<compile_context>
chip_gen: v7x
topology: tpu7x:2x2x1
jax: 0.10.0
libtpu: 0.0.40
codegen_flags: <defaults>
</compile_context>

<pallas_src>
import functools
import jax
import jax.numpy as jnp
from jax.experimental import pallas as pl
from jax.experimental.pallas import tpu as pltpu

_VMEM_LIMIT = 32 * 1024 * 1024  # scoped VMEM budget (safe on v5e/v6e/v7x)


# --------------------------------------------------------------------------
# helpers
# --------------------------------------------------------------------------
def _cdiv(a, b):
    return -(-a // b)


def _round_up(a, m):
    return _cdiv(a, m) * m


def _pick_tile(dim, target, quantum):
    """Largest tile <= target that divides dim and is a multiple of quantum,
    else the full dim (full-extent blocks are always legal).  Used for the
    weight dims (N, K) which are 128-multiples at real model sizes."""
    if dim <= target:
        return dim
    t = target
    while t >= quantum:
        if dim % t == 0:
            return t
        t //= 2
    return dim


def _row_tiles(M, target, quantum):
    """Row (M) tiling that never falls back to one giant block: pick ~target-
    sized tiles and return (tm, padded_M).  Callers zero-pad M up to padded_M."""
    nblk = max(1, _cdiv(M, target))
    tm = _round_up(_cdiv(M, nblk), quantum)
    return tm, tm * nblk


def _erf(x):
    # Abramowitz & Stegun 7.1.26 (|err| <= 1.5e-7): matches PyTorch's exact
    # erf-based nn.GELU to ~f32 precision; the divide goes to the EUP slot.
    a1, a2, a3, a4, a5 = 0.254829592, -0.284496736, 1.421413741, -1.453152027, 1.061405429
    p = 0.3275911
    sgn = jnp.where(x >= 0.0, 1.0, -1.0)
    z = jnp.abs(x)
    t = pl.reciprocal(1.0 + p * z, approx=True)
    poly = ((((a5 * t + a4) * t + a3) * t + a2) * t + a1) * t
    return sgn * (1.0 - poly * jnp.exp(-z * z))


def _gelu_exact(x):
    return 0.5 * x * (1.0 + _erf(x * 0.7071067811865476))


# --------------------------------------------------------------------------
# fused matmul kernel:  out = act(LN?(a) @ b [* scale] + shift) [+ residual]
# --------------------------------------------------------------------------
def _make_matmul_kernel(*, has_ln, ln_eps, has_scale, has_res, activation):
    def kernel(*refs):
        it = iter(refs)
        a_ref = next(it)
        b_ref = next(it)
        g_ref = next(it) if has_ln else None
        be_ref = next(it) if has_ln else None
        scale_ref = next(it) if has_scale else None
        shift_ref = next(it)
        res_ref = next(it) if has_res else None
        o_ref = next(it)
        acc_ref = next(it)

        @pl.when(pl.program_id(2) == 0)
        def _():
            acc_ref[...] = jnp.zeros_like(acc_ref)

        a = a_ref[...]
        if has_ln:
            # LayerNorm fused into the matmul prologue (whole K in one block).
            a = a.astype(jnp.float32)
            mu = jnp.mean(a, axis=-1, keepdims=True)
            ac = a - mu
            var = jnp.mean(ac * ac, axis=-1, keepdims=True)
            a = (ac * jax.lax.rsqrt(var + ln_eps) * g_ref[...]
                 + be_ref[...]).astype(jnp.bfloat16)
        acc_ref[...] += jnp.dot(a, b_ref[...],
                                preferred_element_type=jnp.float32)

        @pl.when(pl.program_id(2) == pl.num_programs(2) - 1)
        def _():
            acc = acc_ref[...]
            if has_scale:
                acc = acc * scale_ref[...]
            acc = acc + shift_ref[...]
            if activation == "relu":
                acc = jnp.maximum(acc, 0.0)
            elif activation == "gelu":
                acc = _gelu_exact(acc)
            if has_res:
                acc = acc + res_ref[...]          # fused residual add
            o_ref[...] = acc.astype(o_ref.dtype)

    return kernel


def pallas_matmul(a, b, shift, *, scale=None, ln=None, ln_eps=1e-6,
                  residual=None, activation=None, out_dtype=jnp.float32,
                  tm=256, tn=512, tk=1024):
    """a:(M,K), b:(K,N) pre-transposed bf16, shift/scale:(1,N) f32,
    ln=(gamma, beta) each (1,K) f32 -> LayerNorm fused before the dot,
    residual:(M,N) f32 added in the epilogue."""
    M, K = a.shape
    K2, N = b.shape
    assert K == K2
    tn = _pick_tile(N, tn, 128)
    if ln is not None:
        tk = K                         # LN needs the whole feature dim per block
    else:
        tk = _pick_tile(K, tk, 128)
        a = a.astype(jnp.bfloat16)     # MXU operand; LN path casts in-kernel
    tm, Mp = _row_tiles(M, tm, 16)     # bf16 sublane quantum
    if Mp != M:
        a = jnp.pad(a, ((0, Mp - M), (0, 0)))
        if residual is not None:
            residual = jnp.pad(residual, ((0, Mp - M), (0, 0)))
    grid = (Mp // tm, N // tn, K // tk)

    in_specs = [pl.BlockSpec((tm, tk), lambda i, j, k: (i, k)),
                pl.BlockSpec((tk, tn), lambda i, j, k: (k, j))]
    operands = [a, b.astype(jnp.bfloat16)]
    if ln is not None:
        in_specs += [pl.BlockSpec((1, tk), lambda i, j, k: (0, k)),
                     pl.BlockSpec((1, tk), lambda i, j, k: (0, k))]
        operands += [ln[0], ln[1]]
    if scale is not None:
        in_specs.append(pl.BlockSpec((1, tn), lambda i, j, k: (0, j)))
        operands.append(scale)
    in_specs.append(pl.BlockSpec((1, tn), lambda i, j, k: (0, j)))
    operands.append(shift)
    if residual is not None:
        in_specs.append(pl.BlockSpec((tm, tn), lambda i, j, k: (i, j)))
        operands.append(residual.astype(jnp.float32))

    kernel = _make_matmul_kernel(has_ln=ln is not None, ln_eps=ln_eps,
                                 has_scale=scale is not None,
                                 has_res=residual is not None,
                                 activation=activation)
    out = pl.pallas_call(
        kernel,
        out_shape=jax.ShapeDtypeStruct((Mp, N), out_dtype),
        grid=grid,
        in_specs=in_specs,
        out_specs=pl.BlockSpec((tm, tn), lambda i, j, k: (i, j)),
        scratch_shapes=[pltpu.VMEM((tm, tn), jnp.float32)],
        compiler_params=pltpu.CompilerParams(
            dimension_semantics=("parallel", "parallel", "arbitrary"),
            vmem_limit_bytes=_VMEM_LIMIT),
    )(*operands)
    return out if Mp == M else out[:M]


# --------------------------------------------------------------------------
# standalone LayerNorm (final encoder LN and decoder norm)
# --------------------------------------------------------------------------
def _ln_kernel(eps, x_ref, g_ref, b_ref, o_ref):
    x = x_ref[...].astype(jnp.float32)
    mu = jnp.mean(x, axis=-1, keepdims=True)
    xc = x - mu
    var = jnp.mean(xc * xc, axis=-1, keepdims=True)
    y = xc * jax.lax.rsqrt(var + eps) * g_ref[...] + b_ref[...]
    o_ref[...] = y.astype(o_ref.dtype)


def pallas_layernorm(x2d, gamma, beta, eps, out_dtype=jnp.float32, tm=512):
    M, C = x2d.shape
    tm, Mp = _row_tiles(M, tm, 8)
    if Mp != M:
        x2d = jnp.pad(x2d, ((0, Mp - M), (0, 0)))
    kernel = functools.partial(_ln_kernel, eps)
    out = pl.pallas_call(
        kernel,
        out_shape=jax.ShapeDtypeStruct((Mp, C), out_dtype),
        grid=(Mp // tm,),
        in_specs=[
            pl.BlockSpec((tm, C), lambda i: (i, 0)),
            pl.BlockSpec((1, C), lambda i: (0, 0)),
            pl.BlockSpec((1, C), lambda i: (0, 0)),
        ],
        out_specs=pl.BlockSpec((tm, C), lambda i: (i, 0)),
        compiler_params=pltpu.CompilerParams(
            dimension_semantics=("parallel",)),
    )(x2d, gamma, beta)
    return out if Mp == M else out[:M]


# --------------------------------------------------------------------------
# attention: takes the packed (B, T, 3C) QKV projection directly
# --------------------------------------------------------------------------
def _attn_kernel(heads, C, qkv_ref, o_ref):
    Dh = C // heads
    x = qkv_ref[0]                                   # (T, 3C) bf16 in VMEM
    for h in range(heads):
        q = x[:, h * Dh:(h + 1) * Dh]
        k = x[:, C + h * Dh:C + (h + 1) * Dh]
        v = x[:, 2 * C + h * Dh:2 * C + (h + 1) * Dh]
        s = jax.lax.dot_general(q, k, (((1,), (1,)), ((), ())),
                                preferred_element_type=jnp.float32)
        m = jnp.max(s, axis=-1, keepdims=True)
        p = jnp.exp(s - m)
        inv = pl.reciprocal(jnp.sum(p, axis=-1, keepdims=True), approx=True)
        oh = jnp.dot((p * inv).astype(v.dtype), v,
                     preferred_element_type=jnp.float32)
        # per-head slice store into the VMEM output block; HBM writeback stays
        # one lane-dense (T, C) slab and no head result is kept live past here.
        o_ref[0, :, h * Dh:(h + 1) * Dh] = oh.astype(o_ref.dtype)


def pallas_attention(qkv, heads):
    """qkv: (B, T, 3C) bf16 (q-scale folded into the projection weights);
    returns (B, T, C) bf16.  QKV lane-slicing happens in VMEM, not HBM."""
    # TODO(synk): flash-style query/KV tiling (online-softmax m/l/acc scratch)
    # and a second parallel grid axis (query tiles / heads) so long sequences
    # fit v7x's 64 MiB VMEM and both v7x TensorCores have work at B==1.
    # TODO(synk): batch the per-head QK^T through one (heads, T, Dh) dot_general
    # to raise MXU utilization when Dh << MXU width.
    B, T, C3 = qkv.shape
    C = C3 // 3
    kernel = functools.partial(_attn_kernel, heads, C)
    return pl.pallas_call(
        kernel,
        out_shape=jax.ShapeDtypeStruct((B, T, C), jnp.bfloat16),
        grid=(B,),
        in_specs=[pl.BlockSpec((1, T, C3), lambda b: (b, 0, 0))],
        out_specs=pl.BlockSpec((1, T, C), lambda b: (b, 0, 0)),
        compiler_params=pltpu.CompilerParams(
            dimension_semantics=("parallel",),
            vmem_limit_bytes=_VMEM_LIMIT),
    )(qkv)


# --------------------------------------------------------------------------
# decoder 3x3 conv + folded BN + ReLU (NHWC), bf16 output
# --------------------------------------------------------------------------
def _conv3x3_kernel(x_ref, w_ref, scale_ref, shift_ref, o_ref):
    _, Hp2, Wp2, Cin = x_ref.shape
    H, W = Hp2 - 2, Wp2 - 2
    Cout = o_ref.shape[-1]
    x = x_ref[0]
    w = w_ref[...]                         # (3, 3, Cin, Cout) bf16
    acc = jnp.zeros((H * W, Cout), jnp.float32)
    for dh in range(3):
        xr = x[dh:dh + H, :, :]            # hoisted row slab: 3 copies, not 9
        for dw in range(3):
            xt = xr[:, dw:dw + W, :].reshape(H * W, Cin)
            acc = acc + jnp.dot(xt, w[dh, dw],
                                preferred_element_type=jnp.float32)
    acc = jnp.maximum(acc * scale_ref[...] + shift_ref[...], 0.0)
    o_ref[0] = acc.reshape(H, W, Cout).astype(o_ref.dtype)


def conv3x3_bn_relu_nhwc(x, p):
    """Conv2d(k=3, pad=1, bias=False) + BatchNorm(eval) + ReLU, NHWC, bf16 out."""
    # TODO(synk): row-tile with a 2-row halo (manual DMA / pl.Element rows) and
    # tile Cout so large decoder resolutions fit v5e's 16 MiB scoped budget and
    # v7x's 64 MiB physical VMEM; whole-image blocks are fine at these sizes.
    # TODO(synk): realize the dw shift with pltpu.roll (XLU slot) instead of the
    # per-tap slice+reshape copy.
    N, H, W, Cin = x.shape
    Cout = p["w"].shape[-1]
    xp = jnp.pad(x, ((0, 0), (1, 1), (1, 1), (0, 0))).astype(jnp.bfloat16)
    return pl.pallas_call(
        _conv3x3_kernel,
        out_shape=jax.ShapeDtypeStruct((N, H, W, Cout), jnp.bfloat16),
        grid=(N,),
        in_specs=[
            pl.BlockSpec((1, H + 2, W + 2, Cin), lambda n: (n, 0, 0, 0)),
            pl.BlockSpec((3, 3, Cin, Cout), lambda n: (0, 0, 0, 0)),
            pl.BlockSpec((1, Cout), lambda n: (0, 0)),
            pl.BlockSpec((1, Cout), lambda n: (0, 0)),
        ],
        out_specs=pl.BlockSpec((1, H, W, Cout), lambda n: (n, 0, 0, 0)),
        compiler_params=pltpu.CompilerParams(
            dimension_semantics=("parallel",),
            vmem_limit_bytes=_VMEM_LIMIT),
    )(xp, p["w"], p["scale"], p["shift"])


# --------------------------------------------------------------------------
# JAX glue (layout plumbing only)
# --------------------------------------------------------------------------
def _bilinear_matrix(in_size, scale):
    """Dense (out, in) interpolation matrix, align_corners=False."""
    out_size = in_size * scale
    i = jnp.arange(out_size, dtype=jnp.float32)
    src = jnp.clip((i + 0.5) / scale - 0.5, 0.0, in_size - 1.0)
    i0 = jnp.floor(src).astype(jnp.int32)
    i1 = jnp.minimum(i0 + 1, in_size - 1)
    w1 = src - i0.astype(jnp.float32)
    w0 = 1.0 - w1
    return (w0[:, None] * jax.nn.one_hot(i0, in_size, dtype=jnp.float32)
            + w1[:, None] * jax.nn.one_hot(i1, in_size, dtype=jnp.float32))


def bilinear_upsample_nhwc(x, scale):
    """Bilinear upsample as two small interpolation matmuls (MXU) on the bf16
    decoder stream — replaces the f32 gather/lerp path (largest HBM traffic)."""
    N, H, W, C = x.shape
    R = _bilinear_matrix(H, scale)      # (Ho, H)
    Cm = _bilinear_matrix(W, scale)     # (Wo, W)
    y = jnp.einsum("oh,nhwc->nowc", R, x)
    y = jnp.einsum("pw,nowc->nopc", Cm, y)
    return y.astype(jnp.bfloat16)


def multihead_attention_block(xs2d, lp, heads, B, T, C):
    """Pre-LN self-attention block with LN1 fused into the QKV matmul prologue
    and the residual add fused into the out-projection epilogue."""
    qkv = pallas_matmul(xs2d, lp["in_w"], lp["in_b"],
                        ln=(lp["ln1_g"], lp["ln1_b"]), ln_eps=1e-6,
                        out_dtype=jnp.bfloat16)               # (B*T, 3C)
    o = pallas_attention(qkv.reshape(B, T, 3 * C), heads)     # (B, T, C) bf16
    return pallas_matmul(o.reshape(B * T, C), lp["out_w"], lp["out_b"],
                         residual=xs2d)


def setr_pup_forward(x, kp, cfg):
    """_SetR_PUP.forward (aux_output=False, eval): ViT encoder -> _SETRUPHead decoder."""
    N, Cin, H, W = x.shape
    ps, hid, heads = cfg["patch_size"], cfg["hidden"], cfg["heads"]
    Hp, Wp = H // ps, W // ps

    # ---- encoder: patch embedding (Conv2d k=ps, stride=ps) as a matmul ----
    xp = (x.reshape(N, Cin, Hp, ps, Wp, ps)
           .transpose(0, 2, 4, 1, 3, 5)
           .reshape(N * Hp * Wp, Cin * ps * ps))
    tok = pallas_matmul(xp, kp["patch_w"], kp["patch_b"]).reshape(N, Hp * Wp, hid)

    cls = jnp.broadcast_to(kp["cls_token"], (N, 1, hid))
    xs = jnp.concatenate([cls, tok], axis=1) + kp["pos_emb"]
    T = xs.shape[1]
    xs2d = xs.reshape(N * T, hid)        # f32 residual stream, kept 2-D

    # ---- encoder: pre-LN transformer blocks (torchvision ViT, LN eps=1e-6) ----
    for lp in kp["layers"]:
        xs2d = multihead_attention_block(xs2d, lp, heads, N, T, hid)
        h1 = pallas_matmul(xs2d, lp["mlp_w1"], lp["mlp_b1"],
                           ln=(lp["ln2_g"], lp["ln2_b"]), ln_eps=1e-6,
                           activation="gelu", out_dtype=jnp.bfloat16)
        xs2d = pallas_matmul(h1, lp["mlp_w2"], lp["mlp_b2"], residual=xs2d)

    xs2d = pallas_layernorm(xs2d, kp["lnf_g"], kp["lnf_b"], 1e-6)
    xs = xs2d.reshape(N, T, hid)

    # drop class token; tokens are already (Hp, Wp) row-major -> NHWC feature map
    feat = xs[:, 1:, :].reshape(N, Hp, Wp, hid)

    # ---- decoder: _SETRUPHead (NHWC, bf16 stream; LN over channels, eps=1e-5) ----
    t = pallas_layernorm(feat.reshape(N * Hp * Wp, hid),
                         kp["dec_norm_g"], kp["dec_norm_b"], 1e-5,
                         out_dtype=jnp.bfloat16)
    xdec = t.reshape(N, Hp, Wp, hid)
    for up in kp["up_convs"]:
        xdec = conv3x3_bn_relu_nhwc(xdec, up)
        xdec = bilinear_upsample_nhwc(xdec, cfg["up_scale"])

    # Dropout2d: eval mode -> identity.  cls_seg (1x1 conv) == matmul over channels.
    n2, h2, w2, c2 = xdec.shape
    ncls = kp["cls_w"].shape[-1]
    out = pallas_matmul(xdec.reshape(n2 * h2 * w2, c2), kp["cls_w"], kp["cls_b"])
    return out.reshape(n2, h2, w2, ncls).transpose(0, 3, 1, 2)   # NCHW output


# --------------------------------------------------------------------------
# Deterministic parameter init (PyTorch layouts) + one-time kernel-side relayout
# --------------------------------------------------------------------------
def init_params(key, cfg):
    hid, mlp = cfg["hidden"], cfg["mlp"]
    ps, cin = cfg["patch_size"], cfg["in_chans"]
    ncls, dch = cfg["num_classes"], cfg["decoder_channels"]
    Hp = cfg["image_size"] // ps
    T = Hp * Hp + 1
    keys = iter(jax.random.split(key, 256))

    def nrm(shape, s=0.02):
        return s * jax.random.normal(next(keys), shape, dtype=jnp.float32)

    p = dict(
        patch_w=nrm((hid, cin, ps, ps)), patch_b=nrm((hid,)),
        cls_token=nrm((1, 1, hid)), pos_emb=nrm((1, T, hid)),
        lnf_g=jnp.ones((hid,), jnp.float32) + nrm((hid,), 0.01),
        lnf_b=nrm((hid,), 0.01),
        dec_norm_g=jnp.ones((hid,), jnp.float32) + nrm((hid,), 0.01),
        dec_norm_b=nrm((hid,), 0.01),
        cls_w=nrm((ncls, dch, 1, 1)), cls_b=nrm((ncls,)),
    )
    p["layers"] = []
    for _ in range(cfg["layers"]):
        p["layers"].append(dict(
            ln1_g=jnp.ones((hid,), jnp.float32) + nrm((hid,), 0.01),
            ln1_b=nrm((hid,), 0.01),
            in_w=nrm((3 * hid, hid)), in_b=nrm((3 * hid,)),
            out_w=nrm((hid, hid)), out_b=nrm((hid,)),
            ln2_g=jnp.ones((hid,), jnp.float32) + nrm((hid,), 0.01),
            ln2_b=nrm((hid,), 0.01),
            mlp_w1=nrm((mlp, hid)), mlp_b1=nrm((mlp,)),
            mlp_w2=nrm((hid, mlp)), mlp_b2=nrm((hid,)),
        ))
    p["up_convs"] = []
    ch_in = hid
    for _ in range(cfg["num_convs"]):
        p["up_convs"].append(dict(
            w=nrm((dch, ch_in, 3, 3)),
            gamma=jnp.ones((dch,), jnp.float32) + nrm((dch,), 0.01),
            beta=nrm((dch,), 0.01),
            mean=nrm((dch,), 0.01),
            var=jnp.ones((dch,), jnp.float32) + jnp.abs(nrm((dch,), 0.01)),
        ))
        ch_in = dch
    return p


def prepare_params(p, cfg, bn_eps=1e-5):
    """One-time relayout: transpose weights to (K, N) and cast to bf16, fold the
    attention 1/sqrt(Dh) scale into the QKV projection, fold BN running stats
    into per-channel scale/shift, and pre-shape LN params / biases as (1, N) f32."""
    hid, heads = cfg["hidden"], cfg["heads"]
    Dh = hid // heads
    qscale = 1.0 / (Dh ** 0.5)
    bf, f32 = jnp.bfloat16, jnp.float32
    row = lambda v: v.reshape(1, -1).astype(f32)

    kp = dict(
        patch_w=p["patch_w"].reshape(hid, -1).T.astype(bf),
        patch_b=row(p["patch_b"]),
        cls_token=p["cls_token"].astype(f32),
        pos_emb=p["pos_emb"].astype(f32),
        lnf_g=row(p["lnf_g"]), lnf_b=row(p["lnf_b"]),
        dec_norm_g=row(p["dec_norm_g"]), dec_norm_b=row(p["dec_norm_b"]),
        cls_w=p["cls_w"].reshape(p["cls_w"].shape[0], -1).T.astype(bf),
        cls_b=row(p["cls_b"]),
        layers=[], up_convs=[],
    )
    qmask = jnp.concatenate([jnp.full((hid,), qscale, f32),
                             jnp.ones((2 * hid,), f32)])
    for lp in p["layers"]:
        kp["layers"].append(dict(
            ln1_g=row(lp["ln1_g"]), ln1_b=row(lp["ln1_b"]),
            in_w=(lp["in_w"] * qmask[:, None]).T.astype(bf),
            in_b=row(lp["in_b"] * qmask),
            out_w=lp["out_w"].T.astype(bf), out_b=row(lp["out_b"]),
            ln2_g=row(lp["ln2_g"]), ln2_b=row(lp["ln2_b"]),
            mlp_w1=lp["mlp_w1"].T.astype(bf), mlp_b1=row(lp["mlp_b1"]),
            mlp_w2=lp["mlp_w2"].T.astype(bf), mlp_b2=row(lp["mlp_b2"]),
        ))
    for up in p["up_convs"]:
        s = up["gamma"] / jnp.sqrt(up["var"] + bn_eps)
        kp["up_convs"].append(dict(
            w=up["w"].transpose(2, 3, 1, 0).astype(bf),      # (kh, kw, Cin, Cout)
            scale=row(s),
            shift=row(up["beta"] - up["mean"] * s),
        ))
    return kp


if __name__ == "__main__":
    cfg = dict(
        image_size=16, patch_size=4, in_chans=3,
        hidden=32, heads=2, layers=2, mlp=64,
        num_classes=3, decoder_channels=16, num_convs=2, up_scale=2,
    )
    raw = init_params(jax.random.PRNGKey(0), cfg)
    params = prepare_params(raw, cfg)
    x = jax.random.normal(jax.random.PRNGKey(0), (2, 3, 16, 16), dtype=jnp.float32)

    fwd = jax.jit(functools.partial(setr_pup_forward, cfg=cfg))
    out = jax.block_until_ready(fwd(x, params))

    # spatial: 16/4 = 4 patches per side, upsampled 2x per up_conv (2 convs) -> 16
    assert out.shape == (2, cfg["num_classes"], 16, 16), out.shape
    assert jnp.all(jnp.isfinite(out))
    print("KERNEL_OK")
</pallas_src>

<mosaic_0001>
module attributes {stable_mosaic.version = 11 : i64} {
  func.func @kernel(%arg0: i32, %arg1: i32, %arg2: i32, %arg3: memref<32x48xbf16, #tpu.memory_space<vmem>>, %arg4: memref<48x32xbf16, #tpu.memory_space<vmem>>, %arg5: memref<1x32xf32, #tpu.memory_space<vmem>>, %arg6: memref<32x32xf32, #tpu.memory_space<vmem>>, %arg7: memref<32x32xf32, #tpu.memory_space<vmem>>) attributes {dimension_semantics = [#tpu.dimension_semantics<parallel>, #tpu.dimension_semantics<parallel>, #tpu.dimension_semantics<arbitrary>], iteration_bounds = array<i64: 1, 1, 1>, scalar_prefetch = 0 : i64, scratch_operands = 1 : i64, tpu.core_type = #tpu.core_type<tc>, window_params = [{transform_indices = @transform_0, window_bounds = array<i64: 32, 48>}, {transform_indices = @transform_1, window_bounds = array<i64: 48, 32>}, {transform_indices = @transform_2, window_bounds = array<i64: 1, 32>}, {transform_indices = @transform_3, window_bounds = array<i64: 32, 32>}]} {
    %c0_i32 = arith.constant 0 : i32
    %0 = arith.cmpi eq, %arg2, %c0_i32 : i32
    %1 = arith.extui %0 : i1 to i32
    %c0_i32_0 = arith.constant 0 : i32
    %2 = arith.cmpi ne, %1, %c0_i32_0 : i32
    scf.if %2 {
      %cst_10 = arith.constant 0.000000e+00 : f32
      %12 = vector.broadcast %cst_10 : f32 to vector<32x32xf32>
      %c0_11 = arith.constant 0 : index
      %c0_12 = arith.constant 0 : index
      %13 = vector.load %arg7[%c0_11, %c0_12] : memref<32x32xf32, #tpu.memory_space<vmem>>, vector<32x32xf32>
      tpu.vector_store %arg7[%c0_11, %c0_12], %12 {strides = array<i32>} : memref<32x32xf32, #tpu.memory_space<vmem>>, vector<32x32xf32>,
    } else {
    }
    %c0 = arith.constant 0 : index
    %c0_1 = arith.constant 0 : index
    %3 = vector.load %arg3[%c0, %c0_1] : memref<32x48xbf16, #tpu.memory_space<vmem>>, vector<32x48xbf16>
    %c0_2 = arith.constant 0 : index
    %c0_3 = arith.constant 0 : index
    %4 = vector.load %arg7[%c0_2, %c0_3] : memref<32x32xf32, #tpu.memory_space<vmem>>, vector<32x32xf32>
    %c0_4 = arith.constant 0 : index
    %c0_5 = arith.constant 0 : index
    %5 = vector.load %arg4[%c0_4, %c0_5] : memref<48x32xbf16, #tpu.memory_space<vmem>>, vector<48x32xbf16>
    %cst = arith.constant dense<0.000000e+00> : vector<32x32xf32>
    %6 = tpu.matmul %3, %5, %cst {dimension_numbers = #tpu.dot_dimension_numbers<[1], [0], [0], [1], [0, 0, 1, 1], [], []>} : vector<32x48xbf16>, vector<48x32xbf16>, vector<32x32xf32> -> vector<32x32xf32>
    %7 = arith.addf %4, %6 : vector<32x32xf32>
    %c0_6 = arith.constant 0 : index
    %c0_7 = arith.constant 0 : index
    %8 = vector.load %arg7[%c0_6, %c0_7] : memref<32x32xf32, #tpu.memory_space<vmem>>, vector<32x32xf32>
    tpu.vector_store %arg7[%c0_6, %c0_7], %7 {strides = array<i32>} : memref<32x32xf32, #tpu.memory_space<vmem>>, vector<32x32xf32>,
    %c0_i32_8 = arith.constant 0 : i32
    %9 = arith.cmpi eq, %arg2, %c0_i32_8 : i32
    %10 = arith.extui %9 : i1 to i32
    %c0_i32_9 = arith.constant 0 : i32
    %11 = arith.cmpi ne, %10, %c0_i32_9 : i32
    scf.if %11 {
      %c0_10 = arith.constant 0 : index
      %c0_11 = arith.constant 0 : index
      %12 = vector.load %arg7[%c0_10, %c0_11] : memref<32x32xf32, #tpu.memory_space<vmem>>, vector<32x32xf32>
      %c0_12 = arith.constant 0 : index
      %c0_13 = arith.constant 0 : index
      %13 = vector.load %arg5[%c0_12, %c0_13] : memref<1x32xf32, #tpu.memory_space<vmem>>, vector<1x32xf32>
      %14 = vector.broadcast %13 : vector<1x32xf32> to vector<32x32xf32>
      %15 = arith.addf %12, %14 : vector<32x32xf32>
      %c0_14 = arith.constant 0 : index
      %c0_15 = arith.constant 0 : index
      %16 = vector.load %arg6[%c0_14, %c0_15] : memref<32x32xf32, #tpu.memory_space<vmem>>, vector<32x32xf32>
      tpu.vector_store %arg6[%c0_14, %c0_15], %15 {strides = array<i32>} : memref<32x32xf32, #tpu.memory_space<vmem>>, vector<32x32xf32>,
    } else {
    }
    return
  }
  func.func @transform_0(%arg0: i32, %arg1: i32, %arg2: i32) -> (i32, i32) {
    %c0_i32 = arith.constant 0 : i32
    return %arg0, %arg2 : i32, i32
  }
  func.func @transform_1(%arg0: i32, %arg1: i32, %arg2: i32) -> (i32, i32) {
    %c0_i32 = arith.constant 0 : i32
    return %arg2, %arg1 : i32, i32
  }
  func.func @transform_2(%arg0: i32, %arg1: i32, %arg2: i32) -> (i32, i32) {
    %c0_i32 = arith.constant 0 : i32
    %c0_i32_0 = arith.constant 0 : i32
    return %c0_i32, %arg1 : i32, i32
  }
  func.func @transform_3(%arg0: i32, %arg1: i32, %arg2: i32) -> (i32, i32) {
    %c0_i32 = arith.constant 0 : i32
    return %arg0, %arg1 : i32, i32
  }
}

module attributes {stable_mosaic.version = 11 : i64} {
  func.func @kernel(%arg0: i32, %arg1: i32, %arg2: i32, %arg3: memref<48x32xf32, #tpu.memory_space<vmem>>, %arg4: memref<32x96xbf16, #tpu.memory_space<vmem>>, %arg5: memref<1x32xf32, #tpu.memory_space<vmem>>, %arg6: memref<1x32xf32, #tpu.memory_space<vmem>>, %arg7: memref<1x96xf32, #tpu.memory_space<vmem>>, %arg8: memref<48x96xbf16, #tpu.memory_space<vmem>>, %arg9: memref<48x96xf32, #tpu.memory_space<vmem>>) attributes {dimension_semantics = [#tpu.dimension_semantics<parallel>, #tpu.dimension_semantics<parallel>, #tpu.dimension_semantics<arbitrary>], iteration_bounds = array<i64: 1, 1, 1>, scalar_prefetch = 0 : i64, scratch_operands = 1 : i64, tpu.core_type = #tpu.core_type<tc>, window_params = [{transform_indices = @transform_0, window_bounds = array<i64: 48, 32>}, {transform_indices = @transform_1, window_bounds = array<i64: 32, 96>}, {transform_indices = @transform_2, window_bounds = array<i64: 1, 32>}, {transform_indices = @transform_3, window_bounds = array<i64: 1, 32>}, {transform_indices = @transform_4, window_bounds = array<i64: 1, 96>}, {transform_indices = @transform_5, window_bounds = array<i64: 48, 96>}]} {
    %c0_i32 = arith.constant 0 : i32
    %0 = arith.cmpi eq, %arg2, %c0_i32 : i32
    %1 = arith.extui %0 : i1 to i32
    %c0_i32_0 = arith.constant 0 : i32
    %2 = arith.cmpi ne, %1, %c0_i32_0 : i32
    scf.if %2 {
      %cst_19 = arith.constant 0.000000e+00 : f32
      %35 = vector.broadcast %cst_19 : f32 to vector<48x96xf32>
      %c0_20 = arith.constant 0 : index
      %c0_21 = arith.constant 0 : index
      %36 = vector.load %arg9[%c0_20, %c0_21] : memref<48x96xf32, #tpu.memory_space<vmem>>, vector<48x96xf32>
      tpu.vector_store %arg9[%c0_20, %c0_21], %35 {strides = array<i32>} : memref<48x96xf32, #tpu.memory_space<vmem>>, vector<48x96xf32>,
    } else {
    }
    %c0 = arith.constant 0 : index
    %c0_1 = arith.constant 0 : index
    %3 = vector.load %arg3[%c0, %c0_1] : memref<48x32xf32, #tpu.memory_space<vmem>>, vector<48x32xf32>
    %cst = arith.constant dense<0.000000e+00> : vector<48xf32>
    %4 = vector.multi_reduction <add>, %3, %cst [1] : vector<48x32xf32> to vector<48xf32>
    %5 = vector.shape_cast %4 : vector<48xf32> to vector<48x1xf32>
    %cst_2 = arith.constant 3.200000e+01 : f32
    %6 = vector.broadcast %cst_2 : f32 to vector<48x1xf32>
    %7 = arith.divf %5, %6 : vector<48x1xf32>
    %8 = vector.broadcast %7 : vector<48x1xf32> to vector<48x32xf32>
    %9 = arith.subf %3, %8 : vector<48x32xf32>
    %10 = arith.mulf %9, %9 : vector<48x32xf32>
    %cst_3 = arith.constant dense<0.000000e+00> : vector<48xf32>
    %11 = vector.multi_reduction <add>, %10, %cst_3 [1] : vector<48x32xf32> to vector<48xf32>
    %12 = vector.shape_cast %11 : vector<48xf32> to vector<48x1xf32>
    %cst_4 = arith.constant 3.200000e+01 : f32
    %13 = vector.broadcast %cst_4 : f32 to vector<48x1xf32>
    %14 = arith.divf %12, %13 : vector<48x1xf32>
    %cst_5 = arith.constant 9.99999997E-7 : f32
    %15 = vector.broadcast %cst_5 : f32 to vector<48x1xf32>
    %16 = arith.addf %14, %15 : vector<48x1xf32>
    %17 = math.rsqrt %16 : vector<48x1xf32>
    %18 = vector.broadcast %17 : vector<48x1xf32> to vector<48x32xf32>
    %19 = arith.mulf %9, %18 : vector<48x32xf32>
    %c0_6 = arith.constant 0 : index
    %c0_7 = arith.constant 0 : index
    %20 = vector.load %arg5[%c0_6, %c0_7] : memref<1x32xf32, #tpu.memory_space<vmem>>, vector<1x32xf32>
    %21 = vector.broadcast %20 : vector<1x32xf32> to vector<48x32xf32>
    %22 = arith.mulf %19, %21 : vector<48x32xf32>
    %c0_8 = arith.constant 0 : index
    %c0_9 = arith.constant 0 : index
    %23 = vector.load %arg6[%c0_8, %c0_9] : memref<1x32xf32, #tpu.memory_space<vmem>>, vector<1x32xf32>
    %24 = vector.broadcast %23 : vector<1x32xf32> to vector<48x32xf32>
    %25 = arith.addf %22, %24 : vector<48x32xf32>
    %26 = arith.truncf %25 : vector<48x32xf32> to vector<48x32xbf16>
    %c0_10 = arith.constant 0 : index
    %c0_11 = arith.constant 0 : index
    %27 = vector.load %arg9[%c0_10, %c0_11] : memref<48x96xf32, #tpu.memory_space<vmem>>, vector<48x96xf32>
    %c0_12 = arith.constant 0 : index
    %c0_13 = arith.constant 0 : index
    %28 = vector.load %arg4[%c0_12, %c0_13] : memref<32x96xbf16, #tpu.memory_space<vmem>>, vector<32x96xbf16>
    %cst_14 = arith.constant dense<0.000000e+00> : vector<48x96xf32>
    %29 = tpu.matmul %26, %28, %cst_14 {dimension_numbers = #tpu.dot_dimension_numbers<[1], [0], [0], [1], [0, 0, 1, 1], [], []>} : vector<48x32xbf16>, vector<32x96xbf16>, vector<48x96xf32> -> vector<48x96xf32>
    %30 = arith.addf %27, %29 : vector<48x96xf32>
    %c0_15 = arith.constant 0 : index
    %c0_16 = arith.constant 0 : index
    %31 = vector.load %arg9[%c0_15, %c0_16] : memref<48x96xf32, #tpu.memory_space<vmem>>, vector<48x96xf32>
    tpu.vector_store %arg9[%c0_15, %c0_16], %30 {strides = array<i32>} : memref<48x96xf32, #tpu.memory_space<vmem>>, vector<48x96xf32>,
    %c0_i32_17 = arith.constant 0 : i32
    %32 = arith.cmpi eq, %arg2, %c0_i32_17 : i32
    %33 = arith.extui %32 : i1 to i32
    %c0_i32_18 = arith.constant 0 : i32
    %34 = arith.cmpi ne, %33, %c0_i32_18 : i32
    scf.if %34 {
      %c0_19 = arith.constant 0 : index
      %c0_20 = arith.constant 0 : index
      %35 = vector.load %arg9[%c0_19, %c0_20] : memref<48x96xf32, #tpu.memory_space<vmem>>, vector<48x96xf32>
      %c0_21 = arith.constant 0 : index
      %c0_22 = arith.constant 0 : index
      %36 = vector.load %arg7[%c0_21, %c0_22] : memref<1x96xf32, #tpu.memory_space<vmem>>, vector<1x96xf32>
      %37 = vector.broadcast %36 : vector<1x96xf32> to vector<48x96xf32>
      %38 = arith.addf %35, %37 : vector<48x96xf32>
      %39 = arith.truncf %38 : vector<48x96xf32> to vector<48x96xbf16>
      %c0_23 = arith.constant 0 : index
      %c0_24 = arith.constant 0 : index
      %40 = vector.load %arg8[%c0_23, %c0_24] : memref<48x96xbf16, #tpu.memory_space<vmem>>, vector<48x96xbf16>
      tpu.vector_store %arg8[%c0_23, %c0_24], %39 {strides = array<i32>} : memref<48x96xbf16, #tpu.memory_space<vmem>>, vector<48x96xbf16>,
    } else {
    }
    return
  }
  func.func @transform_0(%arg0: i32, %arg1: i32, %arg2: i32) -> (i32, i32) {
    %c0_i32 = arith.constant 0 : i32
    return %arg0, %arg2 : i32, i32
  }
  func.func @transform_1(%arg0: i32, %arg1: i32, %arg2: i32) -> (i32, i32) {
    %c0_i32 = arith.constant 0 : i32
    return %arg2, %arg1 : i32, i32
  }
  func.func @transform_2(%arg0: i32, %arg1: i32, %arg2: i32) -> (i32, i32) {
    %c0_i32 = arith.constant 0 : i32
    %c0_i32_0 = arith.constant 0 : i32
    return %c0_i32, %arg2 : i32, i32
  }
  func.func @transform_3(%arg0: i32, %arg1: i32, %arg2: i32) -> (i32, i32) {
    %c0_i32 = arith.constant 0 : i32
    %c0_i32_0 = arith.constant 0 : i32
    return %c0_i32, %arg2 : i32, i32
  }
  func.func @transform_4(%arg0: i32, %arg1: i32, %arg2: i32) -> (i32, i32) {
    %c0_i32 = arith.constant 0 : i32
    %c0_i32_0 = arith.constant 0 : i32
    return %c0_i32, %arg1 : i32, i32
  }
  func.func @transform_5(%arg0: i32, %arg1: i32, %arg2: i32) -> (i32, i32) {
    %c0_i32 = arith.constant 0 : i32
    return %arg0, %arg1 : i32, i32
  }
}

module attributes {stable_mosaic.version = 11 : i64} {
  func.func @kernel(%arg0: i32, %arg1: i32, %arg2: i32, %arg3: memref<48x32xbf16, #tpu.memory_space<vmem>>, %arg4: memref<32x32xbf16, #tpu.memory_space<vmem>>, %arg5: memref<1x32xf32, #tpu.memory_space<vmem>>, %arg6: memref<48x32xf32, #tpu.memory_space<vmem>>, %arg7: memref<48x32xf32, #tpu.memory_space<vmem>>, %arg8: memref<48x32xf32, #tpu.memory_space<vmem>>) attributes {dimension_semantics = [#tpu.dimension_semantics<parallel>, #tpu.dimension_semantics<parallel>, #tpu.dimension_semantics<arbitrary>], iteration_bounds = array<i64: 1, 1, 1>, scalar_prefetch = 0 : i64, scratch_operands = 1 : i64, tpu.core_type = #tpu.core_type<tc>, window_params = [{transform_indices = @transform_0, window_bounds = array<i64: 48, 32>}, {transform_indices = @transform_1, window_bounds = array<i64: 32, 32>}, {transform_indices = @transform_2, window_bounds = array<i64: 1, 32>}, {transform_indices = @transform_3, window_bounds = array<i64: 48, 32>}, {transform_indices = @transform_4, window_bounds = array<i64: 48, 32>}]} {
    %c0_i32 = arith.constant 0 : i32
    %0 = arith.cmpi eq, %arg2, %c0_i32 : i32
    %1 = arith.extui %0 : i1 to i32
    %c0_i32_0 = arith.constant 0 : i32
    %2 = arith.cmpi ne, %1, %c0_i32_0 : i32
    scf.if %2 {
      %cst_10 = arith.constant 0.000000e+00 : f32
      %12 = vector.broadcast %cst_10 : f32 to vector<48x32xf32>
      %c0_11 = arith.constant 0 : index
      %c0_12 = arith.constant 0 : index
      %13 = vector.load %arg8[%c0_11, %c0_12] : memref<48x32xf32, #tpu.memory_space<vmem>>, vector<48x32xf32>
      tpu.vector_store %arg8[%c0_11, %c0_12], %12 {strides = array<i32>} : memref<48x32xf32, #tpu.memory_space<vmem>>, vector<48x32xf32>,
    } else {
    }
    %c0 = arith.constant 0 : index
    %c0_1 = arith.constant 0 : index
    %3 = vector.load %arg3[%c0, %c0_1] : memref<48x32xbf16, #tpu.memory_space<vmem>>, vector<48x32xbf16>
    %c0_2 = arith.constant 0 : index
    %c0_3 = arith.constant 0 : index
    %4 = vector.load %arg8[%c0_2, %c0_3] : memref<48x32xf32, #tpu.memory_space<vmem>>, vector<48x32xf32>
    %c0_4 = arith.constant 0 : index
    %c0_5 = arith.constant 0 : index
    %5 = vector.load %arg4[%c0_4, %c0_5] : memref<32x32xbf16, #tpu.memory_space<vmem>>, vector<32x32xbf16>
    %cst = arith.constant dense<0.000000e+00> : vector<48x32xf32>
    %6 = tpu.matmul %3, %5, %cst {dimension_numbers = #tpu.dot_dimension_numbers<[1], [0], [0], [1], [0, 0, 1, 1], [], []>} : vector<48x32xbf16>, vector<32x32xbf16>, vector<48x32xf32> -> vector<48x32xf32>
    %7 = arith.addf %4, %6 : vector<48x32xf32>
    %c0_6 = arith.constant 0 : index
    %c0_7 = arith.constant 0 : index
    %8 = vector.load %arg8[%c0_6, %c0_7] : memref<48x32xf32, #tpu.memory_space<vmem>>, vector<48x32xf32>
    tpu.vector_store %arg8[%c0_6, %c0_7], %7 {strides = array<i32>} : memref<48x32xf32, #tpu.memory_space<vmem>>, vector<48x32xf32>,
    %c0_i32_8 = arith.constant 0 : i32
    %9 = arith.cmpi eq, %arg2, %c0_i32_8 : i32
    %10 = arith.extui %9 : i1 to i32
    %c0_i32_9 = arith.constant 0 : i32
    %11 = arith.cmpi ne, %10, %c0_i32_9 : i32
    scf.if %11 {
      %c0_10 = arith.constant 0 : index
      %c0_11 = arith.constant 0 : index
      %12 = vector.load %arg8[%c0_10, %c0_11] : memref<48x32xf32, #tpu.memory_space<vmem>>, vector<48x32xf32>
      %c0_12 = arith.constant 0 : index
      %c0_13 = arith.constant 0 : index
      %13 = vector.load %arg5[%c0_12, %c0_13] : memref<1x32xf32, #tpu.memory_space<vmem>>, vector<1x32xf32>
      %14 = vector.broadcast %13 : vector<1x32xf32> to vector<48x32xf32>
      %15 = arith.addf %12, %14 : vector<48x32xf32>
      %c0_14 = arith.constant 0 : index
      %c0_15 = arith.constant 0 : index
      %16 = vector.load %arg6[%c0_14, %c0_15] : memref<48x32xf32, #tpu.memory_space<vmem>>, vector<48x32xf32>
      %17 = arith.addf %15, %16 : vector<48x32xf32>
      %c0_16 = arith.constant 0 : index
      %c0_17 = arith.constant 0 : index
      %18 = vector.load %arg7[%c0_16, %c0_17] : memref<48x32xf32, #tpu.memory_space<vmem>>, vector<48x32xf32>
      tpu.vector_store %arg7[%c0_16, %c0_17], %17 {strides = array<i32>} : memref<48x32xf32, #tpu.memory_space<vmem>>, vector<48x32xf32>,
    } else {
    }
    return
  }
  func.func @transform_0(%arg0: i32, %arg1: i32, %arg2: i32) -> (i32, i32) {
    %c0_i32 = arith.constant 0 : i32
    return %arg0, %arg2 : i32, i32
  }
  func.func @transform_1(%arg0: i32, %arg1: i32, %arg2: i32) -> (i32, i32) {
    %c0_i32 = arith.constant 0 : i32
    return %arg2, %arg1 : i32, i32
  }
  func.func @transform_2(%arg0: i32, %arg1: i32, %arg2: i32) -> (i32, i32) {
    %c0_i32 = arith.constant 0 : i32
    %c0_i32_0 = arith.constant 0 : i32
    return %c0_i32, %arg1 : i32, i32
  }
  func.func @transform_3(%arg0: i32, %arg1: i32, %arg2: i32) -> (i32, i32) {
    %c0_i32 = arith.constant 0 : i32
    return %arg0, %arg1 : i32, i32
  }
  func.func @transform_4(%arg0: i32, %arg1: i32, %arg2: i32) -> (i32, i32) {
    %c0_i32 = arith.constant 0 : i32
    return %arg0, %arg1 : i32, i32
  }
}

module attributes {stable_mosaic.version = 11 : i64} {
  func.func @_attn_kernel(%arg0: i32, %arg1: memref<1x17x96xbf16, #tpu.memory_space<vmem>>, %arg2: memref<1x17x32xbf16, #tpu.memory_space<vmem>>) attributes {dimension_semantics = [#tpu.dimension_semantics<parallel>], iteration_bounds = array<i64: 2>, scalar_prefetch = 0 : i64, scratch_operands = 0 : i64, tpu.core_type = #tpu.core_type<tc>, window_params = [{transform_indices = @transform_0, window_bounds = array<i64: 1, 17, 96>}, {transform_indices = @transform_1, window_bounds = array<i64: 1, 17, 32>}]} {
    %c0 = arith.constant 0 : index
    %c0_0 = arith.constant 0 : index
    %c0_1 = arith.constant 0 : index
    %0 = vector.load %arg1[%c0, %c0_0, %c0_1] : memref<1x17x96xbf16, #tpu.memory_space<vmem>>, vector<1x17x96xbf16>
    %1 = vector.shape_cast %0 : vector<1x17x96xbf16> to vector<17x96xbf16>
    %2 = vector.extract_strided_slice %1 {offsets = [0, 0], sizes = [17, 16], strides = [1, 1]} : vector<17x96xbf16> to vector<17x16xbf16>
    %3 = vector.extract_strided_slice %1 {offsets = [0, 32], sizes = [17, 16], strides = [1, 1]} : vector<17x96xbf16> to vector<17x16xbf16>
    %4 = vector.extract_strided_slice %1 {offsets = [0, 64], sizes = [17, 16], strides = [1, 1]} : vector<17x96xbf16> to vector<17x16xbf16>
    %cst = arith.constant dense<0.000000e+00> : vector<17x17xf32>
    %5 = tpu.matmul %2, %3, %cst {dimension_numbers = #tpu.dot_dimension_numbers<[1], [1], [0], [0], [0, 0, 1, 0], [], []>} : vector<17x16xbf16>, vector<17x16xbf16>, vector<17x17xf32> -> vector<17x17xf32>
    %cst_2 = arith.constant dense<0xFF800000> : vector<17xf32>
    %6 = vector.multi_reduction <maximumf>, %5, %cst_2 [1] : vector<17x17xf32> to vector<17xf32>
    %7 = vector.shape_cast %6 : vector<17xf32> to vector<17x1xf32>
    %8 = vector.broadcast %7 : vector<17x1xf32> to vector<17x17xf32>
    %9 = arith.subf %5, %8 : vector<17x17xf32>
    %10 = math.exp %9 : vector<17x17xf32>
    %cst_3 = arith.constant dense<0.000000e+00> : vector<17xf32>
    %11 = vector.multi_reduction <add>, %10, %cst_3 [1] : vector<17x17xf32> to vector<17xf32>
    %12 = vector.shape_cast %11 : vector<17xf32> to vector<17x1xf32>
    %13 = tpu.reciprocal %12 {approx = true} : vector<17x1xf32> -> vector<17x1xf32>
    %14 = vector.broadcast %13 : vector<17x1xf32> to vector<17x17xf32>
    %15 = arith.mulf %10, %14 : vector<17x17xf32>
    %16 = arith.truncf %15 : vector<17x17xf32> to vector<17x17xbf16>
    %cst_4 = arith.constant dense<0.000000e+00> : vector<17x16xf32>
    %17 = tpu.matmul %16, %4, %cst_4 {dimension_numbers = #tpu.dot_dimension_numbers<[1], [0], [0], [1], [0, 0, 1, 1], [], []>} : vector<17x17xbf16>, vector<17x16xbf16>, vector<17x16xf32> -> vector<17x16xf32>
    %18 = arith.truncf %17 : vector<17x16xf32> to vector<17x16xbf16>
    %c0_5 = arith.constant 0 : index
    %c0_6 = arith.constant 0 : index
    %c0_7 = arith.constant 0 : index
    %19 = vector.load %arg2[%c0_5, %c0_6, %c0_7] : memref<1x17x32xbf16, #tpu.memory_space<vmem>>, vector<1x17x16xbf16>
    %20 = vector.shape_cast %19 : vector<1x17x16xbf16> to vector<17x16xbf16>
    %21 = vector.shape_cast %18 : vector<17x16xbf16> to vector<1x17x16xbf16>
    tpu.vector_store %arg2[%c0_5, %c0_6, %c0_7], %21 {strides = array<i32>} : memref<1x17x32xbf16, #tpu.memory_space<vmem>>, vector<1x17x16xbf16>,
    %22 = vector.extract_strided_slice %1 {offsets = [0, 16], sizes = [17, 16], strides = [1, 1]} : vector<17x96xbf16> to vector<17x16xbf16>
    %23 = vector.extract_strided_slice %1 {offsets = [0, 48], sizes = [17, 16], strides = [1, 1]} : vector<17x96xbf16> to vector<17x16xbf16>
    %24 = vector.extract_strided_slice %1 {offsets = [0, 80], sizes = [17, 16], strides = [1, 1]} : vector<17x96xbf16> to vector<17x16xbf16>
    %cst_8 = arith.constant dense<0.000000e+00> : vector<17x17xf32>
    %25 = tpu.matmul %22, %23, %cst_8 {dimension_numbers = #tpu.dot_dimension_numbers<[1], [1], [0], [0], [0, 0, 1, 0], [], []>} : vector<17x16xbf16>, vector<17x16xbf16>, vector<17x17xf32> -> vector<17x17xf32>
    %cst_9 = arith.constant dense<0xFF800000> : vector<17xf32>
    %26 = vector.multi_reduction <maximumf>, %25, %cst_9 [1] : vector<17x17xf32> to vector<17xf32>
    %27 = vector.shape_cast %26 : vector<17xf32> to vector<17x1xf32>
    %28 = vector.broadcast %27 : vector<17x1xf32> to vector<17x17xf32>
    %29 = arith.subf %25, %28 : vector<17x17xf32>
    %30 = math.exp %29 : vector<17x17xf32>
    %cst_10 = arith.constant dense<0.000000e+00> : vector<17xf32>
    %31 = vector.multi_reduction <add>, %30, %cst_10 [1] : vector<17x17xf32> to vector<17xf32>
    %32 = vector.shape_cast %31 : vector<17xf32> to vector<17x1xf32>
    %33 = tpu.reciprocal %32 {approx = true} : vector<17x1xf32> -> vector<17x1xf32>
    %34 = vector.broadcast %33 : vector<17x1xf32> to vector<17x17xf32>
    %35 = arith.mulf %30, %34 : vector<17x17xf32>
    %36 = arith.truncf %35 : vector<17x17xf32> to vector<17x17xbf16>
    %cst_11 = arith.constant dense<0.000000e+00> : vector<17x16xf32>
    %37 = tpu.matmul %36, %24, %cst_11 {dimension_numbers = #tpu.dot_dimension_numbers<[1], [0], [0], [1], [0, 0, 1, 1], [], []>} : vector<17x17xbf16>, vector<17x16xbf16>, vector<17x16xf32> -> vector<17x16xf32>
    %38 = arith.truncf %37 : vector<17x16xf32> to vector<17x16xbf16>
    %c0_12 = arith.constant 0 : index
    %c0_13 = arith.constant 0 : index
    %c16 = arith.constant 16 : index
    %39 = vector.load %arg2[%c0_12, %c0_13, %c16] : memref<1x17x32xbf16, #tpu.memory_space<vmem>>, vector<1x17x16xbf16>
    %40 = vector.shape_cast %39 : vector<1x17x16xbf16> to vector<17x16xbf16>
    %41 = vector.shape_cast %38 : vector<17x16xbf16> to vector<1x17x16xbf16>
    tpu.vector_store %arg2[%c0_12, %c0_13, %c16], %41 {strides = array<i32>} : memref<1x17x32xbf16, #tpu.memory_space<vmem>>, vector<1x17x16xbf16>,
    return
  }
  func.func @transform_0(%arg0: i32) -> (i32, i32, i32) {
    %c0_i32 = arith.constant 0 : i32
    %c0_i32_0 = arith.constant 0 : i32
    %c0_i32_1 = arith.constant 0 : i32
    return %arg0, %c0_i32, %c0_i32_0 : i32, i32, i32
  }
  func.func @transform_1(%arg0: i32) -> (i32, i32, i32) {
    %c0_i32 = arith.constant 0 : i32
    %c0_i32_0 = arith.constant 0 : i32
    %c0_i32_1 = arith.constant 0 : i32
    return %arg0, %c0_i32, %c0_i32_0 : i32, i32, i32
  }
}

module attributes {stable_mosaic.version = 11 : i64} {
  func.func @kernel(%arg0: i32, %arg1: i32, %arg2: i32, %arg3: memref<48x64xbf16, #tpu.memory_space<vmem>>, %arg4: memref<64x32xbf16, #tpu.memory_space<vmem>>, %arg5: memref<1x32xf32, #tpu.memory_space<vmem>>, %arg6: memref<48x32xf32, #tpu.memory_space<vmem>>, %arg7: memref<48x32xf32, #tpu.memory_space<vmem>>, %arg8: memref<48x32xf32, #tpu.memory_space<vmem>>) attributes {dimension_semantics = [#tpu.dimension_semantics<parallel>, #tpu.dimension_semantics<parallel>, #tpu.dimension_semantics<arbitrary>], iteration_bounds = array<i64: 1, 1, 1>, scalar_prefetch = 0 : i64, scratch_operands = 1 : i64, tpu.core_type = #tpu.core_type<tc>, window_params = [{transform_indices = @transform_0, window_bounds = array<i64: 48, 64>}, {transform_indices = @transform_1, window_bounds = array<i64: 64, 32>}, {transform_indices = @transform_2, window_bounds = array<i64: 1, 32>}, {transform_indices = @transform_3, window_bounds = array<i64: 48, 32>}, {transform_indices = @transform_4, window_bounds = array<i64: 48, 32>}]} {
    %c0_i32 = arith.constant 0 : i32
    %0 = arith.cmpi eq, %arg2, %c0_i32 : i32
    %1 = arith.extui %0 : i1 to i32
    %c0_i32_0 = arith.constant 0 : i32
    %2 = arith.cmpi ne, %1, %c0_i32_0 : i32
    scf.if %2 {
      %cst_10 = arith.constant 0.000000e+00 : f32
      %12 = vector.broadcast %cst_10 : f32 to vector<48x32xf32>
      %c0_11 = arith.constant 0 : index
      %c0_12 = arith.constant 0 : index
      %13 = vector.load %arg8[%c0_11, %c0_12] : memref<48x32xf32, #tpu.memory_space<vmem>>, vector<48x32xf32>
      tpu.vector_store %arg8[%c0_11, %c0_12], %12 {strides = array<i32>} : memref<48x32xf32, #tpu.memory_space<vmem>>, vector<48x32xf32>,
    } else {
    }
    %c0 = arith.constant 0 : index
    %c0_1 = arith.constant 0 : index
    %3 = vector.load %arg3[%c0, %c0_1] : memref<48x64xbf16, #tpu.memory_space<vmem>>, vector<48x64xbf16>
    %c0_2 = arith.constant 0 : index
    %c0_3 = arith.constant 0 : index
    %4 = vector.load %arg8[%c0_2, %c0_3] : memref<48x32xf32, #tpu.memory_space<vmem>>, vector<48x32xf32>
    %c0_4 = arith.constant 0 : index
    %c0_5 = arith.constant 0 : index
    %5 = vector.load %arg4[%c0_4, %c0_5] : memref<64x32xbf16, #tpu.memory_space<vmem>>, vector<64x32xbf16>
    %cst = arith.constant dense<0.000000e+00> : vector<48x32xf32>
    %6 = tpu.matmul %3, %5, %cst {dimension_numbers = #tpu.dot_dimension_numbers<[1], [0], [0], [1], [0, 0, 1, 1], [], []>} : vector<48x64xbf16>, vector<64x32xbf16>, vector<48x32xf32> -> vector<48x32xf32>
    %7 = arith.addf %4, %6 : vector<48x32xf32>
    %c0_6 = arith.constant 0 : index
    %c0_7 = arith.constant 0 : index
    %8 = vector.load %arg8[%c0_6, %c0_7] : memref<48x32xf32, #tpu.memory_space<vmem>>, vector<48x32xf32>
    tpu.vector_store %arg8[%c0_6, %c0_7], %7 {strides = array<i32>} : memref<48x32xf32, #tpu.memory_space<vmem>>, vector<48x32xf32>,
    %c0_i32_8 = arith.constant 0 : i32
    %9 = arith.cmpi eq, %arg2, %c0_i32_8 : i32
    %10 = arith.extui %9 : i1 to i32
    %c0_i32_9 = arith.constant 0 : i32
    %11 = arith.cmpi ne, %10, %c0_i32_9 : i32
    scf.if %11 {
      %c0_10 = arith.constant 0 : index
      %c0_11 = arith.constant 0 : index
      %12 = vector.load %arg8[%c0_10, %c0_11] : memref<48x32xf32, #tpu.memory_space<vmem>>, vector<48x32xf32>
      %c0_12 = arith.constant 0 : index
      %c0_13 = arith.constant 0 : index
      %13 = vector.load %arg5[%c0_12, %c0_13] : memref<1x32xf32, #tpu.memory_space<vmem>>, vector<1x32xf32>
      %14 = vector.broadcast %13 : vector<1x32xf32> to vector<48x32xf32>
      %15 = arith.addf %12, %14 : vector<48x32xf32>
      %c0_14 = arith.constant 0 : index
      %c0_15 = arith.constant 0 : index
      %16 = vector.load %arg6[%c0_14, %c0_15] : memref<48x32xf32, #tpu.memory_space<vmem>>, vector<48x32xf32>
      %17 = arith.addf %15, %16 : vector<48x32xf32>
      %c0_16 = arith.constant 0 : index
      %c0_17 = arith.constant 0 : index
      %18 = vector.load %arg7[%c0_16, %c0_17] : memref<48x32xf32, #tpu.memory_space<vmem>>, vector<48x32xf32>
      tpu.vector_store %arg7[%c0_16, %c0_17], %17 {strides = array<i32>} : memref<48x32xf32, #tpu.memory_space<vmem>>, vector<48x32xf32>,
    } else {
    }
    return
  }
  func.func @transform_0(%arg0: i32, %arg1: i32, %arg2: i32) -> (i32, i32) {
    %c0_i32 = arith.constant 0 : i32
    return %arg0, %arg2 : i32, i32
  }
  func.func @transform_1(%arg0: i32, %arg1: i32, %arg2: i32) -> (i32, i32) {
    %c0_i32 = arith.constant 0 : i32
    return %arg2, %arg1 : i32, i32
  }
  func.func @transform_2(%arg0: i32, %arg1: i32, %arg2: i32) -> (i32, i32) {
    %c0_i32 = arith.constant 0 : i32
    %c0_i32_0 = arith.constant 0 : i32
    return %c0_i32, %arg1 : i32, i32
  }
  func.func @transform_3(%arg0: i32, %arg1: i32, %arg2: i32) -> (i32, i32) {
    %c0_i32 = arith.constant 0 : i32
    return %arg0, %arg1 : i32, i32
  }
  func.func @transform_4(%arg0: i32, %arg1: i32, %arg2: i32) -> (i32, i32) {
    %c0_i32 = arith.constant 0 : i32
    return %arg0, %arg1 : i32, i32
  }
}

module attributes {stable_mosaic.version = 11 : i64} {
  func.func @_ln_kernel(%arg0: i32, %arg1: memref<40x32xf32, #tpu.memory_space<vmem>>, %arg2: memref<1x32xf32, #tpu.memory_space<vmem>>, %arg3: memref<1x32xf32, #tpu.memory_space<vmem>>, %arg4: memref<40x32xf32, #tpu.memory_space<vmem>>) attributes {dimension_semantics = [#tpu.dimension_semantics<parallel>], iteration_bounds = array<i64: 1>, scalar_prefetch = 0 : i64, scratch_operands = 0 : i64, tpu.core_type = #tpu.core_type<tc>, window_params = [{transform_indices = @transform_0, window_bounds = array<i64: 40, 32>}, {pipeline_mode = #tpu.pipeline_mode<synchronous>, transform_indices = @transform_1, window_bounds = array<i64: 1, 32>}, {pipeline_mode = #tpu.pipeline_mode<synchronous>, transform_indices = @transform_2, window_bounds = array<i64: 1, 32>}, {transform_indices = @transform_3, window_bounds = array<i64: 40, 32>}]} {
    %c0 = arith.constant 0 : index
    %c0_0 = arith.constant 0 : index
    %0 = vector.load %arg1[%c0, %c0_0] : memref<40x32xf32, #tpu.memory_space<vmem>>, vector<40x32xf32>
    %cst = arith.constant dense<0.000000e+00> : vector<40xf32>
    %1 = vector.multi_reduction <add>, %0, %cst [1] : vector<40x32xf32> to vector<40xf32>
    %2 = vector.shape_cast %1 : vector<40xf32> to vector<40x1xf32>
    %cst_1 = arith.constant 3.200000e+01 : f32
    %3 = vector.broadcast %cst_1 : f32 to vector<40x1xf32>
    %4 = arith.divf %2, %3 : vector<40x1xf32>
    %5 = vector.broadcast %4 : vector<40x1xf32> to vector<40x32xf32>
    %6 = arith.subf %0, %5 : vector<40x32xf32>
    %7 = arith.mulf %6, %6 : vector<40x32xf32>
    %cst_2 = arith.constant dense<0.000000e+00> : vector<40xf32>
    %8 = vector.multi_reduction <add>, %7, %cst_2 [1] : vector<40x32xf32> to vector<40xf32>
    %9 = vector.shape_cast %8 : vector<40xf32> to vector<40x1xf32>
    %cst_3 = arith.constant 3.200000e+01 : f32
    %10 = vector.broadcast %cst_3 : f32 to vector<40x1xf32>
    %11 = arith.divf %9, %10 : vector<40x1xf32>
    %cst_4 = arith.constant 9.99999997E-7 : f32
    %12 = vector.broadcast %cst_4 : f32 to vector<40x1xf32>
    %13 = arith.addf %11, %12 : vector<40x1xf32>
    %14 = math.rsqrt %13 : vector<40x1xf32>
    %15 = vector.broadcast %14 : vector<40x1xf32> to vector<40x32xf32>
    %16 = arith.mulf %6, %15 : vector<40x32xf32>
    %c0_5 = arith.constant 0 : index
    %c0_6 = arith.constant 0 : index
    %17 = vector.load %arg2[%c0_5, %c0_6] : memref<1x32xf32, #tpu.memory_space<vmem>>, vector<1x32xf32>
    %18 = vector.broadcast %17 : vector<1x32xf32> to vector<40x32xf32>
    %19 = arith.mulf %16, %18 : vector<40x32xf32>
    %c0_7 = arith.constant 0 : index
    %c0_8 = arith.constant 0 : index
    %20 = vector.load %arg3[%c0_7, %c0_8] : memref<1x32xf32, #tpu.memory_space<vmem>>, vector<1x32xf32>
    %21 = vector.broadcast %20 : vector<1x32xf32> to vector<40x32xf32>
    %22 = arith.addf %19, %21 : vector<40x32xf32>
    %c0_9 = arith.constant 0 : index
    %c0_10 = arith.constant 0 : index
    %23 = vector.load %arg4[%c0_9, %c0_10] : memref<40x32xf32, #tpu.memory_space<vmem>>, vector<40x32xf32>
    tpu.vector_store %arg4[%c0_9, %c0_10], %22 {strides = array<i32>} : memref<40x32xf32, #tpu.memory_space<vmem>>, vector<40x32xf32>,
    return
  }
  func.func @transform_0(%arg0: i32) -> (i32, i32) {
    %c0_i32 = arith.constant 0 : i32
    %c0_i32_0 = arith.constant 0 : i32
    return %arg0, %c0_i32 : i32, i32
  }
  func.func @transform_1(%arg0: i32) -> (i32, i32) {
    %c0_i32 = arith.constant 0 : i32
    %c0_i32_0 = arith.constant 0 : i32
    %c0_i32_1 = arith.constant 0 : i32
    return %c0_i32, %c0_i32_0 : i32, i32
  }
  func.func @transform_2(%arg0: i32) -> (i32, i32) {
    %c0_i32 = arith.constant 0 : i32
    %c0_i32_0 = arith.constant 0 : i32
    %c0_i32_1 = arith.constant 0 : i32
    return %c0_i32, %c0_i32_0 : i32, i32
  }
  func.func @transform_3(%arg0: i32) -> (i32, i32) {
    %c0_i32 = arith.constant 0 : i32
    %c0_i32_0 = arith.constant 0 : i32
    return %arg0, %c0_i32 : i32, i32
  }
}

module attributes {stable_mosaic.version = 11 : i64} {
  func.func @_ln_kernel(%arg0: i32, %arg1: memref<32x32xf32, #tpu.memory_space<vmem>>, %arg2: memref<1x32xf32, #tpu.memory_space<vmem>>, %arg3: memref<1x32xf32, #tpu.memory_space<vmem>>, %arg4: memref<32x32xbf16, #tpu.memory_space<vmem>>) attributes {dimension_semantics = [#tpu.dimension_semantics<parallel>], iteration_bounds = array<i64: 1>, scalar_prefetch = 0 : i64, scratch_operands = 0 : i64, tpu.core_type = #tpu.core_type<tc>, window_params = [{transform_indices = @transform_0, window_bounds = array<i64: 32, 32>}, {pipeline_mode = #tpu.pipeline_mode<synchronous>, transform_indices = @transform_1, window_bounds = array<i64: 1, 32>}, {pipeline_mode = #tpu.pipeline_mode<synchronous>, transform_indices = @transform_2, window_bounds = array<i64: 1, 32>}, {transform_indices = @transform_3, window_bounds = array<i64: 32, 32>}]} {
    %c0 = arith.constant 0 : index
    %c0_0 = arith.constant 0 : index
    %0 = vector.load %arg1[%c0, %c0_0] : memref<32x32xf32, #tpu.memory_space<vmem>>, vector<32x32xf32>
    %cst = arith.constant dense<0.000000e+00> : vector<32xf32>
    %1 = vector.multi_reduction <add>, %0, %cst [1] : vector<32x32xf32> to vector<32xf32>
    %2 = vector.shape_cast %1 : vector<32xf32> to vector<32x1xf32>
    %cst_1 = arith.constant 3.200000e+01 : f32
    %3 = vector.broadcast %cst_1 : f32 to vector<32x1xf32>
    %4 = arith.divf %2, %3 : vector<32x1xf32>
    %5 = vector.broadcast %4 : vector<32x1xf32> to vector<32x32xf32>
    %6 = arith.subf %0, %5 : vector<32x32xf32>
    %7 = arith.mulf %6, %6 : vector<32x32xf32>
    %cst_2 = arith.constant dense<0.000000e+00> : vector<32xf32>
    %8 = vector.multi_reduction <add>, %7, %cst_2 [1] : vector<32x32xf32> to vector<32xf32>
    %9 = vector.shape_cast %8 : vector<32xf32> to vector<32x1xf32>
    %cst_3 = arith.constant 3.200000e+01 : f32
    %10 = vector.broadcast %cst_3 : f32 to vector<32x1xf32>
    %11 = arith.divf %9, %10 : vector<32x1xf32>
    %cst_4 = arith.constant 9.99999974E-6 : f32
    %12 = vector.broadcast %cst_4 : f32 to vector<32x1xf32>
    %13 = arith.addf %11, %12 : vector<32x1xf32>
    %14 = math.rsqrt %13 : vector<32x1xf32>
    %15 = vector.broadcast %14 : vector<32x1xf32> to vector<32x32xf32>
    %16 = arith.mulf %6, %15 : vector<32x32xf32>
    %c0_5 = arith.constant 0 : index
    %c0_6 = arith.constant 0 : index
    %17 = vector.load %arg2[%c0_5, %c0_6] : memref<1x32xf32, #tpu.memory_space<vmem>>, vector<1x32xf32>
    %18 = vector.broadcast %17 : vector<1x32xf32> to vector<32x32xf32>
    %19 = arith.mulf %16, %18 : vector<32x32xf32>
    %c0_7 = arith.constant 0 : index
    %c0_8 = arith.constant 0 : index
    %20 = vector.load %arg3[%c0_7, %c0_8] : memref<1x32xf32, #tpu.memory_space<vmem>>, vector<1x32xf32>
    %21 = vector.broadcast %20 : vector<1x32xf32> to vector<32x32xf32>
    %22 = arith.addf %19, %21 : vector<32x32xf32>
    %23 = arith.truncf %22 : vector<32x32xf32> to vector<32x32xbf16>
    %c0_9 = arith.constant 0 : index
    %c0_10 = arith.constant 0 : index
    %24 = vector.load %arg4[%c0_9, %c0_10] : memref<32x32xbf16, #tpu.memory_space<vmem>>, vector<32x32xbf16>
    tpu.vector_store %arg4[%c0_9, %c0_10], %23 {strides = array<i32>} : memref<32x32xbf16, #tpu.memory_space<vmem>>, vector<32x32xbf16>,
    return
  }
  func.func @transform_0(%arg0: i32) -> (i32, i32) {
    %c0_i32 = arith.constant 0 : i32
    %c0_i32_0 = arith.constant 0 : i32
    return %arg0, %c0_i32 : i32, i32
  }
  func.func @transform_1(%arg0: i32) -> (i32, i32) {
    %c0_i32 = arith.constant 0 : i32
    %c0_i32_0 = arith.constant 0 : i32
    %c0_i32_1 = arith.constant 0 : i32
    return %c0_i32, %c0_i32_0 : i32, i32
  }
  func.func @transform_2(%arg0: i32) -> (i32, i32) {
    %c0_i32 = arith.constant 0 : i32
    %c0_i32_0 = arith.constant 0 : i32
    %c0_i32_1 = arith.constant 0 : i32
    return %c0_i32, %c0_i32_0 : i32, i32
  }
  func.func @transform_3(%arg0: i32) -> (i32, i32) {
    %c0_i32 = arith.constant 0 : i32
    %c0_i32_0 = arith.constant 0 : i32
    return %arg0, %c0_i32 : i32, i32
  }
}

module attributes {stable_mosaic.version = 11 : i64} {
  func.func @kernel(%arg0: i32, %arg1: i32, %arg2: i32, %arg3: memref<48x32xf32, #tpu.memory_space<vmem>>, %arg4: memref<32x64xbf16, #tpu.memory_space<vmem>>, %arg5: memref<1x32xf32, #tpu.memory_space<vmem>>, %arg6: memref<1x32xf32, #tpu.memory_space<vmem>>, %arg7: memref<1x64xf32, #tpu.memory_space<vmem>>, %arg8: memref<48x64xbf16, #tpu.memory_space<vmem>>, %arg9: memref<48x64xf32, #tpu.memory_space<vmem>>) attributes {dimension_semantics = [#tpu.dimension_semantics<parallel>, #tpu.dimension_semantics<parallel>, #tpu.dimension_semantics<arbitrary>], iteration_bounds = array<i64: 1, 1, 1>, scalar_prefetch = 0 : i64, scratch_operands = 1 : i64, tpu.core_type = #tpu.core_type<tc>, window_params = [{transform_indices = @transform_0, window_bounds = array<i64: 48, 32>}, {transform_indices = @transform_1, window_bounds = array<i64: 32, 64>}, {transform_indices = @transform_2, window_bounds = array<i64: 1, 32>}, {transform_indices = @transform_3, window_bounds = array<i64: 1, 32>}, {transform_indices = @transform_4, window_bounds = array<i64: 1, 64>}, {transform_indices = @transform_5, window_bounds = array<i64: 48, 64>}]} {
    %c0_i32 = arith.constant 0 : i32
    %0 = arith.cmpi eq, %arg2, %c0_i32 : i32
    %1 = arith.extui %0 : i1 to i32
    %c0_i32_0 = arith.constant 0 : i32
    %2 = arith.cmpi ne, %1, %c0_i32_0 : i32
    scf.if %2 {
      %cst_19 = arith.constant 0.000000e+00 : f32
      %35 = vector.broadcast %cst_19 : f32 to vector<48x64xf32>
      %c0_20 = arith.constant 0 : index
      %c0_21 = arith.constant 0 : index
      %36 = vector.load %arg9[%c0_20, %c0_21] : memref<48x64xf32, #tpu.memory_space<vmem>>, vector<48x64xf32>
      tpu.vector_store %arg9[%c0_20, %c0_21], %35 {strides = array<i32>} : memref<48x64xf32, #tpu.memory_space<vmem>>, vector<48x64xf32>,
    } else {
    }
    %c0 = arith.constant 0 : index
    %c0_1 = arith.constant 0 : index
    %3 = vector.load %arg3[%c0, %c0_1] : memref<48x32xf32, #tpu.memory_space<vmem>>, vector<48x32xf32>
    %cst = arith.constant dense<0.000000e+00> : vector<48xf32>
    %4 = vector.multi_reduction <add>, %3, %cst [1] : vector<48x32xf32> to vector<48xf32>
    %5 = vector.shape_cast %4 : vector<48xf32> to vector<48x1xf32>
    %cst_2 = arith.constant 3.200000e+01 : f32
    %6 = vector.broadcast %cst_2 : f32 to vector<48x1xf32>
    %7 = arith.divf %5, %6 : vector<48x1xf32>
    %8 = vector.broadcast %7 : vector<48x1xf32> to vector<48x32xf32>
    %9 = arith.subf %3, %8 : vector<48x32xf32>
    %10 = arith.mulf %9, %9 : vector<48x32xf32>
    %cst_3 = arith.constant dense<0.000000e+00> : vector<48xf32>
    %11 = vector.multi_reduction <add>, %10, %cst_3 [1] : vector<48x32xf32> to vector<48xf32>
    %12 = vector.shape_cast %11 : vector<48xf32> to vector<48x1xf32>
    %cst_4 = arith.constant 3.200000e+01 : f32
    %13 = vector.broadcast %cst_4 : f32 to vector<48x1xf32>
    %14 = arith.divf %12, %13 : vector<48x1xf32>
    %cst_5 = arith.constant 9.99999997E-7 : f32
    %15 = vector.broadcast %cst_5 : f32 to vector<48x1xf32>
    %16 = arith.addf %14, %15 : vector<48x1xf32>
    %17 = math.rsqrt %16 : vector<48x1xf32>
    %18 = vector.broadcast %17 : vector<48x1xf32> to vector<48x32xf32>
    %19 = arith.mulf %9, %18 : vector<48x32xf32>
    %c0_6 = arith.constant 0 : index
    %c0_7 = arith.constant 0 : index
    %20 = vector.load %arg5[%c0_6, %c0_7] : memref<1x32xf32, #tpu.memory_space<vmem>>, vector<1x32xf32>
    %21 = vector.broadcast %20 : vector<1x32xf32> to vector<48x32xf32>
    %22 = arith.mulf %19, %21 : vector<48x32xf32>
    %c0_8 = arith.constant 0 : index
    %c0_9 = arith.constant 0 : index
    %23 = vector.load %arg6[%c0_8, %c0_9] : memref<1x32xf32, #tpu.memory_space<vmem>>, vector<1x32xf32>
    %24 = vector.broadcast %23 : vector<1x32xf32> to vector<48x32xf32>
    %25 = arith.addf %22, %24 : vector<48x32xf32>
    %26 = arith.truncf %25 : vector<48x32xf32> to vector<48x32xbf16>
    %c0_10 = arith.constant 0 : index
    %c0_11 = arith.constant 0 : index
    %27 = vector.load %arg9[%c0_10, %c0_11] : memref<48x64xf32, #tpu.memory_space<vmem>>, vector<48x64xf32>
    %c0_12 = arith.constant 0 : index
    %c0_13 = arith.constant 0 : index
    %28 = vector.load %arg4[%c0_12, %c0_13] : memref<32x64xbf16, #tpu.memory_space<vmem>>, vector<32x64xbf16>
    %cst_14 = arith.constant dense<0.000000e+00> : vector<48x64xf32>
    %29 = tpu.matmul %26, %28, %cst_14 {dimension_numbers = #tpu.dot_dimension_numbers<[1], [0], [0], [1], [0, 0, 1, 1], [], []>} : vector<48x32xbf16>, vector<32x64xbf16>, vector<48x64xf32> -> vector<48x64xf32>
    %30 = arith.addf %27, %29 : vector<48x64xf32>
    %c0_15 = arith.constant 0 : index
    %c0_16 = arith.constant 0 : index
    %31 = vector.load %arg9[%c0_15, %c0_16] : memref<48x64xf32, #tpu.memory_space<vmem>>, vector<48x64xf32>
    tpu.vector_store %arg9[%c0_15, %c0_16], %30 {strides = array<i32>} : memref<48x64xf32, #tpu.memory_space<vmem>>, vector<48x64xf32>,
    %c0_i32_17 = arith.constant 0 : i32
    %32 = arith.cmpi eq, %arg2, %c0_i32_17 : i32
    %33 = arith.extui %32 : i1 to i32
    %c0_i32_18 = arith.constant 0 : i32
    %34 = arith.cmpi ne, %33, %c0_i32_18 : i32
    scf.if %34 {
      %c0_19 = arith.constant 0 : index
      %c0_20 = arith.constant 0 : index
      %35 = vector.load %arg9[%c0_19, %c0_20] : memref<48x64xf32, #tpu.memory_space<vmem>>, vector<48x64xf32>
      %c0_21 = arith.constant 0 : index
      %c0_22 = arith.constant 0 : index
      %36 = vector.load %arg7[%c0_21, %c0_22] : memref<1x64xf32, #tpu.memory_space<vmem>>, vector<1x64xf32>
      %37 = vector.broadcast %36 : vector<1x64xf32> to vector<48x64xf32>
      %38 = arith.addf %35, %37 : vector<48x64xf32>
      %cst_23 = arith.constant 5.000000e-01 : f32
      %39 = vector.broadcast %cst_23 : f32 to vector<48x64xf32>
      %40 = arith.mulf %39, %38 : vector<48x64xf32>
      %cst_24 = arith.constant 0.707106769 : f32
      %41 = vector.broadcast %cst_24 : f32 to vector<48x64xf32>
      %42 = arith.mulf %38, %41 : vector<48x64xf32>
      %cst_25 = arith.constant 0.000000e+00 : f32
      %43 = vector.broadcast %cst_25 : f32 to vector<48x64xf32>
      %44 = arith.cmpf oge, %42, %43 : vector<48x64xf32>
      %cst_26 = arith.constant 1.000000e+00 : f32
      %cst_27 = arith.constant -1.000000e+00 : f32
      %45 = vector.broadcast %cst_26 : f32 to vector<48x64xf32>
      %46 = vector.broadcast %cst_27 : f32 to vector<48x64xf32>
      %47 = arith.select %44, %45, %46 : vector<48x64xi1>, vector<48x64xf32>
      %48 = math.absf %42 : vector<48x64xf32>
      %cst_28 = arith.constant 0.327591091 : f32
      %49 = vector.broadcast %cst_28 : f32 to vector<48x64xf32>
      %50 = arith.mulf %49, %48 : vector<48x64xf32>
      %cst_29 = arith.constant 1.000000e+00 : f32
      %51 = vector.broadcast %cst_29 : f32 to vector<48x64xf32>
      %52 = arith.addf %51, %50 : vector<48x64xf32>
      %53 = tpu.reciprocal %52 {approx = true} : vector<48x64xf32> -> vector<48x64xf32>
      %cst_30 = arith.constant 1.06140542 : f32
      %54 = vector.broadcast %cst_30 : f32 to vector<48x64xf32>
      %55 = arith.mulf %54, %53 : vector<48x64xf32>
      %cst_31 = arith.constant -1.45315206 : f32
      %56 = vector.broadcast %cst_31 : f32 to vector<48x64xf32>
      %57 = arith.addf %55, %56 : vector<48x64xf32>
      %58 = arith.mulf %57, %53 : vector<48x64xf32>
      %cst_32 = arith.constant 1.42141378 : f32
      %59 = vector.broadcast %cst_32 : f32 to vector<48x64xf32>
      %60 = arith.addf %58, %59 : vector<48x64xf32>
      %61 = arith.mulf %60, %53 : vector<48x64xf32>
      %cst_33 = arith.constant -0.284496725 : f32
      %62 = vector.broadcast %cst_33 : f32 to vector<48x64xf32>
      %63 = arith.addf %61, %62 : vector<48x64xf32>
      %64 = arith.mulf %63, %53 : vector<48x64xf32>
      %cst_34 = arith.constant 0.254829586 : f32
      %65 = vector.broadcast %cst_34 : f32 to vector<48x64xf32>
      %66 = arith.addf %64, %65 : vector<48x64xf32>
      %67 = arith.mulf %66, %53 : vector<48x64xf32>
      %cst_35 = arith.constant 0.000000e+00 : f32
      %68 = vector.broadcast %cst_35 : f32 to vector<48x64xf32>
      %69 = arith.subf %68, %48 : vector<48x64xf32>
      %70 = arith.mulf %69, %48 : vector<48x64xf32>
      %71 = math.exp %70 : vector<48x64xf32>
      %72 = arith.mulf %67, %71 : vector<48x64xf32>
      %cst_36 = arith.constant 1.000000e+00 : f32
      %73 = vector.broadcast %cst_36 : f32 to vector<48x64xf32>
      %74 = arith.subf %73, %72 : vector<48x64xf32>
      %75 = arith.mulf %47, %74 : vector<48x64xf32>
      %cst_37 = arith.constant 1.000000e+00 : f32
      %76 = vector.broadcast %cst_37 : f32 to vector<48x64xf32>
      %77 = arith.addf %76, %75 : vector<48x64xf32>
      %78 = arith.mulf %40, %77 : vector<48x64xf32>
      %79 = arith.truncf %78 : vector<48x64xf32> to vector<48x64xbf16>
      %c0_38 = arith.constant 0 : index
      %c0_39 = arith.constant 0 : index
      %80 = vector.load %arg8[%c0_38, %c0_39] : memref<48x64xbf16, #tpu.memory_space<vmem>>, vector<48x64xbf16>
      tpu.vector_store %arg8[%c0_38, %c0_39], %79 {strides = array<i32>} : memref<48x64xbf16, #tpu.memory_space<vmem>>, vector<48x64xbf16>,
    } else {
    }
    return
  }
  func.func @transform_0(%arg0: i32, %arg1: i32, %arg2: i32) -> (i32, i32) {
    %c0_i32 = arith.constant 0 : i32
    return %arg0, %arg2 : i32, i32
  }
  func.func @transform_1(%arg0: i32, %arg1: i32, %arg2: i32) -> (i32, i32) {
    %c0_i32 = arith.constant 0 : i32
    return %arg2, %arg1 : i32, i32
  }
  func.func @transform_2(%arg0: i32, %arg1: i32, %arg2: i32) -> (i32, i32) {
    %c0_i32 = arith.constant 0 : i32
    %c0_i32_0 = arith.constant 0 : i32
    return %c0_i32, %arg2 : i32, i32
  }
  func.func @transform_3(%arg0: i32, %arg1: i32, %arg2: i32) -> (i32, i32) {
    %c0_i32 = arith.constant 0 : i32
    %c0_i32_0 = arith.constant 0 : i32
    return %c0_i32, %arg2 : i32, i32
  }
  func.func @transform_4(%arg0: i32, %arg1: i32, %arg2: i32) -> (i32, i32) {
    %c0_i32 = arith.constant 0 : i32
    %c0_i32_0 = arith.constant 0 : i32
    return %c0_i32, %arg1 : i32, i32
  }
  func.func @transform_5(%arg0: i32, %arg1: i32, %arg2: i32) -> (i32, i32) {
    %c0_i32 = arith.constant 0 : i32
    return %arg0, %arg1 : i32, i32
  }
}

module attributes {stable_mosaic.version = 11 : i64} {
  func.func @_conv3x3_kernel(%arg0: i32, %arg1: memref<1x6x6x32xbf16, #tpu.memory_space<vmem>>, %arg2: memref<3x3x32x16xbf16, #tpu.memory_space<vmem>>, %arg3: memref<1x16xf32, #tpu.memory_space<vmem>>, %arg4: memref<1x16xf32, #tpu.memory_space<vmem>>, %arg5: memref<1x4x4x16xbf16, #tpu.memory_space<vmem>>) attributes {dimension_semantics = [#tpu.dimension_semantics<parallel>], iteration_bounds = array<i64: 2>, scalar_prefetch = 0 : i64, scratch_operands = 0 : i64, tpu.core_type = #tpu.core_type<tc>, window_params = [{transform_indices = @transform_0, window_bounds = array<i64: 1, 6, 6, 32>}, {pipeline_mode = #tpu.pipeline_mode<synchronous>, transform_indices = @transform_1, window_bounds = array<i64: 3, 3, 32, 16>}, {pipeline_mode = #tpu.pipeline_mode<synchronous>, transform_indices = @transform_2, window_bounds = array<i64: 1, 16>}, {pipeline_mode = #tpu.pipeline_mode<synchronous>, transform_indices = @transform_3, window_bounds = array<i64: 1, 16>}, {transform_indices = @transform_4, window_bounds = array<i64: 1, 4, 4, 16>}]} {
    %c0 = arith.constant 0 : index
    %c0_0 = arith.constant 0 : index
    %c0_1 = arith.constant 0 : index
    %c0_2 = arith.constant 0 : index
    %0 = vector.load %arg1[%c0, %c0_0, %c0_1, %c0_2] : memref<1x6x6x32xbf16, #tpu.memory_space<vmem>>, vector<1x6x6x32xbf16>
    %1 = vector.shape_cast %0 : vector<1x6x6x32xbf16> to vector<6x6x32xbf16>
    %c0_3 = arith.constant 0 : index
    %c0_4 = arith.constant 0 : index
    %c0_5 = arith.constant 0 : index
    %c0_6 = arith.constant 0 : index
    %2 = vector.load %arg2[%c0_3, %c0_4, %c0_5, %c0_6] : memref<3x3x32x16xbf16, #tpu.memory_space<vmem>>, vector<3x3x32x16xbf16>
    %cst = arith.constant 0.000000e+00 : f32
    %3 = vector.broadcast %cst : f32 to vector<16x16xf32>
    %4 = vector.extract_strided_slice %1 {offsets = [0, 0, 0], sizes = [4, 6, 32], strides = [1, 1, 1]} : vector<6x6x32xbf16> to vector<4x6x32xbf16>
    %5 = vector.extract_strided_slice %4 {offsets = [0, 0, 0], sizes = [4, 4, 32], strides = [1, 1, 1]} : vector<4x6x32xbf16> to vector<4x4x32xbf16>
    %6 = vector.shape_cast %5 : vector<4x4x32xbf16> to vector<16x32xbf16>
    %7 = vector.extract_strided_slice %2 {offsets = [0, 0, 0, 0], sizes = [1, 1, 32, 16], strides = [1, 1, 1, 1]} : vector<3x3x32x16xbf16> to vector<1x1x32x16xbf16>
    %8 = vector.shape_cast %7 : vector<1x1x32x16xbf16> to vector<32x16xbf16>
    %cst_7 = arith.constant dense<0.000000e+00> : vector<16x16xf32>
    %9 = tpu.matmul %6, %8, %cst_7 {dimension_numbers = #tpu.dot_dimension_numbers<[1], [0], [0], [1], [0, 0, 1, 1], [], []>} : vector<16x32xbf16>, vector<32x16xbf16>, vector<16x16xf32> -> vector<16x16xf32>
    %10 = arith.addf %3, %9 : vector<16x16xf32>
    %11 = vector.extract_strided_slice %4 {offsets = [0, 1, 0], sizes = [4, 4, 32], strides = [1, 1, 1]} : vector<4x6x32xbf16> to vector<4x4x32xbf16>
    %12 = vector.shape_cast %11 : vector<4x4x32xbf16> to vector<16x32xbf16>
    %13 = vector.extract_strided_slice %2 {offsets = [0, 1, 0, 0], sizes = [1, 1, 32, 16], strides = [1, 1, 1, 1]} : vector<3x3x32x16xbf16> to vector<1x1x32x16xbf16>
    %14 = vector.shape_cast %13 : vector<1x1x32x16xbf16> to vector<32x16xbf16>
    %cst_8 = arith.constant dense<0.000000e+00> : vector<16x16xf32>
    %15 = tpu.matmul %12, %14, %cst_8 {dimension_numbers = #tpu.dot_dimension_numbers<[1], [0], [0], [1], [0, 0, 1, 1], [], []>} : vector<16x32xbf16>, vector<32x16xbf16>, vector<16x16xf32> -> vector<16x16xf32>
    %16 = arith.addf %10, %15 : vector<16x16xf32>
    %17 = vector.extract_strided_slice %4 {offsets = [0, 2, 0], sizes = [4, 4, 32], strides = [1, 1, 1]} : vector<4x6x32xbf16> to vector<4x4x32xbf16>
    %18 = vector.shape_cast %17 : vector<4x4x32xbf16> to vector<16x32xbf16>
    %19 = vector.extract_strided_slice %2 {offsets = [0, 2, 0, 0], sizes = [1, 1, 32, 16], strides = [1, 1, 1, 1]} : vector<3x3x32x16xbf16> to vector<1x1x32x16xbf16>
    %20 = vector.shape_cast %19 : vector<1x1x32x16xbf16> to vector<32x16xbf16>
    %cst_9 = arith.constant dense<0.000000e+00> : vector<16x16xf32>
    %21 = tpu.matmul %18, %20, %cst_9 {dimension_numbers = #tpu.dot_dimension_numbers<[1], [0], [0], [1], [0, 0, 1, 1], [], []>} : vector<16x32xbf16>, vector<32x16xbf16>, vector<16x16xf32> -> vector<16x16xf32>
    %22 = arith.addf %16, %21 : vector<16x16xf32>
    %23 = vector.extract_strided_slice %1 {offsets = [1, 0, 0], sizes = [4, 6, 32], strides = [1, 1, 1]} : vector<6x6x32xbf16> to vector<4x6x32xbf16>
    %24 = vector.extract_strided_slice %23 {offsets = [0, 0, 0], sizes = [4, 4, 32], strides = [1, 1, 1]} : vector<4x6x32xbf16> to vector<4x4x32xbf16>
    %25 = vector.shape_cast %24 : vector<4x4x32xbf16> to vector<16x32xbf16>
    %26 = vector.extract_strided_slice %2 {offsets = [1, 0, 0, 0], sizes = [1, 1, 32, 16], strides = [1, 1, 1, 1]} : vector<3x3x32x16xbf16> to vector<1x1x32x16xbf16>
    %27 = vector.shape_cast %26 : vector<1x1x32x16xbf16> to vector<32x16xbf16>
    %cst_10 = arith.constant dense<0.000000e+00> : vector<16x16xf32>
    %28 = tpu.matmul %25, %27, %cst_10 {dimension_numbers = #tpu.dot_dimension_numbers<[1], [0], [0], [1], [0, 0, 1, 1], [], []>} : vector<16x32xbf16>, vector<32x16xbf16>, vector<16x16xf32> -> vector<16x16xf32>
    %29 = arith.addf %22, %28 : vector<16x16xf32>
    %30 = vector.extract_strided_slice %23 {offsets = [0, 1, 0], sizes = [4, 4, 32], strides = [1, 1, 1]} : vector<4x6x32xbf16> to vector<4x4x32xbf16>
    %31 = vector.shape_cast %30 : vector<4x4x32xbf16> to vector<16x32xbf16>
    %32 = vector.extract_strided_slice %2 {offsets = [1, 1, 0, 0], sizes = [1, 1, 32, 16], strides = [1, 1, 1, 1]} : vector<3x3x32x16xbf16> to vector<1x1x32x16xbf16>
    %33 = vector.shape_cast %32 : vector<1x1x32x16xbf16> to vector<32x16xbf16>
    %cst_11 = arith.constant dense<0.000000e+00> : vector<16x16xf32>
    %34 = tpu.matmul %31, %33, %cst_11 {dimension_numbers = #tpu.dot_dimension_numbers<[1], [0], [0], [1], [0, 0, 1, 1], [], []>} : vector<16x32xbf16>, vector<32x16xbf16>, vector<16x16xf32> -> vector<16x16xf32>
    %35 = arith.addf %29, %34 : vector<16x16xf32>
    %36 = vector.extract_strided_slice %23 {offsets = [0, 2, 0], sizes = [4, 4, 32], strides = [1, 1, 1]} : vector<4x6x32xbf16> to vector<4x4x32xbf16>
    %37 = vector.shape_cast %36 : vector<4x4x32xbf16> to vector<16x32xbf16>
    %38 = vector.extract_strided_slice %2 {offsets = [1, 2, 0, 0], sizes = [1, 1, 32, 16], strides = [1, 1, 1, 1]} : vector<3x3x32x16xbf16> to vector<1x1x32x16xbf16>
    %39 = vector.shape_cast %38 : vector<1x1x32x16xbf16> to vector<32x16xbf16>
    %cst_12 = arith.constant dense<0.000000e+00> : vector<16x16xf32>
    %40 = tpu.matmul %37, %39, %cst_12 {dimension_numbers = #tpu.dot_dimension_numbers<[1], [0], [0], [1], [0, 0, 1, 1], [], []>} : vector<16x32xbf16>, vector<32x16xbf16>, vector<16x16xf32> -> vector<16x16xf32>
    %41 = arith.addf %35, %40 : vector<16x16xf32>
    %42 = vector.extract_strided_slice %1 {offsets = [2, 0, 0], sizes = [4, 6, 32], strides = [1, 1, 1]} : vector<6x6x32xbf16> to vector<4x6x32xbf16>
    %43 = vector.extract_strided_slice %42 {offsets = [0, 0, 0], sizes = [4, 4, 32], strides = [1, 1, 1]} : vector<4x6x32xbf16> to vector<4x4x32xbf16>
    %44 = vector.shape_cast %43 : vector<4x4x32xbf16> to vector<16x32xbf16>
    %45 = vector.extract_strided_slice %2 {offsets = [2, 0, 0, 0], sizes = [1, 1, 32, 16], strides = [1, 1, 1, 1]} : vector<3x3x32x16xbf16> to vector<1x1x32x16xbf16>
    %46 = vector.shape_cast %45 : vector<1x1x32x16xbf16> to vector<32x16xbf16>
    %cst_13 = arith.constant dense<0.000000e+00> : vector<16x16xf32>
    %47 = tpu.matmul %44, %46, %cst_13 {dimension_numbers = #tpu.dot_dimension_numbers<[1], [0], [0], [1], [0, 0, 1, 1], [], []>} : vector<16x32xbf16>, vector<32x16xbf16>, vector<16x16xf32> -> vector<16x16xf32>
    %48 = arith.addf %41, %47 : vector<16x16xf32>
    %49 = vector.extract_strided_slice %42 {offsets = [0, 1, 0], sizes = [4, 4, 32], strides = [1, 1, 1]} : vector<4x6x32xbf16> to vector<4x4x32xbf16>
    %50 = vector.shape_cast %49 : vector<4x4x32xbf16> to vector<16x32xbf16>
    %51 = vector.extract_strided_slice %2 {offsets = [2, 1, 0, 0], sizes = [1, 1, 32, 16], strides = [1, 1, 1, 1]} : vector<3x3x32x16xbf16> to vector<1x1x32x16xbf16>
    %52 = vector.shape_cast %51 : vector<1x1x32x16xbf16> to vector<32x16xbf16>
    %cst_14 = arith.constant dense<0.000000e+00> : vector<16x16xf32>
    %53 = tpu.matmul %50, %52, %cst_14 {dimension_numbers = #tpu.dot_dimension_numbers<[1], [0], [0], [1], [0, 0, 1, 1], [], []>} : vector<16x32xbf16>, vector<32x16xbf16>, vector<16x16xf32> -> vector<16x16xf32>
    %54 = arith.addf %48, %53 : vector<16x16xf32>
    %55 = vector.extract_strided_slice %42 {offsets = [0, 2, 0], sizes = [4, 4, 32], strides = [1, 1, 1]} : vector<4x6x32xbf16> to vector<4x4x32xbf16>
    %56 = vector.shape_cast %55 : vector<4x4x32xbf16> to vector<16x32xbf16>
    %57 = vector.extract_strided_slice %2 {offsets = [2, 2, 0, 0], sizes = [1, 1, 32, 16], strides = [1, 1, 1, 1]} : vector<3x3x32x16xbf16> to vector<1x1x32x16xbf16>
    %58 = vector.shape_cast %57 : vector<1x1x32x16xbf16> to vector<32x16xbf16>
    %cst_15 = arith.constant dense<0.000000e+00> : vector<16x16xf32>
    %59 = tpu.matmul %56, %58, %cst_15 {dimension_numbers = #tpu.dot_dimension_numbers<[1], [0], [0], [1], [0, 0, 1, 1], [], []>} : vector<16x32xbf16>, vector<32x16xbf16>, vector<16x16xf32> -> vector<16x16xf32>
    %60 = arith.addf %54, %59 : vector<16x16xf32>
    %c0_16 = arith.constant 0 : index
    %c0_17 = arith.constant 0 : index
    %61 = vector.load %arg3[%c0_16, %c0_17] : memref<1x16xf32, #tpu.memory_space<vmem>>, vector<1x16xf32>
    %62 = vector.broadcast %61 : vector<1x16xf32> to vector<16x16xf32>
    %63 = arith.mulf %60, %62 : vector<16x16xf32>
    %c0_18 = arith.constant 0 : index
    %c0_19 = arith.constant 0 : index
    %64 = vector.load %arg4[%c0_18, %c0_19] : memref<1x16xf32, #tpu.memory_space<vmem>>, vector<1x16xf32>
    %65 = vector.broadcast %64 : vector<1x16xf32> to vector<16x16xf32>
    %66 = arith.addf %63, %65 : vector<16x16xf32>
    %cst_20 = arith.constant 0.000000e+00 : f32
    %67 = vector.broadcast %cst_20 : f32 to vector<16x16xf32>
    %68 = arith.maximumf %66, %67 : vector<16x16xf32>
    %69 = vector.shape_cast %68 : vector<16x16xf32> to vector<4x4x16xf32>
    %70 = arith.truncf %69 : vector<4x4x16xf32> to vector<4x4x16xbf16>
    %c0_21 = arith.constant 0 : index
    %c0_22 = arith.constant 0 : index
    %c0_23 = arith.constant 0 : index
    %c0_24 = arith.constant 0 : index
    %71 = vector.load %arg5[%c0_21, %c0_22, %c0_23, %c0_24] : memref<1x4x4x16xbf16, #tpu.memory_space<vmem>>, vector<1x4x4x16xbf16>
    %72 = vector.shape_cast %71 : vector<1x4x4x16xbf16> to vector<4x4x16xbf16>
    %73 = vector.shape_cast %70 : vector<4x4x16xbf16> to vector<1x4x4x16xbf16>
    tpu.vector_store %arg5[%c0_21, %c0_22, %c0_23, %c0_24], %73 {strides = array<i32>} : memref<1x4x4x16xbf16, #tpu.memory_space<vmem>>, vector<1x4x4x16xbf16>,
    return
  }
  func.func @transform_0(%arg0: i32) -> (i32, i32, i32, i32) {
    %c0_i32 = arith.constant 0 : i32
    %c0_i32_0 = arith.constant 0 : i32
    %c0_i32_1 = arith.constant 0 : i32
    %c0_i32_2 = arith.constant 0 : i32
    return %arg0, %c0_i32, %c0_i32_0, %c0_i32_1 : i32, i32, i32, i32
  }
  func.func @transform_1(%arg0: i32) -> (i32, i32, i32, i32) {
    %c0_i32 = arith.constant 0 : i32
    %c0_i32_0 = arith.constant 0 : i32
    %c0_i32_1 = arith.constant 0 : i32
    %c0_i32_2 = arith.constant 0 : i32
    %c0_i32_3 = arith.constant 0 : i32
    return %c0_i32, %c0_i32_0, %c0_i32_1, %c0_i32_2 : i32, i32, i32, i32
  }
  func.func @transform_2(%arg0: i32) -> (i32, i32) {
    %c0_i32 = arith.constant 0 : i32
    %c0_i32_0 = arith.constant 0 : i32
    %c0_i32_1 = arith.constant 0 : i32
    return %c0_i32, %c0_i32_0 : i32, i32
  }
  func.func @transform_3(%arg0: i32) -> (i32, i32) {
    %c0_i32 = arith.constant 0 : i32
    %c0_i32_0 = arith.constant 0 : i32
    %c0_i32_1 = arith.constant 0 : i32
    return %c0_i32, %c0_i32_0 : i32, i32
  }
  func.func @transform_4(%arg0: i32) -> (i32, i32, i32, i32) {
    %c0_i32 = arith.constant 0 : i32
    %c0_i32_0 = arith.constant 0 : i32
    %c0_i32_1 = arith.constant 0 : i32
    %c0_i32_2 = arith.constant 0 : i32
    return %arg0, %c0_i32, %c0_i32_0, %c0_i32_1 : i32, i32, i32, i32
  }
}

module attributes {stable_mosaic.version = 11 : i64} {
  func.func @_conv3x3_kernel(%arg0: i32, %arg1: memref<1x10x10x16xbf16, #tpu.memory_space<vmem>>, %arg2: memref<3x3x16x16xbf16, #tpu.memory_space<vmem>>, %arg3: memref<1x16xf32, #tpu.memory_space<vmem>>, %arg4: memref<1x16xf32, #tpu.memory_space<vmem>>, %arg5: memref<1x8x8x16xbf16, #tpu.memory_space<vmem>>) attributes {dimension_semantics = [#tpu.dimension_semantics<parallel>], iteration_bounds = array<i64: 2>, scalar_prefetch = 0 : i64, scratch_operands = 0 : i64, tpu.core_type = #tpu.core_type<tc>, window_params = [{transform_indices = @transform_0, window_bounds = array<i64: 1, 10, 10, 16>}, {pipeline_mode = #tpu.pipeline_mode<synchronous>, transform_indices = @transform_1, window_bounds = array<i64: 3, 3, 16, 16>}, {pipeline_mode = #tpu.pipeline_mode<synchronous>, transform_indices = @transform_2, window_bounds = array<i64: 1, 16>}, {pipeline_mode = #tpu.pipeline_mode<synchronous>, transform_indices = @transform_3, window_bounds = array<i64: 1, 16>}, {transform_indices = @transform_4, window_bounds = array<i64: 1, 8, 8, 16>}]} {
    %c0 = arith.constant 0 : index
    %c0_0 = arith.constant 0 : index
    %c0_1 = arith.constant 0 : index
    %c0_2 = arith.constant 0 : index
    %0 = vector.load %arg1[%c0, %c0_0, %c0_1, %c0_2] : memref<1x10x10x16xbf16, #tpu.memory_space<vmem>>, vector<1x10x10x16xbf16>
    %1 = vector.shape_cast %0 : vector<1x10x10x16xbf16> to vector<10x10x16xbf16>
    %c0_3 = arith.constant 0 : index
    %c0_4 = arith.constant 0 : index
    %c0_5 = arith.constant 0 : index
    %c0_6 = arith.constant 0 : index
    %2 = vector.load %arg2[%c0_3, %c0_4, %c0_5, %c0_6] : memref<3x3x16x16xbf16, #tpu.memory_space<vmem>>, vector<3x3x16x16xbf16>
    %cst = arith.constant 0.000000e+00 : f32
    %3 = vector.broadcast %cst : f32 to vector<64x16xf32>
    %4 = vector.extract_strided_slice %1 {offsets = [0, 0, 0], sizes = [8, 10, 16], strides = [1, 1, 1]} : vector<10x10x16xbf16> to vector<8x10x16xbf16>
    %5 = vector.extract_strided_slice %4 {offsets = [0, 0, 0], sizes = [8, 8, 16], strides = [1, 1, 1]} : vector<8x10x16xbf16> to vector<8x8x16xbf16>
    %6 = vector.shape_cast %5 : vector<8x8x16xbf16> to vector<64x16xbf16>
    %7 = vector.extract_strided_slice %2 {offsets = [0, 0, 0, 0], sizes = [1, 1, 16, 16], strides = [1, 1, 1, 1]} : vector<3x3x16x16xbf16> to vector<1x1x16x16xbf16>
    %8 = vector.shape_cast %7 : vector<1x1x16x16xbf16> to vector<16x16xbf16>
    %cst_7 = arith.constant dense<0.000000e+00> : vector<64x16xf32>
    %9 = tpu.matmul %6, %8, %cst_7 {dimension_numbers = #tpu.dot_dimension_numbers<[1], [0], [0], [1], [0, 0, 1, 1], [], []>} : vector<64x16xbf16>, vector<16x16xbf16>, vector<64x16xf32> -> vector<64x16xf32>
    %10 = arith.addf %3, %9 : vector<64x16xf32>
    %11 = vector.extract_strided_slice %4 {offsets = [0, 1, 0], sizes = [8, 8, 16], strides = [1, 1, 1]} : vector<8x10x16xbf16> to vector<8x8x16xbf16>
    %12 = vector.shape_cast %11 : vector<8x8x16xbf16> to vector<64x16xbf16>
    %13 = vector.extract_strided_slice %2 {offsets = [0, 1, 0, 0], sizes = [1, 1, 16, 16], strides = [1, 1, 1, 1]} : vector<3x3x16x16xbf16> to vector<1x1x16x16xbf16>
    %14 = vector.shape_cast %13 : vector<1x1x16x16xbf16> to vector<16x16xbf16>
    %cst_8 = arith.constant dense<0.000000e+00> : vector<64x16xf32>
    %15 = tpu.matmul %12, %14, %cst_8 {dimension_numbers = #tpu.dot_dimension_numbers<[1], [0], [0], [1], [0, 0, 1, 1], [], []>} : vector<64x16xbf16>, vector<16x16xbf16>, vector<64x16xf32> -> vector<64x16xf32>
    %16 = arith.addf %10, %15 : vector<64x16xf32>
    %17 = vector.extract_strided_slice %4 {offsets = [0, 2, 0], sizes = [8, 8, 16], strides = [1, 1, 1]} : vector<8x10x16xbf16> to vector<8x8x16xbf16>
    %18 = vector.shape_cast %17 : vector<8x8x16xbf16> to vector<64x16xbf16>
    %19 = vector.extract_strided_slice %2 {offsets = [0, 2, 0, 0], sizes = [1, 1, 16, 16], strides = [1, 1, 1, 1]} : vector<3x3x16x16xbf16> to vector<1x1x16x16xbf16>
    %20 = vector.shape_cast %19 : vector<1x1x16x16xbf16> to vector<16x16xbf16>
    %cst_9 = arith.constant dense<0.000000e+00> : vector<64x16xf32>
    %21 = tpu.matmul %18, %20, %cst_9 {dimension_numbers = #tpu.dot_dimension_numbers<[1], [0], [0], [1], [0, 0, 1, 1], [], []>} : vector<64x16xbf16>, vector<16x16xbf16>, vector<64x16xf32> -> vector<64x16xf32>
    %22 = arith.addf %16, %21 : vector<64x16xf32>
    %23 = vector.extract_strided_slice %1 {offsets = [1, 0, 0], sizes = [8, 10, 16], strides = [1, 1, 1]} : vector<10x10x16xbf16> to vector<8x10x16xbf16>
    %24 = vector.extract_strided_slice %23 {offsets = [0, 0, 0], sizes = [8, 8, 16], strides = [1, 1, 1]} : vector<8x10x16xbf16> to vector<8x8x16xbf16>
    %25 = vector.shape_cast %24 : vector<8x8x16xbf16> to vector<64x16xbf16>
    %26 = vector.extract_strided_slice %2 {offsets = [1, 0, 0, 0], sizes = [1, 1, 16, 16], strides = [1, 1, 1, 1]} : vector<3x3x16x16xbf16> to vector<1x1x16x16xbf16>
    %27 = vector.shape_cast %26 : vector<1x1x16x16xbf16> to vector<16x16xbf16>
    %cst_10 = arith.constant dense<0.000000e+00> : vector<64x16xf32>
    %28 = tpu.matmul %25, %27, %cst_10 {dimension_numbers = #tpu.dot_dimension_numbers<[1], [0], [0], [1], [0, 0, 1, 1], [], []>} : vector<64x16xbf16>, vector<16x16xbf16>, vector<64x16xf32> -> vector<64x16xf32>
    %29 = arith.addf %22, %28 : vector<64x16xf32>
    %30 = vector.extract_strided_slice %23 {offsets = [0, 1, 0], sizes = [8, 8, 16], strides = [1, 1, 1]} : vector<8x10x16xbf16> to vector<8x8x16xbf16>
    %31 = vector.shape_cast %30 : vector<8x8x16xbf16> to vector<64x16xbf16>
    %32 = vector.extract_strided_slice %2 {offsets = [1, 1, 0, 0], sizes = [1, 1, 16, 16], strides = [1, 1, 1, 1]} : vector<3x3x16x16xbf16> to vector<1x1x16x16xbf16>
    %33 = vector.shape_cast %32 : vector<1x1x16x16xbf16> to vector<16x16xbf16>
    %cst_11 = arith.constant dense<0.000000e+00> : vector<64x16xf32>
    %34 = tpu.matmul %31, %33, %cst_11 {dimension_numbers = #tpu.dot_dimension_numbers<[1], [0], [0], [1], [0, 0, 1, 1], [], []>} : vector<64x16xbf16>, vector<16x16xbf16>, vector<64x16xf32> -> vector<64x16xf32>
    %35 = arith.addf %29, %34 : vector<64x16xf32>
    %36 = vector.extract_strided_slice %23 {offsets = [0, 2, 0], sizes = [8, 8, 16], strides = [1, 1, 1]} : vector<8x10x16xbf16> to vector<8x8x16xbf16>
    %37 = vector.shape_cast %36 : vector<8x8x16xbf16> to vector<64x16xbf16>
    %38 = vector.extract_strided_slice %2 {offsets = [1, 2, 0, 0], sizes = [1, 1, 16, 16], strides = [1, 1, 1, 1]} : vector<3x3x16x16xbf16> to vector<1x1x16x16xbf16>
    %39 = vector.shape_cast %38 : vector<1x1x16x16xbf16> to vector<16x16xbf16>
    %cst_12 = arith.constant dense<0.000000e+00> : vector<64x16xf32>
    %40 = tpu.matmul %37, %39, %cst_12 {dimension_numbers = #tpu.dot_dimension_numbers<[1], [0], [0], [1], [0, 0, 1, 1], [], []>} : vector<64x16xbf16>, vector<16x16xbf16>, vector<64x16xf32> -> vector<64x16xf32>
    %41 = arith.addf %35, %40 : vector<64x16xf32>
    %42 = vector.extract_strided_slice %1 {offsets = [2, 0, 0], sizes = [8, 10, 16], strides = [1, 1, 1]} : vector<10x10x16xbf16> to vector<8x10x16xbf16>
    %43 = vector.extract_strided_slice %42 {offsets = [0, 0, 0], sizes = [8, 8, 16], strides = [1, 1, 1]} : vector<8x10x16xbf16> to vector<8x8x16xbf16>
    %44 = vector.shape_cast %43 : vector<8x8x16xbf16> to vector<64x16xbf16>
    %45 = vector.extract_strided_slice %2 {offsets = [2, 0, 0, 0], sizes = [1, 1, 16, 16], strides = [1, 1, 1, 1]} : vector<3x3x16x16xbf16> to vector<1x1x16x16xbf16>
    %46 = vector.shape_cast %45 : vector<1x1x16x16xbf16> to vector<16x16xbf16>
    %cst_13 = arith.constant dense<0.000000e+00> : vector<64x16xf32>
    %47 = tpu.matmul %44, %46, %cst_13 {dimension_numbers = #tpu.dot_dimension_numbers<[1], [0], [0], [1], [0, 0, 1, 1], [], []>} : vector<64x16xbf16>, vector<16x16xbf16>, vector<64x16xf32> -> vector<64x16xf32>
    %48 = arith.addf %41, %47 : vector<64x16xf32>
    %49 = vector.extract_strided_slice %42 {offsets = [0, 1, 0], sizes = [8, 8, 16], strides = [1, 1, 1]} : vector<8x10x16xbf16> to vector<8x8x16xbf16>
    %50 = vector.shape_cast %49 : vector<8x8x16xbf16> to vector<64x16xbf16>
    %51 = vector.extract_strided_slice %2 {offsets = [2, 1, 0, 0], sizes = [1, 1, 16, 16], strides = [1, 1, 1, 1]} : vector<3x3x16x16xbf16> to vector<1x1x16x16xbf16>
    %52 = vector.shape_cast %51 : vector<1x1x16x16xbf16> to vector<16x16xbf16>
    %cst_14 = arith.constant dense<0.000000e+00> : vector<64x16xf32>
    %53 = tpu.matmul %50, %52, %cst_14 {dimension_numbers = #tpu.dot_dimension_numbers<[1], [0], [0], [1], [0, 0, 1, 1], [], []>} : vector<64x16xbf16>, vector<16x16xbf16>, vector<64x16xf32> -> vector<64x16xf32>
    %54 = arith.addf %48, %53 : vector<64x16xf32>
    %55 = vector.extract_strided_slice %42 {offsets = [0, 2, 0], sizes = [8, 8, 16], strides = [1, 1, 1]} : vector<8x10x16xbf16> to vector<8x8x16xbf16>
    %56 = vector.shape_cast %55 : vector<8x8x16xbf16> to vector<64x16xbf16>
    %57 = vector.extract_strided_slice %2 {offsets = [2, 2, 0, 0], sizes = [1, 1, 16, 16], strides = [1, 1, 1, 1]} : vector<3x3x16x16xbf16> to vector<1x1x16x16xbf16>
    %58 = vector.shape_cast %57 : vector<1x1x16x16xbf16> to vector<16x16xbf16>
    %cst_15 = arith.constant dense<0.000000e+00> : vector<64x16xf32>
    %59 = tpu.matmul %56, %58, %cst_15 {dimension_numbers = #tpu.dot_dimension_numbers<[1], [0], [0], [1], [0, 0, 1, 1], [], []>} : vector<64x16xbf16>, vector<16x16xbf16>, vector<64x16xf32> -> vector<64x16xf32>
    %60 = arith.addf %54, %59 : vector<64x16xf32>
    %c0_16 = arith.constant 0 : index
    %c0_17 = arith.constant 0 : index
    %61 = vector.load %arg3[%c0_16, %c0_17] : memref<1x16xf32, #tpu.memory_space<vmem>>, vector<1x16xf32>
    %62 = vector.broadcast %61 : vector<1x16xf32> to vector<64x16xf32>
    %63 = arith.mulf %60, %62 : vector<64x16xf32>
    %c0_18 = arith.constant 0 : index
    %c0_19 = arith.constant 0 : index
    %64 = vector.load %arg4[%c0_18, %c0_19] : memref<1x16xf32, #tpu.memory_space<vmem>>, vector<1x16xf32>
    %65 = vector.broadcast %64 : vector<1x16xf32> to vector<64x16xf32>
    %66 = arith.addf %63, %65 : vector<64x16xf32>
    %cst_20 = arith.constant 0.000000e+00 : f32
    %67 = vector.broadcast %cst_20 : f32 to vector<64x16xf32>
    %68 = arith.maximumf %66, %67 : vector<64x16xf32>
    %69 = vector.shape_cast %68 : vector<64x16xf32> to vector<8x8x16xf32>
    %70 = arith.truncf %69 : vector<8x8x16xf32> to vector<8x8x16xbf16>
    %c0_21 = arith.constant 0 : index
    %c0_22 = arith.constant 0 : index
    %c0_23 = arith.constant 0 : index
    %c0_24 = arith.constant 0 : index
    %71 = vector.load %arg5[%c0_21, %c0_22, %c0_23, %c0_24] : memref<1x8x8x16xbf16, #tpu.memory_space<vmem>>, vector<1x8x8x16xbf16>
    %72 = vector.shape_cast %71 : vector<1x8x8x16xbf16> to vector<8x8x16xbf16>
    %73 = vector.shape_cast %70 : vector<8x8x16xbf16> to vector<1x8x8x16xbf16>
    tpu.vector_store %arg5[%c0_21, %c0_22, %c0_23, %c0_24], %73 {strides = array<i32>} : memref<1x8x8x16xbf16, #tpu.memory_space<vmem>>, vector<1x8x8x16xbf16>,
    return
  }
  func.func @transform_0(%arg0: i32) -> (i32, i32, i32, i32) {
    %c0_i32 = arith.constant 0 : i32
    %c0_i32_0 = arith.constant 0 : i32
    %c0_i32_1 = arith.constant 0 : i32
    %c0_i32_2 = arith.constant 0 : i32
    return %arg0, %c0_i32, %c0_i32_0, %c0_i32_1 : i32, i32, i32, i32
  }
  func.func @transform_1(%arg0: i32) -> (i32, i32, i32, i32) {
    %c0_i32 = arith.constant 0 : i32
    %c0_i32_0 = arith.constant 0 : i32
    %c0_i32_1 = arith.constant 0 : i32
    %c0_i32_2 = arith.constant 0 : i32
    %c0_i32_3 = arith.constant 0 : i32
    return %c0_i32, %c0_i32_0, %c0_i32_1, %c0_i32_2 : i32, i32, i32, i32
  }
  func.func @transform_2(%arg0: i32) -> (i32, i32) {
    %c0_i32 = arith.constant 0 : i32
    %c0_i32_0 = arith.constant 0 : i32
    %c0_i32_1 = arith.constant 0 : i32
    return %c0_i32, %c0_i32_0 : i32, i32
  }
  func.func @transform_3(%arg0: i32) -> (i32, i32) {
    %c0_i32 = arith.constant 0 : i32
    %c0_i32_0 = arith.constant 0 : i32
    %c0_i32_1 = arith.constant 0 : i32
    return %c0_i32, %c0_i32_0 : i32, i32
  }
  func.func @transform_4(%arg0: i32) -> (i32, i32, i32, i32) {
    %c0_i32 = arith.constant 0 : i32
    %c0_i32_0 = arith.constant 0 : i32
    %c0_i32_1 = arith.constant 0 : i32
    %c0_i32_2 = arith.constant 0 : i32
    return %arg0, %c0_i32, %c0_i32_0, %c0_i32_1 : i32, i32, i32, i32
  }
}

module attributes {stable_mosaic.version = 11 : i64} {
  func.func @kernel(%arg0: i32, %arg1: i32, %arg2: i32, %arg3: memref<256x16xbf16, #tpu.memory_space<vmem>>, %arg4: memref<16x3xbf16, #tpu.memory_space<vmem>>, %arg5: memref<1x3xf32, #tpu.memory_space<vmem>>, %arg6: memref<256x3xf32, #tpu.memory_space<vmem>>, %arg7: memref<256x3xf32, #tpu.memory_space<vmem>>) attributes {dimension_semantics = [#tpu.dimension_semantics<parallel>, #tpu.dimension_semantics<parallel>, #tpu.dimension_semantics<arbitrary>], iteration_bounds = array<i64: 2, 1, 1>, scalar_prefetch = 0 : i64, scratch_operands = 1 : i64, tpu.core_type = #tpu.core_type<tc>, window_params = [{transform_indices = @transform_0, window_bounds = array<i64: 256, 16>}, {transform_indices = @transform_1, window_bounds = array<i64: 16, 3>}, {transform_indices = @transform_2, window_bounds = array<i64: 1, 3>}, {transform_indices = @transform_3, window_bounds = array<i64: 256, 3>}]} {
    %c0_i32 = arith.constant 0 : i32
    %0 = arith.cmpi eq, %arg2, %c0_i32 : i32
    %1 = arith.extui %0 : i1 to i32
    %c0_i32_0 = arith.constant 0 : i32
    %2 = arith.cmpi ne, %1, %c0_i32_0 : i32
    scf.if %2 {
      %cst_10 = arith.constant 0.000000e+00 : f32
      %12 = vector.broadcast %cst_10 : f32 to vector<256x3xf32>
      %c0_11 = arith.constant 0 : index
      %c0_12 = arith.constant 0 : index
      %13 = vector.load %arg7[%c0_11, %c0_12] : memref<256x3xf32, #tpu.memory_space<vmem>>, vector<256x3xf32>
      tpu.vector_store %arg7[%c0_11, %c0_12], %12 {strides = array<i32>} : memref<256x3xf32, #tpu.memory_space<vmem>>, vector<256x3xf32>,
    } else {
    }
    %c0 = arith.constant 0 : index
    %c0_1 = arith.constant 0 : index
    %3 = vector.load %arg3[%c0, %c0_1] : memref<256x16xbf16, #tpu.memory_space<vmem>>, vector<256x16xbf16>
    %c0_2 = arith.constant 0 : index
    %c0_3 = arith.constant 0 : index
    %4 = vector.load %arg7[%c0_2, %c0_3] : memref<256x3xf32, #tpu.memory_space<vmem>>, vector<256x3xf32>
    %c0_4 = arith.constant 0 : index
    %c0_5 = arith.constant 0 : index
    %5 = vector.load %arg4[%c0_4, %c0_5] : memref<16x3xbf16, #tpu.memory_space<vmem>>, vector<16x3xbf16>
    %cst = arith.constant dense<0.000000e+00> : vector<256x3xf32>
    %6 = tpu.matmul %3, %5, %cst {dimension_numbers = #tpu.dot_dimension_numbers<[1], [0], [0], [1], [0, 0, 1, 1], [], []>} : vector<256x16xbf16>, vector<16x3xbf16>, vector<256x3xf32> -> vector<256x3xf32>
    %7 = arith.addf %4, %6 : vector<256x3xf32>
    %c0_6 = arith.constant 0 : index
    %c0_7 = arith.constant 0 : index
    %8 = vector.load %arg7[%c0_6, %c0_7] : memref<256x3xf32, #tpu.memory_space<vmem>>, vector<256x3xf32>
    tpu.vector_store %arg7[%c0_6, %c0_7], %7 {strides = array<i32>} : memref<256x3xf32, #tpu.memory_space<vmem>>, vector<256x3xf32>,
    %c0_i32_8 = arith.constant 0 : i32
    %9 = arith.cmpi eq, %arg2, %c0_i32_8 : i32
    %10 = arith.extui %9 : i1 to i32
    %c0_i32_9 = arith.constant 0 : i32
    %11 = arith.cmpi ne, %10, %c0_i32_9 : i32
    scf.if %11 {
      %c0_10 = arith.constant 0 : index
      %c0_11 = arith.constant 0 : index
      %12 = vector.load %arg7[%c0_10, %c0_11] : memref<256x3xf32, #tpu.memory_space<vmem>>, vector<256x3xf32>
      %c0_12 = arith.constant 0 : index
      %c0_13 = arith.constant 0 : index
      %13 = vector.load %arg5[%c0_12, %c0_13] : memref<1x3xf32, #tpu.memory_space<vmem>>, vector<1x3xf32>
      %14 = vector.broadcast %13 : vector<1x3xf32> to vector<256x3xf32>
      %15 = arith.addf %12, %14 : vector<256x3xf32>
      %c0_14 = arith.constant 0 : index
      %c0_15 = arith.constant 0 : index
      %16 = vector.load %arg6[%c0_14, %c0_15] : memref<256x3xf32, #tpu.memory_space<vmem>>, vector<256x3xf32>
      tpu.vector_store %arg6[%c0_14, %c0_15], %15 {strides = array<i32>} : memref<256x3xf32, #tpu.memory_space<vmem>>, vector<256x3xf32>,
    } else {
    }
    return
  }
  func.func @transform_0(%arg0: i32, %arg1: i32, %arg2: i32) -> (i32, i32) {
    %c0_i32 = arith.constant 0 : i32
    return %arg0, %arg2 : i32, i32
  }
  func.func @transform_1(%arg0: i32, %arg1: i32, %arg2: i32) -> (i32, i32) {
    %c0_i32 = arith.constant 0 : i32
    return %arg2, %arg1 : i32, i32
  }
  func.func @transform_2(%arg0: i32, %arg1: i32, %arg2: i32) -> (i32, i32) {
    %c0_i32 = arith.constant 0 : i32
    %c0_i32_0 = arith.constant 0 : i32
    return %c0_i32, %arg1 : i32, i32
  }
  func.func @transform_3(%arg0: i32, %arg1: i32, %arg2: i32) -> (i32, i32) {
    %c0_i32 = arith.constant 0 : i32
    return %arg0, %arg1 : i32, i32
  }
}

</mosaic_0001>

<llo_original>
// kernel: setr_pup_forward.17
$region0: #{setr_pup_forward.17}
  #allocation0 [shape = 'u32[]', space=smem, size = 0x4, offset = 0x4, fixed_abs, tag = 'smem constant byte address 0x4 - core index']
  #allocation1 [shape = 'u32[144,128]{1,0:T(1,128)}', space=vmem, size = 0x12000, scoped, tag = 'internal scratch']
  #allocation2 [shape = 'f32[48,96]{1,0:T(8,128)}', space=vmem, size = 0x6000, scoped, tag = 'scratch operand']
  %s0 = inlined_call_operand.vmem [shape: f32[48,32], index: 0, kind: input, shape index: {}]
  %s1 = inlined_call_operand.vmem [shape: bf16[32,96], index: 1, kind: input, shape index: {}]
  %s2 = inlined_call_operand.vmem [shape: f32[1,32], index: 2, kind: input, shape index: {}]
  %s3 = inlined_call_operand.vmem [shape: f32[1,32], index: 3, kind: input, shape index: {}]
  %s4 = inlined_call_operand.vmem [shape: f32[1,96], index: 4, kind: input, shape index: {}]
  %s5 = inlined_call_operand.vmem [shape: bf16[48,96], index: 5, kind: output, shape index: {}]
  %s6 = sld [smem:[#allocation0]]
  $region38: #{setr_pup_forward.17} parent=0
    _
  %s8 = ssub.s32 1, %s6
  %s9 = scalar_select 0, %s8, %s6
  // Predicated region
  $region2: #{setr_pup_forward.17} parent=0 // pred_check
    _
  $region3: #{setr_pup_forward.17} parent=0 // pred_check_branch
    %11 = sbr.rel (0) target = $region5
  $region4: #{setr_pup_forward.17} parent=0 // pred_region
    _
  $region5: #{setr_pup_forward.17} parent=0 // pred_fallthru
    _
  // Predicated region
  $region6: #{setr_pup_forward.17} parent=0 // pred_check
    _
  $region7: #{setr_pup_forward.17} parent=0 // pred_check_branch
    %13 = sbr.rel (0) target = $region9
  $region8: #{setr_pup_forward.17} parent=0 // pred_region
    _
  $region9: #{setr_pup_forward.17} parent=0 // pred_fallthru
    _
  // Predicated region
  $region10: #{setr_pup_forward.17} parent=0 // pred_check
    _
  $region11: #{setr_pup_forward.17} parent=0 // pred_check_branch
    %15 = sbr.rel (0) target = $region13
  $region12: #{setr_pup_forward.17} parent=0 // pred_region
    _
  $region13: #{setr_pup_forward.17} parent=0 // pred_fallthru
    _
  // Predicated region
  $region14: #{setr_pup_forward.17} parent=0 // pred_check
    _
  $region15: #{setr_pup_forward.17} parent=0 // pred_check_branch
    %17 = sbr.rel (0) target = $region17
  $region16: #{setr_pup_forward.17} parent=0 // pred_region
    _
  $region17: #{setr_pup_forward.17} parent=0 // pred_fallthru
    _
  // Predicated region
  $region18: #{setr_pup_forward.17} parent=0 // pred_check
    _
  $region19: #{setr_pup_forward.17} parent=0 // pred_check_branch
    %19 = sbr.rel (0) target = $region21
  $region20: #{setr_pup_forward.17} parent=0 // pred_region
    _
  $region21: #{setr_pup_forward.17} parent=0 // pred_fallthru
    _
  %p21 = scmp.eq.s32.totalorder 0, 0
  // Predicated region
  $region22: #{setr_pup_forward.17} parent=0 // pred_check
    %p22 = pneg %p21
  $region23: #{setr_pup_forward.17} parent=0 // pred_check_branch
    %24 = sbr.rel (%p22) target = $region25
  $region24: #{setr_pup_forward.17} parent=0 // pred_region
    %vm25 = vcmask 785408
    %26 = vst.msk [vmem:[#allocation2] sm:$0xff] %vm25, 0.0
    %27 = vst.msk [vmem:[#allocation2 + $0x8] sm:$0xff] %vm25, 0.0
    %28 = vst.msk [vmem:[#allocation2 + $0x10] sm:$0xff] %vm25, 0.0
    %29 = vst.msk [vmem:[#allocation2 + $0x18] sm:$0xff] %vm25, 0.0
    %30 = vst.msk [vmem:[#allocation2 + $0x20] sm:$0xff] %vm25, 0.0
    %31 = vst.msk [vmem:[#allocation2 + $0x28] sm:$0xff] %vm25, 0.0
  $region25: #{setr_pup_forward.17} parent=0 // pred_fallthru
    _
  %v32 = vld [vmem:[%s0] sm:$0xff]
  %v33 = vld [vmem:[%s0 + $0x8] sm:$0xff]
  %v34 = vld [vmem:[%s0 + $0x10] sm:$0xff]
  %v35 = vld [vmem:[%s0 + $0x18] sm:$0xff]
  %v36 = vld [vmem:[%s0 + $0x20] sm:$0xff]
  %v37 = vld [vmem:[%s0 + $0x28] sm:$0xff]
  %vm38 = vcmask 261120
  %v39 = vsel %vm38, %v32, 0.0
  %40 = vadd.xlane.f32.xlu0 %v39
  %v41 = vpop.xlane.xlu0 %40
  %v42 = vsel %vm38, %v33, 0.0
  %43 = vadd.xlane.f32.xlu0 %v42
  %v44 = vpop.xlane.xlu0 %43
  %v45 = vsel %vm38, %v34, 0.0
  %46 = vadd.xlane.f32.xlu0 %v45
  %v47 = vpop.xlane.xlu0 %46
  %v48 = vsel %vm38, %v35, 0.0
  %49 = vadd.xlane.f32.xlu0 %v48
  %v50 = vpop.xlane.xlu0 %49
  %v51 = vsel %vm38, %v36, 0.0
  %52 = vadd.xlane.f32.xlu0 %v51
  %v53 = vpop.xlane.xlu0 %52
  %v54 = vsel %vm38, %v37, 0.0
  %55 = vadd.xlane.f32.xlu0 %v54
  %v56 = vpop.xlane.xlu0 %55
  %v57 = vrcp.pop 32.0
  %v58 = vmul.f32 %v41, %v57
  %v59 = vmul.f32 %v44, %v57
  %v60 = vmul.f32 %v47, %v57
  %v61 = vmul.f32 %v50, %v57
  %v62 = vmul.f32 %v53, %v57
  %v63 = vmul.f32 %v56, %v57
  %v64 = vsub.f32 %v32, %v58
  %v65 = vsub.f32 %v33, %v59
  %v66 = vsub.f32 %v34, %v60
  %v67 = vsub.f32 %v35, %v61
  %v68 = vsub.f32 %v36, %v62
  %v69 = vsub.f32 %v37, %v63
  %v70 = vmul.f32 %v64, %v64
  %v71 = vmul.f32 %v65, %v65
  %v72 = vmul.f32 %v66, %v66
  %v73 = vmul.f32 %v67, %v67
  %v74 = vmul.f32 %v68, %v68
  %v75 = vmul.f32 %v69, %v69
  %v76 = vsel %vm38, %v70, 0.0
  %77 = vadd.xlane.f32.xlu0 %v76
  %v78 = vpop.xlane.xlu0 %77
  %v79 = vsel %vm38, %v71, 0.0
  %80 = vadd.xlane.f32.xlu0 %v79
  %v81 = vpop.xlane.xlu0 %80
  %v82 = vsel %vm38, %v72, 0.0
  %83 = vadd.xlane.f32.xlu0 %v82
  %v84 = vpop.xlane.xlu0 %83
  %v85 = vsel %vm38, %v73, 0.0
  %86 = vadd.xlane.f32.xlu0 %v85
  %v87 = vpop.xlane.xlu0 %86
  %v88 = vsel %vm38, %v74, 0.0
  %89 = vadd.xlane.f32.xlu0 %v88
  %v90 = vpop.xlane.xlu0 %89
  %v91 = vsel %vm38, %v75, 0.0
  %92 = vadd.xlane.f32.xlu0 %v91
  %v93 = vpop.xlane.xlu0 %92
  %v94 = vmul.f32 %v78, %v57
  %v95 = vmul.f32 %v81, %v57
  %v96 = vmul.f32 %v84, %v57
  %v97 = vmul.f32 %v87, %v57
  %v98 = vmul.f32 %v90, %v57
  %v99 = vmul.f32 %v93, %v57
  %v100 = vadd.f32 %v94, 1e-06
  %v101 = vadd.f32 %v95, 1e-06
  %v102 = vadd.f32 %v96, 1e-06
  %v103 = vadd.f32 %v97, 1e-06
  %v104 = vadd.f32 %v98, 1e-06
  %v105 = vadd.f32 %v99, 1e-06
  %v106 = vrsqrt.pop %v100
  %v107 = vrsqrt.pop %v101
  %v108 = vrsqrt.pop %v102
  %v109 = vrsqrt.pop %v103
  %v110 = vrsqrt.pop %v104
  %v111 = vrsqrt.pop %v105
  %v112 = vmul.f32 %v64, %v106
  %v113 = vmul.f32 %v65, %v107
  %v114 = vmul.f32 %v66, %v108
  %v115 = vmul.f32 %v67, %v109
  %v116 = vmul.f32 %v68, %v110
  %v117 = vmul.f32 %v69, %v111
  %v118 = vld [vmem:[%s2] sm:$0x1]
  %v120 = vlaneseq
  %v121 = vshrl.u32 %v120, 7
  %v122 = vsub.s32 0, %v121
  %v123 = vrot.slane %v118, %v122
  %v125 = vmul.f32 %v112, %v123
  %v126 = vmul.f32 %v113, %v123
  %v127 = vmul.f32 %v114, %v123
  %v128 = vmul.f32 %v115, %v123
  %v129 = vmul.f32 %v116, %v123
  %v130 = vmul.f32 %v117, %v123
  %v131 = vld [vmem:[%s3] sm:$0x1]
  %v133 = vlaneseq
  %v134 = vshrl.u32 %v133, 7
  %v135 = vsub.s32 0, %v134
  %v136 = vrot.slane %v131, %v135
  %v138 = vadd.f32 %v125, %v136
  %v139 = vadd.f32 %v126, %v136
  %v140 = vadd.f32 %v127, %v136
  %v141 = vadd.f32 %v128, %v136
  %v142 = vadd.f32 %v129, %v136
  %v143 = vadd.f32 %v130, %v136
  %v144 = vpack.c.bf16 %v139, %v138
  %v145 = vpack.c.bf16 %v141, %v140
  %v146 = vpack.c.bf16 %v143, %v142
  %v147 = vld [vmem:[#allocation2] sm:$0xff]
  %v148 = vld [vmem:[#allocation2 + $0x8] sm:$0xff]
  %v149 = vld [vmem:[#allocation2 + $0x10] sm:$0xff]
  %v150 = vld [vmem:[#allocation2 + $0x18] sm:$0xff]
  %v151 = vld [vmem:[#allocation2 + $0x20] sm:$0xff]
  %v152 = vld [vmem:[#allocation2 + $0x28] sm:$0xff]
  %v153 = vld [vmem:[%s1] sm:$0xf]
  %v154 = vld [vmem:[%s1 + $0x4] sm:$0xf]
  %v155 = vld [vmem:[%s1 + $0x8] sm:$0xf]
  %v156 = vld [vmem:[%s1 + $0xc] sm:$0xf]
  %v161 = vunpack.c.l.b16 %v153
  %v162 = vunpack.c.l.b16 %v154
  %v163 = vunpack.c.l.b16 %v155
  %v164 = vunpack.c.l.b16 %v156
  %v165 = vpack.c.b16 %v162, %v161
  %v166 = vpack.c.b16 %v164, %v163
  %v170 = vsel %vm38, %v144, 0
  %v173 = vsel %vm38, %v145, 0
  %v176 = vsel %vm38, %v146, 0
  %178 = vmatprep.subr.bf16.mxu0 0
  %179 = vmatpush1.bf16.msra.mxu0 %v165
  %180 = vmatprep.subr.bf16.mxu0 0
  %181 = vmatpush1.bf16.msra.mxu0 %v166
  %182 = vmatprep.subr.bf16.mxu0 0
  %183 = vmatpush1.bf16.msra.mxu0 0
  %184 = vmatprep.subr.bf16.mxu0 0
  %185 = vmatpush1.bf16.msra.mxu0 0
  %186 = vmatprep.subr.bf16.mxu0 0
  %187 = vmatpush1.bf16.msra.mxu0 0
  %188 = vmatprep.subr.bf16.mxu0 0
  %189 = vmatpush1.bf16.msra.mxu0 0
  %190 = vmatprep.subr.bf16.mxu0 0
  %191 = vmatpush1.bf16.msra.mxu0 0
  %192 = vmatprep.subr.bf16.mxu0 0
  %193 = vmatpush1.bf16.msra.mxu0 0
  %194 = vmatprep.subr.bf16.mxu0 0
  %195 = vmatpush1.bf16.msra.mxu0 0
  %196 = vmatprep.subr.bf16.mxu0 0
  %197 = vmatpush1.bf16.msra.mxu0 0
  %198 = vmatprep.subr.bf16.mxu0 0
  %199 = vmatpush1.bf16.msra.mxu0 0
  %200 = vmatprep.subr.bf16.mxu0 0
  %201 = vmatpush1.bf16.msra.mxu0 0
  %202 = vmatprep.subr.bf16.mxu0 0
  %203 = vmatpush1.bf16.msra.mxu0 0
  %204 = vmatprep.subr.bf16.mxu0 0
  %205 = vmatpush1.bf16.msra.mxu0 0
  %206 = vmatprep.subr.bf16.mxu0 0
  %207 = vmatpush1.bf16.msra.mxu0 0
  %208 = vmatprep.subr.bf16.mxu0 0
  %209 = vmatpush1.bf16.msra.mxu0 0
  %210 = vmatprep.mubr.bf16.mxu0 0
  %211 = vmatmul.mubr.bf16.gmra.mrb[0].mxu0 %v170
  %v212 = vpop.f32.mrb[0].mxu0
  %v213 = vadd.f32 0.0, %v212
  %v214 = vpop.f32.mrb[0].mxu0
  %v215 = vpop.f32.mrb[0].mxu0
  %v216 = vadd.f32 0.0, %v215
  %v217 = vpop.f32.mrb[0].mxu0
  %218 = vmatprep.mubr.bf16.mxu0 0
  %219 = vmatmul.mubr.bf16.gmra.mrb[0].mxu0 %v173
  %v220 = vpop.f32.mrb[0].mxu0
  %v221 = vadd.f32 0.0, %v220
  %v222 = vpop.f32.mrb[0].mxu0
  %v223 = vpop.f32.mrb[0].mxu0
  %v224 = vadd.f32 0.0, %v223
  %v225 = vpop.f32.mrb[0].mxu0
  %226 = vmatprep.mubr.bf16.mxu0 0
  %227 = vmatmul.mubr.bf16.gmra.mrb[0].mxu0 %v176
  %v228 = vpop.f32.mrb[0].mxu0
  %v229 = vadd.f32 0.0, %v228
  %v230 = vpop.f32.mrb[0].mxu0
  %v231 = vpop.f32.mrb[0].mxu0
  %v232 = vadd.f32 0.0, %v231
  %v233 = vpop.f32.mrb[0].mxu0
  %234 = vdwg.mxu0
  %v235 = vadd.f32 %v147, %v213
  %v236 = vadd.f32 %v148, %v216
  %v237 = vadd.f32 %v149, %v221
  %v238 = vadd.f32 %v150, %v224
  %v239 = vadd.f32 %v151, %v229
  %v240 = vadd.f32 %v152, %v232
  %vm241 = vcmask 785408
  %242 = vst.msk [vmem:[#allocation2] sm:$0xff] %vm241, %v235
  %243 = vst.msk [vmem:[#allocation2 + $0x8] sm:$0xff] %vm241, %v236
  %244 = vst.msk [vmem:[#allocation2 + $0x10] sm:$0xff] %vm241, %v237
  %245 = vst.msk [vmem:[#allocation2 + $0x18] sm:$0xff] %vm241, %v238
  %246 = vst.msk [vmem:[#allocation2 + $0x20] sm:$0xff] %vm241, %v239
  %247 = vst.msk [vmem:[#allocation2 + $0x28] sm:$0xff] %vm241, %v240
  // Predicated region
  $region26: #{setr_pup_forward.17} parent=0 // pred_check
    %p248 = pneg %p21
  $region27: #{setr_pup_forward.17} parent=0 // pred_check_branch
    %250 = sbr.rel (%p248) target = $region29
  $region28: #{setr_pup_forward.17} parent=0 // pred_region
    %v251 = vld [vmem:[#allocation2] sm:$0xff]
    %v252 = vld [vmem:[#allocation2 + $0x8] sm:$0xff]
    %v253 = vld [vmem:[#allocation2 + $0x10] sm:$0xff]
    %v254 = vld [vmem:[#allocation2 + $0x18] sm:$0xff]
    %v255 = vld [vmem:[#allocation2 + $0x20] sm:$0xff]
    %v256 = vld [vmem:[#allocation2 + $0x28] sm:$0xff]
    %v257 = vld [vmem:[%s4] sm:$0x1]
    %v259 = vlaneseq
    %v260 = vshrl.u32 %v259, 7
    %v261 = vsub.s32 0, %v260
    %v262 = vrot.slane %v257, %v261
    %v264 = vadd.f32 %v251, %v262
    %v265 = vadd.f32 %v252, %v262
    %v266 = vadd.f32 %v253, %v262
    %v267 = vadd.f32 %v254, %v262
    %v268 = vadd.f32 %v255, %v262
    %v269 = vadd.f32 %v256, %v262
    %v270 = vpack.c.bf16 %v265, %v264
    %v271 = vpack.c.bf16 %v267, %v266
    %v272 = vpack.c.bf16 %v269, %v268
    %v276 = vunpack.c.l.b16 %v270
    %v277 = vunpack.c.h.b16 %v270
    %v278 = vunpack.c.l.b16 %v271
    %v279 = vunpack.c.h.b16 %v271
    %v280 = vunpack.c.l.b16 %v272
    %v281 = vunpack.c.h.b16 %v272
    %v282 = vpack.c.b16 %v276, %v276
    %v283 = vpack.c.b16 %v277, %v277
    %v284 = vpack.c.b16 %v278, %v278
    %v285 = vpack.c.b16 %v279, %v279
    %v286 = vpack.c.b16 %v280, %v280
    %v287 = vpack.c.b16 %v281, %v281
    %vm294 = vcmask 781312
    %295 = vst.msk [vmem:[%s5] sm:$0xf] %vm294, %v282
    %296 = vst.msk [vmem:[%s5 + $0x4] sm:$0xf] %vm294, %v283
    %297 = vst.msk [vmem:[%s5 + $0x8] sm:$0xf] %vm294, %v284
    %298 = vst.msk [vmem:[%s5 + $0xc] sm:$0xf] %vm294, %v285
    %299 = vst.msk [vmem:[%s5 + $0x10] sm:$0xf] %vm294, %v286
    %300 = vst.msk [vmem:[%s5 + $0x14] sm:$0xf] %vm294, %v287
  $region29: #{setr_pup_forward.17} parent=0 // pred_fallthru
    _
  // Predicated region
  $region30: #{setr_pup_forward.17} parent=0 // pred_check
    _
  $region31: #{setr_pup_forward.17} parent=0 // pred_check_branch
    %302 = sbr.rel (0) target = $region33
  $region32: #{setr_pup_forward.17} parent=0 // pred_region
    _
  $region33: #{setr_pup_forward.17} parent=0 // pred_fallthru
    _
  // Predicated region
  $region34: #{setr_pup_forward.17} parent=0 // pred_check
    _
  $region35: #{setr_pup_forward.17} parent=0 // pred_check_branch
    %304 = sbr.rel (0) target = $region37
  $region36: #{setr_pup_forward.17} parent=0 // pred_region
    _
  $region37: #{setr_pup_forward.17} parent=0 // pred_fallthru
    _

// kernel: setr_pup_forward.18
$region0: #{setr_pup_forward.18}
  #allocation0 [shape = 'u32[]', space=smem, size = 0x4, offset = 0x4, fixed_abs, tag = 'smem constant byte address 0x4 - core index']
  #allocation1 [shape = 'u32[144,128]{1,0:T(1,128)}', space=vmem, size = 0x12000, scoped, tag = 'internal scratch']
  %s0 = inlined_call_operand.vmem [shape: bf16[2,17,96], index: 0, kind: input, shape index: {}]
  %s1 = inlined_call_operand.vmem [shape: bf16[2,17,32], index: 1, kind: output, shape index: {}]
  %s2 = sld [smem:[#allocation0]]
  $region37: #{setr_pup_forward.18} parent=0
    _
  %s4 = ssub.s32 1, %s2
  %s5 = scalar_select 0, %s4, %s2
  loop: start=0, step=1, limit=4
  $region2: #{setr_pup_forward.18} parent=0 // loop_pre_header
    _
  $region3: #{setr_pup_forward.18} parent=0 // loop_header
    %s7 = sphi 0, %s11
    %p8 = scmp.ge.s32.totalorder %s7, 4
    %s17 = sphi 0, %s19
    %s20 = sphi 0, %s17
    %s21 = sphi 0, %s20
    %s37 = sphi 0, %s21
    %s43 = sphi 0, %s45
    %s46 = sphi 0, %s43
    %s47 = sphi 0, %s46
    %s63 = sphi 0, %s47
  $region4: #{setr_pup_forward.18} parent=0 // loop_header_branch
    %10 = sbr.rel (%p8) target = $region8
  $region5: #{setr_pup_forward.18} parent=0 // loop_body
    %s12 = ssub.s32 %s7, 1
    %s13 = ssub.s32 %s7, 2
    %s14 = sadd.s32 %s7, 1
    %s15 = ssub.s32 %s7, %s14
    %p16 = scmp.eq.s32.totalorder %s15, 0
    %s18 = sadd.s32 %s17, 1
    %s19 = scalar_select %p16, %s17, %s18
    %p22 = pneg %p16
    %p23 = scmp.eq.s32.totalorder %s7, 1
    %p24 = por %p22, %p23
    %p25 = scmp.ne.s32.totalorder %s17, %s20
    %p26 = scmp.eq.s32.totalorder %s7, 0
    %p27 = por %p25, %p26
    %p28 = scmp.ne.s32.totalorder %s17, %s20
    %p29 = scmp.eq.s32.totalorder %s12, 1
    %p30 = por %p28, %p29
    %p31 = scmp.ne.s32.totalorder %s20, %s21
    %p32 = scmp.eq.s32.totalorder %s12, 0
    %p33 = por %p31, %p32
    %p34 = scmp.ne.s32.totalorder %s20, %s21
    %p35 = scmp.eq.s32.totalorder %s13, 1
    %p36 = por %p34, %p35
    %p38 = scmp.ne.s32.totalorder %s21, %s37
    %p39 = scmp.eq.s32.totalorder %s13, 0
    %p40 = por %p38, %p39
    %s41 = ssub.s32 %s7, %s14
    %p42 = scmp.eq.s32.totalorder %s41, 0
    %s44 = sadd.s32 %s43, 1
    %s45 = scalar_select %p42, %s43, %s44
    %p48 = pneg %p42
    %p49 = scmp.eq.s32.totalorder %s7, 1
    %p50 = por %p48, %p49
    %p51 = scmp.ne.s32.totalorder %s43, %s46
    %p52 = scmp.eq.s32.totalorder %s7, 0
    %p53 = por %p51, %p52
    %p54 = scmp.ne.s32.totalorder %s43, %s46
    %p55 = scmp.eq.s32.totalorder %s12, 1
    %p56 = por %p54, %p55
    %p57 = scmp.ne.s32.totalorder %s46, %s47
    %p58 = scmp.eq.s32.totalorder %s12, 0
    %p59 = por %p57, %p58
    %p60 = scmp.ne.s32.totalorder %s46, %s47
    %p61 = scmp.eq.s32.totalorder %s13, 1
    %p62 = por %p60, %p61
    %p64 = scmp.ne.s32.totalorder %s47, %s63
    %p65 = scmp.eq.s32.totalorder %s13, 0
    %p66 = por %p64, %p65
    %p67 = scmp.le.s32.totalorder 1, %s7
    %p68 = scmp.lt.s32.totalorder %s7, 3
    %p69 = pnand %p67, %p68
    %p70 = pneg %p69
    // Predicated region
    $region9: #{setr_pup_forward.18} parent=5 // pred_check
      _
    $region10: #{setr_pup_forward.18} parent=5 // pred_check_branch
      %72 = sbr.rel (%p69) target = $region12
    $region11: #{setr_pup_forward.18} parent=5 // pred_region
      %s73 = ssub.s32 %s7, 1
    $region12: #{setr_pup_forward.18} parent=5 // pred_fallthru
      _
    %p74 = scmp.lt.s32.totalorder %s7, 2
    // Predicated region
    $region13: #{setr_pup_forward.18} parent=5 // pred_check
      %p75 = pneg %p74
    $region14: #{setr_pup_forward.18} parent=5 // pred_check_branch
      %77 = sbr.rel (%p75) target = $region16
    $region15: #{setr_pup_forward.18} parent=5 // pred_region
      // Predicated region
      $region17: #{setr_pup_forward.18} parent=15 // pred_check
        %p78 = pneg %p27
      $region18: #{setr_pup_forward.18} parent=15 // pred_check_branch
        %80 = sbr.rel (%p78) target = $region20
      $region19: #{setr_pup_forward.18} parent=15 // pred_region
        %p81 = scmp.lt.s32.totalorder %s7, 1
        %s82 = scalar_select %p81, %s7, 1
        %s83 = smul.addr %s82, 3
        %s84 = smul.addr %s83, 4
        %s85 = scalar_lea.vmem %s0, %s84
      $region20: #{setr_pup_forward.18} parent=15 // pred_fallthru
        _
    $region16: #{setr_pup_forward.18} parent=5 // pred_fallthru
      _
    %p86 = scmp.le.s32.totalorder 1, %s7
    %p87 = scmp.lt.s32.totalorder %s7, 3
    %p88 = pnand %p86, %p87
    %p89 = pneg %p88
    // Predicated region
    $region21: #{setr_pup_forward.18} parent=5 // pred_check
      _
    $region22: #{setr_pup_forward.18} parent=5 // pred_check_branch
      %91 = sbr.rel (%p88) target = $region24
    $region23: #{setr_pup_forward.18} parent=5 // pred_region
      %s92 = ssub.s32 %s7, 1
      %p93 = scmp.lt.s32.totalorder %s12, 1
      %s94 = scalar_select %p93, %s12, 1
      %s95 = smul.addr %s94, 3
      %s96 = smul.addr %s95, 4
      %s97 = scalar_lea.vmem %s0, %s96
      %p98 = pneg %p33
      %p99 = pneg %p30
      %p100 = pneg %p59
      %p101 = pneg %p56
      %p102 = scmp.lt.s32.totalorder %s12, 1
      %s103 = scalar_select %p102, %s12, 1
      %s104 = smul.addr %s103, 3
      %s105 = smul.addr %s104, 4
      %s106 = scalar_lea.vmem %s1, %s105
      %p107 = scmp.lt.s32.totalorder %s12, 1
      %s108 = scalar_select %p107, %s12, 1
      %s109 = smul.addr %s108, 3
      %s110 = smul.addr %s109, 4
      %s111 = scalar_lea.vmem %s0, %s110
      %p112 = scmp.lt.s32.totalorder %s12, 1
      %s113 = scalar_select %p112, %s12, 1
      %s114 = smul.addr %s113, 3
      %s115 = smul.addr %s114, 4
      %s116 = scalar_lea.vmem %s1, %s115
      %v118 = vld [vmem:[%s111] sm:$0xf]
      %v119 = vld [vmem:[%s111 + $0x4] sm:$0xf]
      %v120 = vld [vmem:[%s111 + $0x8] sm:$0x1]
      %v124 = vunpack.c.l.b16 %v118
      %v125 = vunpack.c.l.b16 %v119
      %v126 = vunpack.c.l.b16 %v120
      %v127 = vpack.c.b16 %v125, %v124
      %v128 = vpack.c.b16 %v126, %v126
      %129 = vrot.lane.b32.xlu0 %v127, 96
      %v130 = vpop.permute.xlu0 %129
      %131 = vrot.lane.b32.xlu0 %v128, 96
      %v132 = vpop.permute.xlu0 %131
      %vm133 = vcmask 130048
      %v135 = vsel %vm133, %v127, 0
      %v138 = vsel %vm133, %v128, 0
      %v141 = vsel %vm133, %v130, 0
      %v144 = vsel %vm133, %v132, 0
      %146 = vmatprep.subr.bf16.mxu0 0
      %147 = vmatpush1.bf16.xpose.msra.mxu0 %v141
      %148 = vmatprep.subr.bf16.mxu0 0
      %149 = vmatpush1.bf16.xpose.msra.mxu0 %v144
      %150 = vmatprep.subr.bf16.mxu0 0
      %151 = vmatpush1.bf16.xpose.msra.mxu0 0
      %152 = vmatprep.subr.bf16.mxu0 0
      %153 = vmatpush1.bf16.xpose.msra.mxu0 0
      %154 = vmatprep.subr.bf16.mxu0 0
      %155 = vmatpush1.bf16.xpose.msra.mxu0 0
      %156 = vmatprep.subr.bf16.mxu0 0
      %157 = vmatpush1.bf16.xpose.msra.mxu0 0
      %158 = vmatprep.subr.bf16.mxu0 0
      %159 = vmatpush1.bf16.xpose.msra.mxu0 0
      %160 = vmatprep.subr.bf16.mxu0 0
      %161 = vmatpush1.bf16.xpose.msra.mxu0 0
      %162 = vmatprep.subr.bf16.mxu0 0
      %163 = vmatpush1.bf16.xpose.msra.mxu0 0
      %164 = vmatprep.subr.bf16.mxu0 0
      %165 = vmatpush1.bf16.xpose.msra.mxu0 0
      %166 = vmatprep.subr.bf16.mxu0 0
      %167 = vmatpush1.bf16.xpose.msra.mxu0 0
      %168 = vmatprep.subr.bf16.mxu0 0
      %169 = vmatpush1.bf16.xpose.msra.mxu0 0
      %170 = vmatprep.subr.bf16.mxu0 0
      %171 = vmatpush1.bf16.xpose.msra.mxu0 0
      %172 = vmatprep.subr.bf16.mxu0 0
      %173 = vmatpush1.bf16.xpose.msra.mxu0 0
      %174 = vmatprep.subr.bf16.mxu0 0
      %175 = vmatpush1.bf16.xpose.msra.mxu0 0
      %176 = vmatprep.subr.bf16.mxu0 0
      %177 = vmatpush1.bf16.xpose.msra.mxu0 0
      %178 = vmatprep.mubr.bf16.mxu0 0
      %179 = vmatmul.mubr.bf16.gmra.mrb[0].mxu0 %v135
      %v180 = vpop.f32.mrb[0].mxu0
      %v181 = vadd.f32 0.0, %v180
      %v182 = vpop.f32.mrb[0].mxu0
      %v183 = vpop.f32.mrb[0].mxu0
      %v184 = vadd.f32 0.0, %v183
      %v185 = vpop.f32.mrb[0].mxu0
      %186 = vmatprep.mubr.bf16.mxu0 0
      %187 = vmatmul.mubr.bf16.gmra.mrb[0].mxu0 %v138
      %v188 = vpop.f32.mrb[0].mxu0
      %v189 = vadd.f32 0.0, %v188
      %v190 = vpop.f32.mrb[0].mxu0
      %v191 = vpop.f32.mrb[0].mxu0
      %v192 = vpop.f32.mrb[0].mxu0
      %193 = vdwg.mxu0
      %vm194 = vcmask 138240
      %v195 = vsel %vm194, %v181, -inf
      %196 = vmax.xlane.f32.xlu0 %v195
      %v197 = vpop.xlane.xlu0 %196
      %v198 = vsel %vm194, %v184, -inf
      %199 = vmax.xlane.f32.xlu0 %v198
      %v200 = vpop.xlane.xlu0 %199
      %vm201 = vcmask 131072
      %v202 = vsel %vm201, %v189, -inf
      %203 = vmax.xlane.f32.xlu0 %v202
      %v204 = vpop.xlane.xlu0 %203
      %v205 = vsub.f32 %v181, %v197
      %v206 = vsub.f32 %v184, %v200
      %v207 = vsub.f32 %v189, %v204
      %v208 = vmul.f32 %v205, 1.442695
      %v209 = vpow.pop %v208
      %v210 = vmul.f32 %v206, 1.442695
      %v211 = vpow.pop %v210
      %v212 = vmul.f32 %v207, 1.442695
      %v213 = vpow.pop %v212
      %v214 = vsel %vm194, %v209, 0.0
      %215 = vadd.xlane.f32.xlu0 %v214
      %v216 = vpop.xlane.xlu0 %215
      %v217 = vsel %vm194, %v211, 0.0
      %218 = vadd.xlane.f32.xlu0 %v217
      %v219 = vpop.xlane.xlu0 %218
      %v220 = vsel %vm201, %v213, 0.0
      %221 = vadd.xlane.f32.xlu0 %v220
      %v222 = vpop.xlane.xlu0 %221
      %v223 = vrcp.pop %v216
      %v224 = vrcp.pop %v219
      %v225 = vrcp.pop %v222
      %v226 = vmul.f32 %v209, %v223
      %v227 = vmul.f32 %v211, %v224
      %v228 = vmul.f32 %v213, %v225
      %v229 = vpack.c.bf16 %v227, %v226
      %v230 = vpack.c.bf16 %v228, %v228
      %231 = vrot.lane.b32.xlu0 %v127, 64
      %v232 = vpop.permute.xlu0 %231
      %233 = vrot.lane.b32.xlu0 %v128, 64
      %v234 = vpop.permute.xlu0 %233
      %v237 = vsel %vm194, %v229, 0
      %v240 = vsel %vm194, %v230, 0
      %vm242 = vcmask 1040384
      %v243 = vsel 0, 4294967295, 65535
      %v244 = vsel %vm242, %v243, 0
      %v246 = vand.u32 %v234, %v244
      %248 = vmatprep.subr.bf16.mxu0 0
      %249 = vmatpush1.bf16.msra.mxu0 %v232
      %250 = vmatprep.subr.bf16.mxu0 0
      %251 = vmatpush1.bf16.msra.mxu0 %v246
      %252 = vmatprep.subr.bf16.mxu0 0
      %253 = vmatpush1.bf16.msra.mxu0 0
      %254 = vmatprep.subr.bf16.mxu0 0
      %255 = vmatpush1.bf16.msra.mxu0 0
      %256 = vmatprep.subr.bf16.mxu0 0
      %257 = vmatpush1.bf16.msra.mxu0 0
      %258 = vmatprep.subr.bf16.mxu0 0
      %259 = vmatpush1.bf16.msra.mxu0 0
      %260 = vmatprep.subr.bf16.mxu0 0
      %261 = vmatpush1.bf16.msra.mxu0 0
      %262 = vmatprep.subr.bf16.mxu0 0
      %263 = vmatpush1.bf16.msra.mxu0 0
      %264 = vmatprep.subr.bf16.mxu0 0
      %265 = vmatpush1.bf16.msra.mxu0 0
      %266 = vmatprep.subr.bf16.mxu0 0
      %267 = vmatpush1.bf16.msra.mxu0 0
      %268 = vmatprep.subr.bf16.mxu0 0
      %269 = vmatpush1.bf16.msra.mxu0 0
      %270 = vmatprep.subr.bf16.mxu0 0
      %271 = vmatpush1.bf16.msra.mxu0 0
      %272 = vmatprep.subr.bf16.mxu0 0
      %273 = vmatpush1.bf16.msra.mxu0 0
      %274 = vmatprep.subr.bf16.mxu0 0
      %275 = vmatpush1.bf16.msra.mxu0 0
      %276 = vmatprep.subr.bf16.mxu0 0
      %277 = vmatpush1.bf16.msra.mxu0 0
      %278 = vmatprep.subr.bf16.mxu0 0
      %279 = vmatpush1.bf16.msra.mxu0 0
      %280 = vmatprep.mubr.bf16.mxu0 0
      %281 = vmatmul.mubr.bf16.gmra.mrb[0].mxu0 %v237
      %v282 = vpop.f32.mrb[0].mxu0
      %v283 = vadd.f32 0.0, %v282
      %v284 = vpop.f32.mrb[0].mxu0
      %v285 = vpop.f32.mrb[0].mxu0
      %v286 = vadd.f32 0.0, %v285
      %v287 = vpop.f32.mrb[0].mxu0
      %288 = vmatprep.mubr.bf16.mxu0 0
      %289 = vmatmul.mubr.bf16.gmra.mrb[0].mxu0 %v240
      %v290 = vpop.f32.mrb[0].mxu0
      %v291 = vadd.f32 0.0, %v290
      %v292 = vpop.f32.mrb[0].mxu0
      %v293 = vpop.f32.mrb[0].mxu0
      %v294 = vpop.f32.mrb[0].mxu0
      %295 = vdwg.mxu0
      %v296 = vpack.c.bf16 %v286, %v283
      %v297 = vpack.c.bf16 %v291, %v291
      %v300 = vunpack.c.l.b16 %v296
      %v301 = vunpack.c.h.b16 %v296
      %v302 = vunpack.c.l.b16 %v297
      %v303 = vpack.c.b16 %v300, %v300
      %v304 = vpack.c.b16 %v301, %v301
      %v305 = vpack.c.b16 %v302, %v302
      %vm309 = vcmask 125952
      %310 = vst.msk [vmem:[%s116] sm:$0xf] %vm309, %v303
      %311 = vst.msk [vmem:[%s116 + $0x4] sm:$0xf] %vm309, %v304
      %vm312 = vcmask 122880
      %vm313 = vsmask.f32 256
      %vm314 = vmand %vm312, %vm313
      %v315 = vld [vmem:[%s116 + $0x8] sm:$0x1]
      %v316 = vsel %vm314, %v305, %v315
      %317 = vst [vmem:[%s116 + $0x8] sm:$0x1] %v316
      %318 = vrot.lane.b32.xlu0 %v127, 112
      %v319 = vpop.permute.xlu0 %318
      %320 = vrot.lane.b32.xlu0 %v128, 112
      %v321 = vpop.permute.xlu0 %320
      %322 = vrot.lane.b32.xlu0 %v127, 80
      %v323 = vpop.permute.xlu0 %322
      %324 = vrot.lane.b32.xlu0 %v128, 80
      %v325 = vpop.permute.xlu0 %324
      %v327 = vsel %vm133, %v319, 0
      %v330 = vsel %vm133, %v321, 0
      %v333 = vsel %vm133, %v323, 0
      %v336 = vsel %vm133, %v325, 0
      %338 = vmatprep.subr.bf16.mxu0 0
      %339 = vmatpush1.bf16.xpose.msra.mxu0 %v333
      %340 = vmatprep.subr.bf16.mxu0 0
      %341 = vmatpush1.bf16.xpose.msra.mxu0 %v336
      %342 = vmatprep.subr.bf16.mxu0 0
      %343 = vmatpush1.bf16.xpose.msra.mxu0 0
      %344 = vmatprep.subr.bf16.mxu0 0
      %345 = vmatpush1.bf16.xpose.msra.mxu0 0
      %346 = vmatprep.subr.bf16.mxu0 0
      %347 = vmatpush1.bf16.xpose.msra.mxu0 0
      %348 = vmatprep.subr.bf16.mxu0 0
      %349 = vmatpush1.bf16.xpose.msra.mxu0 0
      %350 = vmatprep.subr.bf16.mxu0 0
      %351 = vmatpush1.bf16.xpose.msra.mxu0 0
      %352 = vmatprep.subr.bf16.mxu0 0
      %353 = vmatpush1.bf16.xpose.msra.mxu0 0
      %354 = vmatprep.subr.bf16.mxu0 0
      %355 = vmatpush1.bf16.xpose.msra.mxu0 0
      %356 = vmatprep.subr.bf16.mxu0 0
      %357 = vmatpush1.bf16.xpose.msra.mxu0 0
      %358 = vmatprep.subr.bf16.mxu0 0
      %359 = vmatpush1.bf16.xpose.msra.mxu0 0
      %360 = vmatprep.subr.bf16.mxu0 0
      %361 = vmatpush1.bf16.xpose.msra.mxu0 0
      %362 = vmatprep.subr.bf16.mxu0 0
      %363 = vmatpush1.bf16.xpose.msra.mxu0 0
      %364 = vmatprep.subr.bf16.mxu0 0
      %365 = vmatpush1.bf16.xpose.msra.mxu0 0
      %366 = vmatprep.subr.bf16.mxu0 0
      %367 = vmatpush1.bf16.xpose.msra.mxu0 0
      %368 = vmatprep.subr.bf16.mxu0 0
      %369 = vmatpush1.bf16.xpose.msra.mxu0 0
      %370 = vmatprep.mubr.bf16.mxu0 0
      %371 = vmatmul.mubr.bf16.gmra.mrb[0].mxu0 %v327
      %v372 = vpop.f32.mrb[0].mxu0
      %v373 = vadd.f32 0.0, %v372
      %v374 = vpop.f32.mrb[0].mxu0
      %v375 = vpop.f32.mrb[0].mxu0
      %v376 = vadd.f32 0.0, %v375
      %v377 = vpop.f32.mrb[0].mxu0
      %378 = vmatprep.mubr.bf16.mxu0 0
      %379 = vmatmul.mubr.bf16.gmra.mrb[0].mxu0 %v330
      %v380 = vpop.f32.mrb[0].mxu0
      %v381 = vadd.f32 0.0, %v380
      %v382 = vpop.f32.mrb[0].mxu0
      %v383 = vpop.f32.mrb[0].mxu0
      %v384 = vpop.f32.mrb[0].mxu0
      %385 = vdwg.mxu0
      %v386 = vsel %vm194, %v373, -inf
      %387 = vmax.xlane.f32.xlu0 %v386
      %v388 = vpop.xlane.xlu0 %387
      %v389 = vsel %vm194, %v376, -inf
      %390 = vmax.xlane.f32.xlu0 %v389
      %v391 = vpop.xlane.xlu0 %390
      %v392 = vsel %vm201, %v381, -inf
      %393 = vmax.xlane.f32.xlu0 %v392
      %v394 = vpop.xlane.xlu0 %393
      %v395 = vsub.f32 %v373, %v388
      %v396 = vsub.f32 %v376, %v391
      %v397 = vsub.f32 %v381, %v394
      %v398 = vmul.f32 %v395, 1.442695
      %v399 = vpow.pop %v398
      %v400 = vmul.f32 %v396, 1.442695
      %v401 = vpow.pop %v400
      %v402 = vmul.f32 %v397, 1.442695
      %v403 = vpow.pop %v402
      %v404 = vsel %vm194, %v399, 0.0
      %405 = vadd.xlane.f32.xlu0 %v404
      %v406 = vpop.xlane.xlu0 %405
      %v407 = vsel %vm194, %v401, 0.0
      %408 = vadd.xlane.f32.xlu0 %v407
      %v409 = vpop.xlane.xlu0 %408
      %v410 = vsel %vm201, %v403, 0.0
      %411 = vadd.xlane.f32.xlu0 %v410
      %v412 = vpop.xlane.xlu0 %411
      %v413 = vrcp.pop %v406
      %v414 = vrcp.pop %v409
      %v415 = vrcp.pop %v412
      %v416 = vmul.f32 %v399, %v413
      %v417 = vmul.f32 %v401, %v414
      %v418 = vmul.f32 %v403, %v415
      %v419 = vpack.c.bf16 %v417, %v416
      %v420 = vpack.c.bf16 %v418, %v418
      %421 = vrot.lane.b32.xlu0 %v127, 48
      %v422 = vpop.permute.xlu0 %421
      %423 = vrot.lane.b32.xlu0 %v128, 48
      %v424 = vpop.permute.xlu0 %423
      %v427 = vsel %vm194, %v419, 0
      %v430 = vsel %vm194, %v420, 0
      %v433 = vand.u32 %v424, %v244
      %435 = vmatprep.subr.bf16.mxu0 0
      %436 = vmatpush1.bf16.msra.mxu0 %v422
      %437 = vmatprep.subr.bf16.mxu0 0
      %438 = vmatpush1.bf16.msra.mxu0 %v433
      %439 = vmatprep.subr.bf16.mxu0 0
      %440 = vmatpush1.bf16.msra.mxu0 0
      %441 = vmatprep.subr.bf16.mxu0 0
      %442 = vmatpush1.bf16.msra.mxu0 0
      %443 = vmatprep.subr.bf16.mxu0 0
      %444 = vmatpush1.bf16.msra.mxu0 0
      %445 = vmatprep.subr.bf16.mxu0 0
      %446 = vmatpush1.bf16.msra.mxu0 0
      %447 = vmatprep.subr.bf16.mxu0 0
      %448 = vmatpush1.bf16.msra.mxu0 0
      %449 = vmatprep.subr.bf16.mxu0 0
      %450 = vmatpush1.bf16.msra.mxu0 0
      %451 = vmatprep.subr.bf16.mxu0 0
      %452 = vmatpush1.bf16.msra.mxu0 0
      %453 = vmatprep.subr.bf16.mxu0 0
      %454 = vmatpush1.bf16.msra.mxu0 0
      %455 = vmatprep.subr.bf16.mxu0 0
      %456 = vmatpush1.bf16.msra.mxu0 0
      %457 = vmatprep.subr.bf16.mxu0 0
      %458 = vmatpush1.bf16.msra.mxu0 0
      %459 = vmatprep.subr.bf16.mxu0 0
      %460 = vmatpush1.bf16.msra.mxu0 0
      %461 = vmatprep.subr.bf16.mxu0 0
      %462 = vmatpush1.bf16.msra.mxu0 0
      %463 = vmatprep.subr.bf16.mxu0 0
      %464 = vmatpush1.bf16.msra.mxu0 0
      %465 = vmatprep.subr.bf16.mxu0 0
      %466 = vmatpush1.bf16.msra.mxu0 0
      %467 = vmatprep.mubr.bf16.mxu0 0
      %468 = vmatmul.mubr.bf16.gmra.mrb[0].mxu0 %v427
      %v469 = vpop.f32.mrb[0].mxu0
      %v470 = vadd.f32 0.0, %v469
      %v471 = vpop.f32.mrb[0].mxu0
      %v472 = vpop.f32.mrb[0].mxu0
      %v473 = vadd.f32 0.0, %v472
      %v474 = vpop.f32.mrb[0].mxu0
      %475 = vmatprep.mubr.bf16.mxu0 0
      %476 = vmatmul.mubr.bf16.gmra.mrb[0].mxu0 %v430
      %v477 = vpop.f32.mrb[0].mxu0
      %v478 = vadd.f32 0.0, %v477
      %v479 = vpop.f32.mrb[0].mxu0
      %v480 = vpop.f32.mrb[0].mxu0
      %v481 = vpop.f32.mrb[0].mxu0
      %482 = vdwg.mxu0
      %v483 = vpack.c.bf16 %v473, %v470
      %v484 = vpack.c.bf16 %v478, %v478
      %v487 = vunpack.c.l.b16 %v483
      %v488 = vunpack.c.h.b16 %v483
      %v489 = vunpack.c.l.b16 %v484
      %v490 = vpack.c.b16 %v487, %v487
      %v491 = vpack.c.b16 %v488, %v488
      %v492 = vpack.c.b16 %v489, %v489
      %493 = vrot.lane.b32.xlu0 %v490, 16
      %v494 = vpop.permute.xlu0 %493
      %495 = vrot.lane.b32.xlu0 %v491, 16
      %v496 = vpop.permute.xlu0 %495
      %497 = vrot.lane.b32.xlu0 %v492, 16
      %v498 = vpop.permute.xlu0 %497
      %vm502 = vcmask 257152
      %503 = vst.msk [vmem:[%s116] sm:$0xf] %vm502, %v494
      %504 = vst.msk [vmem:[%s116 + $0x4] sm:$0xf] %vm502, %v496
      %vm505 = vcmask 254080
      %vm506 = vmand %vm505, %vm313
      %v507 = vld [vmem:[%s116 + $0x8] sm:$0x1]
      %v508 = vsel %vm506, %v498, %v507
      %509 = vst [vmem:[%s116 + $0x8] sm:$0x1] %v508
      %p510 = scmp.lt.s32.totalorder %s12, 1
      %s511 = scalar_select %p510, %s12, 1
      %s512 = smul.addr %s511, 3
      %s513 = smul.addr %s512, 4
      %s514 = scalar_lea.vmem %s1, %s513
      // Predicated region
      $region25: #{setr_pup_forward.18} parent=23 // pred_check
        %p515 = pneg %p56
      $region26: #{setr_pup_forward.18} parent=23 // pred_check_branch
        %517 = sbr.rel (%p515) target = $region28
      $region27: #{setr_pup_forward.18} parent=23 // pred_region
        _
      $region28: #{setr_pup_forward.18} parent=23 // pred_fallthru
        _
    $region24: #{setr_pup_forward.18} parent=5 // pred_fallthru
      _
    %p518 = scmp.le.s32.totalorder 2, %s7
    // Predicated region
    $region29: #{setr_pup_forward.18} parent=5 // pred_check
      %p519 = pneg %p518
    $region30: #{setr_pup_forward.18} parent=5 // pred_check_branch
      %521 = sbr.rel (%p519) target = $region32
    $region31: #{setr_pup_forward.18} parent=5 // pred_region
      %s522 = ssub.s32 %s7, 2
      // Predicated region
      $region33: #{setr_pup_forward.18} parent=31 // pred_check
        %p523 = pneg %p62
      $region34: #{setr_pup_forward.18} parent=31 // pred_check_branch
        %525 = sbr.rel (%p523) target = $region36
      $region35: #{setr_pup_forward.18} parent=31 // pred_region
        %p526 = scmp.lt.s32.totalorder %s13, 1
        %s527 = scalar_select %p526, %s13, 1
        %s528 = smul.addr %s527, 3
        %s529 = smul.addr %s528, 4
        %s530 = scalar_lea.vmem %s1, %s529
      $region36: #{setr_pup_forward.18} parent=31 // pred_fallthru
        _
    $region32: #{setr_pup_forward.18} parent=5 // pred_fallthru
      _
  $region6: #{setr_pup_forward.18} parent=0 // loop_footer
    %s11 = sadd.s32 1, %s7
  $region7: #{setr_pup_forward.18} parent=0 // loop_footer_branch
    %6 = sbr.rel target = $region3
  $region8: #{setr_pup_forward.18} parent=0 // loop_exit
    _

// kernel: setr_pup_forward.19
$region0: #{setr_pup_forward.19}
  #allocation0 [shape = 'u32[]', space=smem, size = 0x4, offset = 0x4, fixed_abs, tag = 'smem constant byte address 0x4 - core index']
  #allocation1 [shape = 'u32[144,128]{1,0:T(1,128)}', space=vmem, size = 0x12000, scoped, tag = 'internal scratch']
  #allocation2 [shape = 'f32[48,32]{1,0:T(8,128)}', space=vmem, size = 0x6000, scoped, tag = 'scratch operand']
  %s0 = inlined_call_operand.vmem [shape: bf16[48,32], index: 0, kind: input, shape index: {}]
  %s1 = inlined_call_operand.vmem [shape: bf16[32,32], index: 1, kind: input, shape index: {}]
  %s2 = inlined_call_operand.vmem [shape: f32[1,32], index: 2, kind: input, shape index: {}]
  %s3 = inlined_call_operand.vmem [shape: f32[48,32], index: 3, kind: input, shape index: {}]
  %s4 = inlined_call_operand.vmem [shape: f32[48,32], index: 4, kind: output, shape index: {}]
  %s5 = sld [smem:[#allocation0]]
  $region34: #{setr_pup_forward.19} parent=0
    _
  %s7 = ssub.s32 1, %s5
  %s8 = scalar_select 0, %s7, %s5
  // Predicated region
  $region2: #{setr_pup_forward.19} parent=0 // pred_check
    _
  $region3: #{setr_pup_forward.19} parent=0 // pred_check_branch
    %10 = sbr.rel (0) target = $region5
  $region4: #{setr_pup_forward.19} parent=0 // pred_region
    _
  $region5: #{setr_pup_forward.19} parent=0 // pred_fallthru
    _
  // Predicated region
  $region6: #{setr_pup_forward.19} parent=0 // pred_check
    _
  $region7: #{setr_pup_forward.19} parent=0 // pred_check_branch
    %12 = sbr.rel (0) target = $region9
  $region8: #{setr_pup_forward.19} parent=0 // pred_region
    _
  $region9: #{setr_pup_forward.19} parent=0 // pred_fallthru
    _
  // Predicated region
  $region10: #{setr_pup_forward.19} parent=0 // pred_check
    _
  $region11: #{setr_pup_forward.19} parent=0 // pred_check_branch
    %14 = sbr.rel (0) target = $region13
  $region12: #{setr_pup_forward.19} parent=0 // pred_region
    _
  $region13: #{setr_pup_forward.19} parent=0 // pred_fallthru
    _
  // Predicated region
  $region14: #{setr_pup_forward.19} parent=0 // pred_check
    _
  $region15: #{setr_pup_forward.19} parent=0 // pred_check_branch
    %16 = sbr.rel (0) target = $region17
  $region16: #{setr_pup_forward.19} parent=0 // pred_region
    _
  $region17: #{setr_pup_forward.19} parent=0 // pred_fallthru
    _
  %p18 = scmp.eq.s32.totalorder 0, 0
  // Predicated region
  $region18: #{setr_pup_forward.19} parent=0 // pred_check
    %p19 = pneg %p18
  $region19: #{setr_pup_forward.19} parent=0 // pred_check_branch
    %21 = sbr.rel (%p19) target = $region21
  $region20: #{setr_pup_forward.19} parent=0 // pred_region
    %vm22 = vcmask 261120
    %23 = vst.msk [vmem:[#allocation2] sm:$0xff] %vm22, 0.0
    %24 = vst.msk [vmem:[#allocation2 + $0x8] sm:$0xff] %vm22, 0.0
    %25 = vst.msk [vmem:[#allocation2 + $0x10] sm:$0xff] %vm22, 0.0
    %26 = vst.msk [vmem:[#allocation2 + $0x18] sm:$0xff] %vm22, 0.0
    %27 = vst.msk [vmem:[#allocation2 + $0x20] sm:$0xff] %vm22, 0.0
    %28 = vst.msk [vmem:[#allocation2 + $0x28] sm:$0xff] %vm22, 0.0
  $region21: #{setr_pup_forward.19} parent=0 // pred_fallthru
    _
  %v29 = vld [vmem:[%s0] sm:$0xf]
  %v30 = vld [vmem:[%s0 + $0x4] sm:$0xf]
  %v31 = vld [vmem:[%s0 + $0x8] sm:$0xf]
  %v32 = vld [vmem:[%s0 + $0xc] sm:$0xf]
  %v33 = vld [vmem:[%s0 + $0x10] sm:$0xf]
  %v34 = vld [vmem:[%s0 + $0x14] sm:$0xf]
  %v35 = vld [vmem:[#allocation2] sm:$0xff]
  %v36 = vld [vmem:[#allocation2 + $0x8] sm:$0xff]
  %v37 = vld [vmem:[#allocation2 + $0x10] sm:$0xff]
  %v38 = vld [vmem:[#allocation2 + $0x18] sm:$0xff]
  %v39 = vld [vmem:[#allocation2 + $0x20] sm:$0xff]
  %v40 = vld [vmem:[#allocation2 + $0x28] sm:$0xff]
  %v41 = vld [vmem:[%s1] sm:$0xf]
  %v42 = vld [vmem:[%s1 + $0x4] sm:$0xf]
  %v43 = vld [vmem:[%s1 + $0x8] sm:$0xf]
  %v44 = vld [vmem:[%s1 + $0xc] sm:$0xf]
  %v51 = vunpack.c.l.b16 %v29
  %v52 = vunpack.c.l.b16 %v30
  %v53 = vunpack.c.l.b16 %v31
  %v54 = vunpack.c.l.b16 %v32
  %v55 = vunpack.c.l.b16 %v33
  %v56 = vunpack.c.l.b16 %v34
  %v57 = vpack.c.b16 %v52, %v51
  %v58 = vpack.c.b16 %v54, %v53
  %v59 = vpack.c.b16 %v56, %v55
  %v64 = vunpack.c.l.b16 %v41
  %v65 = vunpack.c.l.b16 %v42
  %v66 = vunpack.c.l.b16 %v43
  %v67 = vunpack.c.l.b16 %v44
  %v68 = vpack.c.b16 %v65, %v64
  %v69 = vpack.c.b16 %v67, %v66
  %vm72 = vcmask 261120
  %v74 = vsel %vm72, %v57, 0
  %v77 = vsel %vm72, %v58, 0
  %v80 = vsel %vm72, %v59, 0
  %82 = vmatprep.subr.bf16.mxu0 0
  %83 = vmatpush1.bf16.msra.mxu0 %v68
  %84 = vmatprep.subr.bf16.mxu0 0
  %85 = vmatpush1.bf16.msra.mxu0 %v69
  %86 = vmatprep.subr.bf16.mxu0 0
  %87 = vmatpush1.bf16.msra.mxu0 0
  %88 = vmatprep.subr.bf16.mxu0 0
  %89 = vmatpush1.bf16.msra.mxu0 0
  %90 = vmatprep.subr.bf16.mxu0 0
  %91 = vmatpush1.bf16.msra.mxu0 0
  %92 = vmatprep.subr.bf16.mxu0 0
  %93 = vmatpush1.bf16.msra.mxu0 0
  %94 = vmatprep.subr.bf16.mxu0 0
  %95 = vmatpush1.bf16.msra.mxu0 0
  %96 = vmatprep.subr.bf16.mxu0 0
  %97 = vmatpush1.bf16.msra.mxu0 0
  %98 = vmatprep.subr.bf16.mxu0 0
  %99 = vmatpush1.bf16.msra.mxu0 0
  %100 = vmatprep.subr.bf16.mxu0 0
  %101 = vmatpush1.bf16.msra.mxu0 0
  %102 = vmatprep.subr.bf16.mxu0 0
  %103 = vmatpush1.bf16.msra.mxu0 0
  %104 = vmatprep.subr.bf16.mxu0 0
  %105 = vmatpush1.bf16.msra.mxu0 0
  %106 = vmatprep.subr.bf16.mxu0 0
  %107 = vmatpush1.bf16.msra.mxu0 0
  %108 = vmatprep.subr.bf16.mxu0 0
  %109 = vmatpush1.bf16.msra.mxu0 0
  %110 = vmatprep.subr.bf16.mxu0 0
  %111 = vmatpush1.bf16.msra.mxu0 0
  %112 = vmatprep.subr.bf16.mxu0 0
  %113 = vmatpush1.bf16.msra.mxu0 0
  %114 = vmatprep.mubr.bf16.mxu0 0
  %115 = vmatmul.mubr.bf16.gmra.mrb[0].mxu0 %v74
  %v116 = vpop.f32.mrb[0].mxu0
  %v117 = vadd.f32 0.0, %v116
  %v118 = vpop.f32.mrb[0].mxu0
  %v119 = vpop.f32.mrb[0].mxu0
  %v120 = vadd.f32 0.0, %v119
  %v121 = vpop.f32.mrb[0].mxu0
  %122 = vmatprep.mubr.bf16.mxu0 0
  %123 = vmatmul.mubr.bf16.gmra.mrb[0].mxu0 %v77
  %v124 = vpop.f32.mrb[0].mxu0
  %v125 = vadd.f32 0.0, %v124
  %v126 = vpop.f32.mrb[0].mxu0
  %v127 = vpop.f32.mrb[0].mxu0
  %v128 = vadd.f32 0.0, %v127
  %v129 = vpop.f32.mrb[0].mxu0
  %130 = vmatprep.mubr.bf16.mxu0 0
  %131 = vmatmul.mubr.bf16.gmra.mrb[0].mxu0 %v80
  %v132 = vpop.f32.mrb[0].mxu0
  %v133 = vadd.f32 0.0, %v132
  %v134 = vpop.f32.mrb[0].mxu0
  %v135 = vpop.f32.mrb[0].mxu0
  %v136 = vadd.f32 0.0, %v135
  %v137 = vpop.f32.mrb[0].mxu0
  %138 = vdwg.mxu0
  %v139 = vadd.f32 %v35, %v117
  %v140 = vadd.f32 %v36, %v120
  %v141 = vadd.f32 %v37, %v125
  %v142 = vadd.f32 %v38, %v128
  %v143 = vadd.f32 %v39, %v133
  %v144 = vadd.f32 %v40, %v136
  %145 = vst.msk [vmem:[#allocation2] sm:$0xff] %vm72, %v139
  %146 = vst.msk [vmem:[#allocation2 + $0x8] sm:$0xff] %vm72, %v140
  %147 = vst.msk [vmem:[#allocation2 + $0x10] sm:$0xff] %vm72, %v141
  %148 = vst.msk [vmem:[#allocation2 + $0x18] sm:$0xff] %vm72, %v142
  %149 = vst.msk [vmem:[#allocation2 + $0x20] sm:$0xff] %vm72, %v143
  %150 = vst.msk [vmem:[#allocation2 + $0x28] sm:$0xff] %vm72, %v144
  // Predicated region
  $region22: #{setr_pup_forward.19} parent=0 // pred_check
    %p151 = pneg %p18
  $region23: #{setr_pup_forward.19} parent=0 // pred_check_branch
    %153 = sbr.rel (%p151) target = $region25
  $region24: #{setr_pup_forward.19} parent=0 // pred_region
    %v154 = vld [vmem:[#allocation2] sm:$0xff]
    %v155 = vld [vmem:[#allocation2 + $0x8] sm:$0xff]
    %v156 = vld [vmem:[#allocation2 + $0x10] sm:$0xff]
    %v157 = vld [vmem:[#allocation2 + $0x18] sm:$0xff]
    %v158 = vld [vmem:[#allocation2 + $0x20] sm:$0xff]
    %v159 = vld [vmem:[#allocation2 + $0x28] sm:$0xff]
    %v160 = vld [vmem:[%s2] sm:$0x1]
    %v162 = vlaneseq
    %v163 = vshrl.u32 %v162, 7
    %v164 = vsub.s32 0, %v163
    %v165 = vrot.slane %v160, %v164
    %v167 = vadd.f32 %v154, %v165
    %v168 = vadd.f32 %v155, %v165
    %v169 = vadd.f32 %v156, %v165
    %v170 = vadd.f32 %v157, %v165
    %v171 = vadd.f32 %v158, %v165
    %v172 = vadd.f32 %v159, %v165
    %v173 = vld [vmem:[%s3] sm:$0xff]
    %v174 = vld [vmem:[%s3 + $0x8] sm:$0xff]
    %v175 = vld [vmem:[%s3 + $0x10] sm:$0xff]
    %v176 = vld [vmem:[%s3 + $0x18] sm:$0xff]
    %v177 = vld [vmem:[%s3 + $0x20] sm:$0xff]
    %v178 = vld [vmem:[%s3 + $0x28] sm:$0xff]
    %v179 = vadd.f32 %v167, %v173
    %v180 = vadd.f32 %v168, %v174
    %v181 = vadd.f32 %v169, %v175
    %v182 = vadd.f32 %v170, %v176
    %v183 = vadd.f32 %v171, %v177
    %v184 = vadd.f32 %v172, %v178
    %185 = vst.msk [vmem:[%s4] sm:$0xff] %vm72, %v179
    %186 = vst.msk [vmem:[%s4 + $0x8] sm:$0xff] %vm72, %v180
    %187 = vst.msk [vmem:[%s4 + $0x10] sm:$0xff] %vm72, %v181
    %188 = vst.msk [vmem:[%s4 + $0x18] sm:$0xff] %vm72, %v182
    %189 = vst.msk [vmem:[%s4 + $0x20] sm:$0xff] %vm72, %v183
    %190 = vst.msk [vmem:[%s4 + $0x28] sm:$0xff] %vm72, %v184
  $region25: #{setr_pup_forward.19} parent=0 // pred_fallthru
    _
  // Predicated region
  $region26: #{setr_pup_forward.19} parent=0 // pred_check
    _
  $region27: #{setr_pup_forward.19} parent=0 // pred_check_branch
    %192 = sbr.rel (0) target = $region29
  $region28: #{setr_pup_forward.19} parent=0 // pred_region
    _
  $region29: #{setr_pup_forward.19} parent=0 // pred_fallthru
    _
  // Predicated region
  $region30: #{setr_pup_forward.19} parent=0 // pred_check
    _
  $region31: #{setr_pup_forward.19} parent=0 // pred_check_branch
    %194 = sbr.rel (0) target = $region33
  $region32: #{setr_pup_forward.19} parent=0 // pred_region
    _
  $region33: #{setr_pup_forward.19} parent=0 // pred_fallthru
    _

// kernel: setr_pup_forward.16
$region0: #{setr_pup_forward.16}
  #allocation0 [shape = 'u32[]', space=smem, size = 0x4, offset = 0x4, fixed_abs, tag = 'smem constant byte address 0x4 - core index']
  #allocation1 [shape = 'u32[144,128]{1,0:T(1,128)}', space=vmem, size = 0x12000, scoped, tag = 'internal scratch']
  #allocation2 [shape = 'f32[32,32]{1,0:T(8,128)}', space=vmem, size = 0x4000, scoped, tag = 'scratch operand']
  %s0 = inlined_call_operand.vmem [shape: bf16[32,48], index: 0, kind: input, shape index: {}]
  %s1 = inlined_call_operand.vmem [shape: bf16[48,32], index: 1, kind: input, shape index: {}]
  %s2 = inlined_call_operand.vmem [shape: f32[1,32], index: 2, kind: input, shape index: {}]
  %s3 = inlined_call_operand.vmem [shape: f32[32,32], index: 3, kind: output, shape index: {}]
  %s4 = sld [smem:[#allocation0]]
  $region30: #{setr_pup_forward.16} parent=0
    _
  %s6 = ssub.s32 1, %s4
  %s7 = scalar_select 0, %s6, %s4
  // Predicated region
  $region2: #{setr_pup_forward.16} parent=0 // pred_check
    _
  $region3: #{setr_pup_forward.16} parent=0 // pred_check_branch
    %9 = sbr.rel (0) target = $region5
  $region4: #{setr_pup_forward.16} parent=0 // pred_region
    _
  $region5: #{setr_pup_forward.16} parent=0 // pred_fallthru
    _
  // Predicated region
  $region6: #{setr_pup_forward.16} parent=0 // pred_check
    _
  $region7: #{setr_pup_forward.16} parent=0 // pred_check_branch
    %11 = sbr.rel (0) target = $region9
  $region8: #{setr_pup_forward.16} parent=0 // pred_region
    _
  $region9: #{setr_pup_forward.16} parent=0 // pred_fallthru
    _
  // Predicated region
  $region10: #{setr_pup_forward.16} parent=0 // pred_check
    _
  $region11: #{setr_pup_forward.16} parent=0 // pred_check_branch
    %13 = sbr.rel (0) target = $region13
  $region12: #{setr_pup_forward.16} parent=0 // pred_region
    _
  $region13: #{setr_pup_forward.16} parent=0 // pred_fallthru
    _
  %p15 = scmp.eq.s32.totalorder 0, 0
  // Predicated region
  $region14: #{setr_pup_forward.16} parent=0 // pred_check
    %p16 = pneg %p15
  $region15: #{setr_pup_forward.16} parent=0 // pred_check_branch
    %18 = sbr.rel (%p16) target = $region17
  $region16: #{setr_pup_forward.16} parent=0 // pred_region
    %vm19 = vcmask 261120
    %20 = vst.msk [vmem:[#allocation2] sm:$0xff] %vm19, 0.0
    %21 = vst.msk [vmem:[#allocation2 + $0x8] sm:$0xff] %vm19, 0.0
    %22 = vst.msk [vmem:[#allocation2 + $0x10] sm:$0xff] %vm19, 0.0
    %23 = vst.msk [vmem:[#allocation2 + $0x18] sm:$0xff] %vm19, 0.0
  $region17: #{setr_pup_forward.16} parent=0 // pred_fallthru
    _
  %v24 = vld [vmem:[%s0] sm:$0xf]
  %v25 = vld [vmem:[%s0 + $0x4] sm:$0xf]
  %v26 = vld [vmem:[%s0 + $0x8] sm:$0xf]
  %v27 = vld [vmem:[%s0 + $0xc] sm:$0xf]
  %v28 = vld [vmem:[#allocation2] sm:$0xff]
  %v29 = vld [vmem:[#allocation2 + $0x8] sm:$0xff]
  %v30 = vld [vmem:[#allocation2 + $0x10] sm:$0xff]
  %v31 = vld [vmem:[#allocation2 + $0x18] sm:$0xff]
  %v32 = vld [vmem:[%s1] sm:$0xf]
  %v33 = vld [vmem:[%s1 + $0x4] sm:$0xf]
  %v34 = vld [vmem:[%s1 + $0x8] sm:$0xf]
  %v35 = vld [vmem:[%s1 + $0xc] sm:$0xf]
  %v36 = vld [vmem:[%s1 + $0x10] sm:$0xf]
  %v37 = vld [vmem:[%s1 + $0x14] sm:$0xf]
  %v42 = vunpack.c.l.b16 %v24
  %v43 = vunpack.c.l.b16 %v25
  %v44 = vunpack.c.l.b16 %v26
  %v45 = vunpack.c.l.b16 %v27
  %v46 = vpack.c.b16 %v43, %v42
  %v47 = vpack.c.b16 %v45, %v44
  %v54 = vunpack.c.l.b16 %v32
  %v55 = vunpack.c.l.b16 %v33
  %v56 = vunpack.c.l.b16 %v34
  %v57 = vunpack.c.l.b16 %v35
  %v58 = vunpack.c.l.b16 %v36
  %v59 = vunpack.c.l.b16 %v37
  %v60 = vpack.c.b16 %v55, %v54
  %v61 = vpack.c.b16 %v57, %v56
  %v62 = vpack.c.b16 %v59, %v58
  %vm66 = vcmask 392192
  %v68 = vsel %vm66, %v46, 0
  %v71 = vsel %vm66, %v47, 0
  %73 = vmatprep.subr.bf16.mxu0 0
  %74 = vmatpush1.bf16.msra.mxu0 %v60
  %75 = vmatprep.subr.bf16.mxu0 0
  %76 = vmatpush1.bf16.msra.mxu0 %v61
  %77 = vmatprep.subr.bf16.mxu0 0
  %78 = vmatpush1.bf16.msra.mxu0 %v62
  %79 = vmatprep.subr.bf16.mxu0 0
  %80 = vmatpush1.bf16.msra.mxu0 0
  %81 = vmatprep.subr.bf16.mxu0 0
  %82 = vmatpush1.bf16.msra.mxu0 0
  %83 = vmatprep.subr.bf16.mxu0 0
  %84 = vmatpush1.bf16.msra.mxu0 0
  %85 = vmatprep.subr.bf16.mxu0 0
  %86 = vmatpush1.bf16.msra.mxu0 0
  %87 = vmatprep.subr.bf16.mxu0 0
  %88 = vmatpush1.bf16.msra.mxu0 0
  %89 = vmatprep.subr.bf16.mxu0 0
  %90 = vmatpush1.bf16.msra.mxu0 0
  %91 = vmatprep.subr.bf16.mxu0 0
  %92 = vmatpush1.bf16.msra.mxu0 0
  %93 = vmatprep.subr.bf16.mxu0 0
  %94 = vmatpush1.bf16.msra.mxu0 0
  %95 = vmatprep.subr.bf16.mxu0 0
  %96 = vmatpush1.bf16.msra.mxu0 0
  %97 = vmatprep.subr.bf16.mxu0 0
  %98 = vmatpush1.bf16.msra.mxu0 0
  %99 = vmatprep.subr.bf16.mxu0 0
  %100 = vmatpush1.bf16.msra.mxu0 0
  %101 = vmatprep.subr.bf16.mxu0 0
  %102 = vmatpush1.bf16.msra.mxu0 0
  %103 = vmatprep.subr.bf16.mxu0 0
  %104 = vmatpush1.bf16.msra.mxu0 0
  %105 = vmatprep.mubr.bf16.mxu0 0
  %106 = vmatmul.mubr.bf16.gmra.mrb[0].mxu0 %v68
  %v107 = vpop.f32.mrb[0].mxu0
  %v108 = vadd.f32 0.0, %v107
  %v109 = vpop.f32.mrb[0].mxu0
  %v110 = vpop.f32.mrb[0].mxu0
  %v111 = vadd.f32 0.0, %v110
  %v112 = vpop.f32.mrb[0].mxu0
  %113 = vmatprep.mubr.bf16.mxu0 0
  %114 = vmatmul.mubr.bf16.gmra.mrb[0].mxu0 %v71
  %v115 = vpop.f32.mrb[0].mxu0
  %v116 = vadd.f32 0.0, %v115
  %v117 = vpop.f32.mrb[0].mxu0
  %v118 = vpop.f32.mrb[0].mxu0
  %v119 = vadd.f32 0.0, %v118
  %v120 = vpop.f32.mrb[0].mxu0
  %121 = vdwg.mxu0
  %v122 = vadd.f32 %v28, %v108
  %v123 = vadd.f32 %v29, %v111
  %v124 = vadd.f32 %v30, %v116
  %v125 = vadd.f32 %v31, %v119
  %vm126 = vcmask 261120
  %127 = vst.msk [vmem:[#allocation2] sm:$0xff] %vm126, %v122
  %128 = vst.msk [vmem:[#allocation2 + $0x8] sm:$0xff] %vm126, %v123
  %129 = vst.msk [vmem:[#allocation2 + $0x10] sm:$0xff] %vm126, %v124
  %130 = vst.msk [vmem:[#allocation2 + $0x18] sm:$0xff] %vm126, %v125
  // Predicated region
  $region18: #{setr_pup_forward.16} parent=0 // pred_check
    %p131 = pneg %p15
  $region19: #{setr_pup_forward.16} parent=0 // pred_check_branch
    %133 = sbr.rel (%p131) target = $region21
  $region20: #{setr_pup_forward.16} parent=0 // pred_region
    %v134 = vld [vmem:[#allocation2] sm:$0xff]
    %v135 = vld [vmem:[#allocation2 + $0x8] sm:$0xff]
    %v136 = vld [vmem:[#allocation2 + $0x10] sm:$0xff]
    %v137 = vld [vmem:[#allocation2 + $0x18] sm:$0xff]
    %v138 = vld [vmem:[%s2] sm:$0x1]
    %v140 = vlaneseq
    %v141 = vshrl.u32 %v140, 7
    %v142 = vsub.s32 0, %v141
    %v143 = vrot.slane %v138, %v142
    %v145 = vadd.f32 %v134, %v143
    %v146 = vadd.f32 %v135, %v143
    %v147 = vadd.f32 %v136, %v143
    %v148 = vadd.f32 %v137, %v143
    %149 = vst.msk [vmem:[%s3] sm:$0xff] %vm126, %v145
    %150 = vst.msk [vmem:[%s3 + $0x8] sm:$0xff] %vm126, %v146
    %151 = vst.msk [vmem:[%s3 + $0x10] sm:$0xff] %vm126, %v147
    %152 = vst.msk [vmem:[%s3 + $0x18] sm:$0xff] %vm126, %v148
  $region21: #{setr_pup_forward.16} parent=0 // pred_fallthru
    _
  // Predicated region
  $region22: #{setr_pup_forward.16} parent=0 // pred_check
    _
  $region23: #{setr_pup_forward.16} parent=0 // pred_check_branch
    %154 = sbr.rel (0) target = $region25
  $region24: #{setr_pup_forward.16} parent=0 // pred_region
    _
  $region25: #{setr_pup_forward.16} parent=0 // pred_fallthru
    _
  // Predicated region
  $region26: #{setr_pup_forward.16} parent=0 // pred_check
    _
  $region27: #{setr_pup_forward.16} parent=0 // pred_check_branch
    %156 = sbr.rel (0) target = $region29
  $region28: #{setr_pup_forward.16} parent=0 // pred_region
    _
  $region29: #{setr_pup_forward.16} parent=0 // pred_fallthru
    _

// kernel: setr_pup_forward.27
$region0: #{setr_pup_forward.27}
  #allocation0 [shape = 'u32[]', space=smem, size = 0x4, offset = 0x4, fixed_abs, tag = 'smem constant byte address 0x4 - core index']
  #allocation1 [shape = 'u32[144,128]{1,0:T(1,128)}', space=vmem, size = 0x12000, scoped, tag = 'internal scratch']
  %s0 = inlined_call_operand.vmem [shape: f32[40,32], index: 0, kind: input, shape index: {}]
  %s1 = inlined_call_operand.vmem [shape: f32[1,32], index: 1, kind: input, shape index: {}]
  %s2 = inlined_call_operand.vmem [shape: f32[1,32], index: 2, kind: input, shape index: {}]
  %s3 = inlined_call_operand.vmem [shape: f32[40,32], index: 3, kind: output, shape index: {}]
  %s4 = sld [smem:[#allocation0]]
  $region22: #{setr_pup_forward.27} parent=0
    _
  %s6 = ssub.s32 1, %s4
  %s7 = scalar_select 0, %s6, %s4
  // Predicated region
  $region2: #{setr_pup_forward.27} parent=0 // pred_check
    _
  $region3: #{setr_pup_forward.27} parent=0 // pred_check_branch
    %9 = sbr.rel (0) target = $region5
  $region4: #{setr_pup_forward.27} parent=0 // pred_region
    _
  $region5: #{setr_pup_forward.27} parent=0 // pred_fallthru
    _
  // Predicated region
  $region6: #{setr_pup_forward.27} parent=0 // pred_check
    _
  $region7: #{setr_pup_forward.27} parent=0 // pred_check_branch
    %11 = sbr.rel (0) target = $region9
  $region8: #{setr_pup_forward.27} parent=0 // pred_region
    _
  $region9: #{setr_pup_forward.27} parent=0 // pred_fallthru
    _
  // Predicated region
  $region10: #{setr_pup_forward.27} parent=0 // pred_check
    _
  $region11: #{setr_pup_forward.27} parent=0 // pred_check_branch
    %13 = sbr.rel (0) target = $region13
  $region12: #{setr_pup_forward.27} parent=0 // pred_region
    _
  $region13: #{setr_pup_forward.27} parent=0 // pred_fallthru
    _
  %v14 = vld [vmem:[%s0] sm:$0xff]
  %v15 = vld [vmem:[%s0 + $0x8] sm:$0xff]
  %v16 = vld [vmem:[%s0 + $0x10] sm:$0xff]
  %v17 = vld [vmem:[%s0 + $0x18] sm:$0xff]
  %v18 = vld [vmem:[%s0 + $0x20] sm:$0xff]
  %vm19 = vcmask 261120
  %v20 = vsel %vm19, %v14, 0.0
  %21 = vadd.xlane.f32.xlu0 %v20
  %v22 = vpop.xlane.xlu0 %21
  %v23 = vsel %vm19, %v15, 0.0
  %24 = vadd.xlane.f32.xlu0 %v23
  %v25 = vpop.xlane.xlu0 %24
  %v26 = vsel %vm19, %v16, 0.0
  %27 = vadd.xlane.f32.xlu0 %v26
  %v28 = vpop.xlane.xlu0 %27
  %v29 = vsel %vm19, %v17, 0.0
  %30 = vadd.xlane.f32.xlu0 %v29
  %v31 = vpop.xlane.xlu0 %30
  %v32 = vsel %vm19, %v18, 0.0
  %33 = vadd.xlane.f32.xlu0 %v32
  %v34 = vpop.xlane.xlu0 %33
  %v35 = vrcp.pop 32.0
  %v36 = vmul.f32 %v22, %v35
  %v37 = vmul.f32 %v25, %v35
  %v38 = vmul.f32 %v28, %v35
  %v39 = vmul.f32 %v31, %v35
  %v40 = vmul.f32 %v34, %v35
  %v41 = vsub.f32 %v14, %v36
  %v42 = vsub.f32 %v15, %v37
  %v43 = vsub.f32 %v16, %v38
  %v44 = vsub.f32 %v17, %v39
  %v45 = vsub.f32 %v18, %v40
  %v46 = vmul.f32 %v41, %v41
  %v47 = vmul.f32 %v42, %v42
  %v48 = vmul.f32 %v43, %v43
  %v49 = vmul.f32 %v44, %v44
  %v50 = vmul.f32 %v45, %v45
  %v51 = vsel %vm19, %v46, 0.0
  %52 = vadd.xlane.f32.xlu0 %v51
  %v53 = vpop.xlane.xlu0 %52
  %v54 = vsel %vm19, %v47, 0.0
  %55 = vadd.xlane.f32.xlu0 %v54
  %v56 = vpop.xlane.xlu0 %55
  %v57 = vsel %vm19, %v48, 0.0
  %58 = vadd.xlane.f32.xlu0 %v57
  %v59 = vpop.xlane.xlu0 %58
  %v60 = vsel %vm19, %v49, 0.0
  %61 = vadd.xlane.f32.xlu0 %v60
  %v62 = vpop.xlane.xlu0 %61
  %v63 = vsel %vm19, %v50, 0.0
  %64 = vadd.xlane.f32.xlu0 %v63
  %v65 = vpop.xlane.xlu0 %64
  %v66 = vmul.f32 %v53, %v35
  %v67 = vmul.f32 %v56, %v35
  %v68 = vmul.f32 %v59, %v35
  %v69 = vmul.f32 %v62, %v35
  %v70 = vmul.f32 %v65, %v35
  %v71 = vadd.f32 %v66, 1e-06
  %v72 = vadd.f32 %v67, 1e-06
  %v73 = vadd.f32 %v68, 1e-06
  %v74 = vadd.f32 %v69, 1e-06
  %v75 = vadd.f32 %v70, 1e-06
  %v76 = vrsqrt.pop %v71
  %v77 = vrsqrt.pop %v72
  %v78 = vrsqrt.pop %v73
  %v79 = vrsqrt.pop %v74
  %v80 = vrsqrt.pop %v75
  %v81 = vmul.f32 %v41, %v76
  %v82 = vmul.f32 %v42, %v77
  %v83 = vmul.f32 %v43, %v78
  %v84 = vmul.f32 %v44, %v79
  %v85 = vmul.f32 %v45, %v80
  %v86 = vld [vmem:[%s1] sm:$0x1]
  %v88 = vlaneseq
  %v89 = vshrl.u32 %v88, 7
  %v90 = vsub.s32 0, %v89
  %v91 = vrot.slane %v86, %v90
  %v93 = vmul.f32 %v81, %v91
  %v94 = vmul.f32 %v82, %v91
  %v95 = vmul.f32 %v83, %v91
  %v96 = vmul.f32 %v84, %v91
  %v97 = vmul.f32 %v85, %v91
  %v98 = vld [vmem:[%s2] sm:$0x1]
  %v100 = vlaneseq
  %v101 = vshrl.u32 %v100, 7
  %v102 = vsub.s32 0, %v101
  %v103 = vrot.slane %v98, %v102
  %v105 = vadd.f32 %v93, %v103
  %v106 = vadd.f32 %v94, %v103
  %v107 = vadd.f32 %v95, %v103
  %v108 = vadd.f32 %v96, %v103
  %v109 = vadd.f32 %v97, %v103
  %110 = vst.msk [vmem:[%s3] sm:$0xff] %vm19, %v105
  %111 = vst.msk [vmem:[%s3 + $0x8] sm:$0xff] %vm19, %v106
  %112 = vst.msk [vmem:[%s3 + $0x10] sm:$0xff] %vm19, %v107
  %113 = vst.msk [vmem:[%s3 + $0x18] sm:$0xff] %vm19, %v108
  %114 = vst.msk [vmem:[%s3 + $0x20] sm:$0xff] %vm19, %v109
  // Predicated region
  $region14: #{setr_pup_forward.27} parent=0 // pred_check
    _
  $region15: #{setr_pup_forward.27} parent=0 // pred_check_branch
    %116 = sbr.rel (0) target = $region17
  $region16: #{setr_pup_forward.27} parent=0 // pred_region
    _
  $region17: #{setr_pup_forward.27} parent=0 // pred_fallthru
    _
  // Predicated region
  $region18: #{setr_pup_forward.27} parent=0 // pred_check
    _
  $region19: #{setr_pup_forward.27} parent=0 // pred_check_branch
    %118 = sbr.rel (0) target = $region21
  $region20: #{setr_pup_forward.27} parent=0 // pred_region
    _
  $region21: #{setr_pup_forward.27} parent=0 // pred_fallthru
    _

// kernel: setr_pup_forward.21
$region0: #{setr_pup_forward.21}
  #allocation0 [shape = 'u32[]', space=smem, size = 0x4, offset = 0x4, fixed_abs, tag = 'smem constant byte address 0x4 - core index']
  #allocation1 [shape = 'u32[144,128]{1,0:T(1,128)}', space=vmem, size = 0x12000, scoped, tag = 'internal scratch']
  #allocation2 [shape = 'f32[48,32]{1,0:T(8,128)}', space=vmem, size = 0x6000, scoped, tag = 'scratch operand']
  %s0 = inlined_call_operand.vmem [shape: bf16[48,64], index: 0, kind: input, shape index: {}]
  %s1 = inlined_call_operand.vmem [shape: bf16[64,32], index: 1, kind: input, shape index: {}]
  %s2 = inlined_call_operand.vmem [shape: f32[1,32], index: 2, kind: input, shape index: {}]
  %s3 = inlined_call_operand.vmem [shape: f32[48,32], index: 3, kind: input, shape index: {}]
  %s4 = inlined_call_operand.vmem [shape: f32[48,32], index: 4, kind: output, shape index: {}]
  %s5 = sld [smem:[#allocation0]]
  $region34: #{setr_pup_forward.21} parent=0
    _
  %s7 = ssub.s32 1, %s5
  %s8 = scalar_select 0, %s7, %s5
  // Predicated region
  $region2: #{setr_pup_forward.21} parent=0 // pred_check
    _
  $region3: #{setr_pup_forward.21} parent=0 // pred_check_branch
    %10 = sbr.rel (0) target = $region5
  $region4: #{setr_pup_forward.21} parent=0 // pred_region
    _
  $region5: #{setr_pup_forward.21} parent=0 // pred_fallthru
    _
  // Predicated region
  $region6: #{setr_pup_forward.21} parent=0 // pred_check
    _
  $region7: #{setr_pup_forward.21} parent=0 // pred_check_branch
    %12 = sbr.rel (0) target = $region9
  $region8: #{setr_pup_forward.21} parent=0 // pred_region
    _
  $region9: #{setr_pup_forward.21} parent=0 // pred_fallthru
    _
  // Predicated region
  $region10: #{setr_pup_forward.21} parent=0 // pred_check
    _
  $region11: #{setr_pup_forward.21} parent=0 // pred_check_branch
    %14 = sbr.rel (0) target = $region13
  $region12: #{setr_pup_forward.21} parent=0 // pred_region
    _
  $region13: #{setr_pup_forward.21} parent=0 // pred_fallthru
    _
  // Predicated region
  $region14: #{setr_pup_forward.21} parent=0 // pred_check
    _
  $region15: #{setr_pup_forward.21} parent=0 // pred_check_branch
    %16 = sbr.rel (0) target = $region17
  $region16: #{setr_pup_forward.21} parent=0 // pred_region
    _
  $region17: #{setr_pup_forward.21} parent=0 // pred_fallthru
    _
  %p18 = scmp.eq.s32.totalorder 0, 0
  // Predicated region
  $region18: #{setr_pup_forward.21} parent=0 // pred_check
    %p19 = pneg %p18
  $region19: #{setr_pup_forward.21} parent=0 // pred_check_branch
    %21 = sbr.rel (%p19) target = $region21
  $region20: #{setr_pup_forward.21} parent=0 // pred_region
    %vm22 = vcmask 261120
    %23 = vst.msk [vmem:[#allocation2] sm:$0xff] %vm22, 0.0
    %24 = vst.msk [vmem:[#allocation2 + $0x8] sm:$0xff] %vm22, 0.0
    %25 = vst.msk [vmem:[#allocation2 + $0x10] sm:$0xff] %vm22, 0.0
    %26 = vst.msk [vmem:[#allocation2 + $0x18] sm:$0xff] %vm22, 0.0
    %27 = vst.msk [vmem:[#allocation2 + $0x20] sm:$0xff] %vm22, 0.0
    %28 = vst.msk [vmem:[#allocation2 + $0x28] sm:$0xff] %vm22, 0.0
  $region21: #{setr_pup_forward.21} parent=0 // pred_fallthru
    _
  %v29 = vld [vmem:[%s0] sm:$0xf]
  %v30 = vld [vmem:[%s0 + $0x4] sm:$0xf]
  %v31 = vld [vmem:[%s0 + $0x8] sm:$0xf]
  %v32 = vld [vmem:[%s0 + $0xc] sm:$0xf]
  %v33 = vld [vmem:[%s0 + $0x10] sm:$0xf]
  %v34 = vld [vmem:[%s0 + $0x14] sm:$0xf]
  %v35 = vld [vmem:[#allocation2] sm:$0xff]
  %v36 = vld [vmem:[#allocation2 + $0x8] sm:$0xff]
  %v37 = vld [vmem:[#allocation2 + $0x10] sm:$0xff]
  %v38 = vld [vmem:[#allocation2 + $0x18] sm:$0xff]
  %v39 = vld [vmem:[#allocation2 + $0x20] sm:$0xff]
  %v40 = vld [vmem:[#allocation2 + $0x28] sm:$0xff]
  %v41 = vld [vmem:[%s1] sm:$0xf]
  %v42 = vld [vmem:[%s1 + $0x4] sm:$0xf]
  %v43 = vld [vmem:[%s1 + $0x8] sm:$0xf]
  %v44 = vld [vmem:[%s1 + $0xc] sm:$0xf]
  %v45 = vld [vmem:[%s1 + $0x10] sm:$0xf]
  %v46 = vld [vmem:[%s1 + $0x14] sm:$0xf]
  %v47 = vld [vmem:[%s1 + $0x18] sm:$0xf]
  %v48 = vld [vmem:[%s1 + $0x1c] sm:$0xf]
  %v55 = vunpack.c.l.b16 %v29
  %v56 = vunpack.c.l.b16 %v30
  %v57 = vunpack.c.l.b16 %v31
  %v58 = vunpack.c.l.b16 %v32
  %v59 = vunpack.c.l.b16 %v33
  %v60 = vunpack.c.l.b16 %v34
  %v61 = vpack.c.b16 %v56, %v55
  %v62 = vpack.c.b16 %v58, %v57
  %v63 = vpack.c.b16 %v60, %v59
  %v72 = vunpack.c.l.b16 %v41
  %v73 = vunpack.c.l.b16 %v42
  %v74 = vunpack.c.l.b16 %v43
  %v75 = vunpack.c.l.b16 %v44
  %v76 = vunpack.c.l.b16 %v45
  %v77 = vunpack.c.l.b16 %v46
  %v78 = vunpack.c.l.b16 %v47
  %v79 = vunpack.c.l.b16 %v48
  %v80 = vpack.c.b16 %v73, %v72
  %v81 = vpack.c.b16 %v75, %v74
  %v82 = vpack.c.b16 %v77, %v76
  %v83 = vpack.c.b16 %v79, %v78
  %vm88 = vcmask 523264
  %v90 = vsel %vm88, %v61, 0
  %v93 = vsel %vm88, %v62, 0
  %v96 = vsel %vm88, %v63, 0
  %98 = vmatprep.subr.bf16.mxu0 0
  %99 = vmatpush1.bf16.msra.mxu0 %v80
  %100 = vmatprep.subr.bf16.mxu0 0
  %101 = vmatpush1.bf16.msra.mxu0 %v81
  %102 = vmatprep.subr.bf16.mxu0 0
  %103 = vmatpush1.bf16.msra.mxu0 %v82
  %104 = vmatprep.subr.bf16.mxu0 0
  %105 = vmatpush1.bf16.msra.mxu0 %v83
  %106 = vmatprep.subr.bf16.mxu0 0
  %107 = vmatpush1.bf16.msra.mxu0 0
  %108 = vmatprep.subr.bf16.mxu0 0
  %109 = vmatpush1.bf16.msra.mxu0 0
  %110 = vmatprep.subr.bf16.mxu0 0
  %111 = vmatpush1.bf16.msra.mxu0 0
  %112 = vmatprep.subr.bf16.mxu0 0
  %113 = vmatpush1.bf16.msra.mxu0 0
  %114 = vmatprep.subr.bf16.mxu0 0
  %115 = vmatpush1.bf16.msra.mxu0 0
  %116 = vmatprep.subr.bf16.mxu0 0
  %117 = vmatpush1.bf16.msra.mxu0 0
  %118 = vmatprep.subr.bf16.mxu0 0
  %119 = vmatpush1.bf16.msra.mxu0 0
  %120 = vmatprep.subr.bf16.mxu0 0
  %121 = vmatpush1.bf16.msra.mxu0 0
  %122 = vmatprep.subr.bf16.mxu0 0
  %123 = vmatpush1.bf16.msra.mxu0 0
  %124 = vmatprep.subr.bf16.mxu0 0
  %125 = vmatpush1.bf16.msra.mxu0 0
  %126 = vmatprep.subr.bf16.mxu0 0
  %127 = vmatpush1.bf16.msra.mxu0 0
  %128 = vmatprep.subr.bf16.mxu0 0
  %129 = vmatpush1.bf16.msra.mxu0 0
  %130 = vmatprep.mubr.bf16.mxu0 0
  %131 = vmatmul.mubr.bf16.gmra.mrb[0].mxu0 %v90
  %v132 = vpop.f32.mrb[0].mxu0
  %v133 = vadd.f32 0.0, %v132
  %v134 = vpop.f32.mrb[0].mxu0
  %v135 = vpop.f32.mrb[0].mxu0
  %v136 = vadd.f32 0.0, %v135
  %v137 = vpop.f32.mrb[0].mxu0
  %138 = vmatprep.mubr.bf16.mxu0 0
  %139 = vmatmul.mubr.bf16.gmra.mrb[0].mxu0 %v93
  %v140 = vpop.f32.mrb[0].mxu0
  %v141 = vadd.f32 0.0, %v140
  %v142 = vpop.f32.mrb[0].mxu0
  %v143 = vpop.f32.mrb[0].mxu0
  %v144 = vadd.f32 0.0, %v143
  %v145 = vpop.f32.mrb[0].mxu0
  %146 = vmatprep.mubr.bf16.mxu0 0
  %147 = vmatmul.mubr.bf16.gmra.mrb[0].mxu0 %v96
  %v148 = vpop.f32.mrb[0].mxu0
  %v149 = vadd.f32 0.0, %v148
  %v150 = vpop.f32.mrb[0].mxu0
  %v151 = vpop.f32.mrb[0].mxu0
  %v152 = vadd.f32 0.0, %v151
  %v153 = vpop.f32.mrb[0].mxu0
  %154 = vdwg.mxu0
  %v155 = vadd.f32 %v35, %v133
  %v156 = vadd.f32 %v36, %v136
  %v157 = vadd.f32 %v37, %v141
  %v158 = vadd.f32 %v38, %v144
  %v159 = vadd.f32 %v39, %v149
  %v160 = vadd.f32 %v40, %v152
  %vm161 = vcmask 261120
  %162 = vst.msk [vmem:[#allocation2] sm:$0xff] %vm161, %v155
  %163 = vst.msk [vmem:[#allocation2 + $0x8] sm:$0xff] %vm161, %v156
  %164 = vst.msk [vmem:[#allocation2 + $0x10] sm:$0xff] %vm161, %v157
  %165 = vst.msk [vmem:[#allocation2 + $0x18] sm:$0xff] %vm161, %v158
  %166 = vst.msk [vmem:[#allocation2 + $0x20] sm:$0xff] %vm161, %v159
  %167 = vst.msk [vmem:[#allocation2 + $0x28] sm:$0xff] %vm161, %v160
  // Predicated region
  $region22: #{setr_pup_forward.21} parent=0 // pred_check
    %p168 = pneg %p18
  $region23: #{setr_pup_forward.21} parent=0 // pred_check_branch
    %170 = sbr.rel (%p168) target = $region25
  $region24: #{setr_pup_forward.21} parent=0 // pred_region
    %v171 = vld [vmem:[#allocation2] sm:$0xff]
    %v172 = vld [vmem:[#allocation2 + $0x8] sm:$0xff]
    %v173 = vld [vmem:[#allocation2 + $0x10] sm:$0xff]
    %v174 = vld [vmem:[#allocation2 + $0x18] sm:$0xff]
    %v175 = vld [vmem:[#allocation2 + $0x20] sm:$0xff]
    %v176 = vld [vmem:[#allocation2 + $0x28] sm:$0xff]
    %v177 = vld [vmem:[%s2] sm:$0x1]
    %v179 = vlaneseq
    %v180 = vshrl.u32 %v179, 7
    %v181 = vsub.s32 0, %v180
    %v182 = vrot.slane %v177, %v181
    %v184 = vadd.f32 %v171, %v182
    %v185 = vadd.f32 %v172, %v182
    %v186 = vadd.f32 %v173, %v182
    %v187 = vadd.f32 %v174, %v182
    %v188 = vadd.f32 %v175, %v182
    %v189 = vadd.f32 %v176, %v182
    %v190 = vld [vmem:[%s3] sm:$0xff]
    %v191 = vld [vmem:[%s3 + $0x8] sm:$0xff]
    %v192 = vld [vmem:[%s3 + $0x10] sm:$0xff]
    %v193 = vld [vmem:[%s3 + $0x18] sm:$0xff]
    %v194 = vld [vmem:[%s3 + $0x20] sm:$0xff]
    %v195 = vld [vmem:[%s3 + $0x28] sm:$0xff]
    %v196 = vadd.f32 %v184, %v190
    %v197 = vadd.f32 %v185, %v191
    %v198 = vadd.f32 %v186, %v192
    %v199 = vadd.f32 %v187, %v193
    %v200 = vadd.f32 %v188, %v194
    %v201 = vadd.f32 %v189, %v195
    %202 = vst.msk [vmem:[%s4] sm:$0xff] %vm161, %v196
    %203 = vst.msk [vmem:[%s4 + $0x8] sm:$0xff] %vm161, %v197
    %204 = vst.msk [vmem:[%s4 + $0x10] sm:$0xff] %vm161, %v198
    %205 = vst.msk [vmem:[%s4 + $0x18] sm:$0xff] %vm161, %v199
    %206 = vst.msk [vmem:[%s4 + $0x20] sm:$0xff] %vm161, %v200
    %207 = vst.msk [vmem:[%s4 + $0x28] sm:$0xff] %vm161, %v201
  $region25: #{setr_pup_forward.21} parent=0 // pred_fallthru
    _
  // Predicated region
  $region26: #{setr_pup_forward.21} parent=0 // pred_check
    _
  $region27: #{setr_pup_forward.21} parent=0 // pred_check_branch
    %209 = sbr.rel (0) target = $region29
  $region28: #{setr_pup_forward.21} parent=0 // pred_region
    _
  $region29: #{setr_pup_forward.21} parent=0 // pred_fallthru
    _
  // Predicated region
  $region30: #{setr_pup_forward.21} parent=0 // pred_check
    _
  $region31: #{setr_pup_forward.21} parent=0 // pred_check_branch
    %211 = sbr.rel (0) target = $region33
  $region32: #{setr_pup_forward.21} parent=0 // pred_region
    _
  $region33: #{setr_pup_forward.21} parent=0 // pred_fallthru
    _

// kernel: setr_pup_forward.28
$region0: #{setr_pup_forward.28}
  #allocation0 [shape = 'u32[]', space=smem, size = 0x4, offset = 0x4, fixed_abs, tag = 'smem constant byte address 0x4 - core index']
  #allocation1 [shape = 'u32[144,128]{1,0:T(1,128)}', space=vmem, size = 0x12000, scoped, tag = 'internal scratch']
  %s0 = inlined_call_operand.vmem [shape: f32[32,32], index: 0, kind: input, shape index: {}]
  %s1 = inlined_call_operand.vmem [shape: f32[1,32], index: 1, kind: input, shape index: {}]
  %s2 = inlined_call_operand.vmem [shape: f32[1,32], index: 2, kind: input, shape index: {}]
  %s3 = inlined_call_operand.vmem [shape: bf16[32,32], index: 3, kind: output, shape index: {}]
  %s4 = sld [smem:[#allocation0]]
  $region22: #{setr_pup_forward.28} parent=0
    _
  %s6 = ssub.s32 1, %s4
  %s7 = scalar_select 0, %s6, %s4
  // Predicated region
  $region2: #{setr_pup_forward.28} parent=0 // pred_check
    _
  $region3: #{setr_pup_forward.28} parent=0 // pred_check_branch
    %9 = sbr.rel (0) target = $region5
  $region4: #{setr_pup_forward.28} parent=0 // pred_region
    _
  $region5: #{setr_pup_forward.28} parent=0 // pred_fallthru
    _
  // Predicated region
  $region6: #{setr_pup_forward.28} parent=0 // pred_check
    _
  $region7: #{setr_pup_forward.28} parent=0 // pred_check_branch
    %11 = sbr.rel (0) target = $region9
  $region8: #{setr_pup_forward.28} parent=0 // pred_region
    _
  $region9: #{setr_pup_forward.28} parent=0 // pred_fallthru
    _
  // Predicated region
  $region10: #{setr_pup_forward.28} parent=0 // pred_check
    _
  $region11: #{setr_pup_forward.28} parent=0 // pred_check_branch
    %13 = sbr.rel (0) target = $region13
  $region12: #{setr_pup_forward.28} parent=0 // pred_region
    _
  $region13: #{setr_pup_forward.28} parent=0 // pred_fallthru
    _
  %v14 = vld [vmem:[%s0] sm:$0xff]
  %v15 = vld [vmem:[%s0 + $0x8] sm:$0xff]
  %v16 = vld [vmem:[%s0 + $0x10] sm:$0xff]
  %v17 = vld [vmem:[%s0 + $0x18] sm:$0xff]
  %vm18 = vcmask 261120
  %v19 = vsel %vm18, %v14, 0.0
  %20 = vadd.xlane.f32.xlu0 %v19
  %v21 = vpop.xlane.xlu0 %20
  %v22 = vsel %vm18, %v15, 0.0
  %23 = vadd.xlane.f32.xlu0 %v22
  %v24 = vpop.xlane.xlu0 %23
  %v25 = vsel %vm18, %v16, 0.0
  %26 = vadd.xlane.f32.xlu0 %v25
  %v27 = vpop.xlane.xlu0 %26
  %v28 = vsel %vm18, %v17, 0.0
  %29 = vadd.xlane.f32.xlu0 %v28
  %v30 = vpop.xlane.xlu0 %29
  %v31 = vrcp.pop 32.0
  %v32 = vmul.f32 %v21, %v31
  %v33 = vmul.f32 %v24, %v31
  %v34 = vmul.f32 %v27, %v31
  %v35 = vmul.f32 %v30, %v31
  %v36 = vsub.f32 %v14, %v32
  %v37 = vsub.f32 %v15, %v33
  %v38 = vsub.f32 %v16, %v34
  %v39 = vsub.f32 %v17, %v35
  %v40 = vmul.f32 %v36, %v36
  %v41 = vmul.f32 %v37, %v37
  %v42 = vmul.f32 %v38, %v38
  %v43 = vmul.f32 %v39, %v39
  %v44 = vsel %vm18, %v40, 0.0
  %45 = vadd.xlane.f32.xlu0 %v44
  %v46 = vpop.xlane.xlu0 %45
  %v47 = vsel %vm18, %v41, 0.0
  %48 = vadd.xlane.f32.xlu0 %v47
  %v49 = vpop.xlane.xlu0 %48
  %v50 = vsel %vm18, %v42, 0.0
  %51 = vadd.xlane.f32.xlu0 %v50
  %v52 = vpop.xlane.xlu0 %51
  %v53 = vsel %vm18, %v43, 0.0
  %54 = vadd.xlane.f32.xlu0 %v53
  %v55 = vpop.xlane.xlu0 %54
  %v56 = vmul.f32 %v46, %v31
  %v57 = vmul.f32 %v49, %v31
  %v58 = vmul.f32 %v52, %v31
  %v59 = vmul.f32 %v55, %v31
  %v60 = vadd.f32 %v56, 1e-05
  %v61 = vadd.f32 %v57, 1e-05
  %v62 = vadd.f32 %v58, 1e-05
  %v63 = vadd.f32 %v59, 1e-05
  %v64 = vrsqrt.pop %v60
  %v65 = vrsqrt.pop %v61
  %v66 = vrsqrt.pop %v62
  %v67 = vrsqrt.pop %v63
  %v68 = vmul.f32 %v36, %v64
  %v69 = vmul.f32 %v37, %v65
  %v70 = vmul.f32 %v38, %v66
  %v71 = vmul.f32 %v39, %v67
  %v72 = vld [vmem:[%s1] sm:$0x1]
  %v74 = vlaneseq
  %v75 = vshrl.u32 %v74, 7
  %v76 = vsub.s32 0, %v75
  %v77 = vrot.slane %v72, %v76
  %v79 = vmul.f32 %v68, %v77
  %v80 = vmul.f32 %v69, %v77
  %v81 = vmul.f32 %v70, %v77
  %v82 = vmul.f32 %v71, %v77
  %v83 = vld [vmem:[%s2] sm:$0x1]
  %v85 = vlaneseq
  %v86 = vshrl.u32 %v85, 7
  %v87 = vsub.s32 0, %v86
  %v88 = vrot.slane %v83, %v87
  %v90 = vadd.f32 %v79, %v88
  %v91 = vadd.f32 %v80, %v88
  %v92 = vadd.f32 %v81, %v88
  %v93 = vadd.f32 %v82, %v88
  %v94 = vpack.c.bf16 %v91, %v90
  %v95 = vpack.c.bf16 %v93, %v92
  %v98 = vunpack.c.l.b16 %v94
  %v99 = vunpack.c.h.b16 %v94
  %v100 = vunpack.c.l.b16 %v95
  %v101 = vunpack.c.h.b16 %v95
  %v102 = vpack.c.b16 %v98, %v98
  %v103 = vpack.c.b16 %v99, %v99
  %v104 = vpack.c.b16 %v100, %v100
  %v105 = vpack.c.b16 %v101, %v101
  %vm110 = vcmask 257024
  %111 = vst.msk [vmem:[%s3] sm:$0xf] %vm110, %v102
  %112 = vst.msk [vmem:[%s3 + $0x4] sm:$0xf] %vm110, %v103
  %113 = vst.msk [vmem:[%s3 + $0x8] sm:$0xf] %vm110, %v104
  %114 = vst.msk [vmem:[%s3 + $0xc] sm:$0xf] %vm110, %v105
  // Predicated region
  $region14: #{setr_pup_forward.28} parent=0 // pred_check
    _
  $region15: #{setr_pup_forward.28} parent=0 // pred_check_branch
    %116 = sbr.rel (0) target = $region17
  $region16: #{setr_pup_forward.28} parent=0 // pred_region
    _
  $region17: #{setr_pup_forward.28} parent=0 // pred_fallthru
    _
  // Predicated region
  $region18: #{setr_pup_forward.28} parent=0 // pred_check
    _
  $region19: #{setr_pup_forward.28} parent=0 // pred_check_branch
    %118 = sbr.rel (0) target = $region21
  $region20: #{setr_pup_forward.28} parent=0 // pred_region
    _
  $region21: #{setr_pup_forward.28} parent=0 // pred_fallthru
    _

// kernel: setr_pup_forward.20
$region0: #{setr_pup_forward.20}
  #allocation0 [shape = 'u32[]', space=smem, size = 0x4, offset = 0x4, fixed_abs, tag = 'smem constant byte address 0x4 - core index']
  #allocation1 [shape = 'u32[144,128]{1,0:T(1,128)}', space=vmem, size = 0x12000, scoped, tag = 'internal scratch']
  #allocation2 [shape = 'f32[48,64]{1,0:T(8,128)}', space=vmem, size = 0x6000, scoped, tag = 'scratch operand']
  %s0 = inlined_call_operand.vmem [shape: f32[48,32], index: 0, kind: input, shape index: {}]
  %s1 = inlined_call_operand.vmem [shape: bf16[32,64], index: 1, kind: input, shape index: {}]
  %s2 = inlined_call_operand.vmem [shape: f32[1,32], index: 2, kind: input, shape index: {}]
  %s3 = inlined_call_operand.vmem [shape: f32[1,32], index: 3, kind: input, shape index: {}]
  %s4 = inlined_call_operand.vmem [shape: f32[1,64], index: 4, kind: input, shape index: {}]
  %s5 = inlined_call_operand.vmem [shape: bf16[48,64], index: 5, kind: output, shape index: {}]
  %s6 = sld [smem:[#allocation0]]
  $region38: #{setr_pup_forward.20} parent=0
    _
  %s8 = ssub.s32 1, %s6
  %s9 = scalar_select 0, %s8, %s6
  // Predicated region
  $region2: #{setr_pup_forward.20} parent=0 // pred_check
    _
  $region3: #{setr_pup_forward.20} parent=0 // pred_check_branch
    %11 = sbr.rel (0) target = $region5
  $region4: #{setr_pup_forward.20} parent=0 // pred_region
    _
  $region5: #{setr_pup_forward.20} parent=0 // pred_fallthru
    _
  // Predicated region
  $region6: #{setr_pup_forward.20} parent=0 // pred_check
    _
  $region7: #{setr_pup_forward.20} parent=0 // pred_check_branch
    %13 = sbr.rel (0) target = $region9
  $region8: #{setr_pup_forward.20} parent=0 // pred_region
    _
  $region9: #{setr_pup_forward.20} parent=0 // pred_fallthru
    _
  // Predicated region
  $region10: #{setr_pup_forward.20} parent=0 // pred_check
    _
  $region11: #{setr_pup_forward.20} parent=0 // pred_check_branch
    %15 = sbr.rel (0) target = $region13
  $region12: #{setr_pup_forward.20} parent=0 // pred_region
    _
  $region13: #{setr_pup_forward.20} parent=0 // pred_fallthru
    _
  // Predicated region
  $region14: #{setr_pup_forward.20} parent=0 // pred_check
    _
  $region15: #{setr_pup_forward.20} parent=0 // pred_check_branch
    %17 = sbr.rel (0) target = $region17
  $region16: #{setr_pup_forward.20} parent=0 // pred_region
    _
  $region17: #{setr_pup_forward.20} parent=0 // pred_fallthru
    _
  // Predicated region
  $region18: #{setr_pup_forward.20} parent=0 // pred_check
    _
  $region19: #{setr_pup_forward.20} parent=0 // pred_check_branch
    %19 = sbr.rel (0) target = $region21
  $region20: #{setr_pup_forward.20} parent=0 // pred_region
    _
  $region21: #{setr_pup_forward.20} parent=0 // pred_fallthru
    _
  %p21 = scmp.eq.s32.totalorder 0, 0
  // Predicated region
  $region22: #{setr_pup_forward.20} parent=0 // pred_check
    %p22 = pneg %p21
  $region23: #{setr_pup_forward.20} parent=0 // pred_check_branch
    %24 = sbr.rel (%p22) target = $region25
  $region24: #{setr_pup_forward.20} parent=0 // pred_region
    %vm25 = vcmask 523264
    %26 = vst.msk [vmem:[#allocation2] sm:$0xff] %vm25, 0.0
    %27 = vst.msk [vmem:[#allocation2 + $0x8] sm:$0xff] %vm25, 0.0
    %28 = vst.msk [vmem:[#allocation2 + $0x10] sm:$0xff] %vm25, 0.0
    %29 = vst.msk [vmem:[#allocation2 + $0x18] sm:$0xff] %vm25, 0.0
    %30 = vst.msk [vmem:[#allocation2 + $0x20] sm:$0xff] %vm25, 0.0
    %31 = vst.msk [vmem:[#allocation2 + $0x28] sm:$0xff] %vm25, 0.0
  $region25: #{setr_pup_forward.20} parent=0 // pred_fallthru
    _
  %v32 = vld [vmem:[%s0] sm:$0xff]
  %v33 = vld [vmem:[%s0 + $0x8] sm:$0xff]
  %v34 = vld [vmem:[%s0 + $0x10] sm:$0xff]
  %v35 = vld [vmem:[%s0 + $0x18] sm:$0xff]
  %v36 = vld [vmem:[%s0 + $0x20] sm:$0xff]
  %v37 = vld [vmem:[%s0 + $0x28] sm:$0xff]
  %vm38 = vcmask 261120
  %v39 = vsel %vm38, %v32, 0.0
  %40 = vadd.xlane.f32.xlu0 %v39
  %v41 = vpop.xlane.xlu0 %40
  %v42 = vsel %vm38, %v33, 0.0
  %43 = vadd.xlane.f32.xlu0 %v42
  %v44 = vpop.xlane.xlu0 %43
  %v45 = vsel %vm38, %v34, 0.0
  %46 = vadd.xlane.f32.xlu0 %v45
  %v47 = vpop.xlane.xlu0 %46
  %v48 = vsel %vm38, %v35, 0.0
  %49 = vadd.xlane.f32.xlu0 %v48
  %v50 = vpop.xlane.xlu0 %49
  %v51 = vsel %vm38, %v36, 0.0
  %52 = vadd.xlane.f32.xlu0 %v51
  %v53 = vpop.xlane.xlu0 %52
  %v54 = vsel %vm38, %v37, 0.0
  %55 = vadd.xlane.f32.xlu0 %v54
  %v56 = vpop.xlane.xlu0 %55
  %v57 = vrcp.pop 32.0
  %v58 = vmul.f32 %v41, %v57
  %v59 = vmul.f32 %v44, %v57
  %v60 = vmul.f32 %v47, %v57
  %v61 = vmul.f32 %v50, %v57
  %v62 = vmul.f32 %v53, %v57
  %v63 = vmul.f32 %v56, %v57
  %v64 = vsub.f32 %v32, %v58
  %v65 = vsub.f32 %v33, %v59
  %v66 = vsub.f32 %v34, %v60
  %v67 = vsub.f32 %v35, %v61
  %v68 = vsub.f32 %v36, %v62
  %v69 = vsub.f32 %v37, %v63
  %v70 = vmul.f32 %v64, %v64
  %v71 = vmul.f32 %v65, %v65
  %v72 = vmul.f32 %v66, %v66
  %v73 = vmul.f32 %v67, %v67
  %v74 = vmul.f32 %v68, %v68
  %v75 = vmul.f32 %v69, %v69
  %v76 = vsel %vm38, %v70, 0.0
  %77 = vadd.xlane.f32.xlu0 %v76
  %v78 = vpop.xlane.xlu0 %77
  %v79 = vsel %vm38, %v71, 0.0
  %80 = vadd.xlane.f32.xlu0 %v79
  %v81 = vpop.xlane.xlu0 %80
  %v82 = vsel %vm38, %v72, 0.0
  %83 = vadd.xlane.f32.xlu0 %v82
  %v84 = vpop.xlane.xlu0 %83
  %v85 = vsel %vm38, %v73, 0.0
  %86 = vadd.xlane.f32.xlu0 %v85
  %v87 = vpop.xlane.xlu0 %86
  %v88 = vsel %vm38, %v74, 0.0
  %89 = vadd.xlane.f32.xlu0 %v88
  %v90 = vpop.xlane.xlu0 %89
  %v91 = vsel %vm38, %v75, 0.0
  %92 = vadd.xlane.f32.xlu0 %v91
  %v93 = vpop.xlane.xlu0 %92
  %v94 = vmul.f32 %v78, %v57
  %v95 = vmul.f32 %v81, %v57
  %v96 = vmul.f32 %v84, %v57
  %v97 = vmul.f32 %v87, %v57
  %v98 = vmul.f32 %v90, %v57
  %v99 = vmul.f32 %v93, %v57
  %v100 = vadd.f32 %v94, 1e-06
  %v101 = vadd.f32 %v95, 1e-06
  %v102 = vadd.f32 %v96, 1e-06
  %v103 = vadd.f32 %v97, 1e-06
  %v104 = vadd.f32 %v98, 1e-06
  %v105 = vadd.f32 %v99, 1e-06
  %v106 = vrsqrt.pop %v100
  %v107 = vrsqrt.pop %v101
  %v108 = vrsqrt.pop %v102
  %v109 = vrsqrt.pop %v103
  %v110 = vrsqrt.pop %v104
  %v111 = vrsqrt.pop %v105
  %v112 = vmul.f32 %v64, %v106
  %v113 = vmul.f32 %v65, %v107
  %v114 = vmul.f32 %v66, %v108
  %v115 = vmul.f32 %v67, %v109
  %v116 = vmul.f32 %v68, %v110
  %v117 = vmul.f32 %v69, %v111
  %v118 = vld [vmem:[%s2] sm:$0x1]
  %v120 = vlaneseq
  %v121 = vshrl.u32 %v120, 7
  %v122 = vsub.s32 0, %v121
  %v123 = vrot.slane %v118, %v122
  %v125 = vmul.f32 %v112, %v123
  %v126 = vmul.f32 %v113, %v123
  %v127 = vmul.f32 %v114, %v123
  %v128 = vmul.f32 %v115, %v123
  %v129 = vmul.f32 %v116, %v123
  %v130 = vmul.f32 %v117, %v123
  %v131 = vld [vmem:[%s3] sm:$0x1]
  %v133 = vlaneseq
  %v134 = vshrl.u32 %v133, 7
  %v135 = vsub.s32 0, %v134
  %v136 = vrot.slane %v131, %v135
  %v138 = vadd.f32 %v125, %v136
  %v139 = vadd.f32 %v126, %v136
  %v140 = vadd.f32 %v127, %v136
  %v141 = vadd.f32 %v128, %v136
  %v142 = vadd.f32 %v129, %v136
  %v143 = vadd.f32 %v130, %v136
  %v144 = vpack.c.bf16 %v139, %v138
  %v145 = vpack.c.bf16 %v141, %v140
  %v146 = vpack.c.bf16 %v143, %v142
  %v147 = vld [vmem:[#allocation2] sm:$0xff]
  %v148 = vld [vmem:[#allocation2 + $0x8] sm:$0xff]
  %v149 = vld [vmem:[#allocation2 + $0x10] sm:$0xff]
  %v150 = vld [vmem:[#allocation2 + $0x18] sm:$0xff]
  %v151 = vld [vmem:[#allocation2 + $0x20] sm:$0xff]
  %v152 = vld [vmem:[#allocation2 + $0x28] sm:$0xff]
  %v153 = vld [vmem:[%s1] sm:$0xf]
  %v154 = vld [vmem:[%s1 + $0x4] sm:$0xf]
  %v155 = vld [vmem:[%s1 + $0x8] sm:$0xf]
  %v156 = vld [vmem:[%s1 + $0xc] sm:$0xf]
  %v161 = vunpack.c.l.b16 %v153
  %v162 = vunpack.c.l.b16 %v154
  %v163 = vunpack.c.l.b16 %v155
  %v164 = vunpack.c.l.b16 %v156
  %v165 = vpack.c.b16 %v162, %v161
  %v166 = vpack.c.b16 %v164, %v163
  %v170 = vsel %vm38, %v144, 0
  %v173 = vsel %vm38, %v145, 0
  %v176 = vsel %vm38, %v146, 0
  %178 = vmatprep.subr.bf16.mxu0 0
  %179 = vmatpush1.bf16.msra.mxu0 %v165
  %180 = vmatprep.subr.bf16.mxu0 0
  %181 = vmatpush1.bf16.msra.mxu0 %v166
  %182 = vmatprep.subr.bf16.mxu0 0
  %183 = vmatpush1.bf16.msra.mxu0 0
  %184 = vmatprep.subr.bf16.mxu0 0
  %185 = vmatpush1.bf16.msra.mxu0 0
  %186 = vmatprep.subr.bf16.mxu0 0
  %187 = vmatpush1.bf16.msra.mxu0 0
  %188 = vmatprep.subr.bf16.mxu0 0
  %189 = vmatpush1.bf16.msra.mxu0 0
  %190 = vmatprep.subr.bf16.mxu0 0
  %191 = vmatpush1.bf16.msra.mxu0 0
  %192 = vmatprep.subr.bf16.mxu0 0
  %193 = vmatpush1.bf16.msra.mxu0 0
  %194 = vmatprep.subr.bf16.mxu0 0
  %195 = vmatpush1.bf16.msra.mxu0 0
  %196 = vmatprep.subr.bf16.mxu0 0
  %197 = vmatpush1.bf16.msra.mxu0 0
  %198 = vmatprep.subr.bf16.mxu0 0
  %199 = vmatpush1.bf16.msra.mxu0 0
  %200 = vmatprep.subr.bf16.mxu0 0
  %201 = vmatpush1.bf16.msra.mxu0 0
  %202 = vmatprep.subr.bf16.mxu0 0
  %203 = vmatpush1.bf16.msra.mxu0 0
  %204 = vmatprep.subr.bf16.mxu0 0
  %205 = vmatpush1.bf16.msra.mxu0 0
  %206 = vmatprep.subr.bf16.mxu0 0
  %207 = vmatpush1.bf16.msra.mxu0 0
  %208 = vmatprep.subr.bf16.mxu0 0
  %209 = vmatpush1.bf16.msra.mxu0 0
  %210 = vmatprep.mubr.bf16.mxu0 0
  %211 = vmatmul.mubr.bf16.gmra.mrb[0].mxu0 %v170
  %v212 = vpop.f32.mrb[0].mxu0
  %v213 = vadd.f32 0.0, %v212
  %v214 = vpop.f32.mrb[0].mxu0
  %v215 = vpop.f32.mrb[0].mxu0
  %v216 = vadd.f32 0.0, %v215
  %v217 = vpop.f32.mrb[0].mxu0
  %218 = vmatprep.mubr.bf16.mxu0 0
  %219 = vmatmul.mubr.bf16.gmra.mrb[0].mxu0 %v173
  %v220 = vpop.f32.mrb[0].mxu0
  %v221 = vadd.f32 0.0, %v220
  %v222 = vpop.f32.mrb[0].mxu0
  %v223 = vpop.f32.mrb[0].mxu0
  %v224 = vadd.f32 0.0, %v223
  %v225 = vpop.f32.mrb[0].mxu0
  %226 = vmatprep.mubr.bf16.mxu0 0
  %227 = vmatmul.mubr.bf16.gmra.mrb[0].mxu0 %v176
  %v228 = vpop.f32.mrb[0].mxu0
  %v229 = vadd.f32 0.0, %v228
  %v230 = vpop.f32.mrb[0].mxu0
  %v231 = vpop.f32.mrb[0].mxu0
  %v232 = vadd.f32 0.0, %v231
  %v233 = vpop.f32.mrb[0].mxu0
  %234 = vdwg.mxu0
  %v235 = vadd.f32 %v147, %v213
  %v236 = vadd.f32 %v148, %v216
  %v237 = vadd.f32 %v149, %v221
  %v238 = vadd.f32 %v150, %v224
  %v239 = vadd.f32 %v151, %v229
  %v240 = vadd.f32 %v152, %v232
  %vm241 = vcmask 523264
  %242 = vst.msk [vmem:[#allocation2] sm:$0xff] %vm241, %v235
  %243 = vst.msk [vmem:[#allocation2 + $0x8] sm:$0xff] %vm241, %v236
  %244 = vst.msk [vmem:[#allocation2 + $0x10] sm:$0xff] %vm241, %v237
  %245 = vst.msk [vmem:[#allocation2 + $0x18] sm:$0xff] %vm241, %v238
  %246 = vst.msk [vmem:[#allocation2 + $0x20] sm:$0xff] %vm241, %v239
  %247 = vst.msk [vmem:[#allocation2 + $0x28] sm:$0xff] %vm241, %v240
  // Predicated region
  $region26: #{setr_pup_forward.20} parent=0 // pred_check
    %p248 = pneg %p21
  $region27: #{setr_pup_forward.20} parent=0 // pred_check_branch
    %250 = sbr.rel (%p248) target = $region29
  $region28: #{setr_pup_forward.20} parent=0 // pred_region
    %v251 = vld [vmem:[#allocation2] sm:$0xff]
    %v252 = vld [vmem:[#allocation2 + $0x8] sm:$0xff]
    %v253 = vld [vmem:[#allocation2 + $0x10] sm:$0xff]
    %v254 = vld [vmem:[#allocation2 + $0x18] sm:$0xff]
    %v255 = vld [vmem:[#allocation2 + $0x20] sm:$0xff]
    %v256 = vld [vmem:[#allocation2 + $0x28] sm:$0xff]
    %v257 = vld [vmem:[%s4] sm:$0x1]
    %v259 = vlaneseq
    %v260 = vshrl.u32 %v259, 7
    %v261 = vsub.s32 0, %v260
    %v262 = vrot.slane %v257, %v261
    %v264 = vadd.f32 %v251, %v262
    %v265 = vadd.f32 %v252, %v262
    %v266 = vadd.f32 %v253, %v262
    %v267 = vadd.f32 %v254, %v262
    %v268 = vadd.f32 %v255, %v262
    %v269 = vadd.f32 %v256, %v262
    %v270 = vmul.f32 %v264, 0.5
    %v271 = vmul.f32 %v265, 0.5
    %v272 = vmul.f32 %v266, 0.5
    %v273 = vmul.f32 %v267, 0.5
    %v274 = vmul.f32 %v268, 0.5
    %v275 = vmul.f32 %v269, 0.5
    %v276 = vmul.f32 %v264, 0.70710677
    %v277 = vmul.f32 %v265, 0.70710677
    %v278 = vmul.f32 %v266, 0.70710677
    %v279 = vmul.f32 %v267, 0.70710677
    %v280 = vmul.f32 %v268, 0.70710677
    %v281 = vmul.f32 %v269, 0.70710677
    %vm282 = vcmp.ge.f32.partialorder %v276, 0.0
    %vm283 = vcmp.ge.f32.partialorder %v277, 0.0
    %vm284 = vcmp.ge.f32.partialorder %v278, 0.0
    %vm285 = vcmp.ge.f32.partialorder %v279, 0.0
    %vm286 = vcmp.ge.f32.partialorder %v280, 0.0
    %vm287 = vcmp.ge.f32.partialorder %v281, 0.0
    %v288 = vsel %vm282, 1.0, -1.0
    %v289 = vsel %vm283, 1.0, -1.0
    %v290 = vsel %vm284, 1.0, -1.0
    %v291 = vsel %vm285, 1.0, -1.0
    %v292 = vsel %vm286, 1.0, -1.0
    %v293 = vsel %vm287, 1.0, -1.0
    %v294 = vand.u32 2147483647, %v276
    %v295 = vand.u32 2147483647, %v277
    %v296 = vand.u32 2147483647, %v278
    %v297 = vand.u32 2147483647, %v279
    %v298 = vand.u32 2147483647, %v280
    %v299 = vand.u32 2147483647, %v281
    %v300 = vmul.f32 %v294, 0.3275911
    %v301 = vmul.f32 %v295, 0.3275911
    %v302 = vmul.f32 %v296, 0.3275911
    %v303 = vmul.f32 %v297, 0.3275911
    %v304 = vmul.f32 %v298, 0.3275911
    %v305 = vmul.f32 %v299, 0.3275911
    %v306 = vadd.f32 %v300, 1.0
    %v307 = vadd.f32 %v301, 1.0
    %v308 = vadd.f32 %v302, 1.0
    %v309 = vadd.f32 %v303, 1.0
    %v310 = vadd.f32 %v304, 1.0
    %v311 = vadd.f32 %v305, 1.0
    %v312 = vrcp.pop %v306
    %v313 = vrcp.pop %v307
    %v314 = vrcp.pop %v308
    %v315 = vrcp.pop %v309
    %v316 = vrcp.pop %v310
    %v317 = vrcp.pop %v311
    %v318 = vmul.f32 %v312, 1.0614054
    %v319 = vmul.f32 %v313, 1.0614054
    %v320 = vmul.f32 %v314, 1.0614054
    %v321 = vmul.f32 %v315, 1.0614054
    %v322 = vmul.f32 %v316, 1.0614054
    %v323 = vmul.f32 %v317, 1.0614054
    %v324 = vadd.f32 %v318, -1.4531521
    %v325 = vadd.f32 %v319, -1.4531521
    %v326 = vadd.f32 %v320, -1.4531521
    %v327 = vadd.f32 %v321, -1.4531521
    %v328 = vadd.f32 %v322, -1.4531521
    %v329 = vadd.f32 %v323, -1.4531521
    %v330 = vmul.f32 %v324, %v312
    %v331 = vmul.f32 %v325, %v313
    %v332 = vmul.f32 %v326, %v314
    %v333 = vmul.f32 %v327, %v315
    %v334 = vmul.f32 %v328, %v316
    %v335 = vmul.f32 %v329, %v317
    %v336 = vadd.f32 %v330, 1.4214138
    %v337 = vadd.f32 %v331, 1.4214138
    %v338 = vadd.f32 %v332, 1.4214138
    %v339 = vadd.f32 %v333, 1.4214138
    %v340 = vadd.f32 %v334, 1.4214138
    %v341 = vadd.f32 %v335, 1.4214138
    %v342 = vmul.f32 %v336, %v312
    %v343 = vmul.f32 %v337, %v313
    %v344 = vmul.f32 %v338, %v314
    %v345 = vmul.f32 %v339, %v315
    %v346 = vmul.f32 %v340, %v316
    %v347 = vmul.f32 %v341, %v317
    %v348 = vadd.f32 %v342, -0.28449672
    %v349 = vadd.f32 %v343, -0.28449672
    %v350 = vadd.f32 %v344, -0.28449672
    %v351 = vadd.f32 %v345, -0.28449672
    %v352 = vadd.f32 %v346, -0.28449672
    %v353 = vadd.f32 %v347, -0.28449672
    %v354 = vmul.f32 %v348, %v312
    %v355 = vmul.f32 %v349, %v313
    %v356 = vmul.f32 %v350, %v314
    %v357 = vmul.f32 %v351, %v315
    %v358 = vmul.f32 %v352, %v316
    %v359 = vmul.f32 %v353, %v317
    %v360 = vadd.f32 %v354, 0.2548296
    %v361 = vadd.f32 %v355, 0.2548296
    %v362 = vadd.f32 %v356, 0.2548296
    %v363 = vadd.f32 %v357, 0.2548296
    %v364 = vadd.f32 %v358, 0.2548296
    %v365 = vadd.f32 %v359, 0.2548296
    %v366 = vmul.f32 %v360, %v312
    %v367 = vmul.f32 %v361, %v313
    %v368 = vmul.f32 %v362, %v314
    %v369 = vmul.f32 %v363, %v315
    %v370 = vmul.f32 %v364, %v316
    %v371 = vmul.f32 %v365, %v317
    %v372 = vsub.f32 0.0, %v294
    %v373 = vsub.f32 0.0, %v295
    %v374 = vsub.f32 0.0, %v296
    %v375 = vsub.f32 0.0, %v297
    %v376 = vsub.f32 0.0, %v298
    %v377 = vsub.f32 0.0, %v299
    %v378 = vmul.f32 %v372, %v294
    %v379 = vmul.f32 %v373, %v295
    %v380 = vmul.f32 %v374, %v296
    %v381 = vmul.f32 %v375, %v297
    %v382 = vmul.f32 %v376, %v298
    %v383 = vmul.f32 %v377, %v299
    %v384 = vmul.f32 %v378, 1.442695
    %v385 = vpow.pop %v384
    %v386 = vmul.f32 %v379, 1.442695
    %v387 = vpow.pop %v386
    %v388 = vmul.f32 %v380, 1.442695
    %v389 = vpow.pop %v388
    %v390 = vmul.f32 %v381, 1.442695
    %v391 = vpow.pop %v390
    %v392 = vmul.f32 %v382, 1.442695
    %v393 = vpow.pop %v392
    %v394 = vmul.f32 %v383, 1.442695
    %v395 = vpow.pop %v394
    %v396 = vmul.f32 %v366, %v385
    %v397 = vmul.f32 %v367, %v387
    %v398 = vmul.f32 %v368, %v389
    %v399 = vmul.f32 %v369, %v391
    %v400 = vmul.f32 %v370, %v393
    %v401 = vmul.f32 %v371, %v395
    %v402 = vsub.f32 1.0, %v396
    %v403 = vsub.f32 1.0, %v397
    %v404 = vsub.f32 1.0, %v398
    %v405 = vsub.f32 1.0, %v399
    %v406 = vsub.f32 1.0, %v400
    %v407 = vsub.f32 1.0, %v401
    %v408 = vmul.f32 %v288, %v402
    %v409 = vmul.f32 %v289, %v403
    %v410 = vmul.f32 %v290, %v404
    %v411 = vmul.f32 %v291, %v405
    %v412 = vmul.f32 %v292, %v406
    %v413 = vmul.f32 %v293, %v407
    %v414 = vadd.f32 %v408, 1.0
    %v415 = vadd.f32 %v409, 1.0
    %v416 = vadd.f32 %v410, 1.0
    %v417 = vadd.f32 %v411, 1.0
    %v418 = vadd.f32 %v412, 1.0
    %v419 = vadd.f32 %v413, 1.0
    %v420 = vmul.f32 %v270, %v414
    %v421 = vmul.f32 %v271, %v415
    %v422 = vmul.f32 %v272, %v416
    %v423 = vmul.f32 %v273, %v417
    %v424 = vmul.f32 %v274, %v418
    %v425 = vmul.f32 %v275, %v419
    %v426 = vpack.c.bf16 %v421, %v420
    %v427 = vpack.c.bf16 %v423, %v422
    %v428 = vpack.c.bf16 %v425, %v424
    %v432 = vunpack.c.l.b16 %v426
    %v433 = vunpack.c.h.b16 %v426
    %v434 = vunpack.c.l.b16 %v427
    %v435 = vunpack.c.h.b16 %v427
    %v436 = vunpack.c.l.b16 %v428
    %v437 = vunpack.c.h.b16 %v428
    %v438 = vpack.c.b16 %v432, %v432
    %v439 = vpack.c.b16 %v433, %v433
    %v440 = vpack.c.b16 %v434, %v434
    %v441 = vpack.c.b16 %v435, %v435
    %v442 = vpack.c.b16 %v436, %v436
    %v443 = vpack.c.b16 %v437, %v437
    %vm450 = vcmask 519168
    %451 = vst.msk [vmem:[%s5] sm:$0xf] %vm450, %v438
    %452 = vst.msk [vmem:[%s5 + $0x4] sm:$0xf] %vm450, %v439
    %453 = vst.msk [vmem:[%s5 + $0x8] sm:$0xf] %vm450, %v440
    %454 = vst.msk [vmem:[%s5 + $0xc] sm:$0xf] %vm450, %v441
    %455 = vst.msk [vmem:[%s5 + $0x10] sm:$0xf] %vm450, %v442
    %456 = vst.msk [vmem:[%s5 + $0x14] sm:$0xf] %vm450, %v443
  $region29: #{setr_pup_forward.20} parent=0 // pred_fallthru
    _
  // Predicated region
  $region30: #{setr_pup_forward.20} parent=0 // pred_check
    _
  $region31: #{setr_pup_forward.20} parent=0 // pred_check_branch
    %458 = sbr.rel (0) target = $region33
  $region32: #{setr_pup_forward.20} parent=0 // pred_region
    _
  $region33: #{setr_pup_forward.20} parent=0 // pred_fallthru
    _
  // Predicated region
  $region34: #{setr_pup_forward.20} parent=0 // pred_check
    _
  $region35: #{setr_pup_forward.20} parent=0 // pred_check_branch
    %460 = sbr.rel (0) target = $region37
  $region36: #{setr_pup_forward.20} parent=0 // pred_region
    _
  $region37: #{setr_pup_forward.20} parent=0 // pred_fallthru
    _

// kernel: setr_pup_forward.29
$region0: #{setr_pup_forward.29}
  #allocation0 [shape = 'u32[]', space=smem, size = 0x4, offset = 0x4, fixed_abs, tag = 'smem constant byte address 0x4 - core index']
  #allocation1 [shape = 'u32[144,128]{1,0:T(1,128)}', space=vmem, size = 0x12000, scoped, tag = 'internal scratch']
  %s0 = inlined_call_operand.vmem [shape: bf16[2,6,6,32], index: 0, kind: input, shape index: {}]
  %s1 = inlined_call_operand.vmem [shape: bf16[3,3,32,16], index: 1, kind: input, shape index: {}]
  %s2 = inlined_call_operand.vmem [shape: f32[1,16], index: 2, kind: input, shape index: {}]
  %s3 = inlined_call_operand.vmem [shape: f32[1,16], index: 3, kind: input, shape index: {}]
  %s4 = inlined_call_operand.vmem [shape: bf16[2,4,4,16], index: 4, kind: output, shape index: {}]
  %s5 = sld [smem:[#allocation0]]
  $region49: #{setr_pup_forward.29} parent=0
    _
  %s7 = ssub.s32 1, %s5
  %s8 = scalar_select 0, %s7, %s5
  loop: start=0, step=1, limit=4
  $region2: #{setr_pup_forward.29} parent=0 // loop_pre_header
    _
  $region3: #{setr_pup_forward.29} parent=0 // loop_header
    %s10 = sphi 0, %s14
    %p11 = scmp.ge.s32.totalorder %s10, 4
    %s20 = sphi 0, %s22
    %s23 = sphi 0, %s20
    %s24 = sphi 0, %s23
    %s40 = sphi 0, %s24
    %s44 = sphi 0, %s44
    %s46 = sphi 0, %s44
    %s47 = sphi 0, %s46
    %s61 = sphi 0, %s47
    %s65 = sphi 0, %s65
    %s67 = sphi 0, %s65
    %s68 = sphi 0, %s67
    %s82 = sphi 0, %s68
    %s86 = sphi 0, %s86
    %s88 = sphi 0, %s86
    %s89 = sphi 0, %s88
    %s103 = sphi 0, %s89
    %s109 = sphi 0, %s111
    %s112 = sphi 0, %s109
    %s113 = sphi 0, %s112
    %s129 = sphi 0, %s113
  $region4: #{setr_pup_forward.29} parent=0 // loop_header_branch
    %13 = sbr.rel (%p11) target = $region8
  $region5: #{setr_pup_forward.29} parent=0 // loop_body
    %s15 = ssub.s32 %s10, 1
    %s16 = ssub.s32 %s10, 2
    %s17 = sadd.s32 %s10, 1
    %s18 = ssub.s32 %s10, %s17
    %p19 = scmp.eq.s32.totalorder %s18, 0
    %s21 = sadd.s32 %s20, 1
    %s22 = scalar_select %p19, %s20, %s21
    %p25 = pneg %p19
    %p26 = scmp.eq.s32.totalorder %s10, 1
    %p27 = por %p25, %p26
    %p28 = scmp.ne.s32.totalorder %s20, %s23
    %p29 = scmp.eq.s32.totalorder %s10, 0
    %p30 = por %p28, %p29
    %p31 = scmp.ne.s32.totalorder %s20, %s23
    %p32 = scmp.eq.s32.totalorder %s15, 1
    %p33 = por %p31, %p32
    %p34 = scmp.ne.s32.totalorder %s23, %s24
    %p35 = scmp.eq.s32.totalorder %s15, 0
    %p36 = por %p34, %p35
    %p37 = scmp.ne.s32.totalorder %s23, %s24
    %p38 = scmp.eq.s32.totalorder %s16, 1
    %p39 = por %p37, %p38
    %p41 = scmp.ne.s32.totalorder %s24, %s40
    %p42 = scmp.eq.s32.totalorder %s16, 0
    %p43 = por %p41, %p42
    %s45 = sadd.s32 %s44, 1
    %p48 = scmp.eq.s32.totalorder %s10, 1
    %p49 = scmp.ne.s32.totalorder %s44, %s46
    %p50 = scmp.eq.s32.totalorder %s10, 0
    %p51 = por %p49, %p50
    %p52 = scmp.ne.s32.totalorder %s44, %s46
    %p53 = scmp.eq.s32.totalorder %s15, 1
    %p54 = por %p52, %p53
    %p55 = scmp.ne.s32.totalorder %s46, %s47
    %p56 = scmp.eq.s32.totalorder %s15, 0
    %p57 = por %p55, %p56
    %p58 = scmp.ne.s32.totalorder %s46, %s47
    %p59 = scmp.eq.s32.totalorder %s16, 1
    %p60 = por %p58, %p59
    %p62 = scmp.ne.s32.totalorder %s47, %s61
    %p63 = scmp.eq.s32.totalorder %s16, 0
    %p64 = por %p62, %p63
    %s66 = sadd.s32 %s65, 1
    %p69 = scmp.eq.s32.totalorder %s10, 1
    %p70 = scmp.ne.s32.totalorder %s65, %s67
    %p71 = scmp.eq.s32.totalorder %s10, 0
    %p72 = por %p70, %p71
    %p73 = scmp.ne.s32.totalorder %s65, %s67
    %p74 = scmp.eq.s32.totalorder %s15, 1
    %p75 = por %p73, %p74
    %p76 = scmp.ne.s32.totalorder %s67, %s68
    %p77 = scmp.eq.s32.totalorder %s15, 0
    %p78 = por %p76, %p77
    %p79 = scmp.ne.s32.totalorder %s67, %s68
    %p80 = scmp.eq.s32.totalorder %s16, 1
    %p81 = por %p79, %p80
    %p83 = scmp.ne.s32.totalorder %s68, %s82
    %p84 = scmp.eq.s32.totalorder %s16, 0
    %p85 = por %p83, %p84
    %s87 = sadd.s32 %s86, 1
    %p90 = scmp.eq.s32.totalorder %s10, 1
    %p91 = scmp.ne.s32.totalorder %s86, %s88
    %p92 = scmp.eq.s32.totalorder %s10, 0
    %p93 = por %p91, %p92
    %p94 = scmp.ne.s32.totalorder %s86, %s88
    %p95 = scmp.eq.s32.totalorder %s15, 1
    %p96 = por %p94, %p95
    %p97 = scmp.ne.s32.totalorder %s88, %s89
    %p98 = scmp.eq.s32.totalorder %s15, 0
    %p99 = por %p97, %p98
    %p100 = scmp.ne.s32.totalorder %s88, %s89
    %p101 = scmp.eq.s32.totalorder %s16, 1
    %p102 = por %p100, %p101
    %p104 = scmp.ne.s32.totalorder %s89, %s103
    %p105 = scmp.eq.s32.totalorder %s16, 0
    %p106 = por %p104, %p105
    %s107 = ssub.s32 %s10, %s17
    %p108 = scmp.eq.s32.totalorder %s107, 0
    %s110 = sadd.s32 %s109, 1
    %s111 = scalar_select %p108, %s109, %s110
    %p114 = pneg %p108
    %p115 = scmp.eq.s32.totalorder %s10, 1
    %p116 = por %p114, %p115
    %p117 = scmp.ne.s32.totalorder %s109, %s112
    %p118 = scmp.eq.s32.totalorder %s10, 0
    %p119 = por %p117, %p118
    %p120 = scmp.ne.s32.totalorder %s109, %s112
    %p121 = scmp.eq.s32.totalorder %s15, 1
    %p122 = por %p120, %p121
    %p123 = scmp.ne.s32.totalorder %s112, %s113
    %p124 = scmp.eq.s32.totalorder %s15, 0
    %p125 = por %p123, %p124
    %p126 = scmp.ne.s32.totalorder %s112, %s113
    %p127 = scmp.eq.s32.totalorder %s16, 1
    %p128 = por %p126, %p127
    %p130 = scmp.ne.s32.totalorder %s113, %s129
    %p131 = scmp.eq.s32.totalorder %s16, 0
    %p132 = por %p130, %p131
    %p133 = scmp.le.s32.totalorder 1, %s10
    %p134 = scmp.lt.s32.totalorder %s10, 3
    %p135 = pnand %p133, %p134
    %p136 = pneg %p135
    // Predicated region
    $region9: #{setr_pup_forward.29} parent=5 // pred_check
      _
    $region10: #{setr_pup_forward.29} parent=5 // pred_check_branch
      %138 = sbr.rel (%p135) target = $region12
    $region11: #{setr_pup_forward.29} parent=5 // pred_region
      %s139 = ssub.s32 %s10, 1
      // Predicated region
      $region13: #{setr_pup_forward.29} parent=11 // pred_check
        %p140 = pneg %p57
      $region14: #{setr_pup_forward.29} parent=11 // pred_check_branch
        %142 = sbr.rel (%p140) target = $region16
      $region15: #{setr_pup_forward.29} parent=11 // pred_region
        _
      $region16: #{setr_pup_forward.29} parent=11 // pred_fallthru
        _
      // Predicated region
      $region17: #{setr_pup_forward.29} parent=11 // pred_check
        %p143 = pneg %p78
      $region18: #{setr_pup_forward.29} parent=11 // pred_check_branch
        %145 = sbr.rel (%p143) target = $region20
      $region19: #{setr_pup_forward.29} parent=11 // pred_region
        _
      $region20: #{setr_pup_forward.29} parent=11 // pred_fallthru
        _
      // Predicated region
      $region21: #{setr_pup_forward.29} parent=11 // pred_check
        %p146 = pneg %p99
      $region22: #{setr_pup_forward.29} parent=11 // pred_check_branch
        %148 = sbr.rel (%p146) target = $region24
      $region23: #{setr_pup_forward.29} parent=11 // pred_region
        _
      $region24: #{setr_pup_forward.29} parent=11 // pred_fallthru
        _
    $region12: #{setr_pup_forward.29} parent=5 // pred_fallthru
      _
    %p149 = scmp.lt.s32.totalorder %s10, 2
    // Predicated region
    $region25: #{setr_pup_forward.29} parent=5 // pred_check
      %p150 = pneg %p149
    $region26: #{setr_pup_forward.29} parent=5 // pred_check_branch
      %152 = sbr.rel (%p150) target = $region28
    $region27: #{setr_pup_forward.29} parent=5 // pred_region
      // Predicated region
      $region29: #{setr_pup_forward.29} parent=27 // pred_check
        %p153 = pneg %p30
      $region30: #{setr_pup_forward.29} parent=27 // pred_check_branch
        %155 = sbr.rel (%p153) target = $region32
      $region31: #{setr_pup_forward.29} parent=27 // pred_region
        %p156 = scmp.lt.s32.totalorder %s10, 1
        %s157 = scalar_select %p156, %s10, 1
        %s158 = smul.addr %s157, 6
        %s159 = smul.addr %s158, 4
        %s160 = scalar_lea.vmem %s0, %s159
      $region32: #{setr_pup_forward.29} parent=27 // pred_fallthru
        _
    $region28: #{setr_pup_forward.29} parent=5 // pred_fallthru
      _
    %p161 = scmp.le.s32.totalorder 1, %s10
    %p162 = scmp.lt.s32.totalorder %s10, 3
    %p163 = pnand %p161, %p162
    %p164 = pneg %p163
    // Predicated region
    $region33: #{setr_pup_forward.29} parent=5 // pred_check
      _
    $region34: #{setr_pup_forward.29} parent=5 // pred_check_branch
      %166 = sbr.rel (%p163) target = $region36
    $region35: #{setr_pup_forward.29} parent=5 // pred_region
      %s167 = ssub.s32 %s10, 1
      %p168 = scmp.lt.s32.totalorder %s15, 1
      %s169 = scalar_select %p168, %s15, 1
      %s170 = smul.addr %s169, 6
      %s171 = smul.addr %s170, 4
      %s172 = scalar_lea.vmem %s0, %s171
      %p173 = pneg %p36
      %p174 = pneg %p33
      %p175 = pneg %p57
      %p176 = pneg %p54
      %p177 = pneg %p78
      %p178 = pneg %p75
      %p179 = pneg %p99
      %p180 = pneg %p96
      %p181 = pneg %p125
      %p182 = pneg %p122
      %p183 = scmp.lt.s32.totalorder %s15, 1
      %s184 = scalar_select %p183, %s15, 1
      %s185 = smul.addr %s184, 4
      %s186 = smul.addr %s185, 2
      %s187 = scalar_lea.vmem %s4, %s186
      %p188 = scmp.lt.s32.totalorder %s15, 1
      %s189 = scalar_select %p188, %s15, 1
      %s190 = smul.addr %s189, 6
      %s191 = smul.addr %s190, 4
      %s192 = scalar_lea.vmem %s0, %s191
      %p193 = scmp.lt.s32.totalorder %s15, 1
      %s194 = scalar_select %p193, %s15, 1
      %s195 = smul.addr %s194, 4
      %s196 = smul.addr %s195, 2
      %s197 = scalar_lea.vmem %s4, %s196
      %v199 = vld [vmem:[%s192] sm:$0x7]
      %v200 = vld [vmem:[%s192 + $0x4] sm:$0x7]
      %v201 = vld [vmem:[%s192 + $0x8] sm:$0x7]
      %v202 = vld [vmem:[%s192 + $0xc] sm:$0x7]
      %v203 = vld [vmem:[%s192 + $0x10] sm:$0x7]
      %v204 = vld [vmem:[%s192 + $0x14] sm:$0x7]
      %v205 = vld [vmem:[%s1] sm:$0xf]
      %v206 = vld [vmem:[%s1 + $0x4] sm:$0xf]
      %v207 = vld [vmem:[%s1 + $0x8] sm:$0xf]
      %v208 = vld [vmem:[%s1 + $0xc] sm:$0xf]
      %v209 = vld [vmem:[%s1 + $0x10] sm:$0xf]
      %v210 = vld [vmem:[%s1 + $0x14] sm:$0xf]
      %v211 = vld [vmem:[%s1 + $0x18] sm:$0xf]
      %v212 = vld [vmem:[%s1 + $0x1c] sm:$0xf]
      %v213 = vld [vmem:[%s1 + $0x20] sm:$0xf]
      %v214 = vld [vmem:[%s1 + $0x24] sm:$0xf]
      %v215 = vld [vmem:[%s1 + $0x28] sm:$0xf]
      %v216 = vld [vmem:[%s1 + $0x2c] sm:$0xf]
      %v217 = vld [vmem:[%s1 + $0x30] sm:$0xf]
      %v218 = vld [vmem:[%s1 + $0x34] sm:$0xf]
      %v219 = vld [vmem:[%s1 + $0x38] sm:$0xf]
      %v220 = vld [vmem:[%s1 + $0x3c] sm:$0xf]
      %v221 = vld [vmem:[%s1 + $0x40] sm:$0xf]
      %v222 = vld [vmem:[%s1 + $0x44] sm:$0xf]
      %v223 = vld [vmem:[%s1 + $0x48] sm:$0xf]
      %v224 = vld [vmem:[%s1 + $0x4c] sm:$0xf]
      %v225 = vld [vmem:[%s1 + $0x50] sm:$0xf]
      %v226 = vld [vmem:[%s1 + $0x54] sm:$0xf]
      %v227 = vld [vmem:[%s1 + $0x58] sm:$0xf]
      %v228 = vld [vmem:[%s1 + $0x5c] sm:$0xf]
      %v229 = vld [vmem:[%s1 + $0x60] sm:$0xf]
      %v230 = vld [vmem:[%s1 + $0x64] sm:$0xf]
      %v231 = vld [vmem:[%s1 + $0x68] sm:$0xf]
      %v232 = vld [vmem:[%s1 + $0x6c] sm:$0xf]
      %v233 = vld [vmem:[%s1 + $0x70] sm:$0xf]
      %v234 = vld [vmem:[%s1 + $0x74] sm:$0xf]
      %v235 = vld [vmem:[%s1 + $0x78] sm:$0xf]
      %v236 = vld [vmem:[%s1 + $0x7c] sm:$0xf]
      %v237 = vld [vmem:[%s1 + $0x80] sm:$0xf]
      %v238 = vld [vmem:[%s1 + $0x84] sm:$0xf]
      %v239 = vld [vmem:[%s1 + $0x88] sm:$0xf]
      %v240 = vld [vmem:[%s1 + $0x8c] sm:$0xf]
      %v246 = vunpack.c.l.s4 1983009808
      %v247 = vunpack.c.0.s8 %v246
      %v248 = vlaneseq
      %v249 = vshrl.u32 %v248, 7
      %v250 = vsub.s32 %v247, %v249
      %v251 = vrot.slane %v199, %v250
      %v252 = vcombine.high %v251, %v251
      %v254 = vunpack.c.l.s4 1983009808
      %v255 = vunpack.c.0.s8 %v254
      %v256 = vlaneseq
      %v257 = vshrl.u32 %v256, 7
      %v258 = vsub.s32 %v255, %v257
      %v259 = vrot.slane %v200, %v258
      %v260 = vcombine.high %v259, %v259
      %v262 = vunpack.c.l.s4 1983009808
      %v263 = vunpack.c.0.s8 %v262
      %v264 = vlaneseq
      %v265 = vshrl.u32 %v264, 7
      %v266 = vsub.s32 %v263, %v265
      %v267 = vrot.slane %v201, %v266
      %v268 = vcombine.high %v267, %v267
      %v270 = vunpack.c.l.s4 1983009808
      %v271 = vunpack.c.0.s8 %v270
      %v272 = vlaneseq
      %v273 = vshrl.u32 %v272, 7
      %v274 = vsub.s32 %v271, %v273
      %v275 = vrot.slane %v202, %v274
      %v276 = vcombine.high %v275, %v275
      %vm277 = vsmask.f32 1280
      %vm278 = vsmask.f32 3336
      %vm279 = vmor %vm277, %vm278
      %vm280 = vsmask.f32 5392
      %vm281 = vmor %vm279, %vm280
      %vm282 = vsmask.f32 7448
      %vm283 = vmor %vm281, %vm282
      %v285 = vshrl.u32 %v251, 16
      %v287 = vrot.slane %v285, 6
      %v288 = vshll.u32 %v251, 16
      %v290 = vrot.slane %v288, 7
      %v291 = vor.u32 %v287, %v290
      %v292 = vrot.slane %v291, 2
      %v294 = vshll.u32 %v252, 16
      %v296 = vrot.slane %v294, 7
      %v297 = vsel %vm283, %v292, %v296
      %v299 = vshrl.u32 %v259, 16
      %v301 = vrot.slane %v299, 6
      %v302 = vshll.u32 %v259, 16
      %v304 = vrot.slane %v302, 7
      %v305 = vor.u32 %v301, %v304
      %v306 = vrot.slane %v305, 2
      %v308 = vshll.u32 %v260, 16
      %v310 = vrot.slane %v308, 7
      %v311 = vsel %vm283, %v306, %v310
      %v313 = vshrl.u32 %v267, 16
      %v315 = vrot.slane %v313, 6
      %v316 = vshll.u32 %v267, 16
      %v318 = vrot.slane %v316, 7
      %v319 = vor.u32 %v315, %v318
      %v320 = vrot.slane %v319, 2
      %v322 = vshll.u32 %v268, 16
      %v324 = vrot.slane %v322, 7
      %v325 = vsel %vm283, %v320, %v324
      %v327 = vshrl.u32 %v275, 16
      %v329 = vrot.slane %v327, 6
      %v330 = vshll.u32 %v275, 16
      %v332 = vrot.slane %v330, 7
      %v333 = vor.u32 %v329, %v332
      %v334 = vrot.slane %v333, 2
      %v336 = vshll.u32 %v276, 16
      %v338 = vrot.slane %v336, 7
      %v339 = vsel %vm283, %v334, %v338
      %v340 = vcombine.low %v297, %v311
      %v341 = vcombine.low %v325, %v339
      %v343 = vunpack.c.l.s4 1983009808
      %v344 = vunpack.c.0.s8 %v343
      %v345 = vlaneseq
      %v346 = vshrl.u32 %v345, 7
      %v347 = vsub.s32 %v344, %v346
      %v348 = vrot.slane %v340, %v347
      %v350 = vunpack.c.l.s4 1983009808
      %v351 = vunpack.c.0.s8 %v350
      %v352 = vlaneseq
      %v353 = vshrl.u32 %v352, 7
      %v354 = vsub.s32 %v351, %v353
      %v355 = vrot.slane %v341, %v354
      %v356 = vcombine.low %v348, %v355
      %v361 = vunpack.c.l.b16 %v209
      %v362 = vunpack.c.l.b16 %v210
      %v363 = vunpack.c.l.b16 %v211
      %v364 = vunpack.c.l.b16 %v212
      %v365 = vpack.c.b16 %v362, %v361
      %v366 = vpack.c.b16 %v364, %v363
      %vm369 = vcmask 261120
      %v371 = vsel %vm369, %v356, 0
      %373 = vmatprep.subr.bf16.mxu0 0
      %374 = vmatpush1.bf16.msra.mxu0 %v365
      %375 = vmatprep.subr.bf16.mxu0 0
      %376 = vmatpush1.bf16.msra.mxu0 %v366
      %377 = vmatprep.subr.bf16.mxu0 0
      %378 = vmatpush1.bf16.msra.mxu0 0
      %379 = vmatprep.subr.bf16.mxu0 0
      %380 = vmatpush1.bf16.msra.mxu0 0
      %381 = vmatprep.subr.bf16.mxu0 0
      %382 = vmatpush1.bf16.msra.mxu0 0
      %383 = vmatprep.subr.bf16.mxu0 0
      %384 = vmatpush1.bf16.msra.mxu0 0
      %385 = vmatprep.subr.bf16.mxu0 0
      %386 = vmatpush1.bf16.msra.mxu0 0
      %387 = vmatprep.subr.bf16.mxu0 0
      %388 = vmatpush1.bf16.msra.mxu0 0
      %389 = vmatprep.subr.bf16.mxu0 0
      %390 = vmatpush1.bf16.msra.mxu0 0
      %391 = vmatprep.subr.bf16.mxu0 0
      %392 = vmatpush1.bf16.msra.mxu0 0
      %393 = vmatprep.subr.bf16.mxu0 0
      %394 = vmatpush1.bf16.msra.mxu0 0
      %395 = vmatprep.subr.bf16.mxu0 0
      %396 = vmatpush1.bf16.msra.mxu0 0
      %397 = vmatprep.subr.bf16.mxu0 0
      %398 = vmatpush1.bf16.msra.mxu0 0
      %399 = vmatprep.subr.bf16.mxu0 0
      %400 = vmatpush1.bf16.msra.mxu0 0
      %401 = vmatprep.subr.bf16.mxu0 0
      %402 = vmatpush1.bf16.msra.mxu0 0
      %403 = vmatprep.subr.bf16.mxu0 0
      %404 = vmatpush1.bf16.msra.mxu0 0
      %405 = vmatprep.mubr.bf16.mxu0 0
      %406 = vmatmul.mubr.bf16.gmra.mrb[0].mxu0 %v371
      %v407 = vpop.f32.mrb[0].mxu0
      %v408 = vadd.f32 0.0, %v407
      %v409 = vpop.f32.mrb[0].mxu0
      %v410 = vpop.f32.mrb[0].mxu0
      %v411 = vadd.f32 0.0, %v410
      %v412 = vpop.f32.mrb[0].mxu0
      %413 = vdwg.mxu0
      %v414 = vcombine.low %v199, %v200
      %v415 = vcombine.low %v201, %v202
      %v417 = vunpack.c.l.s4 1983009808
      %v418 = vunpack.c.0.s8 %v417
      %v419 = vlaneseq
      %v420 = vshrl.u32 %v419, 7
      %v421 = vsub.s32 %v418, %v420
      %v422 = vrot.slane %v414, %v421
      %v424 = vunpack.c.l.s4 1983009808
      %v425 = vunpack.c.0.s8 %v424
      %v426 = vlaneseq
      %v427 = vshrl.u32 %v426, 7
      %v428 = vsub.s32 %v425, %v427
      %v429 = vrot.slane %v415, %v428
      %v430 = vcombine.low %v422, %v429
      %v435 = vunpack.c.l.b16 %v205
      %v436 = vunpack.c.l.b16 %v206
      %v437 = vunpack.c.l.b16 %v207
      %v438 = vunpack.c.l.b16 %v208
      %v439 = vpack.c.b16 %v436, %v435
      %v440 = vpack.c.b16 %v438, %v437
      %v444 = vsel %vm369, %v430, 0
      %446 = vmatprep.subr.bf16.mxu0 0
      %447 = vmatpush1.bf16.msra.mxu0 %v439
      %448 = vmatprep.subr.bf16.mxu0 0
      %449 = vmatpush1.bf16.msra.mxu0 %v440
      %450 = vmatprep.subr.bf16.mxu0 0
      %451 = vmatpush1.bf16.msra.mxu0 0
      %452 = vmatprep.subr.bf16.mxu0 0
      %453 = vmatpush1.bf16.msra.mxu0 0
      %454 = vmatprep.subr.bf16.mxu0 0
      %455 = vmatpush1.bf16.msra.mxu0 0
      %456 = vmatprep.subr.bf16.mxu0 0
      %457 = vmatpush1.bf16.msra.mxu0 0
      %458 = vmatprep.subr.bf16.mxu0 0
      %459 = vmatpush1.bf16.msra.mxu0 0
      %460 = vmatprep.subr.bf16.mxu0 0
      %461 = vmatpush1.bf16.msra.mxu0 0
      %462 = vmatprep.subr.bf16.mxu0 0
      %463 = vmatpush1.bf16.msra.mxu0 0
      %464 = vmatprep.subr.bf16.mxu0 0
      %465 = vmatpush1.bf16.msra.mxu0 0
      %466 = vmatprep.subr.bf16.mxu0 0
      %467 = vmatpush1.bf16.msra.mxu0 0
      %468 = vmatprep.subr.bf16.mxu0 0
      %469 = vmatpush1.bf16.msra.mxu0 0
      %470 = vmatprep.subr.bf16.mxu0 0
      %471 = vmatpush1.bf16.msra.mxu0 0
      %472 = vmatprep.subr.bf16.mxu0 0
      %473 = vmatpush1.bf16.msra.mxu0 0
      %474 = vmatprep.subr.bf16.mxu0 0
      %475 = vmatpush1.bf16.msra.mxu0 0
      %476 = vmatprep.subr.bf16.mxu0 0
      %477 = vmatpush1.bf16.msra.mxu0 0
      %478 = vmatprep.mubr.bf16.mxu0 0
      %479 = vmatmul.mubr.bf16.gmra.mrb[0].mxu0 %v444
      %v480 = vpop.f32.mrb[0].mxu0
      %v481 = vadd.f32 %v408, %v480
      %v482 = vpop.f32.mrb[0].mxu0
      %v483 = vpop.f32.mrb[0].mxu0
      %v484 = vadd.f32 %v411, %v483
      %v485 = vpop.f32.mrb[0].mxu0
      %486 = vdwg.mxu0
      %vm487 = vcmask 1040384
      %vm488 = vcmask 1042434
      %vm489 = vmor %vm487, %vm488
      %vm490 = vcmask 1044484
      %vm491 = vmor %vm489, %vm490
      %vm492 = vcmask 1046534
      %vm493 = vmor %vm491, %vm492
      %v494 = vrot.slane %v251, 7
      %v495 = vrot.slane %v494, 2
      %v496 = vrot.slane %v252, 7
      %v497 = vsel %vm493, %v495, %v496
      %v498 = vrot.slane %v259, 7
      %v499 = vrot.slane %v498, 2
      %v500 = vrot.slane %v260, 7
      %v501 = vsel %vm493, %v499, %v500
      %v502 = vrot.slane %v267, 7
      %v503 = vrot.slane %v502, 2
      %v504 = vrot.slane %v268, 7
      %v505 = vsel %vm493, %v503, %v504
      %v506 = vrot.slane %v275, 7
      %v507 = vrot.slane %v506, 2
      %v508 = vrot.slane %v276, 7
      %v509 = vsel %vm493, %v507, %v508
      %v510 = vcombine.low %v497, %v501
      %v511 = vcombine.low %v505, %v509
      %v513 = vunpack.c.l.s4 1983009808
      %v514 = vunpack.c.0.s8 %v513
      %v515 = vlaneseq
      %v516 = vshrl.u32 %v515, 7
      %v517 = vsub.s32 %v514, %v516
      %v518 = vrot.slane %v510, %v517
      %v520 = vunpack.c.l.s4 1983009808
      %v521 = vunpack.c.0.s8 %v520
      %v522 = vlaneseq
      %v523 = vshrl.u32 %v522, 7
      %v524 = vsub.s32 %v521, %v523
      %v525 = vrot.slane %v511, %v524
      %v526 = vcombine.low %v518, %v525
      %v531 = vunpack.c.l.b16 %v213
      %v532 = vunpack.c.l.b16 %v214
      %v533 = vunpack.c.l.b16 %v215
      %v534 = vunpack.c.l.b16 %v216
      %v535 = vpack.c.b16 %v532, %v531
      %v536 = vpack.c.b16 %v534, %v533
      %v540 = vsel %vm369, %v526, 0
      %542 = vmatprep.subr.bf16.mxu0 0
      %543 = vmatpush1.bf16.msra.mxu0 %v535
      %544 = vmatprep.subr.bf16.mxu0 0
      %545 = vmatpush1.bf16.msra.mxu0 %v536
      %546 = vmatprep.subr.bf16.mxu0 0
      %547 = vmatpush1.bf16.msra.mxu0 0
      %548 = vmatprep.subr.bf16.mxu0 0
      %549 = vmatpush1.bf16.msra.mxu0 0
      %550 = vmatprep.subr.bf16.mxu0 0
      %551 = vmatpush1.bf16.msra.mxu0 0
      %552 = vmatprep.subr.bf16.mxu0 0
      %553 = vmatpush1.bf16.msra.mxu0 0
      %554 = vmatprep.subr.bf16.mxu0 0
      %555 = vmatpush1.bf16.msra.mxu0 0
      %556 = vmatprep.subr.bf16.mxu0 0
      %557 = vmatpush1.bf16.msra.mxu0 0
      %558 = vmatprep.subr.bf16.mxu0 0
      %559 = vmatpush1.bf16.msra.mxu0 0
      %560 = vmatprep.subr.bf16.mxu0 0
      %561 = vmatpush1.bf16.msra.mxu0 0
      %562 = vmatprep.subr.bf16.mxu0 0
      %563 = vmatpush1.bf16.msra.mxu0 0
      %564 = vmatprep.subr.bf16.mxu0 0
      %565 = vmatpush1.bf16.msra.mxu0 0
      %566 = vmatprep.subr.bf16.mxu0 0
      %567 = vmatpush1.bf16.msra.mxu0 0
      %568 = vmatprep.subr.bf16.mxu0 0
      %569 = vmatpush1.bf16.msra.mxu0 0
      %570 = vmatprep.subr.bf16.mxu0 0
      %571 = vmatpush1.bf16.msra.mxu0 0
      %572 = vmatprep.subr.bf16.mxu0 0
      %573 = vmatpush1.bf16.msra.mxu0 0
      %574 = vmatprep.mubr.bf16.mxu0 0
      %575 = vmatmul.mubr.bf16.gmra.mrb[0].mxu0 %v540
      %v576 = vpop.f32.mrb[0].mxu0
      %v577 = vadd.f32 0.0, %v576
      %v578 = vpop.f32.mrb[0].mxu0
      %v579 = vpop.f32.mrb[0].mxu0
      %v580 = vadd.f32 0.0, %v579
      %v581 = vpop.f32.mrb[0].mxu0
      %582 = vdwg.mxu0
      %v583 = vadd.f32 %v481, %v577
      %v584 = vadd.f32 %v484, %v580
      %v586 = vcombine.low %v200, %v201
      %v587 = vcombine.low %v202, %v203
      %v589 = vunpack.c.l.s4 1983009808
      %v590 = vunpack.c.0.s8 %v589
      %v591 = vlaneseq
      %v592 = vshrl.u32 %v591, 7
      %v593 = vsub.s32 %v590, %v592
      %v594 = vrot.slane %v586, %v593
      %v596 = vunpack.c.l.s4 1983009808
      %v597 = vunpack.c.0.s8 %v596
      %v598 = vlaneseq
      %v599 = vshrl.u32 %v598, 7
      %v600 = vsub.s32 %v597, %v599
      %v601 = vrot.slane %v587, %v600
      %v602 = vcombine.low %v594, %v601
      %v607 = vunpack.c.l.b16 %v217
      %v608 = vunpack.c.l.b16 %v218
      %v609 = vunpack.c.l.b16 %v219
      %v610 = vunpack.c.l.b16 %v220
      %v611 = vpack.c.b16 %v608, %v607
      %v612 = vpack.c.b16 %v610, %v609
      %v616 = vsel %vm369, %v602, 0
      %618 = vmatprep.subr.bf16.mxu0 0
      %619 = vmatpush1.bf16.msra.mxu0 %v611
      %620 = vmatprep.subr.bf16.mxu0 0
      %621 = vmatpush1.bf16.msra.mxu0 %v612
      %622 = vmatprep.subr.bf16.mxu0 0
      %623 = vmatpush1.bf16.msra.mxu0 0
      %624 = vmatprep.subr.bf16.mxu0 0
      %625 = vmatpush1.bf16.msra.mxu0 0
      %626 = vmatprep.subr.bf16.mxu0 0
      %627 = vmatpush1.bf16.msra.mxu0 0
      %628 = vmatprep.subr.bf16.mxu0 0
      %629 = vmatpush1.bf16.msra.mxu0 0
      %630 = vmatprep.subr.bf16.mxu0 0
      %631 = vmatpush1.bf16.msra.mxu0 0
      %632 = vmatprep.subr.bf16.mxu0 0
      %633 = vmatpush1.bf16.msra.mxu0 0
      %634 = vmatprep.subr.bf16.mxu0 0
      %635 = vmatpush1.bf16.msra.mxu0 0
      %636 = vmatprep.subr.bf16.mxu0 0
      %637 = vmatpush1.bf16.msra.mxu0 0
      %638 = vmatprep.subr.bf16.mxu0 0
      %639 = vmatpush1.bf16.msra.mxu0 0
      %640 = vmatprep.subr.bf16.mxu0 0
      %641 = vmatpush1.bf16.msra.mxu0 0
      %642 = vmatprep.subr.bf16.mxu0 0
      %643 = vmatpush1.bf16.msra.mxu0 0
      %644 = vmatprep.subr.bf16.mxu0 0
      %645 = vmatpush1.bf16.msra.mxu0 0
      %646 = vmatprep.subr.bf16.mxu0 0
      %647 = vmatpush1.bf16.msra.mxu0 0
      %648 = vmatprep.subr.bf16.mxu0 0
      %649 = vmatpush1.bf16.msra.mxu0 0
      %650 = vmatprep.mubr.bf16.mxu0 0
      %651 = vmatmul.mubr.bf16.gmra.mrb[0].mxu0 %v616
      %v652 = vpop.f32.mrb[0].mxu0
      %v653 = vadd.f32 0.0, %v652
      %v654 = vpop.f32.mrb[0].mxu0
      %v655 = vpop.f32.mrb[0].mxu0
      %v656 = vadd.f32 0.0, %v655
      %v657 = vpop.f32.mrb[0].mxu0
      %658 = vdwg.mxu0
      %v659 = vadd.f32 %v583, %v653
      %v660 = vadd.f32 %v584, %v656
      %v662 = vunpack.c.l.s4 1983009808
      %v663 = vunpack.c.0.s8 %v662
      %v664 = vlaneseq
      %v665 = vshrl.u32 %v664, 7
      %v666 = vsub.s32 %v663, %v665
      %v667 = vrot.slane %v203, %v666
      %v668 = vcombine.high %v667, %v667
      %v670 = vshrl.u32 %v667, 16
      %v672 = vrot.slane %v670, 6
      %v673 = vshll.u32 %v667, 16
      %v675 = vrot.slane %v673, 7
      %v676 = vor.u32 %v672, %v675
      %v677 = vrot.slane %v676, 2
      %v679 = vshll.u32 %v668, 16
      %v681 = vrot.slane %v679, 7
      %v682 = vsel %vm283, %v677, %v681
      %v683 = vcombine.low %v311, %v325
      %v684 = vcombine.low %v339, %v682
      %v686 = vunpack.c.l.s4 1983009808
      %v687 = vunpack.c.0.s8 %v686
      %v688 = vlaneseq
      %v689 = vshrl.u32 %v688, 7
      %v690 = vsub.s32 %v687, %v689
      %v691 = vrot.slane %v683, %v690
      %v693 = vunpack.c.l.s4 1983009808
      %v694 = vunpack.c.0.s8 %v693
      %v695 = vlaneseq
      %v696 = vshrl.u32 %v695, 7
      %v697 = vsub.s32 %v694, %v696
      %v698 = vrot.slane %v684, %v697
      %v699 = vcombine.low %v691, %v698
      %v704 = vunpack.c.l.b16 %v221
      %v705 = vunpack.c.l.b16 %v222
      %v706 = vunpack.c.l.b16 %v223
      %v707 = vunpack.c.l.b16 %v224
      %v708 = vpack.c.b16 %v705, %v704
      %v709 = vpack.c.b16 %v707, %v706
      %v713 = vsel %vm369, %v699, 0
      %715 = vmatprep.subr.bf16.mxu0 0
      %716 = vmatpush1.bf16.msra.mxu0 %v708
      %717 = vmatprep.subr.bf16.mxu0 0
      %718 = vmatpush1.bf16.msra.mxu0 %v709
      %719 = vmatprep.subr.bf16.mxu0 0
      %720 = vmatpush1.bf16.msra.mxu0 0
      %721 = vmatprep.subr.bf16.mxu0 0
      %722 = vmatpush1.bf16.msra.mxu0 0
      %723 = vmatprep.subr.bf16.mxu0 0
      %724 = vmatpush1.bf16.msra.mxu0 0
      %725 = vmatprep.subr.bf16.mxu0 0
      %726 = vmatpush1.bf16.msra.mxu0 0
      %727 = vmatprep.subr.bf16.mxu0 0
      %728 = vmatpush1.bf16.msra.mxu0 0
      %729 = vmatprep.subr.bf16.mxu0 0
      %730 = vmatpush1.bf16.msra.mxu0 0
      %731 = vmatprep.subr.bf16.mxu0 0
      %732 = vmatpush1.bf16.msra.mxu0 0
      %733 = vmatprep.subr.bf16.mxu0 0
      %734 = vmatpush1.bf16.msra.mxu0 0
      %735 = vmatprep.subr.bf16.mxu0 0
      %736 = vmatpush1.bf16.msra.mxu0 0
      %737 = vmatprep.subr.bf16.mxu0 0
      %738 = vmatpush1.bf16.msra.mxu0 0
      %739 = vmatprep.subr.bf16.mxu0 0
      %740 = vmatpush1.bf16.msra.mxu0 0
      %741 = vmatprep.subr.bf16.mxu0 0
      %742 = vmatpush1.bf16.msra.mxu0 0
      %743 = vmatprep.subr.bf16.mxu0 0
      %744 = vmatpush1.bf16.msra.mxu0 0
      %745 = vmatprep.subr.bf16.mxu0 0
      %746 = vmatpush1.bf16.msra.mxu0 0
      %747 = vmatprep.mubr.bf16.mxu0 0
      %748 = vmatmul.mubr.bf16.gmra.mrb[0].mxu0 %v713
      %v749 = vpop.f32.mrb[0].mxu0
      %v750 = vadd.f32 0.0, %v749
      %v751 = vpop.f32.mrb[0].mxu0
      %v752 = vpop.f32.mrb[0].mxu0
      %v753 = vadd.f32 0.0, %v752
      %v754 = vpop.f32.mrb[0].mxu0
      %755 = vdwg.mxu0
      %v756 = vadd.f32 %v659, %v750
      %v757 = vadd.f32 %v660, %v753
      %v758 = vrot.slane %v667, 7
      %v759 = vrot.slane %v758, 2
      %v760 = vrot.slane %v668, 7
      %v761 = vsel %vm493, %v759, %v760
      %v762 = vcombine.low %v501, %v505
      %v763 = vcombine.low %v509, %v761
      %v765 = vunpack.c.l.s4 1983009808
      %v766 = vunpack.c.0.s8 %v765
      %v767 = vlaneseq
      %v768 = vshrl.u32 %v767, 7
      %v769 = vsub.s32 %v766, %v768
      %v770 = vrot.slane %v762, %v769
      %v772 = vunpack.c.l.s4 1983009808
      %v773 = vunpack.c.0.s8 %v772
      %v774 = vlaneseq
      %v775 = vshrl.u32 %v774, 7
      %v776 = vsub.s32 %v773, %v775
      %v777 = vrot.slane %v763, %v776
      %v778 = vcombine.low %v770, %v777
      %v783 = vunpack.c.l.b16 %v225
      %v784 = vunpack.c.l.b16 %v226
      %v785 = vunpack.c.l.b16 %v227
      %v786 = vunpack.c.l.b16 %v228
      %v787 = vpack.c.b16 %v784, %v783
      %v788 = vpack.c.b16 %v786, %v785
      %v792 = vsel %vm369, %v778, 0
      %794 = vmatprep.subr.bf16.mxu0 0
      %795 = vmatpush1.bf16.msra.mxu0 %v787
      %796 = vmatprep.subr.bf16.mxu0 0
      %797 = vmatpush1.bf16.msra.mxu0 %v788
      %798 = vmatprep.subr.bf16.mxu0 0
      %799 = vmatpush1.bf16.msra.mxu0 0
      %800 = vmatprep.subr.bf16.mxu0 0
      %801 = vmatpush1.bf16.msra.mxu0 0
      %802 = vmatprep.subr.bf16.mxu0 0
      %803 = vmatpush1.bf16.msra.mxu0 0
      %804 = vmatprep.subr.bf16.mxu0 0
      %805 = vmatpush1.bf16.msra.mxu0 0
      %806 = vmatprep.subr.bf16.mxu0 0
      %807 = vmatpush1.bf16.msra.mxu0 0
      %808 = vmatprep.subr.bf16.mxu0 0
      %809 = vmatpush1.bf16.msra.mxu0 0
      %810 = vmatprep.subr.bf16.mxu0 0
      %811 = vmatpush1.bf16.msra.mxu0 0
      %812 = vmatprep.subr.bf16.mxu0 0
      %813 = vmatpush1.bf16.msra.mxu0 0
      %814 = vmatprep.subr.bf16.mxu0 0
      %815 = vmatpush1.bf16.msra.mxu0 0
      %816 = vmatprep.subr.bf16.mxu0 0
      %817 = vmatpush1.bf16.msra.mxu0 0
      %818 = vmatprep.subr.bf16.mxu0 0
      %819 = vmatpush1.bf16.msra.mxu0 0
      %820 = vmatprep.subr.bf16.mxu0 0
      %821 = vmatpush1.bf16.msra.mxu0 0
      %822 = vmatprep.subr.bf16.mxu0 0
      %823 = vmatpush1.bf16.msra.mxu0 0
      %824 = vmatprep.subr.bf16.mxu0 0
      %825 = vmatpush1.bf16.msra.mxu0 0
      %826 = vmatprep.mubr.bf16.mxu0 0
      %827 = vmatmul.mubr.bf16.gmra.mrb[0].mxu0 %v792
      %v828 = vpop.f32.mrb[0].mxu0
      %v829 = vadd.f32 0.0, %v828
      %v830 = vpop.f32.mrb[0].mxu0
      %v831 = vpop.f32.mrb[0].mxu0
      %v832 = vadd.f32 0.0, %v831
      %v833 = vpop.f32.mrb[0].mxu0
      %834 = vdwg.mxu0
      %v835 = vadd.f32 %v756, %v829
      %v836 = vadd.f32 %v757, %v832
      %v838 = vcombine.low %v203, %v204
      %v840 = vunpack.c.l.s4 1983009808
      %v841 = vunpack.c.0.s8 %v840
      %v842 = vlaneseq
      %v843 = vshrl.u32 %v842, 7
      %v844 = vsub.s32 %v841, %v843
      %v845 = vrot.slane %v838, %v844
      %v846 = vcombine.low %v429, %v845
      %v851 = vunpack.c.l.b16 %v229
      %v852 = vunpack.c.l.b16 %v230
      %v853 = vunpack.c.l.b16 %v231
      %v854 = vunpack.c.l.b16 %v232
      %v855 = vpack.c.b16 %v852, %v851
      %v856 = vpack.c.b16 %v854, %v853
      %v860 = vsel %vm369, %v846, 0
      %862 = vmatprep.subr.bf16.mxu0 0
      %863 = vmatpush1.bf16.msra.mxu0 %v855
      %864 = vmatprep.subr.bf16.mxu0 0
      %865 = vmatpush1.bf16.msra.mxu0 %v856
      %866 = vmatprep.subr.bf16.mxu0 0
      %867 = vmatpush1.bf16.msra.mxu0 0
      %868 = vmatprep.subr.bf16.mxu0 0
      %869 = vmatpush1.bf16.msra.mxu0 0
      %870 = vmatprep.subr.bf16.mxu0 0
      %871 = vmatpush1.bf16.msra.mxu0 0
      %872 = vmatprep.subr.bf16.mxu0 0
      %873 = vmatpush1.bf16.msra.mxu0 0
      %874 = vmatprep.subr.bf16.mxu0 0
      %875 = vmatpush1.bf16.msra.mxu0 0
      %876 = vmatprep.subr.bf16.mxu0 0
      %877 = vmatpush1.bf16.msra.mxu0 0
      %878 = vmatprep.subr.bf16.mxu0 0
      %879 = vmatpush1.bf16.msra.mxu0 0
      %880 = vmatprep.subr.bf16.mxu0 0
      %881 = vmatpush1.bf16.msra.mxu0 0
      %882 = vmatprep.subr.bf16.mxu0 0
      %883 = vmatpush1.bf16.msra.mxu0 0
      %884 = vmatprep.subr.bf16.mxu0 0
      %885 = vmatpush1.bf16.msra.mxu0 0
      %886 = vmatprep.subr.bf16.mxu0 0
      %887 = vmatpush1.bf16.msra.mxu0 0
      %888 = vmatprep.subr.bf16.mxu0 0
      %889 = vmatpush1.bf16.msra.mxu0 0
      %890 = vmatprep.subr.bf16.mxu0 0
      %891 = vmatpush1.bf16.msra.mxu0 0
      %892 = vmatprep.subr.bf16.mxu0 0
      %893 = vmatpush1.bf16.msra.mxu0 0
      %894 = vmatprep.mubr.bf16.mxu0 0
      %895 = vmatmul.mubr.bf16.gmra.mrb[0].mxu0 %v860
      %v896 = vpop.f32.mrb[0].mxu0
      %v897 = vadd.f32 0.0, %v896
      %v898 = vpop.f32.mrb[0].mxu0
      %v899 = vpop.f32.mrb[0].mxu0
      %v900 = vadd.f32 0.0, %v899
      %v901 = vpop.f32.mrb[0].mxu0
      %902 = vdwg.mxu0
      %v903 = vadd.f32 %v835, %v897
      %v904 = vadd.f32 %v836, %v900
      %v906 = vunpack.c.l.s4 1983009808
      %v907 = vunpack.c.0.s8 %v906
      %v908 = vlaneseq
      %v909 = vshrl.u32 %v908, 7
      %v910 = vsub.s32 %v907, %v909
      %v911 = vrot.slane %v204, %v910
      %v912 = vcombine.high %v911, %v911
      %v914 = vshrl.u32 %v911, 16
      %v916 = vrot.slane %v914, 6
      %v917 = vshll.u32 %v911, 16
      %v919 = vrot.slane %v917, 7
      %v920 = vor.u32 %v916, %v919
      %v921 = vrot.slane %v920, 2
      %v923 = vshll.u32 %v912, 16
      %v925 = vrot.slane %v923, 7
      %v926 = vsel %vm283, %v921, %v925
      %v927 = vcombine.low %v682, %v926
      %v929 = vunpack.c.l.s4 1983009808
      %v930 = vunpack.c.0.s8 %v929
      %v931 = vlaneseq
      %v932 = vshrl.u32 %v931, 7
      %v933 = vsub.s32 %v930, %v932
      %v934 = vrot.slane %v927, %v933
      %v935 = vcombine.low %v355, %v934
      %v940 = vunpack.c.l.b16 %v233
      %v941 = vunpack.c.l.b16 %v234
      %v942 = vunpack.c.l.b16 %v235
      %v943 = vunpack.c.l.b16 %v236
      %v944 = vpack.c.b16 %v941, %v940
      %v945 = vpack.c.b16 %v943, %v942
      %v949 = vsel %vm369, %v935, 0
      %951 = vmatprep.subr.bf16.mxu0 0
      %952 = vmatpush1.bf16.msra.mxu0 %v944
      %953 = vmatprep.subr.bf16.mxu0 0
      %954 = vmatpush1.bf16.msra.mxu0 %v945
      %955 = vmatprep.subr.bf16.mxu0 0
      %956 = vmatpush1.bf16.msra.mxu0 0
      %957 = vmatprep.subr.bf16.mxu0 0
      %958 = vmatpush1.bf16.msra.mxu0 0
      %959 = vmatprep.subr.bf16.mxu0 0
      %960 = vmatpush1.bf16.msra.mxu0 0
      %961 = vmatprep.subr.bf16.mxu0 0
      %962 = vmatpush1.bf16.msra.mxu0 0
      %963 = vmatprep.subr.bf16.mxu0 0
      %964 = vmatpush1.bf16.msra.mxu0 0
      %965 = vmatprep.subr.bf16.mxu0 0
      %966 = vmatpush1.bf16.msra.mxu0 0
      %967 = vmatprep.subr.bf16.mxu0 0
      %968 = vmatpush1.bf16.msra.mxu0 0
      %969 = vmatprep.subr.bf16.mxu0 0
      %970 = vmatpush1.bf16.msra.mxu0 0
      %971 = vmatprep.subr.bf16.mxu0 0
      %972 = vmatpush1.bf16.msra.mxu0 0
      %973 = vmatprep.subr.bf16.mxu0 0
      %974 = vmatpush1.bf16.msra.mxu0 0
      %975 = vmatprep.subr.bf16.mxu0 0
      %976 = vmatpush1.bf16.msra.mxu0 0
      %977 = vmatprep.subr.bf16.mxu0 0
      %978 = vmatpush1.bf16.msra.mxu0 0
      %979 = vmatprep.subr.bf16.mxu0 0
      %980 = vmatpush1.bf16.msra.mxu0 0
      %981 = vmatprep.subr.bf16.mxu0 0
      %982 = vmatpush1.bf16.msra.mxu0 0
      %983 = vmatprep.mubr.bf16.mxu0 0
      %984 = vmatmul.mubr.bf16.gmra.mrb[0].mxu0 %v949
      %v985 = vpop.f32.mrb[0].mxu0
      %v986 = vadd.f32 0.0, %v985
      %v987 = vpop.f32.mrb[0].mxu0
      %v988 = vpop.f32.mrb[0].mxu0
      %v989 = vadd.f32 0.0, %v988
      %v990 = vpop.f32.mrb[0].mxu0
      %991 = vdwg.mxu0
      %v992 = vadd.f32 %v903, %v986
      %v993 = vadd.f32 %v904, %v989
      %v994 = vrot.slane %v911, 7
      %v995 = vrot.slane %v994, 2
      %v996 = vrot.slane %v912, 7
      %v997 = vsel %vm493, %v995, %v996
      %v998 = vcombine.low %v761, %v997
      %v1000 = vunpack.c.l.s4 1983009808
      %v1001 = vunpack.c.0.s8 %v1000
      %v1002 = vlaneseq
      %v1003 = vshrl.u32 %v1002, 7
      %v1004 = vsub.s32 %v1001, %v1003
      %v1005 = vrot.slane %v998, %v1004
      %v1006 = vcombine.low %v525, %v1005
      %v1011 = vunpack.c.l.b16 %v237
      %v1012 = vunpack.c.l.b16 %v238
      %v1013 = vunpack.c.l.b16 %v239
      %v1014 = vunpack.c.l.b16 %v240
      %v1015 = vpack.c.b16 %v1012, %v1011
      %v1016 = vpack.c.b16 %v1014, %v1013
      %v1020 = vsel %vm369, %v1006, 0
      %1022 = vmatprep.subr.bf16.mxu0 0
      %1023 = vmatpush1.bf16.msra.mxu0 %v1015
      %1024 = vmatprep.subr.bf16.mxu0 0
      %1025 = vmatpush1.bf16.msra.mxu0 %v1016
      %1026 = vmatprep.subr.bf16.mxu0 0
      %1027 = vmatpush1.bf16.msra.mxu0 0
      %1028 = vmatprep.subr.bf16.mxu0 0
      %1029 = vmatpush1.bf16.msra.mxu0 0
      %1030 = vmatprep.subr.bf16.mxu0 0
      %1031 = vmatpush1.bf16.msra.mxu0 0
      %1032 = vmatprep.subr.bf16.mxu0 0
      %1033 = vmatpush1.bf16.msra.mxu0 0
      %1034 = vmatprep.subr.bf16.mxu0 0
      %1035 = vmatpush1.bf16.msra.mxu0 0
      %1036 = vmatprep.subr.bf16.mxu0 0
      %1037 = vmatpush1.bf16.msra.mxu0 0
      %1038 = vmatprep.subr.bf16.mxu0 0
      %1039 = vmatpush1.bf16.msra.mxu0 0
      %1040 = vmatprep.subr.bf16.mxu0 0
      %1041 = vmatpush1.bf16.msra.mxu0 0
      %1042 = vmatprep.subr.bf16.mxu0 0
      %1043 = vmatpush1.bf16.msra.mxu0 0
      %1044 = vmatprep.subr.bf16.mxu0 0
      %1045 = vmatpush1.bf16.msra.mxu0 0
      %1046 = vmatprep.subr.bf16.mxu0 0
      %1047 = vmatpush1.bf16.msra.mxu0 0
      %1048 = vmatprep.subr.bf16.mxu0 0
      %1049 = vmatpush1.bf16.msra.mxu0 0
      %1050 = vmatprep.subr.bf16.mxu0 0
      %1051 = vmatpush1.bf16.msra.mxu0 0
      %1052 = vmatprep.subr.bf16.mxu0 0
      %1053 = vmatpush1.bf16.msra.mxu0 0
      %1054 = vmatprep.mubr.bf16.mxu0 0
      %1055 = vmatmul.mubr.bf16.gmra.mrb[0].mxu0 %v1020
      %v1056 = vpop.f32.mrb[0].mxu0
      %v1057 = vadd.f32 0.0, %v1056
      %v1058 = vpop.f32.mrb[0].mxu0
      %v1059 = vpop.f32.mrb[0].mxu0
      %v1060 = vadd.f32 0.0, %v1059
      %v1061 = vpop.f32.mrb[0].mxu0
      %1062 = vdwg.mxu0
      %v1063 = vadd.f32 %v992, %v1057
      %v1064 = vadd.f32 %v993, %v1060
      %v1065 = vld [vmem:[%s2] sm:$0x1]
      %v1067 = vlaneseq
      %v1068 = vshrl.u32 %v1067, 7
      %v1069 = vsub.s32 0, %v1068
      %v1070 = vrot.slane %v1065, %v1069
      %v1072 = vmul.f32 %v1063, %v1070
      %v1073 = vmul.f32 %v1064, %v1070
      %v1074 = vld [vmem:[%s3] sm:$0x1]
      %v1076 = vlaneseq
      %v1077 = vshrl.u32 %v1076, 7
      %v1078 = vsub.s32 0, %v1077
      %v1079 = vrot.slane %v1074, %v1078
      %v1081 = vadd.f32 %v1072, %v1079
      %v1082 = vadd.f32 %v1073, %v1079
      %v1083 = vmax.f32 %v1081, 0.0
      %v1084 = vmax.f32 %v1082, 0.0
      %v1087 = vcombine.high %v1083, %v1083
      %v1088 = vcombine.high %v1084, %v1084
      %v1091 = vpack.c.bf16 %v1083, %v1083
      %v1092 = vpack.c.bf16 %v1087, %v1087
      %v1093 = vpack.c.bf16 %v1084, %v1084
      %v1094 = vpack.c.bf16 %v1088, %v1088
      %vm1095 = vcmask 123904
      %1096 = vst.msk [vmem:[%s197] sm:$0x3] %vm1095, %v1091
      %1097 = vst.msk [vmem:[%s197 + $0x2] sm:$0x3] %vm1095, %v1092
      %1098 = vst.msk [vmem:[%s197 + $0x4] sm:$0x3] %vm1095, %v1093
      %1099 = vst.msk [vmem:[%s197 + $0x6] sm:$0x3] %vm1095, %v1094
      %p1100 = scmp.lt.s32.totalorder %s15, 1
      %s1101 = scalar_select %p1100, %s15, 1
      %s1102 = smul.addr %s1101, 4
      %s1103 = smul.addr %s1102, 2
      %s1104 = scalar_lea.vmem %s4, %s1103
      // Predicated region
      $region37: #{setr_pup_forward.29} parent=35 // pred_check
        %p1105 = pneg %p122
      $region38: #{setr_pup_forward.29} parent=35 // pred_check_branch
        %1107 = sbr.rel (%p1105) target = $region40
      $region39: #{setr_pup_forward.29} parent=35 // pred_region
        _
      $region40: #{setr_pup_forward.29} parent=35 // pred_fallthru
        _
    $region36: #{setr_pup_forward.29} parent=5 // pred_fallthru
      _
    %p1108 = scmp.le.s32.totalorder 2, %s10
    // Predicated region
    $region41: #{setr_pup_forward.29} parent=5 // pred_check
      %p1109 = pneg %p1108
    $region42: #{setr_pup_forward.29} parent=5 // pred_check_branch
      %1111 = sbr.rel (%p1109) target = $region44
    $region43: #{setr_pup_forward.29} parent=5 // pred_region
      %s1112 = ssub.s32 %s10, 2
      // Predicated region
      $region45: #{setr_pup_forward.29} parent=43 // pred_check
        %p1113 = pneg %p128
      $region46: #{setr_pup_forward.29} parent=43 // pred_check_branch
        %1115 = sbr.rel (%p1113) target = $region48
      $region47: #{setr_pup_forward.29} parent=43 // pred_region
        %p1116 = scmp.lt.s32.totalorder %s16, 1
        %s1117 = scalar_select %p1116, %s16, 1
        %s1118 = smul.addr %s1117, 4
        %s1119 = smul.addr %s1118, 2
        %s1120 = scalar_lea.vmem %s4, %s1119
      $region48: #{setr_pup_forward.29} parent=43 // pred_fallthru
        _
    $region44: #{setr_pup_forward.29} parent=5 // pred_fallthru
      _
  $region6: #{setr_pup_forward.29} parent=0 // loop_footer
    %s14 = sadd.s32 1, %s10
  $region7: #{setr_pup_forward.29} parent=0 // loop_footer_branch
    %9 = sbr.rel target = $region3
  $region8: #{setr_pup_forward.29} parent=0 // loop_exit
    _

// kernel: setr_pup_forward.30
$region0: #{setr_pup_forward.30}
  #allocation0 [shape = 'u32[]', space=smem, size = 0x4, offset = 0x4, fixed_abs, tag = 'smem constant byte address 0x4 - core index']
  #allocation1 [shape = 'u32[144,128]{1,0:T(1,128)}', space=vmem, size = 0x12000, scoped, tag = 'internal scratch']
  %s0 = inlined_call_operand.vmem [shape: bf16[2,10,10,16], index: 0, kind: input, shape index: {}]
  %s1 = inlined_call_operand.vmem [shape: bf16[3,3,16,16], index: 1, kind: input, shape index: {}]
  %s2 = inlined_call_operand.vmem [shape: f32[1,16], index: 2, kind: input, shape index: {}]
  %s3 = inlined_call_operand.vmem [shape: f32[1,16], index: 3, kind: input, shape index: {}]
  %s4 = inlined_call_operand.vmem [shape: bf16[2,8,8,16], index: 4, kind: output, shape index: {}]
  %s5 = sld [smem:[#allocation0]]
  $region49: #{setr_pup_forward.30} parent=0
    _
  %s7 = ssub.s32 1, %s5
  %s8 = scalar_select 0, %s7, %s5
  loop: start=0, step=1, limit=4
  $region2: #{setr_pup_forward.30} parent=0 // loop_pre_header
    _
  $region3: #{setr_pup_forward.30} parent=0 // loop_header
    %s10 = sphi 0, %s14
    %p11 = scmp.ge.s32.totalorder %s10, 4
    %s20 = sphi 0, %s22
    %s23 = sphi 0, %s20
    %s24 = sphi 0, %s23
    %s40 = sphi 0, %s24
    %s44 = sphi 0, %s44
    %s46 = sphi 0, %s44
    %s47 = sphi 0, %s46
    %s61 = sphi 0, %s47
    %s65 = sphi 0, %s65
    %s67 = sphi 0, %s65
    %s68 = sphi 0, %s67
    %s82 = sphi 0, %s68
    %s86 = sphi 0, %s86
    %s88 = sphi 0, %s86
    %s89 = sphi 0, %s88
    %s103 = sphi 0, %s89
    %s109 = sphi 0, %s111
    %s112 = sphi 0, %s109
    %s113 = sphi 0, %s112
    %s129 = sphi 0, %s113
  $region4: #{setr_pup_forward.30} parent=0 // loop_header_branch
    %13 = sbr.rel (%p11) target = $region8
  $region5: #{setr_pup_forward.30} parent=0 // loop_body
    %s15 = ssub.s32 %s10, 1
    %s16 = ssub.s32 %s10, 2
    %s17 = sadd.s32 %s10, 1
    %s18 = ssub.s32 %s10, %s17
    %p19 = scmp.eq.s32.totalorder %s18, 0
    %s21 = sadd.s32 %s20, 1
    %s22 = scalar_select %p19, %s20, %s21
    %p25 = pneg %p19
    %p26 = scmp.eq.s32.totalorder %s10, 1
    %p27 = por %p25, %p26
    %p28 = scmp.ne.s32.totalorder %s20, %s23
    %p29 = scmp.eq.s32.totalorder %s10, 0
    %p30 = por %p28, %p29
    %p31 = scmp.ne.s32.totalorder %s20, %s23
    %p32 = scmp.eq.s32.totalorder %s15, 1
    %p33 = por %p31, %p32
    %p34 = scmp.ne.s32.totalorder %s23, %s24
    %p35 = scmp.eq.s32.totalorder %s15, 0
    %p36 = por %p34, %p35
    %p37 = scmp.ne.s32.totalorder %s23, %s24
    %p38 = scmp.eq.s32.totalorder %s16, 1
    %p39 = por %p37, %p38
    %p41 = scmp.ne.s32.totalorder %s24, %s40
    %p42 = scmp.eq.s32.totalorder %s16, 0
    %p43 = por %p41, %p42
    %s45 = sadd.s32 %s44, 1
    %p48 = scmp.eq.s32.totalorder %s10, 1
    %p49 = scmp.ne.s32.totalorder %s44, %s46
    %p50 = scmp.eq.s32.totalorder %s10, 0
    %p51 = por %p49, %p50
    %p52 = scmp.ne.s32.totalorder %s44, %s46
    %p53 = scmp.eq.s32.totalorder %s15, 1
    %p54 = por %p52, %p53
    %p55 = scmp.ne.s32.totalorder %s46, %s47
    %p56 = scmp.eq.s32.totalorder %s15, 0
    %p57 = por %p55, %p56
    %p58 = scmp.ne.s32.totalorder %s46, %s47
    %p59 = scmp.eq.s32.totalorder %s16, 1
    %p60 = por %p58, %p59
    %p62 = scmp.ne.s32.totalorder %s47, %s61
    %p63 = scmp.eq.s32.totalorder %s16, 0
    %p64 = por %p62, %p63
    %s66 = sadd.s32 %s65, 1
    %p69 = scmp.eq.s32.totalorder %s10, 1
    %p70 = scmp.ne.s32.totalorder %s65, %s67
    %p71 = scmp.eq.s32.totalorder %s10, 0
    %p72 = por %p70, %p71
    %p73 = scmp.ne.s32.totalorder %s65, %s67
    %p74 = scmp.eq.s32.totalorder %s15, 1
    %p75 = por %p73, %p74
    %p76 = scmp.ne.s32.totalorder %s67, %s68
    %p77 = scmp.eq.s32.totalorder %s15, 0
    %p78 = por %p76, %p77
    %p79 = scmp.ne.s32.totalorder %s67, %s68
    %p80 = scmp.eq.s32.totalorder %s16, 1
    %p81 = por %p79, %p80
    %p83 = scmp.ne.s32.totalorder %s68, %s82
    %p84 = scmp.eq.s32.totalorder %s16, 0
    %p85 = por %p83, %p84
    %s87 = sadd.s32 %s86, 1
    %p90 = scmp.eq.s32.totalorder %s10, 1
    %p91 = scmp.ne.s32.totalorder %s86, %s88
    %p92 = scmp.eq.s32.totalorder %s10, 0
    %p93 = por %p91, %p92
    %p94 = scmp.ne.s32.totalorder %s86, %s88
    %p95 = scmp.eq.s32.totalorder %s15, 1
    %p96 = por %p94, %p95
    %p97 = scmp.ne.s32.totalorder %s88, %s89
    %p98 = scmp.eq.s32.totalorder %s15, 0
    %p99 = por %p97, %p98
    %p100 = scmp.ne.s32.totalorder %s88, %s89
    %p101 = scmp.eq.s32.totalorder %s16, 1
    %p102 = por %p100, %p101
    %p104 = scmp.ne.s32.totalorder %s89, %s103
    %p105 = scmp.eq.s32.totalorder %s16, 0
    %p106 = por %p104, %p105
    %s107 = ssub.s32 %s10, %s17
    %p108 = scmp.eq.s32.totalorder %s107, 0
    %s110 = sadd.s32 %s109, 1
    %s111 = scalar_select %p108, %s109, %s110
    %p114 = pneg %p108
    %p115 = scmp.eq.s32.totalorder %s10, 1
    %p116 = por %p114, %p115
    %p117 = scmp.ne.s32.totalorder %s109, %s112
    %p118 = scmp.eq.s32.totalorder %s10, 0
    %p119 = por %p117, %p118
    %p120 = scmp.ne.s32.totalorder %s109, %s112
    %p121 = scmp.eq.s32.totalorder %s15, 1
    %p122 = por %p120, %p121
    %p123 = scmp.ne.s32.totalorder %s112, %s113
    %p124 = scmp.eq.s32.totalorder %s15, 0
    %p125 = por %p123, %p124
    %p126 = scmp.ne.s32.totalorder %s112, %s113
    %p127 = scmp.eq.s32.totalorder %s16, 1
    %p128 = por %p126, %p127
    %p130 = scmp.ne.s32.totalorder %s113, %s129
    %p131 = scmp.eq.s32.totalorder %s16, 0
    %p132 = por %p130, %p131
    %p133 = scmp.le.s32.totalorder 1, %s10
    %p134 = scmp.lt.s32.totalorder %s10, 3
    %p135 = pnand %p133, %p134
    %p136 = pneg %p135
    // Predicated region
    $region9: #{setr_pup_forward.30} parent=5 // pred_check
      _
    $region10: #{setr_pup_forward.30} parent=5 // pred_check_branch
      %138 = sbr.rel (%p135) target = $region12
    $region11: #{setr_pup_forward.30} parent=5 // pred_region
      %s139 = ssub.s32 %s10, 1
      // Predicated region
      $region13: #{setr_pup_forward.30} parent=11 // pred_check
        %p140 = pneg %p57
      $region14: #{setr_pup_forward.30} parent=11 // pred_check_branch
        %142 = sbr.rel (%p140) target = $region16
      $region15: #{setr_pup_forward.30} parent=11 // pred_region
        _
      $region16: #{setr_pup_forward.30} parent=11 // pred_fallthru
        _
      // Predicated region
      $region17: #{setr_pup_forward.30} parent=11 // pred_check
        %p143 = pneg %p78
      $region18: #{setr_pup_forward.30} parent=11 // pred_check_branch
        %145 = sbr.rel (%p143) target = $region20
      $region19: #{setr_pup_forward.30} parent=11 // pred_region
        _
      $region20: #{setr_pup_forward.30} parent=11 // pred_fallthru
        _
      // Predicated region
      $region21: #{setr_pup_forward.30} parent=11 // pred_check
        %p146 = pneg %p99
      $region22: #{setr_pup_forward.30} parent=11 // pred_check_branch
        %148 = sbr.rel (%p146) target = $region24
      $region23: #{setr_pup_forward.30} parent=11 // pred_region
        _
      $region24: #{setr_pup_forward.30} parent=11 // pred_fallthru
        _
    $region12: #{setr_pup_forward.30} parent=5 // pred_fallthru
      _
    %p149 = scmp.lt.s32.totalorder %s10, 2
    // Predicated region
    $region25: #{setr_pup_forward.30} parent=5 // pred_check
      %p150 = pneg %p149
    $region26: #{setr_pup_forward.30} parent=5 // pred_check_branch
      %152 = sbr.rel (%p150) target = $region28
    $region27: #{setr_pup_forward.30} parent=5 // pred_region
      // Predicated region
      $region29: #{setr_pup_forward.30} parent=27 // pred_check
        %p153 = pneg %p30
      $region30: #{setr_pup_forward.30} parent=27 // pred_check_branch
        %155 = sbr.rel (%p153) target = $region32
      $region31: #{setr_pup_forward.30} parent=27 // pred_region
        %p156 = scmp.lt.s32.totalorder %s10, 1
        %s157 = scalar_select %p156, %s10, 1
        %s158 = smul.addr %s157, 20
        %s159 = smul.addr %s158, 4
        %s160 = scalar_lea.vmem %s0, %s159
      $region32: #{setr_pup_forward.30} parent=27 // pred_fallthru
        _
    $region28: #{setr_pup_forward.30} parent=5 // pred_fallthru
      _
    %p161 = scmp.le.s32.totalorder 1, %s10
    %p162 = scmp.lt.s32.totalorder %s10, 3
    %p163 = pnand %p161, %p162
    %p164 = pneg %p163
    // Predicated region
    $region33: #{setr_pup_forward.30} parent=5 // pred_check
      _
    $region34: #{setr_pup_forward.30} parent=5 // pred_check_branch
      %166 = sbr.rel (%p163) target = $region36
    $region35: #{setr_pup_forward.30} parent=5 // pred_region
      %s167 = ssub.s32 %s10, 1
      %p168 = scmp.lt.s32.totalorder %s15, 1
      %s169 = scalar_select %p168, %s15, 1
      %s170 = smul.addr %s169, 20
      %s171 = smul.addr %s170, 4
      %s172 = scalar_lea.vmem %s0, %s171
      %p173 = pneg %p36
      %p174 = pneg %p33
      %p175 = pneg %p57
      %p176 = pneg %p54
      %p177 = pneg %p78
      %p178 = pneg %p75
      %p179 = pneg %p99
      %p180 = pneg %p96
      %p181 = pneg %p125
      %p182 = pneg %p122
      %p183 = scmp.lt.s32.totalorder %s15, 1
      %s184 = scalar_select %p183, %s15, 1
      %s185 = smul.addr %s184, 8
      %s186 = smul.addr %s185, 4
      %s187 = scalar_lea.vmem %s4, %s186
      %p188 = scmp.lt.s32.totalorder %s15, 1
      %s189 = scalar_select %p188, %s15, 1
      %s190 = smul.addr %s189, 20
      %s191 = smul.addr %s190, 4
      %s192 = scalar_lea.vmem %s0, %s191
      %p193 = scmp.lt.s32.totalorder %s15, 1
      %s194 = scalar_select %p193, %s15, 1
      %s195 = smul.addr %s194, 8
      %s196 = smul.addr %s195, 4
      %s197 = scalar_lea.vmem %s4, %s196
      %v199 = vld [vmem:[%s192] sm:$0xf]
      %v200 = vld [vmem:[%s192 + $0x4] sm:$0x1]
      %v201 = vld [vmem:[%s192 + $0x8] sm:$0xf]
      %v202 = vld [vmem:[%s192 + $0xc] sm:$0x1]
      %v203 = vld [vmem:[%s192 + $0x10] sm:$0xf]
      %v204 = vld [vmem:[%s192 + $0x14] sm:$0x1]
      %v205 = vld [vmem:[%s192 + $0x18] sm:$0xf]
      %v206 = vld [vmem:[%s192 + $0x1c] sm:$0x1]
      %v207 = vld [vmem:[%s192 + $0x20] sm:$0xf]
      %v208 = vld [vmem:[%s192 + $0x24] sm:$0x1]
      %v209 = vld [vmem:[%s192 + $0x28] sm:$0xf]
      %v210 = vld [vmem:[%s192 + $0x2c] sm:$0x1]
      %v211 = vld [vmem:[%s192 + $0x30] sm:$0xf]
      %v212 = vld [vmem:[%s192 + $0x34] sm:$0x1]
      %v213 = vld [vmem:[%s192 + $0x38] sm:$0xf]
      %v214 = vld [vmem:[%s192 + $0x3c] sm:$0x1]
      %v215 = vld [vmem:[%s192 + $0x40] sm:$0xf]
      %v216 = vld [vmem:[%s192 + $0x44] sm:$0x1]
      %v217 = vld [vmem:[%s192 + $0x48] sm:$0xf]
      %v218 = vld [vmem:[%s192 + $0x4c] sm:$0x1]
      %v219 = vld [vmem:[%s1] sm:$0xf]
      %v220 = vld [vmem:[%s1 + $0x4] sm:$0xf]
      %v221 = vld [vmem:[%s1 + $0x8] sm:$0xf]
      %v222 = vld [vmem:[%s1 + $0xc] sm:$0xf]
      %v223 = vld [vmem:[%s1 + $0x10] sm:$0xf]
      %v224 = vld [vmem:[%s1 + $0x14] sm:$0xf]
      %v225 = vld [vmem:[%s1 + $0x18] sm:$0xf]
      %v226 = vld [vmem:[%s1 + $0x1c] sm:$0xf]
      %v227 = vld [vmem:[%s1 + $0x20] sm:$0xf]
      %v228 = vld [vmem:[%s1 + $0x24] sm:$0xf]
      %v229 = vld [vmem:[%s1 + $0x28] sm:$0xf]
      %v230 = vld [vmem:[%s1 + $0x2c] sm:$0xf]
      %v231 = vld [vmem:[%s1 + $0x30] sm:$0xf]
      %v232 = vld [vmem:[%s1 + $0x34] sm:$0xf]
      %v233 = vld [vmem:[%s1 + $0x38] sm:$0xf]
      %v234 = vld [vmem:[%s1 + $0x3c] sm:$0xf]
      %v235 = vld [vmem:[%s1 + $0x40] sm:$0xf]
      %v236 = vld [vmem:[%s1 + $0x44] sm:$0xf]
      %vm237 = vsmask.f32 3328
      %vm238 = vsmask.f32 7440
      %vm239 = vmor %vm237, %vm238
      %v241 = vshrl.u32 %v199, 16
      %v243 = vrot.slane %v241, 4
      %v244 = vshll.u32 %v199, 16
      %v246 = vrot.slane %v244, 5
      %v247 = vor.u32 %v243, %v246
      %v248 = vrot.slane %v247, 4
      %v250 = vshll.u32 %v200, 16
      %v252 = vrot.slane %v250, 5
      %v253 = vsel %vm239, %v248, %v252
      %v255 = vshrl.u32 %v201, 16
      %v257 = vrot.slane %v255, 4
      %v258 = vshll.u32 %v201, 16
      %v260 = vrot.slane %v258, 5
      %v261 = vor.u32 %v257, %v260
      %v262 = vrot.slane %v261, 4
      %v264 = vshll.u32 %v202, 16
      %v266 = vrot.slane %v264, 5
      %v267 = vsel %vm239, %v262, %v266
      %v269 = vshrl.u32 %v203, 16
      %v271 = vrot.slane %v269, 4
      %v272 = vshll.u32 %v203, 16
      %v274 = vrot.slane %v272, 5
      %v275 = vor.u32 %v271, %v274
      %v276 = vrot.slane %v275, 4
      %v278 = vshll.u32 %v204, 16
      %v280 = vrot.slane %v278, 5
      %v281 = vsel %vm239, %v276, %v280
      %v283 = vshrl.u32 %v205, 16
      %v285 = vrot.slane %v283, 4
      %v286 = vshll.u32 %v205, 16
      %v288 = vrot.slane %v286, 5
      %v289 = vor.u32 %v285, %v288
      %v290 = vrot.slane %v289, 4
      %v292 = vshll.u32 %v206, 16
      %v294 = vrot.slane %v292, 5
      %v295 = vsel %vm239, %v290, %v294
      %v297 = vshrl.u32 %v207, 16
      %v299 = vrot.slane %v297, 4
      %v300 = vshll.u32 %v207, 16
      %v302 = vrot.slane %v300, 5
      %v303 = vor.u32 %v299, %v302
      %v304 = vrot.slane %v303, 4
      %v306 = vshll.u32 %v208, 16
      %v308 = vrot.slane %v306, 5
      %v309 = vsel %vm239, %v304, %v308
      %v311 = vshrl.u32 %v209, 16
      %v313 = vrot.slane %v311, 4
      %v314 = vshll.u32 %v209, 16
      %v316 = vrot.slane %v314, 5
      %v317 = vor.u32 %v313, %v316
      %v318 = vrot.slane %v317, 4
      %v320 = vshll.u32 %v210, 16
      %v322 = vrot.slane %v320, 5
      %v323 = vsel %vm239, %v318, %v322
      %v325 = vshrl.u32 %v211, 16
      %v327 = vrot.slane %v325, 4
      %v328 = vshll.u32 %v211, 16
      %v330 = vrot.slane %v328, 5
      %v331 = vor.u32 %v327, %v330
      %v332 = vrot.slane %v331, 4
      %v334 = vshll.u32 %v212, 16
      %v336 = vrot.slane %v334, 5
      %v337 = vsel %vm239, %v332, %v336
      %v339 = vshrl.u32 %v213, 16
      %v341 = vrot.slane %v339, 4
      %v342 = vshll.u32 %v213, 16
      %v344 = vrot.slane %v342, 5
      %v345 = vor.u32 %v341, %v344
      %v346 = vrot.slane %v345, 4
      %v348 = vshll.u32 %v214, 16
      %v350 = vrot.slane %v348, 5
      %v351 = vsel %vm239, %v346, %v350
      %v352 = vunpack.c.l.b16 %v253
      %v353 = vunpack.c.l.b16 %v267
      %v354 = vunpack.c.l.b16 %v281
      %v355 = vunpack.c.l.b16 %v295
      %v356 = vunpack.c.l.b16 %v309
      %v357 = vunpack.c.l.b16 %v323
      %v358 = vunpack.c.l.b16 %v337
      %v359 = vunpack.c.l.b16 %v351
      %v360 = vpack.c.b16 %v353, %v352
      %v361 = vpack.c.b16 %v355, %v354
      %v362 = vpack.c.b16 %v357, %v356
      %v363 = vpack.c.b16 %v359, %v358
      %v366 = vunpack.c.l.b16 %v221
      %v367 = vunpack.c.l.b16 %v222
      %v368 = vpack.c.b16 %v367, %v366
      %vm370 = vcmask 130048
      %v372 = vsel %vm370, %v360, 0
      %v375 = vsel %vm370, %v361, 0
      %v378 = vsel %vm370, %v362, 0
      %v381 = vsel %vm370, %v363, 0
      %383 = vmatprep.subr.bf16.mxu0 0
      %384 = vmatpush1.bf16.msra.mxu0 %v368
      %385 = vmatprep.subr.bf16.mxu0 0
      %386 = vmatpush1.bf16.msra.mxu0 0
      %387 = vmatprep.subr.bf16.mxu0 0
      %388 = vmatpush1.bf16.msra.mxu0 0
      %389 = vmatprep.subr.bf16.mxu0 0
      %390 = vmatpush1.bf16.msra.mxu0 0
      %391 = vmatprep.subr.bf16.mxu0 0
      %392 = vmatpush1.bf16.msra.mxu0 0
      %393 = vmatprep.subr.bf16.mxu0 0
      %394 = vmatpush1.bf16.msra.mxu0 0
      %395 = vmatprep.subr.bf16.mxu0 0
      %396 = vmatpush1.bf16.msra.mxu0 0
      %397 = vmatprep.subr.bf16.mxu0 0
      %398 = vmatpush1.bf16.msra.mxu0 0
      %399 = vmatprep.subr.bf16.mxu0 0
      %400 = vmatpush1.bf16.msra.mxu0 0
      %401 = vmatprep.subr.bf16.mxu0 0
      %402 = vmatpush1.bf16.msra.mxu0 0
      %403 = vmatprep.subr.bf16.mxu0 0
      %404 = vmatpush1.bf16.msra.mxu0 0
      %405 = vmatprep.subr.bf16.mxu0 0
      %406 = vmatpush1.bf16.msra.mxu0 0
      %407 = vmatprep.subr.bf16.mxu0 0
      %408 = vmatpush1.bf16.msra.mxu0 0
      %409 = vmatprep.subr.bf16.mxu0 0
      %410 = vmatpush1.bf16.msra.mxu0 0
      %411 = vmatprep.subr.bf16.mxu0 0
      %412 = vmatpush1.bf16.msra.mxu0 0
      %413 = vmatprep.subr.bf16.mxu0 0
      %414 = vmatpush1.bf16.msra.mxu0 0
      %415 = vmatprep.mubr.bf16.mxu0 0
      %416 = vmatmul.mubr.bf16.gmra.mrb[0].mxu0 %v372
      %v417 = vpop.f32.mrb[0].mxu0
      %v418 = vadd.f32 0.0, %v417
      %v419 = vpop.f32.mrb[0].mxu0
      %v420 = vpop.f32.mrb[0].mxu0
      %v421 = vadd.f32 0.0, %v420
      %v422 = vpop.f32.mrb[0].mxu0
      %423 = vmatprep.mubr.bf16.mxu0 0
      %424 = vmatmul.mubr.bf16.gmra.mrb[0].mxu0 %v375
      %v425 = vpop.f32.mrb[0].mxu0
      %v426 = vadd.f32 0.0, %v425
      %v427 = vpop.f32.mrb[0].mxu0
      %v428 = vpop.f32.mrb[0].mxu0
      %v429 = vadd.f32 0.0, %v428
      %v430 = vpop.f32.mrb[0].mxu0
      %431 = vmatprep.mubr.bf16.mxu0 0
      %432 = vmatmul.mubr.bf16.gmra.mrb[0].mxu0 %v378
      %v433 = vpop.f32.mrb[0].mxu0
      %v434 = vadd.f32 0.0, %v433
      %v435 = vpop.f32.mrb[0].mxu0
      %v436 = vpop.f32.mrb[0].mxu0
      %v437 = vadd.f32 0.0, %v436
      %v438 = vpop.f32.mrb[0].mxu0
      %439 = vmatprep.mubr.bf16.mxu0 0
      %440 = vmatmul.mubr.bf16.gmra.mrb[0].mxu0 %v381
      %v441 = vpop.f32.mrb[0].mxu0
      %v442 = vadd.f32 0.0, %v441
      %v443 = vpop.f32.mrb[0].mxu0
      %v444 = vpop.f32.mrb[0].mxu0
      %v445 = vadd.f32 0.0, %v444
      %v446 = vpop.f32.mrb[0].mxu0
      %447 = vdwg.mxu0
      %v456 = vunpack.c.l.b16 %v199
      %v457 = vunpack.c.l.b16 %v201
      %v458 = vunpack.c.l.b16 %v203
      %v459 = vunpack.c.l.b16 %v205
      %v460 = vunpack.c.l.b16 %v207
      %v461 = vunpack.c.l.b16 %v209
      %v462 = vunpack.c.l.b16 %v211
      %v463 = vunpack.c.l.b16 %v213
      %v464 = vpack.c.b16 %v457, %v456
      %v465 = vpack.c.b16 %v459, %v458
      %v466 = vpack.c.b16 %v461, %v460
      %v467 = vpack.c.b16 %v463, %v462
      %v470 = vunpack.c.l.b16 %v219
      %v471 = vunpack.c.l.b16 %v220
      %v472 = vpack.c.b16 %v471, %v470
      %v475 = vsel %vm370, %v464, 0
      %v478 = vsel %vm370, %v465, 0
      %v481 = vsel %vm370, %v466, 0
      %v484 = vsel %vm370, %v467, 0
      %486 = vmatprep.subr.bf16.mxu0 0
      %487 = vmatpush1.bf16.msra.mxu0 %v472
      %488 = vmatprep.subr.bf16.mxu0 0
      %489 = vmatpush1.bf16.msra.mxu0 0
      %490 = vmatprep.subr.bf16.mxu0 0
      %491 = vmatpush1.bf16.msra.mxu0 0
      %492 = vmatprep.subr.bf16.mxu0 0
      %493 = vmatpush1.bf16.msra.mxu0 0
      %494 = vmatprep.subr.bf16.mxu0 0
      %495 = vmatpush1.bf16.msra.mxu0 0
      %496 = vmatprep.subr.bf16.mxu0 0
      %497 = vmatpush1.bf16.msra.mxu0 0
      %498 = vmatprep.subr.bf16.mxu0 0
      %499 = vmatpush1.bf16.msra.mxu0 0
      %500 = vmatprep.subr.bf16.mxu0 0
      %501 = vmatpush1.bf16.msra.mxu0 0
      %502 = vmatprep.subr.bf16.mxu0 0
      %503 = vmatpush1.bf16.msra.mxu0 0
      %504 = vmatprep.subr.bf16.mxu0 0
      %505 = vmatpush1.bf16.msra.mxu0 0
      %506 = vmatprep.subr.bf16.mxu0 0
      %507 = vmatpush1.bf16.msra.mxu0 0
      %508 = vmatprep.subr.bf16.mxu0 0
      %509 = vmatpush1.bf16.msra.mxu0 0
      %510 = vmatprep.subr.bf16.mxu0 0
      %511 = vmatpush1.bf16.msra.mxu0 0
      %512 = vmatprep.subr.bf16.mxu0 0
      %513 = vmatpush1.bf16.msra.mxu0 0
      %514 = vmatprep.subr.bf16.mxu0 0
      %515 = vmatpush1.bf16.msra.mxu0 0
      %516 = vmatprep.subr.bf16.mxu0 0
      %517 = vmatpush1.bf16.msra.mxu0 0
      %518 = vmatprep.mubr.bf16.mxu0 0
      %519 = vmatmul.mubr.bf16.gmra.mrb[0].mxu0 %v475
      %v520 = vpop.f32.mrb[0].mxu0
      %v521 = vadd.f32 %v418, %v520
      %v522 = vpop.f32.mrb[0].mxu0
      %v523 = vpop.f32.mrb[0].mxu0
      %v524 = vadd.f32 %v421, %v523
      %v525 = vpop.f32.mrb[0].mxu0
      %526 = vmatprep.mubr.bf16.mxu0 0
      %527 = vmatmul.mubr.bf16.gmra.mrb[0].mxu0 %v478
      %v528 = vpop.f32.mrb[0].mxu0
      %v529 = vadd.f32 %v426, %v528
      %v530 = vpop.f32.mrb[0].mxu0
      %v531 = vpop.f32.mrb[0].mxu0
      %v532 = vadd.f32 %v429, %v531
      %v533 = vpop.f32.mrb[0].mxu0
      %534 = vmatprep.mubr.bf16.mxu0 0
      %535 = vmatmul.mubr.bf16.gmra.mrb[0].mxu0 %v481
      %v536 = vpop.f32.mrb[0].mxu0
      %v537 = vadd.f32 %v434, %v536
      %v538 = vpop.f32.mrb[0].mxu0
      %v539 = vpop.f32.mrb[0].mxu0
      %v540 = vadd.f32 %v437, %v539
      %v541 = vpop.f32.mrb[0].mxu0
      %542 = vmatprep.mubr.bf16.mxu0 0
      %543 = vmatmul.mubr.bf16.gmra.mrb[0].mxu0 %v484
      %v544 = vpop.f32.mrb[0].mxu0
      %v545 = vadd.f32 %v442, %v544
      %v546 = vpop.f32.mrb[0].mxu0
      %v547 = vpop.f32.mrb[0].mxu0
      %v548 = vadd.f32 %v445, %v547
      %v549 = vpop.f32.mrb[0].mxu0
      %550 = vdwg.mxu0
      %vm559 = vcmask 1042432
      %vm560 = vcmask 1046532
      %vm561 = vmor %vm559, %vm560
      %v562 = vrot.slane %v199, 5
      %v563 = vrot.slane %v562, 4
      %v564 = vrot.slane %v200, 5
      %v565 = vsel %vm561, %v563, %v564
      %v566 = vrot.slane %v201, 5
      %v567 = vrot.slane %v566, 4
      %v568 = vrot.slane %v202, 5
      %v569 = vsel %vm561, %v567, %v568
      %v570 = vrot.slane %v203, 5
      %v571 = vrot.slane %v570, 4
      %v572 = vrot.slane %v204, 5
      %v573 = vsel %vm561, %v571, %v572
      %v574 = vrot.slane %v205, 5
      %v575 = vrot.slane %v574, 4
      %v576 = vrot.slane %v206, 5
      %v577 = vsel %vm561, %v575, %v576
      %v578 = vrot.slane %v207, 5
      %v579 = vrot.slane %v578, 4
      %v580 = vrot.slane %v208, 5
      %v581 = vsel %vm561, %v579, %v580
      %v582 = vrot.slane %v209, 5
      %v583 = vrot.slane %v582, 4
      %v584 = vrot.slane %v210, 5
      %v585 = vsel %vm561, %v583, %v584
      %v586 = vrot.slane %v211, 5
      %v587 = vrot.slane %v586, 4
      %v588 = vrot.slane %v212, 5
      %v589 = vsel %vm561, %v587, %v588
      %v590 = vrot.slane %v213, 5
      %v591 = vrot.slane %v590, 4
      %v592 = vrot.slane %v214, 5
      %v593 = vsel %vm561, %v591, %v592
      %v594 = vunpack.c.l.b16 %v565
      %v595 = vunpack.c.l.b16 %v569
      %v596 = vunpack.c.l.b16 %v573
      %v597 = vunpack.c.l.b16 %v577
      %v598 = vunpack.c.l.b16 %v581
      %v599 = vunpack.c.l.b16 %v585
      %v600 = vunpack.c.l.b16 %v589
      %v601 = vunpack.c.l.b16 %v593
      %v602 = vpack.c.b16 %v595, %v594
      %v603 = vpack.c.b16 %v597, %v596
      %v604 = vpack.c.b16 %v599, %v598
      %v605 = vpack.c.b16 %v601, %v600
      %v608 = vunpack.c.l.b16 %v223
      %v609 = vunpack.c.l.b16 %v224
      %v610 = vpack.c.b16 %v609, %v608
      %v613 = vsel %vm370, %v602, 0
      %v616 = vsel %vm370, %v603, 0
      %v619 = vsel %vm370, %v604, 0
      %v622 = vsel %vm370, %v605, 0
      %624 = vmatprep.subr.bf16.mxu0 0
      %625 = vmatpush1.bf16.msra.mxu0 %v610
      %626 = vmatprep.subr.bf16.mxu0 0
      %627 = vmatpush1.bf16.msra.mxu0 0
      %628 = vmatprep.subr.bf16.mxu0 0
      %629 = vmatpush1.bf16.msra.mxu0 0
      %630 = vmatprep.subr.bf16.mxu0 0
      %631 = vmatpush1.bf16.msra.mxu0 0
      %632 = vmatprep.subr.bf16.mxu0 0
      %633 = vmatpush1.bf16.msra.mxu0 0
      %634 = vmatprep.subr.bf16.mxu0 0
      %635 = vmatpush1.bf16.msra.mxu0 0
      %636 = vmatprep.subr.bf16.mxu0 0
      %637 = vmatpush1.bf16.msra.mxu0 0
      %638 = vmatprep.subr.bf16.mxu0 0
      %639 = vmatpush1.bf16.msra.mxu0 0
      %640 = vmatprep.subr.bf16.mxu0 0
      %641 = vmatpush1.bf16.msra.mxu0 0
      %642 = vmatprep.subr.bf16.mxu0 0
      %643 = vmatpush1.bf16.msra.mxu0 0
      %644 = vmatprep.subr.bf16.mxu0 0
      %645 = vmatpush1.bf16.msra.mxu0 0
      %646 = vmatprep.subr.bf16.mxu0 0
      %647 = vmatpush1.bf16.msra.mxu0 0
      %648 = vmatprep.subr.bf16.mxu0 0
      %649 = vmatpush1.bf16.msra.mxu0 0
      %650 = vmatprep.subr.bf16.mxu0 0
      %651 = vmatpush1.bf16.msra.mxu0 0
      %652 = vmatprep.subr.bf16.mxu0 0
      %653 = vmatpush1.bf16.msra.mxu0 0
      %654 = vmatprep.subr.bf16.mxu0 0
      %655 = vmatpush1.bf16.msra.mxu0 0
      %656 = vmatprep.mubr.bf16.mxu0 0
      %657 = vmatmul.mubr.bf16.gmra.mrb[0].mxu0 %v613
      %v658 = vpop.f32.mrb[0].mxu0
      %v659 = vadd.f32 0.0, %v658
      %v660 = vpop.f32.mrb[0].mxu0
      %v661 = vpop.f32.mrb[0].mxu0
      %v662 = vadd.f32 0.0, %v661
      %v663 = vpop.f32.mrb[0].mxu0
      %664 = vmatprep.mubr.bf16.mxu0 0
      %665 = vmatmul.mubr.bf16.gmra.mrb[0].mxu0 %v616
      %v666 = vpop.f32.mrb[0].mxu0
      %v667 = vadd.f32 0.0, %v666
      %v668 = vpop.f32.mrb[0].mxu0
      %v669 = vpop.f32.mrb[0].mxu0
      %v670 = vadd.f32 0.0, %v669
      %v671 = vpop.f32.mrb[0].mxu0
      %672 = vmatprep.mubr.bf16.mxu0 0
      %673 = vmatmul.mubr.bf16.gmra.mrb[0].mxu0 %v619
      %v674 = vpop.f32.mrb[0].mxu0
      %v675 = vadd.f32 0.0, %v674
      %v676 = vpop.f32.mrb[0].mxu0
      %v677 = vpop.f32.mrb[0].mxu0
      %v678 = vadd.f32 0.0, %v677
      %v679 = vpop.f32.mrb[0].mxu0
      %680 = vmatprep.mubr.bf16.mxu0 0
      %681 = vmatmul.mubr.bf16.gmra.mrb[0].mxu0 %v622
      %v682 = vpop.f32.mrb[0].mxu0
      %v683 = vadd.f32 0.0, %v682
      %v684 = vpop.f32.mrb[0].mxu0
      %v685 = vpop.f32.mrb[0].mxu0
      %v686 = vadd.f32 0.0, %v685
      %v687 = vpop.f32.mrb[0].mxu0
      %688 = vdwg.mxu0
      %v689 = vadd.f32 %v521, %v659
      %v690 = vadd.f32 %v524, %v662
      %v691 = vadd.f32 %v529, %v667
      %v692 = vadd.f32 %v532, %v670
      %v693 = vadd.f32 %v537, %v675
      %v694 = vadd.f32 %v540, %v678
      %v695 = vadd.f32 %v545, %v683
      %v696 = vadd.f32 %v548, %v686
      %v698 = vunpack.c.l.b16 %v215
      %v699 = vpack.c.b16 %v458, %v457
      %v700 = vpack.c.b16 %v460, %v459
      %v701 = vpack.c.b16 %v462, %v461
      %v702 = vpack.c.b16 %v698, %v463
      %v705 = vunpack.c.l.b16 %v225
      %v706 = vunpack.c.l.b16 %v226
      %v707 = vpack.c.b16 %v706, %v705
      %v710 = vsel %vm370, %v699, 0
      %v713 = vsel %vm370, %v700, 0
      %v716 = vsel %vm370, %v701, 0
      %v719 = vsel %vm370, %v702, 0
      %721 = vmatprep.subr.bf16.mxu0 0
      %722 = vmatpush1.bf16.msra.mxu0 %v707
      %723 = vmatprep.subr.bf16.mxu0 0
      %724 = vmatpush1.bf16.msra.mxu0 0
      %725 = vmatprep.subr.bf16.mxu0 0
      %726 = vmatpush1.bf16.msra.mxu0 0
      %727 = vmatprep.subr.bf16.mxu0 0
      %728 = vmatpush1.bf16.msra.mxu0 0
      %729 = vmatprep.subr.bf16.mxu0 0
      %730 = vmatpush1.bf16.msra.mxu0 0
      %731 = vmatprep.subr.bf16.mxu0 0
      %732 = vmatpush1.bf16.msra.mxu0 0
      %733 = vmatprep.subr.bf16.mxu0 0
      %734 = vmatpush1.bf16.msra.mxu0 0
      %735 = vmatprep.subr.bf16.mxu0 0
      %736 = vmatpush1.bf16.msra.mxu0 0
      %737 = vmatprep.subr.bf16.mxu0 0
      %738 = vmatpush1.bf16.msra.mxu0 0
      %739 = vmatprep.subr.bf16.mxu0 0
      %740 = vmatpush1.bf16.msra.mxu0 0
      %741 = vmatprep.subr.bf16.mxu0 0
      %742 = vmatpush1.bf16.msra.mxu0 0
      %743 = vmatprep.subr.bf16.mxu0 0
      %744 = vmatpush1.bf16.msra.mxu0 0
      %745 = vmatprep.subr.bf16.mxu0 0
      %746 = vmatpush1.bf16.msra.mxu0 0
      %747 = vmatprep.subr.bf16.mxu0 0
      %748 = vmatpush1.bf16.msra.mxu0 0
      %749 = vmatprep.subr.bf16.mxu0 0
      %750 = vmatpush1.bf16.msra.mxu0 0
      %751 = vmatprep.subr.bf16.mxu0 0
      %752 = vmatpush1.bf16.msra.mxu0 0
      %753 = vmatprep.mubr.bf16.mxu0 0
      %754 = vmatmul.mubr.bf16.gmra.mrb[0].mxu0 %v710
      %v755 = vpop.f32.mrb[0].mxu0
      %v756 = vadd.f32 0.0, %v755
      %v757 = vpop.f32.mrb[0].mxu0
      %v758 = vpop.f32.mrb[0].mxu0
      %v759 = vadd.f32 0.0, %v758
      %v760 = vpop.f32.mrb[0].mxu0
      %761 = vmatprep.mubr.bf16.mxu0 0
      %762 = vmatmul.mubr.bf16.gmra.mrb[0].mxu0 %v713
      %v763 = vpop.f32.mrb[0].mxu0
      %v764 = vadd.f32 0.0, %v763
      %v765 = vpop.f32.mrb[0].mxu0
      %v766 = vpop.f32.mrb[0].mxu0
      %v767 = vadd.f32 0.0, %v766
      %v768 = vpop.f32.mrb[0].mxu0
      %769 = vmatprep.mubr.bf16.mxu0 0
      %770 = vmatmul.mubr.bf16.gmra.mrb[0].mxu0 %v716
      %v771 = vpop.f32.mrb[0].mxu0
      %v772 = vadd.f32 0.0, %v771
      %v773 = vpop.f32.mrb[0].mxu0
      %v774 = vpop.f32.mrb[0].mxu0
      %v775 = vadd.f32 0.0, %v774
      %v776 = vpop.f32.mrb[0].mxu0
      %777 = vmatprep.mubr.bf16.mxu0 0
      %778 = vmatmul.mubr.bf16.gmra.mrb[0].mxu0 %v719
      %v779 = vpop.f32.mrb[0].mxu0
      %v780 = vadd.f32 0.0, %v779
      %v781 = vpop.f32.mrb[0].mxu0
      %v782 = vpop.f32.mrb[0].mxu0
      %v783 = vadd.f32 0.0, %v782
      %v784 = vpop.f32.mrb[0].mxu0
      %785 = vdwg.mxu0
      %v786 = vadd.f32 %v689, %v756
      %v787 = vadd.f32 %v690, %v759
      %v788 = vadd.f32 %v691, %v764
      %v789 = vadd.f32 %v692, %v767
      %v790 = vadd.f32 %v693, %v772
      %v791 = vadd.f32 %v694, %v775
      %v792 = vadd.f32 %v695, %v780
      %v793 = vadd.f32 %v696, %v783
      %v795 = vshrl.u32 %v215, 16
      %v797 = vrot.slane %v795, 4
      %v798 = vshll.u32 %v215, 16
      %v800 = vrot.slane %v798, 5
      %v801 = vor.u32 %v797, %v800
      %v802 = vrot.slane %v801, 4
      %v804 = vshll.u32 %v216, 16
      %v806 = vrot.slane %v804, 5
      %v807 = vsel %vm239, %v802, %v806
      %v808 = vunpack.c.l.b16 %v807
      %v809 = vpack.c.b16 %v354, %v353
      %v810 = vpack.c.b16 %v356, %v355
      %v811 = vpack.c.b16 %v358, %v357
      %v812 = vpack.c.b16 %v808, %v359
      %v815 = vunpack.c.l.b16 %v227
      %v816 = vunpack.c.l.b16 %v228
      %v817 = vpack.c.b16 %v816, %v815
      %v820 = vsel %vm370, %v809, 0
      %v823 = vsel %vm370, %v810, 0
      %v826 = vsel %vm370, %v811, 0
      %v829 = vsel %vm370, %v812, 0
      %831 = vmatprep.subr.bf16.mxu0 0
      %832 = vmatpush1.bf16.msra.mxu0 %v817
      %833 = vmatprep.subr.bf16.mxu0 0
      %834 = vmatpush1.bf16.msra.mxu0 0
      %835 = vmatprep.subr.bf16.mxu0 0
      %836 = vmatpush1.bf16.msra.mxu0 0
      %837 = vmatprep.subr.bf16.mxu0 0
      %838 = vmatpush1.bf16.msra.mxu0 0
      %839 = vmatprep.subr.bf16.mxu0 0
      %840 = vmatpush1.bf16.msra.mxu0 0
      %841 = vmatprep.subr.bf16.mxu0 0
      %842 = vmatpush1.bf16.msra.mxu0 0
      %843 = vmatprep.subr.bf16.mxu0 0
      %844 = vmatpush1.bf16.msra.mxu0 0
      %845 = vmatprep.subr.bf16.mxu0 0
      %846 = vmatpush1.bf16.msra.mxu0 0
      %847 = vmatprep.subr.bf16.mxu0 0
      %848 = vmatpush1.bf16.msra.mxu0 0
      %849 = vmatprep.subr.bf16.mxu0 0
      %850 = vmatpush1.bf16.msra.mxu0 0
      %851 = vmatprep.subr.bf16.mxu0 0
      %852 = vmatpush1.bf16.msra.mxu0 0
      %853 = vmatprep.subr.bf16.mxu0 0
      %854 = vmatpush1.bf16.msra.mxu0 0
      %855 = vmatprep.subr.bf16.mxu0 0
      %856 = vmatpush1.bf16.msra.mxu0 0
      %857 = vmatprep.subr.bf16.mxu0 0
      %858 = vmatpush1.bf16.msra.mxu0 0
      %859 = vmatprep.subr.bf16.mxu0 0
      %860 = vmatpush1.bf16.msra.mxu0 0
      %861 = vmatprep.subr.bf16.mxu0 0
      %862 = vmatpush1.bf16.msra.mxu0 0
      %863 = vmatprep.mubr.bf16.mxu0 0
      %864 = vmatmul.mubr.bf16.gmra.mrb[0].mxu0 %v820
      %v865 = vpop.f32.mrb[0].mxu0
      %v866 = vadd.f32 0.0, %v865
      %v867 = vpop.f32.mrb[0].mxu0
      %v868 = vpop.f32.mrb[0].mxu0
      %v869 = vadd.f32 0.0, %v868
      %v870 = vpop.f32.mrb[0].mxu0
      %871 = vmatprep.mubr.bf16.mxu0 0
      %872 = vmatmul.mubr.bf16.gmra.mrb[0].mxu0 %v823
      %v873 = vpop.f32.mrb[0].mxu0
      %v874 = vadd.f32 0.0, %v873
      %v875 = vpop.f32.mrb[0].mxu0
      %v876 = vpop.f32.mrb[0].mxu0
      %v877 = vadd.f32 0.0, %v876
      %v878 = vpop.f32.mrb[0].mxu0
      %879 = vmatprep.mubr.bf16.mxu0 0
      %880 = vmatmul.mubr.bf16.gmra.mrb[0].mxu0 %v826
      %v881 = vpop.f32.mrb[0].mxu0
      %v882 = vadd.f32 0.0, %v881
      %v883 = vpop.f32.mrb[0].mxu0
      %v884 = vpop.f32.mrb[0].mxu0
      %v885 = vadd.f32 0.0, %v884
      %v886 = vpop.f32.mrb[0].mxu0
      %887 = vmatprep.mubr.bf16.mxu0 0
      %888 = vmatmul.mubr.bf16.gmra.mrb[0].mxu0 %v829
      %v889 = vpop.f32.mrb[0].mxu0
      %v890 = vadd.f32 0.0, %v889
      %v891 = vpop.f32.mrb[0].mxu0
      %v892 = vpop.f32.mrb[0].mxu0
      %v893 = vadd.f32 0.0, %v892
      %v894 = vpop.f32.mrb[0].mxu0
      %895 = vdwg.mxu0
      %v896 = vadd.f32 %v786, %v866
      %v897 = vadd.f32 %v787, %v869
      %v898 = vadd.f32 %v788, %v874
      %v899 = vadd.f32 %v789, %v877
      %v900 = vadd.f32 %v790, %v882
      %v901 = vadd.f32 %v791, %v885
      %v902 = vadd.f32 %v792, %v890
      %v903 = vadd.f32 %v793, %v893
      %v905 = vrot.slane %v215, 5
      %v906 = vrot.slane %v905, 4
      %v907 = vrot.slane %v216, 5
      %v908 = vsel %vm561, %v906, %v907
      %v909 = vunpack.c.l.b16 %v908
      %v910 = vpack.c.b16 %v596, %v595
      %v911 = vpack.c.b16 %v598, %v597
      %v912 = vpack.c.b16 %v600, %v599
      %v913 = vpack.c.b16 %v909, %v601
      %v916 = vunpack.c.l.b16 %v229
      %v917 = vunpack.c.l.b16 %v230
      %v918 = vpack.c.b16 %v917, %v916
      %v921 = vsel %vm370, %v910, 0
      %v924 = vsel %vm370, %v911, 0
      %v927 = vsel %vm370, %v912, 0
      %v930 = vsel %vm370, %v913, 0
      %932 = vmatprep.subr.bf16.mxu0 0
      %933 = vmatpush1.bf16.msra.mxu0 %v918
      %934 = vmatprep.subr.bf16.mxu0 0
      %935 = vmatpush1.bf16.msra.mxu0 0
      %936 = vmatprep.subr.bf16.mxu0 0
      %937 = vmatpush1.bf16.msra.mxu0 0
      %938 = vmatprep.subr.bf16.mxu0 0
      %939 = vmatpush1.bf16.msra.mxu0 0
      %940 = vmatprep.subr.bf16.mxu0 0
      %941 = vmatpush1.bf16.msra.mxu0 0
      %942 = vmatprep.subr.bf16.mxu0 0
      %943 = vmatpush1.bf16.msra.mxu0 0
      %944 = vmatprep.subr.bf16.mxu0 0
      %945 = vmatpush1.bf16.msra.mxu0 0
      %946 = vmatprep.subr.bf16.mxu0 0
      %947 = vmatpush1.bf16.msra.mxu0 0
      %948 = vmatprep.subr.bf16.mxu0 0
      %949 = vmatpush1.bf16.msra.mxu0 0
      %950 = vmatprep.subr.bf16.mxu0 0
      %951 = vmatpush1.bf16.msra.mxu0 0
      %952 = vmatprep.subr.bf16.mxu0 0
      %953 = vmatpush1.bf16.msra.mxu0 0
      %954 = vmatprep.subr.bf16.mxu0 0
      %955 = vmatpush1.bf16.msra.mxu0 0
      %956 = vmatprep.subr.bf16.mxu0 0
      %957 = vmatpush1.bf16.msra.mxu0 0
      %958 = vmatprep.subr.bf16.mxu0 0
      %959 = vmatpush1.bf16.msra.mxu0 0
      %960 = vmatprep.subr.bf16.mxu0 0
      %961 = vmatpush1.bf16.msra.mxu0 0
      %962 = vmatprep.subr.bf16.mxu0 0
      %963 = vmatpush1.bf16.msra.mxu0 0
      %964 = vmatprep.mubr.bf16.mxu0 0
      %965 = vmatmul.mubr.bf16.gmra.mrb[0].mxu0 %v921
      %v966 = vpop.f32.mrb[0].mxu0
      %v967 = vadd.f32 0.0, %v966
      %v968 = vpop.f32.mrb[0].mxu0
      %v969 = vpop.f32.mrb[0].mxu0
      %v970 = vadd.f32 0.0, %v969
      %v971 = vpop.f32.mrb[0].mxu0
      %972 = vmatprep.mubr.bf16.mxu0 0
      %973 = vmatmul.mubr.bf16.gmra.mrb[0].mxu0 %v924
      %v974 = vpop.f32.mrb[0].mxu0
      %v975 = vadd.f32 0.0, %v974
      %v976 = vpop.f32.mrb[0].mxu0
      %v977 = vpop.f32.mrb[0].mxu0
      %v978 = vadd.f32 0.0, %v977
      %v979 = vpop.f32.mrb[0].mxu0
      %980 = vmatprep.mubr.bf16.mxu0 0
      %981 = vmatmul.mubr.bf16.gmra.mrb[0].mxu0 %v927
      %v982 = vpop.f32.mrb[0].mxu0
      %v983 = vadd.f32 0.0, %v982
      %v984 = vpop.f32.mrb[0].mxu0
      %v985 = vpop.f32.mrb[0].mxu0
      %v986 = vadd.f32 0.0, %v985
      %v987 = vpop.f32.mrb[0].mxu0
      %988 = vmatprep.mubr.bf16.mxu0 0
      %989 = vmatmul.mubr.bf16.gmra.mrb[0].mxu0 %v930
      %v990 = vpop.f32.mrb[0].mxu0
      %v991 = vadd.f32 0.0, %v990
      %v992 = vpop.f32.mrb[0].mxu0
      %v993 = vpop.f32.mrb[0].mxu0
      %v994 = vadd.f32 0.0, %v993
      %v995 = vpop.f32.mrb[0].mxu0
      %996 = vdwg.mxu0
      %v997 = vadd.f32 %v896, %v967
      %v998 = vadd.f32 %v897, %v970
      %v999 = vadd.f32 %v898, %v975
      %v1000 = vadd.f32 %v899, %v978
      %v1001 = vadd.f32 %v900, %v983
      %v1002 = vadd.f32 %v901, %v986
      %v1003 = vadd.f32 %v902, %v991
      %v1004 = vadd.f32 %v903, %v994
      %v1006 = vunpack.c.l.b16 %v217
      %v1007 = vpack.c.b16 %v1006, %v698
      %v1010 = vunpack.c.l.b16 %v231
      %v1011 = vunpack.c.l.b16 %v232
      %v1012 = vpack.c.b16 %v1011, %v1010
      %v1015 = vsel %vm370, %v1007, 0
      %1017 = vmatprep.subr.bf16.mxu0 0
      %1018 = vmatpush1.bf16.msra.mxu0 %v1012
      %1019 = vmatprep.subr.bf16.mxu0 0
      %1020 = vmatpush1.bf16.msra.mxu0 0
      %1021 = vmatprep.subr.bf16.mxu0 0
      %1022 = vmatpush1.bf16.msra.mxu0 0
      %1023 = vmatprep.subr.bf16.mxu0 0
      %1024 = vmatpush1.bf16.msra.mxu0 0
      %1025 = vmatprep.subr.bf16.mxu0 0
      %1026 = vmatpush1.bf16.msra.mxu0 0
      %1027 = vmatprep.subr.bf16.mxu0 0
      %1028 = vmatpush1.bf16.msra.mxu0 0
      %1029 = vmatprep.subr.bf16.mxu0 0
      %1030 = vmatpush1.bf16.msra.mxu0 0
      %1031 = vmatprep.subr.bf16.mxu0 0
      %1032 = vmatpush1.bf16.msra.mxu0 0
      %1033 = vmatprep.subr.bf16.mxu0 0
      %1034 = vmatpush1.bf16.msra.mxu0 0
      %1035 = vmatprep.subr.bf16.mxu0 0
      %1036 = vmatpush1.bf16.msra.mxu0 0
      %1037 = vmatprep.subr.bf16.mxu0 0
      %1038 = vmatpush1.bf16.msra.mxu0 0
      %1039 = vmatprep.subr.bf16.mxu0 0
      %1040 = vmatpush1.bf16.msra.mxu0 0
      %1041 = vmatprep.subr.bf16.mxu0 0
      %1042 = vmatpush1.bf16.msra.mxu0 0
      %1043 = vmatprep.subr.bf16.mxu0 0
      %1044 = vmatpush1.bf16.msra.mxu0 0
      %1045 = vmatprep.subr.bf16.mxu0 0
      %1046 = vmatpush1.bf16.msra.mxu0 0
      %1047 = vmatprep.subr.bf16.mxu0 0
      %1048 = vmatpush1.bf16.msra.mxu0 0
      %1049 = vmatprep.mubr.bf16.mxu0 0
      %1050 = vmatmul.mubr.bf16.gmra.mrb[0].mxu0 %v478
      %v1051 = vpop.f32.mrb[0].mxu0
      %v1052 = vadd.f32 0.0, %v1051
      %v1053 = vpop.f32.mrb[0].mxu0
      %v1054 = vpop.f32.mrb[0].mxu0
      %v1055 = vadd.f32 0.0, %v1054
      %v1056 = vpop.f32.mrb[0].mxu0
      %1057 = vmatprep.mubr.bf16.mxu0 0
      %1058 = vmatmul.mubr.bf16.gmra.mrb[0].mxu0 %v481
      %v1059 = vpop.f32.mrb[0].mxu0
      %v1060 = vadd.f32 0.0, %v1059
      %v1061 = vpop.f32.mrb[0].mxu0
      %v1062 = vpop.f32.mrb[0].mxu0
      %v1063 = vadd.f32 0.0, %v1062
      %v1064 = vpop.f32.mrb[0].mxu0
      %1065 = vmatprep.mubr.bf16.mxu0 0
      %1066 = vmatmul.mubr.bf16.gmra.mrb[0].mxu0 %v484
      %v1067 = vpop.f32.mrb[0].mxu0
      %v1068 = vadd.f32 0.0, %v1067
      %v1069 = vpop.f32.mrb[0].mxu0
      %v1070 = vpop.f32.mrb[0].mxu0
      %v1071 = vadd.f32 0.0, %v1070
      %v1072 = vpop.f32.mrb[0].mxu0
      %1073 = vmatprep.mubr.bf16.mxu0 0
      %1074 = vmatmul.mubr.bf16.gmra.mrb[0].mxu0 %v1015
      %v1075 = vpop.f32.mrb[0].mxu0
      %v1076 = vadd.f32 0.0, %v1075
      %v1077 = vpop.f32.mrb[0].mxu0
      %v1078 = vpop.f32.mrb[0].mxu0
      %v1079 = vadd.f32 0.0, %v1078
      %v1080 = vpop.f32.mrb[0].mxu0
      %1081 = vdwg.mxu0
      %v1082 = vadd.f32 %v997, %v1052
      %v1083 = vadd.f32 %v998, %v1055
      %v1084 = vadd.f32 %v999, %v1060
      %v1085 = vadd.f32 %v1000, %v1063
      %v1086 = vadd.f32 %v1001, %v1068
      %v1087 = vadd.f32 %v1002, %v1071
      %v1088 = vadd.f32 %v1003, %v1076
      %v1089 = vadd.f32 %v1004, %v1079
      %v1091 = vshrl.u32 %v217, 16
      %v1093 = vrot.slane %v1091, 4
      %v1094 = vshll.u32 %v217, 16
      %v1096 = vrot.slane %v1094, 5
      %v1097 = vor.u32 %v1093, %v1096
      %v1098 = vrot.slane %v1097, 4
      %v1100 = vshll.u32 %v218, 16
      %v1102 = vrot.slane %v1100, 5
      %v1103 = vsel %vm239, %v1098, %v1102
      %v1104 = vunpack.c.l.b16 %v1103
      %v1105 = vpack.c.b16 %v1104, %v808
      %v1108 = vunpack.c.l.b16 %v233
      %v1109 = vunpack.c.l.b16 %v234
      %v1110 = vpack.c.b16 %v1109, %v1108
      %v1113 = vsel %vm370, %v1105, 0
      %1115 = vmatprep.subr.bf16.mxu0 0
      %1116 = vmatpush1.bf16.msra.mxu0 %v1110
      %1117 = vmatprep.subr.bf16.mxu0 0
      %1118 = vmatpush1.bf16.msra.mxu0 0
      %1119 = vmatprep.subr.bf16.mxu0 0
      %1120 = vmatpush1.bf16.msra.mxu0 0
      %1121 = vmatprep.subr.bf16.mxu0 0
      %1122 = vmatpush1.bf16.msra.mxu0 0
      %1123 = vmatprep.subr.bf16.mxu0 0
      %1124 = vmatpush1.bf16.msra.mxu0 0
      %1125 = vmatprep.subr.bf16.mxu0 0
      %1126 = vmatpush1.bf16.msra.mxu0 0
      %1127 = vmatprep.subr.bf16.mxu0 0
      %1128 = vmatpush1.bf16.msra.mxu0 0
      %1129 = vmatprep.subr.bf16.mxu0 0
      %1130 = vmatpush1.bf16.msra.mxu0 0
      %1131 = vmatprep.subr.bf16.mxu0 0
      %1132 = vmatpush1.bf16.msra.mxu0 0
      %1133 = vmatprep.subr.bf16.mxu0 0
      %1134 = vmatpush1.bf16.msra.mxu0 0
      %1135 = vmatprep.subr.bf16.mxu0 0
      %1136 = vmatpush1.bf16.msra.mxu0 0
      %1137 = vmatprep.subr.bf16.mxu0 0
      %1138 = vmatpush1.bf16.msra.mxu0 0
      %1139 = vmatprep.subr.bf16.mxu0 0
      %1140 = vmatpush1.bf16.msra.mxu0 0
      %1141 = vmatprep.subr.bf16.mxu0 0
      %1142 = vmatpush1.bf16.msra.mxu0 0
      %1143 = vmatprep.subr.bf16.mxu0 0
      %1144 = vmatpush1.bf16.msra.mxu0 0
      %1145 = vmatprep.subr.bf16.mxu0 0
      %1146 = vmatpush1.bf16.msra.mxu0 0
      %1147 = vmatprep.mubr.bf16.mxu0 0
      %1148 = vmatmul.mubr.bf16.gmra.mrb[0].mxu0 %v375
      %v1149 = vpop.f32.mrb[0].mxu0
      %v1150 = vadd.f32 0.0, %v1149
      %v1151 = vpop.f32.mrb[0].mxu0
      %v1152 = vpop.f32.mrb[0].mxu0
      %v1153 = vadd.f32 0.0, %v1152
      %v1154 = vpop.f32.mrb[0].mxu0
      %1155 = vmatprep.mubr.bf16.mxu0 0
      %1156 = vmatmul.mubr.bf16.gmra.mrb[0].mxu0 %v378
      %v1157 = vpop.f32.mrb[0].mxu0
      %v1158 = vadd.f32 0.0, %v1157
      %v1159 = vpop.f32.mrb[0].mxu0
      %v1160 = vpop.f32.mrb[0].mxu0
      %v1161 = vadd.f32 0.0, %v1160
      %v1162 = vpop.f32.mrb[0].mxu0
      %1163 = vmatprep.mubr.bf16.mxu0 0
      %1164 = vmatmul.mubr.bf16.gmra.mrb[0].mxu0 %v381
      %v1165 = vpop.f32.mrb[0].mxu0
      %v1166 = vadd.f32 0.0, %v1165
      %v1167 = vpop.f32.mrb[0].mxu0
      %v1168 = vpop.f32.mrb[0].mxu0
      %v1169 = vadd.f32 0.0, %v1168
      %v1170 = vpop.f32.mrb[0].mxu0
      %1171 = vmatprep.mubr.bf16.mxu0 0
      %1172 = vmatmul.mubr.bf16.gmra.mrb[0].mxu0 %v1113
      %v1173 = vpop.f32.mrb[0].mxu0
      %v1174 = vadd.f32 0.0, %v1173
      %v1175 = vpop.f32.mrb[0].mxu0
      %v1176 = vpop.f32.mrb[0].mxu0
      %v1177 = vadd.f32 0.0, %v1176
      %v1178 = vpop.f32.mrb[0].mxu0
      %1179 = vdwg.mxu0
      %v1180 = vadd.f32 %v1082, %v1150
      %v1181 = vadd.f32 %v1083, %v1153
      %v1182 = vadd.f32 %v1084, %v1158
      %v1183 = vadd.f32 %v1085, %v1161
      %v1184 = vadd.f32 %v1086, %v1166
      %v1185 = vadd.f32 %v1087, %v1169
      %v1186 = vadd.f32 %v1088, %v1174
      %v1187 = vadd.f32 %v1089, %v1177
      %v1189 = vrot.slane %v217, 5
      %v1190 = vrot.slane %v1189, 4
      %v1191 = vrot.slane %v218, 5
      %v1192 = vsel %vm561, %v1190, %v1191
      %v1193 = vunpack.c.l.b16 %v1192
      %v1194 = vpack.c.b16 %v1193, %v909
      %v1197 = vunpack.c.l.b16 %v235
      %v1198 = vunpack.c.l.b16 %v236
      %v1199 = vpack.c.b16 %v1198, %v1197
      %v1202 = vsel %vm370, %v1194, 0
      %1204 = vmatprep.subr.bf16.mxu0 0
      %1205 = vmatpush1.bf16.msra.mxu0 %v1199
      %1206 = vmatprep.subr.bf16.mxu0 0
      %1207 = vmatpush1.bf16.msra.mxu0 0
      %1208 = vmatprep.subr.bf16.mxu0 0
      %1209 = vmatpush1.bf16.msra.mxu0 0
      %1210 = vmatprep.subr.bf16.mxu0 0
      %1211 = vmatpush1.bf16.msra.mxu0 0
      %1212 = vmatprep.subr.bf16.mxu0 0
      %1213 = vmatpush1.bf16.msra.mxu0 0
      %1214 = vmatprep.subr.bf16.mxu0 0
      %1215 = vmatpush1.bf16.msra.mxu0 0
      %1216 = vmatprep.subr.bf16.mxu0 0
      %1217 = vmatpush1.bf16.msra.mxu0 0
      %1218 = vmatprep.subr.bf16.mxu0 0
      %1219 = vmatpush1.bf16.msra.mxu0 0
      %1220 = vmatprep.subr.bf16.mxu0 0
      %1221 = vmatpush1.bf16.msra.mxu0 0
      %1222 = vmatprep.subr.bf16.mxu0 0
      %1223 = vmatpush1.bf16.msra.mxu0 0
      %1224 = vmatprep.subr.bf16.mxu0 0
      %1225 = vmatpush1.bf16.msra.mxu0 0
      %1226 = vmatprep.subr.bf16.mxu0 0
      %1227 = vmatpush1.bf16.msra.mxu0 0
      %1228 = vmatprep.subr.bf16.mxu0 0
      %1229 = vmatpush1.bf16.msra.mxu0 0
      %1230 = vmatprep.subr.bf16.mxu0 0
      %1231 = vmatpush1.bf16.msra.mxu0 0
      %1232 = vmatprep.subr.bf16.mxu0 0
      %1233 = vmatpush1.bf16.msra.mxu0 0
      %1234 = vmatprep.subr.bf16.mxu0 0
      %1235 = vmatpush1.bf16.msra.mxu0 0
      %1236 = vmatprep.mubr.bf16.mxu0 0
      %1237 = vmatmul.mubr.bf16.gmra.mrb[0].mxu0 %v616
      %v1238 = vpop.f32.mrb[0].mxu0
      %v1239 = vadd.f32 0.0, %v1238
      %v1240 = vpop.f32.mrb[0].mxu0
      %v1241 = vpop.f32.mrb[0].mxu0
      %v1242 = vadd.f32 0.0, %v1241
      %v1243 = vpop.f32.mrb[0].mxu0
      %1244 = vmatprep.mubr.bf16.mxu0 0
      %1245 = vmatmul.mubr.bf16.gmra.mrb[0].mxu0 %v619
      %v1246 = vpop.f32.mrb[0].mxu0
      %v1247 = vadd.f32 0.0, %v1246
      %v1248 = vpop.f32.mrb[0].mxu0
      %v1249 = vpop.f32.mrb[0].mxu0
      %v1250 = vadd.f32 0.0, %v1249
      %v1251 = vpop.f32.mrb[0].mxu0
      %1252 = vmatprep.mubr.bf16.mxu0 0
      %1253 = vmatmul.mubr.bf16.gmra.mrb[0].mxu0 %v622
      %v1254 = vpop.f32.mrb[0].mxu0
      %v1255 = vadd.f32 0.0, %v1254
      %v1256 = vpop.f32.mrb[0].mxu0
      %v1257 = vpop.f32.mrb[0].mxu0
      %v1258 = vadd.f32 0.0, %v1257
      %v1259 = vpop.f32.mrb[0].mxu0
      %1260 = vmatprep.mubr.bf16.mxu0 0
      %1261 = vmatmul.mubr.bf16.gmra.mrb[0].mxu0 %v1202
      %v1262 = vpop.f32.mrb[0].mxu0
      %v1263 = vadd.f32 0.0, %v1262
      %v1264 = vpop.f32.mrb[0].mxu0
      %v1265 = vpop.f32.mrb[0].mxu0
      %v1266 = vadd.f32 0.0, %v1265
      %v1267 = vpop.f32.mrb[0].mxu0
      %1268 = vdwg.mxu0
      %v1269 = vadd.f32 %v1180, %v1239
      %v1270 = vadd.f32 %v1181, %v1242
      %v1271 = vadd.f32 %v1182, %v1247
      %v1272 = vadd.f32 %v1183, %v1250
      %v1273 = vadd.f32 %v1184, %v1255
      %v1274 = vadd.f32 %v1185, %v1258
      %v1275 = vadd.f32 %v1186, %v1263
      %v1276 = vadd.f32 %v1187, %v1266
      %v1277 = vld [vmem:[%s2] sm:$0x1]
      %v1279 = vlaneseq
      %v1280 = vshrl.u32 %v1279, 7
      %v1281 = vsub.s32 0, %v1280
      %v1282 = vrot.slane %v1277, %v1281
      %v1284 = vmul.f32 %v1269, %v1282
      %v1285 = vmul.f32 %v1270, %v1282
      %v1286 = vmul.f32 %v1271, %v1282
      %v1287 = vmul.f32 %v1272, %v1282
      %v1288 = vmul.f32 %v1273, %v1282
      %v1289 = vmul.f32 %v1274, %v1282
      %v1290 = vmul.f32 %v1275, %v1282
      %v1291 = vmul.f32 %v1276, %v1282
      %v1292 = vld [vmem:[%s3] sm:$0x1]
      %v1294 = vlaneseq
      %v1295 = vshrl.u32 %v1294, 7
      %v1296 = vsub.s32 0, %v1295
      %v1297 = vrot.slane %v1292, %v1296
      %v1299 = vadd.f32 %v1284, %v1297
      %v1300 = vadd.f32 %v1285, %v1297
      %v1301 = vadd.f32 %v1286, %v1297
      %v1302 = vadd.f32 %v1287, %v1297
      %v1303 = vadd.f32 %v1288, %v1297
      %v1304 = vadd.f32 %v1289, %v1297
      %v1305 = vadd.f32 %v1290, %v1297
      %v1306 = vadd.f32 %v1291, %v1297
      %v1307 = vmax.f32 %v1299, 0.0
      %v1308 = vmax.f32 %v1300, 0.0
      %v1309 = vmax.f32 %v1301, 0.0
      %v1310 = vmax.f32 %v1302, 0.0
      %v1311 = vmax.f32 %v1303, 0.0
      %v1312 = vmax.f32 %v1304, 0.0
      %v1313 = vmax.f32 %v1305, 0.0
      %v1314 = vmax.f32 %v1306, 0.0
      %v1315 = vpack.c.bf16 %v1307, %v1307
      %v1316 = vpack.c.bf16 %v1308, %v1308
      %v1317 = vpack.c.bf16 %v1309, %v1309
      %v1318 = vpack.c.bf16 %v1310, %v1310
      %v1319 = vpack.c.bf16 %v1311, %v1311
      %v1320 = vpack.c.bf16 %v1312, %v1312
      %v1321 = vpack.c.bf16 %v1313, %v1313
      %v1322 = vpack.c.bf16 %v1314, %v1314
      %vm1323 = vcmask 125952
      %1324 = vst.msk [vmem:[%s197] sm:$0xf] %vm1323, %v1315
      %1325 = vst.msk [vmem:[%s197 + $0x4] sm:$0xf] %vm1323, %v1316
      %1326 = vst.msk [vmem:[%s197 + $0x8] sm:$0xf] %vm1323, %v1317
      %1327 = vst.msk [vmem:[%s197 + $0xc] sm:$0xf] %vm1323, %v1318
      %1328 = vst.msk [vmem:[%s197 + $0x10] sm:$0xf] %vm1323, %v1319
      %1329 = vst.msk [vmem:[%s197 + $0x14] sm:$0xf] %vm1323, %v1320
      %1330 = vst.msk [vmem:[%s197 + $0x18] sm:$0xf] %vm1323, %v1321
      %1331 = vst.msk [vmem:[%s197 + $0x1c] sm:$0xf] %vm1323, %v1322
      %p1332 = scmp.lt.s32.totalorder %s15, 1
      %s1333 = scalar_select %p1332, %s15, 1
      %s1334 = smul.addr %s1333, 8
      %s1335 = smul.addr %s1334, 4
      %s1336 = scalar_lea.vmem %s4, %s1335
      // Predicated region
      $region37: #{setr_pup_forward.30} parent=35 // pred_check
        %p1337 = pneg %p122
      $region38: #{setr_pup_forward.30} parent=35 // pred_check_branch
        %1339 = sbr.rel (%p1337) target = $region40
      $region39: #{setr_pup_forward.30} parent=35 // pred_region
        _
      $region40: #{setr_pup_forward.30} parent=35 // pred_fallthru
        _
    $region36: #{setr_pup_forward.30} parent=5 // pred_fallthru
      _
    %p1340 = scmp.le.s32.totalorder 2, %s10
    // Predicated region
    $region41: #{setr_pup_forward.30} parent=5 // pred_check
      %p1341 = pneg %p1340
    $region42: #{setr_pup_forward.30} parent=5 // pred_check_branch
      %1343 = sbr.rel (%p1341) target = $region44
    $region43: #{setr_pup_forward.30} parent=5 // pred_region
      %s1344 = ssub.s32 %s10, 2
      // Predicated region
      $region45: #{setr_pup_forward.30} parent=43 // pred_check
        %p1345 = pneg %p128
      $region46: #{setr_pup_forward.30} parent=43 // pred_check_branch
        %1347 = sbr.rel (%p1345) target = $region48
      $region47: #{setr_pup_forward.30} parent=43 // pred_region
        %p1348 = scmp.lt.s32.totalorder %s16, 1
        %s1349 = scalar_select %p1348, %s16, 1
        %s1350 = smul.addr %s1349, 8
        %s1351 = smul.addr %s1350, 4
        %s1352 = scalar_lea.vmem %s4, %s1351
      $region48: #{setr_pup_forward.30} parent=43 // pred_fallthru
        _
    $region44: #{setr_pup_forward.30} parent=5 // pred_fallthru
      _
  $region6: #{setr_pup_forward.30} parent=0 // loop_footer
    %s14 = sadd.s32 1, %s10
  $region7: #{setr_pup_forward.30} parent=0 // loop_footer_branch
    %9 = sbr.rel target = $region3
  $region8: #{setr_pup_forward.30} parent=0 // loop_exit
    _

// kernel: setr_pup_forward.31
$region0: #{setr_pup_forward.31}
  #allocation0 [shape = 'u32[]', space=smem, size = 0x4, offset = 0x4, fixed_abs, tag = 'smem constant byte address 0x4 - core index']
  #allocation1 [shape = 'u32[144,128]{1,0:T(1,128)}', space=vmem, size = 0x12000, scoped, tag = 'internal scratch']
  #allocation2 [shape = 'f32[256,3]{1,0:T(8,128)}', space=vmem, size = 0x20000, scoped, tag = 'scratch operand']
  %s0 = inlined_call_operand.vmem [shape: bf16[512,16], index: 0, kind: input, shape index: {}]
  %s1 = inlined_call_operand.vmem [shape: bf16[16,3], index: 1, kind: input, shape index: {}]
  %s2 = inlined_call_operand.vmem [shape: f32[1,3], index: 2, kind: input, shape index: {}]
  %s3 = inlined_call_operand.vmem [shape: f32[512,3], index: 3, kind: output, shape index: {}]
  %s4 = sld [smem:[#allocation0]]
  $region53: #{setr_pup_forward.31} parent=0
    _
  %s6 = ssub.s32 1, %s4
  %s7 = scalar_select 0, %s6, %s4
  loop: start=0, step=1, limit=4
  $region2: #{setr_pup_forward.31} parent=0 // loop_pre_header
    _
  $region3: #{setr_pup_forward.31} parent=0 // loop_header
    %s9 = sphi 0, %s13
    %p10 = scmp.ge.s32.totalorder %s9, 4
    %s16 = sphi 0, %s35
    %s17 = sphi 0, %s31
    %s18 = sphi 0, %s27
    %s19 = sphi 0, %s16
    %s20 = sphi 0, %s17
    %s21 = sphi 0, %s18
    %s22 = sphi 0, %s19
    %s23 = sphi 0, %s20
    %s24 = sphi 0, %s21
    %s40 = sphi 0, %s42
    %s43 = sphi 0, %s40
    %s44 = sphi 0, %s43
    %s60 = sphi 0, %s44
    %s68 = sphi 0, %s70
    %s71 = sphi 0, %s68
    %s72 = sphi 0, %s71
    %s88 = sphi 0, %s72
    %s94 = sphi 0, %s96
    %s97 = sphi 0, %s94
    %s98 = sphi 0, %s97
    %s114 = sphi 0, %s98
    %s122 = sphi 0, %s124
    %s125 = sphi 0, %s122
    %s126 = sphi 0, %s125
    %s142 = sphi 0, %s126
  $region4: #{setr_pup_forward.31} parent=0 // loop_header_branch
    %12 = sbr.rel (%p10) target = $region8
  $region5: #{setr_pup_forward.31} parent=0 // loop_body
    %s14 = ssub.s32 %s9, 1
    %s15 = ssub.s32 %s9, 2
    %s25 = sadd.s32 1, %s18
    %p26 = scmp.ge.s32.totalorder %s25, 1
    %s27 = scalar_select %p26, 0, %s25
    %s28 = sadd.s32 1, %s17
    %s29 = scalar_select %p26, %s28, %s17
    %p30 = scmp.ge.s32.totalorder %s29, 1
    %s31 = scalar_select %p30, 0, %s29
    %s32 = sadd.s32 1, %s16
    %s33 = scalar_select %p30, %s32, %s16
    %p34 = scmp.ge.s32.totalorder %s33, 2
    %s35 = scalar_select %p34, 0, %s33
    %s36 = ssub.s32 %s16, %s35
    %s37 = ssub.s32 %s18, %s27
    %s38 = sor.u32 %s36, %s37
    %p39 = scmp.eq.s32.totalorder %s38, 0
    %s41 = sadd.s32 %s40, 1
    %s42 = scalar_select %p39, %s40, %s41
    %p45 = pneg %p39
    %p46 = scmp.eq.s32.totalorder %s9, 1
    %p47 = por %p45, %p46
    %p48 = scmp.ne.s32.totalorder %s40, %s43
    %p49 = scmp.eq.s32.totalorder %s9, 0
    %p50 = por %p48, %p49
    %p51 = scmp.ne.s32.totalorder %s40, %s43
    %p52 = scmp.eq.s32.totalorder %s14, 1
    %p53 = por %p51, %p52
    %p54 = scmp.ne.s32.totalorder %s43, %s44
    %p55 = scmp.eq.s32.totalorder %s14, 0
    %p56 = por %p54, %p55
    %p57 = scmp.ne.s32.totalorder %s43, %s44
    %p58 = scmp.eq.s32.totalorder %s15, 1
    %p59 = por %p57, %p58
    %p61 = scmp.ne.s32.totalorder %s44, %s60
    %p62 = scmp.eq.s32.totalorder %s15, 0
    %p63 = por %p61, %p62
    %s64 = ssub.s32 %s18, %s27
    %s65 = ssub.s32 %s17, %s31
    %s66 = sor.u32 %s64, %s65
    %p67 = scmp.eq.s32.totalorder %s66, 0
    %s69 = sadd.s32 %s68, 1
    %s70 = scalar_select %p67, %s68, %s69
    %p73 = pneg %p67
    %p74 = scmp.eq.s32.totalorder %s9, 1
    %p75 = por %p73, %p74
    %p76 = scmp.ne.s32.totalorder %s68, %s71
    %p77 = scmp.eq.s32.totalorder %s9, 0
    %p78 = por %p76, %p77
    %p79 = scmp.ne.s32.totalorder %s68, %s71
    %p80 = scmp.eq.s32.totalorder %s14, 1
    %p81 = por %p79, %p80
    %p82 = scmp.ne.s32.totalorder %s71, %s72
    %p83 = scmp.eq.s32.totalorder %s14, 0
    %p84 = por %p82, %p83
    %p85 = scmp.ne.s32.totalorder %s71, %s72
    %p86 = scmp.eq.s32.totalorder %s15, 1
    %p87 = por %p85, %p86
    %p89 = scmp.ne.s32.totalorder %s72, %s88
    %p90 = scmp.eq.s32.totalorder %s15, 0
    %p91 = por %p89, %p90
    %s92 = ssub.s32 %s17, %s31
    %p93 = scmp.eq.s32.totalorder %s92, 0
    %s95 = sadd.s32 %s94, 1
    %s96 = scalar_select %p93, %s94, %s95
    %p99 = pneg %p93
    %p100 = scmp.eq.s32.totalorder %s9, 1
    %p101 = por %p99, %p100
    %p102 = scmp.ne.s32.totalorder %s94, %s97
    %p103 = scmp.eq.s32.totalorder %s9, 0
    %p104 = por %p102, %p103
    %p105 = scmp.ne.s32.totalorder %s94, %s97
    %p106 = scmp.eq.s32.totalorder %s14, 1
    %p107 = por %p105, %p106
    %p108 = scmp.ne.s32.totalorder %s97, %s98
    %p109 = scmp.eq.s32.totalorder %s14, 0
    %p110 = por %p108, %p109
    %p111 = scmp.ne.s32.totalorder %s97, %s98
    %p112 = scmp.eq.s32.totalorder %s15, 1
    %p113 = por %p111, %p112
    %p115 = scmp.ne.s32.totalorder %s98, %s114
    %p116 = scmp.eq.s32.totalorder %s15, 0
    %p117 = por %p115, %p116
    %s118 = ssub.s32 %s16, %s35
    %s119 = ssub.s32 %s17, %s31
    %s120 = sor.u32 %s118, %s119
    %p121 = scmp.eq.s32.totalorder %s120, 0
    %s123 = sadd.s32 %s122, 1
    %s124 = scalar_select %p121, %s122, %s123
    %p127 = pneg %p121
    %p128 = scmp.eq.s32.totalorder %s9, 1
    %p129 = por %p127, %p128
    %p130 = scmp.ne.s32.totalorder %s122, %s125
    %p131 = scmp.eq.s32.totalorder %s9, 0
    %p132 = por %p130, %p131
    %p133 = scmp.ne.s32.totalorder %s122, %s125
    %p134 = scmp.eq.s32.totalorder %s14, 1
    %p135 = por %p133, %p134
    %p136 = scmp.ne.s32.totalorder %s125, %s126
    %p137 = scmp.eq.s32.totalorder %s14, 0
    %p138 = por %p136, %p137
    %p139 = scmp.ne.s32.totalorder %s125, %s126
    %p140 = scmp.eq.s32.totalorder %s15, 1
    %p141 = por %p139, %p140
    %p143 = scmp.ne.s32.totalorder %s126, %s142
    %p144 = scmp.eq.s32.totalorder %s15, 0
    %p145 = por %p143, %p144
    %p146 = scmp.le.s32.totalorder 1, %s9
    %p147 = scmp.lt.s32.totalorder %s9, 3
    %p148 = pnand %p146, %p147
    %p149 = pneg %p148
    // Predicated region
    $region9: #{setr_pup_forward.31} parent=5 // pred_check
      _
    $region10: #{setr_pup_forward.31} parent=5 // pred_check_branch
      %151 = sbr.rel (%p148) target = $region12
    $region11: #{setr_pup_forward.31} parent=5 // pred_region
      %s152 = ssub.s32 %s9, 1
      // Predicated region
      $region13: #{setr_pup_forward.31} parent=11 // pred_check
        %p153 = pneg %p84
      $region14: #{setr_pup_forward.31} parent=11 // pred_check_branch
        %155 = sbr.rel (%p153) target = $region16
      $region15: #{setr_pup_forward.31} parent=11 // pred_region
        %s156 = smul.u32 2, %s21
        %p157 = scmp.lt.s32.totalorder %s156, 1
        %s158 = scalar_select %p157, %s156, 1
        %p159 = scmp.lt.s32.totalorder %s20, 0
        %s160 = scalar_select %p159, %s20, 0
        %s161 = sadd.s32 %s160, %s158
        %s162 = smul.addr %s161, 4
        %s163 = scalar_lea.vmem %s1, %s162
        %s164 = smul.u32 2, %s21
      $region16: #{setr_pup_forward.31} parent=11 // pred_fallthru
        _
      // Predicated region
      $region17: #{setr_pup_forward.31} parent=11 // pred_check
        %p165 = pneg %p110
      $region18: #{setr_pup_forward.31} parent=11 // pred_check_branch
        %167 = sbr.rel (%p165) target = $region20
      $region19: #{setr_pup_forward.31} parent=11 // pred_region
        %p168 = scmp.lt.s32.totalorder %s20, 0
        %s169 = scalar_select %p168, %s20, 0
        %s170 = scalar_lea.vmem %s2, %s169
      $region20: #{setr_pup_forward.31} parent=11 // pred_fallthru
        _
    $region12: #{setr_pup_forward.31} parent=5 // pred_fallthru
      _
    %p171 = scmp.lt.s32.totalorder %s9, 2
    // Predicated region
    $region21: #{setr_pup_forward.31} parent=5 // pred_check
      %p172 = pneg %p171
    $region22: #{setr_pup_forward.31} parent=5 // pred_check_branch
      %174 = sbr.rel (%p172) target = $region24
    $region23: #{setr_pup_forward.31} parent=5 // pred_region
      // Predicated region
      $region25: #{setr_pup_forward.31} parent=23 // pred_check
        %p175 = pneg %p50
      $region26: #{setr_pup_forward.31} parent=23 // pred_check_branch
        %177 = sbr.rel (%p175) target = $region28
      $region27: #{setr_pup_forward.31} parent=23 // pred_region
        %s178 = smul.u32 32, %s16
        %p179 = scmp.lt.s32.totalorder %s178, 63
        %s180 = scalar_select %p179, %s178, 63
        %p181 = scmp.lt.s32.totalorder %s18, 0
        %s182 = scalar_select %p181, %s18, 0
        %s183 = sadd.s32 %s182, %s180
        %s184 = smul.addr %s183, 4
        %s185 = scalar_lea.vmem %s0, %s184
        %s186 = smul.u32 32, %s16
      $region28: #{setr_pup_forward.31} parent=23 // pred_fallthru
        _
    $region24: #{setr_pup_forward.31} parent=5 // pred_fallthru
      _
    %p187 = scmp.le.s32.totalorder 1, %s9
    %p188 = scmp.lt.s32.totalorder %s9, 3
    %p189 = pnand %p187, %p188
    %p190 = pneg %p189
    // Predicated region
    $region29: #{setr_pup_forward.31} parent=5 // pred_check
      _
    $region30: #{setr_pup_forward.31} parent=5 // pred_check_branch
      %192 = sbr.rel (%p189) target = $region32
    $region31: #{setr_pup_forward.31} parent=5 // pred_region
      %s193 = ssub.s32 %s9, 1
      %s194 = smul.u32 32, %s19
      %p195 = scmp.lt.s32.totalorder %s194, 63
      %s196 = scalar_select %p195, %s194, 63
      %p197 = scmp.lt.s32.totalorder %s21, 0
      %s198 = scalar_select %p197, %s21, 0
      %s199 = sadd.s32 %s198, %s196
      %s200 = smul.addr %s199, 4
      %s201 = scalar_lea.vmem %s0, %s200
      %p202 = pneg %p56
      %p203 = pneg %p53
      %s204 = smul.u32 2, %s21
      %p205 = scmp.lt.s32.totalorder %s204, 1
      %s206 = scalar_select %p205, %s204, 1
      %p207 = scmp.lt.s32.totalorder %s20, 0
      %s208 = scalar_select %p207, %s20, 0
      %s209 = sadd.s32 %s208, %s206
      %s210 = smul.addr %s209, 4
      %s211 = scalar_lea.vmem %s1, %s210
      %p212 = pneg %p84
      %p213 = pneg %p81
      %p214 = scmp.lt.s32.totalorder %s20, 0
      %s215 = scalar_select %p214, %s20, 0
      %s216 = scalar_lea.vmem %s2, %s215
      %p217 = pneg %p110
      %p218 = pneg %p107
      %p219 = pneg %p138
      %p220 = pneg %p135
      %s221 = smul.u32 32, %s19
      %p222 = scmp.lt.s32.totalorder %s221, 63
      %s223 = scalar_select %p222, %s221, 63
      %p224 = scmp.lt.s32.totalorder %s20, 0
      %s225 = scalar_select %p224, %s20, 0
      %s226 = sadd.s32 %s225, %s223
      %s227 = smul.addr %s226, 8
      %s228 = scalar_lea.vmem %s3, %s227
      %s229 = smul.u32 32, %s19
      %p230 = scmp.lt.s32.totalorder %s229, 63
      %s231 = scalar_select %p230, %s229, 63
      %p232 = scmp.lt.s32.totalorder %s21, 0
      %s233 = scalar_select %p232, %s21, 0
      %s234 = sadd.s32 %s233, %s231
      %s235 = smul.addr %s234, 4
      %s236 = scalar_lea.vmem %s0, %s235
      %s237 = smul.u32 32, %s19
      %s238 = smul.u32 2, %s21
      %p239 = scmp.lt.s32.totalorder %s238, 1
      %s240 = scalar_select %p239, %s238, 1
      %p241 = scmp.lt.s32.totalorder %s20, 0
      %s242 = scalar_select %p241, %s20, 0
      %s243 = sadd.s32 %s242, %s240
      %s244 = smul.addr %s243, 4
      %s245 = scalar_lea.vmem %s1, %s244
      %s246 = smul.u32 2, %s21
      %p247 = scmp.lt.s32.totalorder %s20, 0
      %s248 = scalar_select %p247, %s20, 0
      %s249 = scalar_lea.vmem %s2, %s248
      %s250 = smul.u32 32, %s19
      %p251 = scmp.lt.s32.totalorder %s250, 63
      %s252 = scalar_select %p251, %s250, 63
      %p253 = scmp.lt.s32.totalorder %s20, 0
      %s254 = scalar_select %p253, %s20, 0
      %s255 = sadd.s32 %s254, %s252
      %s256 = smul.addr %s255, 8
      %s257 = scalar_lea.vmem %s3, %s256
      %s258 = smul.u32 32, %s19
      %p260 = scmp.eq.s32.totalorder %s21, 0
      // Predicated region
      $region33: #{setr_pup_forward.31} parent=31 // pred_check
        %p261 = pneg %p260
      $region34: #{setr_pup_forward.31} parent=31 // pred_check_branch
        %263 = sbr.rel (%p261) target = $region36
      $region35: #{setr_pup_forward.31} parent=31 // pred_region
        %vm264 = vcmask 23552
        %265 = vst.msk [vmem:[#allocation2] sm:$0xff] %vm264, 0.0
        %266 = vst.msk [vmem:[#allocation2 + $0x8] sm:$0xff] %vm264, 0.0
        %267 = vst.msk [vmem:[#allocation2 + $0x10] sm:$0xff] %vm264, 0.0
        %268 = vst.msk [vmem:[#allocation2 + $0x18] sm:$0xff] %vm264, 0.0
        %269 = vst.msk [vmem:[#allocation2 + $0x20] sm:$0xff] %vm264, 0.0
        %270 = vst.msk [vmem:[#allocation2 + $0x28] sm:$0xff] %vm264, 0.0
        %271 = vst.msk [vmem:[#allocation2 + $0x30] sm:$0xff] %vm264, 0.0
        %272 = vst.msk [vmem:[#allocation2 + $0x38] sm:$0xff] %vm264, 0.0
        %273 = vst.msk [vmem:[#allocation2 + $0x40] sm:$0xff] %vm264, 0.0
        %274 = vst.msk [vmem:[#allocation2 + $0x48] sm:$0xff] %vm264, 0.0
        %275 = vst.msk [vmem:[#allocation2 + $0x50] sm:$0xff] %vm264, 0.0
        %276 = vst.msk [vmem:[#allocation2 + $0x58] sm:$0xff] %vm264, 0.0
        %277 = vst.msk [vmem:[#allocation2 + $0x60] sm:$0xff] %vm264, 0.0
        %278 = vst.msk [vmem:[#allocation2 + $0x68] sm:$0xff] %vm264, 0.0
        %279 = vst.msk [vmem:[#allocation2 + $0x70] sm:$0xff] %vm264, 0.0
        %280 = vst.msk [vmem:[#allocation2 + $0x78] sm:$0xff] %vm264, 0.0
        %281 = vst.msk [vmem:[#allocation2 + $0x80] sm:$0xff] %vm264, 0.0
        %282 = vst.msk [vmem:[#allocation2 + $0x88] sm:$0xff] %vm264, 0.0
        %283 = vst.msk [vmem:[#allocation2 + $0x90] sm:$0xff] %vm264, 0.0
        %284 = vst.msk [vmem:[#allocation2 + $0x98] sm:$0xff] %vm264, 0.0
        %285 = vst.msk [vmem:[#allocation2 + $0xa0] sm:$0xff] %vm264, 0.0
        %286 = vst.msk [vmem:[#allocation2 + $0xa8] sm:$0xff] %vm264, 0.0
        %287 = vst.msk [vmem:[#allocation2 + $0xb0] sm:$0xff] %vm264, 0.0
        %288 = vst.msk [vmem:[#allocation2 + $0xb8] sm:$0xff] %vm264, 0.0
        %289 = vst.msk [vmem:[#allocation2 + $0xc0] sm:$0xff] %vm264, 0.0
        %290 = vst.msk [vmem:[#allocation2 + $0xc8] sm:$0xff] %vm264, 0.0
        %291 = vst.msk [vmem:[#allocation2 + $0xd0] sm:$0xff] %vm264, 0.0
        %292 = vst.msk [vmem:[#allocation2 + $0xd8] sm:$0xff] %vm264, 0.0
        %293 = vst.msk [vmem:[#allocation2 + $0xe0] sm:$0xff] %vm264, 0.0
        %294 = vst.msk [vmem:[#allocation2 + $0xe8] sm:$0xff] %vm264, 0.0
        %295 = vst.msk [vmem:[#allocation2 + $0xf0] sm:$0xff] %vm264, 0.0
        %296 = vst.msk [vmem:[#allocation2 + $0xf8] sm:$0xff] %vm264, 0.0
      $region36: #{setr_pup_forward.31} parent=31 // pred_fallthru
        _
      %v297 = vld [vmem:[%s236] sm:$0xf]
      %v298 = vld [vmem:[%s236 + $0x4] sm:$0xf]
      %v299 = vld [vmem:[%s236 + $0x8] sm:$0xf]
      %v300 = vld [vmem:[%s236 + $0xc] sm:$0xf]
      %v301 = vld [vmem:[%s236 + $0x10] sm:$0xf]
      %v302 = vld [vmem:[%s236 + $0x14] sm:$0xf]
      %v303 = vld [vmem:[%s236 + $0x18] sm:$0xf]
      %v304 = vld [vmem:[%s236 + $0x1c] sm:$0xf]
      %v305 = vld [vmem:[%s236 + $0x20] sm:$0xf]
      %v306 = vld [vmem:[%s236 + $0x24] sm:$0xf]
      %v307 = vld [vmem:[%s236 + $0x28] sm:$0xf]
      %v308 = vld [vmem:[%s236 + $0x2c] sm:$0xf]
      %v309 = vld [vmem:[%s236 + $0x30] sm:$0xf]
      %v310 = vld [vmem:[%s236 + $0x34] sm:$0xf]
      %v311 = vld [vmem:[%s236 + $0x38] sm:$0xf]
      %v312 = vld [vmem:[%s236 + $0x3c] sm:$0xf]
      %v313 = vld [vmem:[%s236 + $0x40] sm:$0xf]
      %v314 = vld [vmem:[%s236 + $0x44] sm:$0xf]
      %v315 = vld [vmem:[%s236 + $0x48] sm:$0xf]
      %v316 = vld [vmem:[%s236 + $0x4c] sm:$0xf]
      %v317 = vld [vmem:[%s236 + $0x50] sm:$0xf]
      %v318 = vld [vmem:[%s236 + $0x54] sm:$0xf]
      %v319 = vld [vmem:[%s236 + $0x58] sm:$0xf]
      %v320 = vld [vmem:[%s236 + $0x5c] sm:$0xf]
      %v321 = vld [vmem:[%s236 + $0x60] sm:$0xf]
      %v322 = vld [vmem:[%s236 + $0x64] sm:$0xf]
      %v323 = vld [vmem:[%s236 + $0x68] sm:$0xf]
      %v324 = vld [vmem:[%s236 + $0x6c] sm:$0xf]
      %v325 = vld [vmem:[%s236 + $0x70] sm:$0xf]
      %v326 = vld [vmem:[%s236 + $0x74] sm:$0xf]
      %v327 = vld [vmem:[%s236 + $0x78] sm:$0xf]
      %v328 = vld [vmem:[%s236 + $0x7c] sm:$0xf]
      %v329 = vld [vmem:[#allocation2] sm:$0xff]
      %v330 = vld [vmem:[#allocation2 + $0x8] sm:$0xff]
      %v331 = vld [vmem:[#allocation2 + $0x10] sm:$0xff]
      %v332 = vld [vmem:[#allocation2 + $0x18] sm:$0xff]
      %v333 = vld [vmem:[#allocation2 + $0x20] sm:$0xff]
      %v334 = vld [vmem:[#allocation2 + $0x28] sm:$0xff]
      %v335 = vld [vmem:[#allocation2 + $0x30] sm:$0xff]
      %v336 = vld [vmem:[#allocation2 + $0x38] sm:$0xff]
      %v337 = vld [vmem:[#allocation2 + $0x40] sm:$0xff]
      %v338 = vld [vmem:[#allocation2 + $0x48] sm:$0xff]
      %v339 = vld [vmem:[#allocation2 + $0x50] sm:$0xff]
      %v340 = vld [vmem:[#allocation2 + $0x58] sm:$0xff]
      %v341 = vld [vmem:[#allocation2 + $0x60] sm:$0xff]
      %v342 = vld [vmem:[#allocation2 + $0x68] sm:$0xff]
      %v343 = vld [vmem:[#allocation2 + $0x70] sm:$0xff]
      %v344 = vld [vmem:[#allocation2 + $0x78] sm:$0xff]
      %v345 = vld [vmem:[#allocation2 + $0x80] sm:$0xff]
      %v346 = vld [vmem:[#allocation2 + $0x88] sm:$0xff]
      %v347 = vld [vmem:[#allocation2 + $0x90] sm:$0xff]
      %v348 = vld [vmem:[#allocation2 + $0x98] sm:$0xff]
      %v349 = vld [vmem:[#allocation2 + $0xa0] sm:$0xff]
      %v350 = vld [vmem:[#allocation2 + $0xa8] sm:$0xff]
      %v351 = vld [vmem:[#allocation2 + $0xb0] sm:$0xff]
      %v352 = vld [vmem:[#allocation2 + $0xb8] sm:$0xff]
      %v353 = vld [vmem:[#allocation2 + $0xc0] sm:$0xff]
      %v354 = vld [vmem:[#allocation2 + $0xc8] sm:$0xff]
      %v355 = vld [vmem:[#allocation2 + $0xd0] sm:$0xff]
      %v356 = vld [vmem:[#allocation2 + $0xd8] sm:$0xff]
      %v357 = vld [vmem:[#allocation2 + $0xe0] sm:$0xff]
      %v358 = vld [vmem:[#allocation2 + $0xe8] sm:$0xff]
      %v359 = vld [vmem:[#allocation2 + $0xf0] sm:$0xff]
      %v360 = vld [vmem:[#allocation2 + $0xf8] sm:$0xff]
      %v361 = vld [vmem:[%s245] sm:$0xf]
      %v362 = vld [vmem:[%s245 + $0x4] sm:$0xf]
      %v395 = vunpack.c.l.b16 %v297
      %v396 = vunpack.c.l.b16 %v298
      %v397 = vunpack.c.l.b16 %v299
      %v398 = vunpack.c.l.b16 %v300
      %v399 = vunpack.c.l.b16 %v301
      %v400 = vunpack.c.l.b16 %v302
      %v401 = vunpack.c.l.b16 %v303
      %v402 = vunpack.c.l.b16 %v304
      %v403 = vunpack.c.l.b16 %v305
      %v404 = vunpack.c.l.b16 %v306
      %v405 = vunpack.c.l.b16 %v307
      %v406 = vunpack.c.l.b16 %v308
      %v407 = vunpack.c.l.b16 %v309
      %v408 = vunpack.c.l.b16 %v310
      %v409 = vunpack.c.l.b16 %v311
      %v410 = vunpack.c.l.b16 %v312
      %v411 = vunpack.c.l.b16 %v313
      %v412 = vunpack.c.l.b16 %v314
      %v413 = vunpack.c.l.b16 %v315
      %v414 = vunpack.c.l.b16 %v316
      %v415 = vunpack.c.l.b16 %v317
      %v416 = vunpack.c.l.b16 %v318
      %v417 = vunpack.c.l.b16 %v319
      %v418 = vunpack.c.l.b16 %v320
      %v419 = vunpack.c.l.b16 %v321
      %v420 = vunpack.c.l.b16 %v322
      %v421 = vunpack.c.l.b16 %v323
      %v422 = vunpack.c.l.b16 %v324
      %v423 = vunpack.c.l.b16 %v325
      %v424 = vunpack.c.l.b16 %v326
      %v425 = vunpack.c.l.b16 %v327
      %v426 = vunpack.c.l.b16 %v328
      %v427 = vpack.c.b16 %v396, %v395
      %v428 = vpack.c.b16 %v398, %v397
      %v429 = vpack.c.b16 %v400, %v399
      %v430 = vpack.c.b16 %v402, %v401
      %v431 = vpack.c.b16 %v404, %v403
      %v432 = vpack.c.b16 %v406, %v405
      %v433 = vpack.c.b16 %v408, %v407
      %v434 = vpack.c.b16 %v410, %v409
      %v435 = vpack.c.b16 %v412, %v411
      %v436 = vpack.c.b16 %v414, %v413
      %v437 = vpack.c.b16 %v416, %v415
      %v438 = vpack.c.b16 %v418, %v417
      %v439 = vpack.c.b16 %v420, %v419
      %v440 = vpack.c.b16 %v422, %v421
      %v441 = vpack.c.b16 %v424, %v423
      %v442 = vpack.c.b16 %v426, %v425
      %v445 = vunpack.c.l.b16 %v361
      %v446 = vunpack.c.l.b16 %v362
      %v447 = vpack.c.b16 %v446, %v445
      %vm449 = vcmask 130048
      %v451 = vsel %vm449, %v427, 0
      %v454 = vsel %vm449, %v428, 0
      %v457 = vsel %vm449, %v429, 0
      %v460 = vsel %vm449, %v430, 0
      %v463 = vsel %vm449, %v431, 0
      %v466 = vsel %vm449, %v432, 0
      %v469 = vsel %vm449, %v433, 0
      %v472 = vsel %vm449, %v434, 0
      %v475 = vsel %vm449, %v435, 0
      %v478 = vsel %vm449, %v436, 0
      %v481 = vsel %vm449, %v437, 0
      %v484 = vsel %vm449, %v438, 0
      %v487 = vsel %vm449, %v439, 0
      %v490 = vsel %vm449, %v440, 0
      %v493 = vsel %vm449, %v441, 0
      %v496 = vsel %vm449, %v442, 0
      %498 = vmatprep.subr.bf16.mxu0 0
      %499 = vmatpush1.bf16.msra.mxu0 %v447
      %500 = vmatprep.subr.bf16.mxu0 0
      %501 = vmatpush1.bf16.msra.mxu0 0
      %502 = vmatprep.subr.bf16.mxu0 0
      %503 = vmatpush1.bf16.msra.mxu0 0
      %504 = vmatprep.subr.bf16.mxu0 0
      %505 = vmatpush1.bf16.msra.mxu0 0
      %506 = vmatprep.subr.bf16.mxu0 0
      %507 = vmatpush1.bf16.msra.mxu0 0
      %508 = vmatprep.subr.bf16.mxu0 0
      %509 = vmatpush1.bf16.msra.mxu0 0
      %510 = vmatprep.subr.bf16.mxu0 0
      %511 = vmatpush1.bf16.msra.mxu0 0
      %512 = vmatprep.subr.bf16.mxu0 0
      %513 = vmatpush1.bf16.msra.mxu0 0
      %514 = vmatprep.subr.bf16.mxu0 0
      %515 = vmatpush1.bf16.msra.mxu0 0
      %516 = vmatprep.subr.bf16.mxu0 0
      %517 = vmatpush1.bf16.msra.mxu0 0
      %518 = vmatprep.subr.bf16.mxu0 0
      %519 = vmatpush1.bf16.msra.mxu0 0
      %520 = vmatprep.subr.bf16.mxu0 0
      %521 = vmatpush1.bf16.msra.mxu0 0
      %522 = vmatprep.subr.bf16.mxu0 0
      %523 = vmatpush1.bf16.msra.mxu0 0
      %524 = vmatprep.subr.bf16.mxu0 0
      %525 = vmatpush1.bf16.msra.mxu0 0
      %526 = vmatprep.subr.bf16.mxu0 0
      %527 = vmatpush1.bf16.msra.mxu0 0
      %528 = vmatprep.subr.bf16.mxu0 0
      %529 = vmatpush1.bf16.msra.mxu0 0
      %530 = vmatprep.mubr.bf16.mxu0 0
      %531 = vmatmul.mubr.bf16.gmra.mrb[0].mxu0 %v451
      %v532 = vpop.f32.mrb[0].mxu0
      %v533 = vadd.f32 0.0, %v532
      %v534 = vpop.f32.mrb[0].mxu0
      %v535 = vpop.f32.mrb[0].mxu0
      %v536 = vadd.f32 0.0, %v535
      %v537 = vpop.f32.mrb[0].mxu0
      %538 = vmatprep.mubr.bf16.mxu0 0
      %539 = vmatmul.mubr.bf16.gmra.mrb[0].mxu0 %v454
      %v540 = vpop.f32.mrb[0].mxu0
      %v541 = vadd.f32 0.0, %v540
      %v542 = vpop.f32.mrb[0].mxu0
      %v543 = vpop.f32.mrb[0].mxu0
      %v544 = vadd.f32 0.0, %v543
      %v545 = vpop.f32.mrb[0].mxu0
      %546 = vmatprep.mubr.bf16.mxu0 0
      %547 = vmatmul.mubr.bf16.gmra.mrb[0].mxu0 %v457
      %v548 = vpop.f32.mrb[0].mxu0
      %v549 = vadd.f32 0.0, %v548
      %v550 = vpop.f32.mrb[0].mxu0
      %v551 = vpop.f32.mrb[0].mxu0
      %v552 = vadd.f32 0.0, %v551
      %v553 = vpop.f32.mrb[0].mxu0
      %554 = vmatprep.mubr.bf16.mxu0 0
      %555 = vmatmul.mubr.bf16.gmra.mrb[0].mxu0 %v460
      %v556 = vpop.f32.mrb[0].mxu0
      %v557 = vadd.f32 0.0, %v556
      %v558 = vpop.f32.mrb[0].mxu0
      %v559 = vpop.f32.mrb[0].mxu0
      %v560 = vadd.f32 0.0, %v559
      %v561 = vpop.f32.mrb[0].mxu0
      %562 = vmatprep.mubr.bf16.mxu0 0
      %563 = vmatmul.mubr.bf16.gmra.mrb[0].mxu0 %v463
      %v564 = vpop.f32.mrb[0].mxu0
      %v565 = vadd.f32 0.0, %v564
      %v566 = vpop.f32.mrb[0].mxu0
      %v567 = vpop.f32.mrb[0].mxu0
      %v568 = vadd.f32 0.0, %v567
      %v569 = vpop.f32.mrb[0].mxu0
      %570 = vmatprep.mubr.bf16.mxu0 0
      %571 = vmatmul.mubr.bf16.gmra.mrb[0].mxu0 %v466
      %v572 = vpop.f32.mrb[0].mxu0
      %v573 = vadd.f32 0.0, %v572
      %v574 = vpop.f32.mrb[0].mxu0
      %v575 = vpop.f32.mrb[0].mxu0
      %v576 = vadd.f32 0.0, %v575
      %v577 = vpop.f32.mrb[0].mxu0
      %578 = vmatprep.mubr.bf16.mxu0 0
      %579 = vmatmul.mubr.bf16.gmra.mrb[0].mxu0 %v469
      %v580 = vpop.f32.mrb[0].mxu0
      %v581 = vadd.f32 0.0, %v580
      %v582 = vpop.f32.mrb[0].mxu0
      %v583 = vpop.f32.mrb[0].mxu0
      %v584 = vadd.f32 0.0, %v583
      %v585 = vpop.f32.mrb[0].mxu0
      %586 = vmatprep.mubr.bf16.mxu0 0
      %587 = vmatmul.mubr.bf16.gmra.mrb[0].mxu0 %v472
      %v588 = vpop.f32.mrb[0].mxu0
      %v589 = vadd.f32 0.0, %v588
      %v590 = vpop.f32.mrb[0].mxu0
      %v591 = vpop.f32.mrb[0].mxu0
      %v592 = vadd.f32 0.0, %v591
      %v593 = vpop.f32.mrb[0].mxu0
      %594 = vmatprep.mubr.bf16.mxu0 0
      %595 = vmatmul.mubr.bf16.gmra.mrb[0].mxu0 %v475
      %v596 = vpop.f32.mrb[0].mxu0
      %v597 = vadd.f32 0.0, %v596
      %v598 = vpop.f32.mrb[0].mxu0
      %v599 = vpop.f32.mrb[0].mxu0
      %v600 = vadd.f32 0.0, %v599
      %v601 = vpop.f32.mrb[0].mxu0
      %602 = vmatprep.mubr.bf16.mxu0 0
      %603 = vmatmul.mubr.bf16.gmra.mrb[0].mxu0 %v478
      %v604 = vpop.f32.mrb[0].mxu0
      %v605 = vadd.f32 0.0, %v604
      %v606 = vpop.f32.mrb[0].mxu0
      %v607 = vpop.f32.mrb[0].mxu0
      %v608 = vadd.f32 0.0, %v607
      %v609 = vpop.f32.mrb[0].mxu0
      %610 = vmatprep.mubr.bf16.mxu0 0
      %611 = vmatmul.mubr.bf16.gmra.mrb[0].mxu0 %v481
      %v612 = vpop.f32.mrb[0].mxu0
      %v613 = vadd.f32 0.0, %v612
      %v614 = vpop.f32.mrb[0].mxu0
      %v615 = vpop.f32.mrb[0].mxu0
      %v616 = vadd.f32 0.0, %v615
      %v617 = vpop.f32.mrb[0].mxu0
      %618 = vmatprep.mubr.bf16.mxu0 0
      %619 = vmatmul.mubr.bf16.gmra.mrb[0].mxu0 %v484
      %v620 = vpop.f32.mrb[0].mxu0
      %v621 = vadd.f32 0.0, %v620
      %v622 = vpop.f32.mrb[0].mxu0
      %v623 = vpop.f32.mrb[0].mxu0
      %v624 = vadd.f32 0.0, %v623
      %v625 = vpop.f32.mrb[0].mxu0
      %626 = vmatprep.mubr.bf16.mxu0 0
      %627 = vmatmul.mubr.bf16.gmra.mrb[0].mxu0 %v487
      %v628 = vpop.f32.mrb[0].mxu0
      %v629 = vadd.f32 0.0, %v628
      %v630 = vpop.f32.mrb[0].mxu0
      %v631 = vpop.f32.mrb[0].mxu0
      %v632 = vadd.f32 0.0, %v631
      %v633 = vpop.f32.mrb[0].mxu0
      %634 = vmatprep.mubr.bf16.mxu0 0
      %635 = vmatmul.mubr.bf16.gmra.mrb[0].mxu0 %v490
      %v636 = vpop.f32.mrb[0].mxu0
      %v637 = vadd.f32 0.0, %v636
      %v638 = vpop.f32.mrb[0].mxu0
      %v639 = vpop.f32.mrb[0].mxu0
      %v640 = vadd.f32 0.0, %v639
      %v641 = vpop.f32.mrb[0].mxu0
      %642 = vmatprep.mubr.bf16.mxu0 0
      %643 = vmatmul.mubr.bf16.gmra.mrb[0].mxu0 %v493
      %v644 = vpop.f32.mrb[0].mxu0
      %v645 = vadd.f32 0.0, %v644
      %v646 = vpop.f32.mrb[0].mxu0
      %v647 = vpop.f32.mrb[0].mxu0
      %v648 = vadd.f32 0.0, %v647
      %v649 = vpop.f32.mrb[0].mxu0
      %650 = vmatprep.mubr.bf16.mxu0 0
      %651 = vmatmul.mubr.bf16.gmra.mrb[0].mxu0 %v496
      %v652 = vpop.f32.mrb[0].mxu0
      %v653 = vadd.f32 0.0, %v652
      %v654 = vpop.f32.mrb[0].mxu0
      %v655 = vpop.f32.mrb[0].mxu0
      %v656 = vadd.f32 0.0, %v655
      %v657 = vpop.f32.mrb[0].mxu0
      %658 = vdwg.mxu0
      %v659 = vadd.f32 %v329, %v533
      %v660 = vadd.f32 %v330, %v536
      %v661 = vadd.f32 %v331, %v541
      %v662 = vadd.f32 %v332, %v544
      %v663 = vadd.f32 %v333, %v549
      %v664 = vadd.f32 %v334, %v552
      %v665 = vadd.f32 %v335, %v557
      %v666 = vadd.f32 %v336, %v560
      %v667 = vadd.f32 %v337, %v565
      %v668 = vadd.f32 %v338, %v568
      %v669 = vadd.f32 %v339, %v573
      %v670 = vadd.f32 %v340, %v576
      %v671 = vadd.f32 %v341, %v581
      %v672 = vadd.f32 %v342, %v584
      %v673 = vadd.f32 %v343, %v589
      %v674 = vadd.f32 %v344, %v592
      %v675 = vadd.f32 %v345, %v597
      %v676 = vadd.f32 %v346, %v600
      %v677 = vadd.f32 %v347, %v605
      %v678 = vadd.f32 %v348, %v608
      %v679 = vadd.f32 %v349, %v613
      %v680 = vadd.f32 %v350, %v616
      %v681 = vadd.f32 %v351, %v621
      %v682 = vadd.f32 %v352, %v624
      %v683 = vadd.f32 %v353, %v629
      %v684 = vadd.f32 %v354, %v632
      %v685 = vadd.f32 %v355, %v637
      %v686 = vadd.f32 %v356, %v640
      %v687 = vadd.f32 %v357, %v645
      %v688 = vadd.f32 %v358, %v648
      %v689 = vadd.f32 %v359, %v653
      %v690 = vadd.f32 %v360, %v656
      %vm691 = vcmask 23552
      %692 = vst.msk [vmem:[#allocation2] sm:$0xff] %vm691, %v659
      %693 = vst.msk [vmem:[#allocation2 + $0x8] sm:$0xff] %vm691, %v660
      %694 = vst.msk [vmem:[#allocation2 + $0x10] sm:$0xff] %vm691, %v661
      %695 = vst.msk [vmem:[#allocation2 + $0x18] sm:$0xff] %vm691, %v662
      %696 = vst.msk [vmem:[#allocation2 + $0x20] sm:$0xff] %vm691, %v663
      %697 = vst.msk [vmem:[#allocation2 + $0x28] sm:$0xff] %vm691, %v664
      %698 = vst.msk [vmem:[#allocation2 + $0x30] sm:$0xff] %vm691, %v665
      %699 = vst.msk [vmem:[#allocation2 + $0x38] sm:$0xff] %vm691, %v666
      %700 = vst.msk [vmem:[#allocation2 + $0x40] sm:$0xff] %vm691, %v667
      %701 = vst.msk [vmem:[#allocation2 + $0x48] sm:$0xff] %vm691, %v668
      %702 = vst.msk [vmem:[#allocation2 + $0x50] sm:$0xff] %vm691, %v669
      %703 = vst.msk [vmem:[#allocation2 + $0x58] sm:$0xff] %vm691, %v670
      %704 = vst.msk [vmem:[#allocation2 + $0x60] sm:$0xff] %vm691, %v671
      %705 = vst.msk [vmem:[#allocation2 + $0x68] sm:$0xff] %vm691, %v672
      %706 = vst.msk [vmem:[#allocation2 + $0x70] sm:$0xff] %vm691, %v673
      %707 = vst.msk [vmem:[#allocation2 + $0x78] sm:$0xff] %vm691, %v674
      %708 = vst.msk [vmem:[#allocation2 + $0x80] sm:$0xff] %vm691, %v675
      %709 = vst.msk [vmem:[#allocation2 + $0x88] sm:$0xff] %vm691, %v676
      %710 = vst.msk [vmem:[#allocation2 + $0x90] sm:$0xff] %vm691, %v677
      %711 = vst.msk [vmem:[#allocation2 + $0x98] sm:$0xff] %vm691, %v678
      %712 = vst.msk [vmem:[#allocation2 + $0xa0] sm:$0xff] %vm691, %v679
      %713 = vst.msk [vmem:[#allocation2 + $0xa8] sm:$0xff] %vm691, %v680
      %714 = vst.msk [vmem:[#allocation2 + $0xb0] sm:$0xff] %vm691, %v681
      %715 = vst.msk [vmem:[#allocation2 + $0xb8] sm:$0xff] %vm691, %v682
      %716 = vst.msk [vmem:[#allocation2 + $0xc0] sm:$0xff] %vm691, %v683
      %717 = vst.msk [vmem:[#allocation2 + $0xc8] sm:$0xff] %vm691, %v684
      %718 = vst.msk [vmem:[#allocation2 + $0xd0] sm:$0xff] %vm691, %v685
      %719 = vst.msk [vmem:[#allocation2 + $0xd8] sm:$0xff] %vm691, %v686
      %720 = vst.msk [vmem:[#allocation2 + $0xe0] sm:$0xff] %vm691, %v687
      %721 = vst.msk [vmem:[#allocation2 + $0xe8] sm:$0xff] %vm691, %v688
      %722 = vst.msk [vmem:[#allocation2 + $0xf0] sm:$0xff] %vm691, %v689
      %723 = vst.msk [vmem:[#allocation2 + $0xf8] sm:$0xff] %vm691, %v690
      // Predicated region
      $region37: #{setr_pup_forward.31} parent=31 // pred_check
        %p724 = pneg %p260
      $region38: #{setr_pup_forward.31} parent=31 // pred_check_branch
        %726 = sbr.rel (%p724) target = $region40
      $region39: #{setr_pup_forward.31} parent=31 // pred_region
        %v727 = vld [vmem:[#allocation2] sm:$0xff]
        %v728 = vld [vmem:[#allocation2 + $0x8] sm:$0xff]
        %v729 = vld [vmem:[#allocation2 + $0x10] sm:$0xff]
        %v730 = vld [vmem:[#allocation2 + $0x18] sm:$0xff]
        %v731 = vld [vmem:[#allocation2 + $0x20] sm:$0xff]
        %v732 = vld [vmem:[#allocation2 + $0x28] sm:$0xff]
        %v733 = vld [vmem:[#allocation2 + $0x30] sm:$0xff]
        %v734 = vld [vmem:[#allocation2 + $0x38] sm:$0xff]
        %v735 = vld [vmem:[#allocation2 + $0x40] sm:$0xff]
        %v736 = vld [vmem:[#allocation2 + $0x48] sm:$0xff]
        %v737 = vld [vmem:[#allocation2 + $0x50] sm:$0xff]
        %v738 = vld [vmem:[#allocation2 + $0x58] sm:$0xff]
        %v739 = vld [vmem:[#allocation2 + $0x60] sm:$0xff]
        %v740 = vld [vmem:[#allocation2 + $0x68] sm:$0xff]
        %v741 = vld [vmem:[#allocation2 + $0x70] sm:$0xff]
        %v742 = vld [vmem:[#allocation2 + $0x78] sm:$0xff]
        %v743 = vld [vmem:[#allocation2 + $0x80] sm:$0xff]
        %v744 = vld [vmem:[#allocation2 + $0x88] sm:$0xff]
        %v745 = vld [vmem:[#allocation2 + $0x90] sm:$0xff]
        %v746 = vld [vmem:[#allocation2 + $0x98] sm:$0xff]
        %v747 = vld [vmem:[#allocation2 + $0xa0] sm:$0xff]
        %v748 = vld [vmem:[#allocation2 + $0xa8] sm:$0xff]
        %v749 = vld [vmem:[#allocation2 + $0xb0] sm:$0xff]
        %v750 = vld [vmem:[#allocation2 + $0xb8] sm:$0xff]
        %v751 = vld [vmem:[#allocation2 + $0xc0] sm:$0xff]
        %v752 = vld [vmem:[#allocation2 + $0xc8] sm:$0xff]
        %v753 = vld [vmem:[#allocation2 + $0xd0] sm:$0xff]
        %v754 = vld [vmem:[#allocation2 + $0xd8] sm:$0xff]
        %v755 = vld [vmem:[#allocation2 + $0xe0] sm:$0xff]
        %v756 = vld [vmem:[#allocation2 + $0xe8] sm:$0xff]
        %v757 = vld [vmem:[#allocation2 + $0xf0] sm:$0xff]
        %v758 = vld [vmem:[#allocation2 + $0xf8] sm:$0xff]
        %v759 = vld [vmem:[%s249] sm:$0x1]
        %v761 = vlaneseq
        %v762 = vshrl.u32 %v761, 7
        %v763 = vsub.s32 0, %v762
        %v764 = vrot.slane %v759, %v763
        %v766 = vadd.f32 %v727, %v764
        %v767 = vadd.f32 %v728, %v764
        %v768 = vadd.f32 %v729, %v764
        %v769 = vadd.f32 %v730, %v764
        %v770 = vadd.f32 %v731, %v764
        %v771 = vadd.f32 %v732, %v764
        %v772 = vadd.f32 %v733, %v764
        %v773 = vadd.f32 %v734, %v764
        %v774 = vadd.f32 %v735, %v764
        %v775 = vadd.f32 %v736, %v764
        %v776 = vadd.f32 %v737, %v764
        %v777 = vadd.f32 %v738, %v764
        %v778 = vadd.f32 %v739, %v764
        %v779 = vadd.f32 %v740, %v764
        %v780 = vadd.f32 %v741, %v764
        %v781 = vadd.f32 %v742, %v764
        %v782 = vadd.f32 %v743, %v764
        %v783 = vadd.f32 %v744, %v764
        %v784 = vadd.f32 %v745, %v764
        %v785 = vadd.f32 %v746, %v764
        %v786 = vadd.f32 %v747, %v764
        %v787 = vadd.f32 %v748, %v764
        %v788 = vadd.f32 %v749, %v764
        %v789 = vadd.f32 %v750, %v764
        %v790 = vadd.f32 %v751, %v764
        %v791 = vadd.f32 %v752, %v764
        %v792 = vadd.f32 %v753, %v764
        %v793 = vadd.f32 %v754, %v764
        %v794 = vadd.f32 %v755, %v764
        %v795 = vadd.f32 %v756, %v764
        %v796 = vadd.f32 %v757, %v764
        %v797 = vadd.f32 %v758, %v764
        %798 = vst.msk [vmem:[%s257] sm:$0xff] %vm691, %v766
        %799 = vst.msk [vmem:[%s257 + $0x8] sm:$0xff] %vm691, %v767
        %800 = vst.msk [vmem:[%s257 + $0x10] sm:$0xff] %vm691, %v768
        %801 = vst.msk [vmem:[%s257 + $0x18] sm:$0xff] %vm691, %v769
        %802 = vst.msk [vmem:[%s257 + $0x20] sm:$0xff] %vm691, %v770
        %803 = vst.msk [vmem:[%s257 + $0x28] sm:$0xff] %vm691, %v771
        %804 = vst.msk [vmem:[%s257 + $0x30] sm:$0xff] %vm691, %v772
        %805 = vst.msk [vmem:[%s257 + $0x38] sm:$0xff] %vm691, %v773
        %806 = vst.msk [vmem:[%s257 + $0x40] sm:$0xff] %vm691, %v774
        %807 = vst.msk [vmem:[%s257 + $0x48] sm:$0xff] %vm691, %v775
        %808 = vst.msk [vmem:[%s257 + $0x50] sm:$0xff] %vm691, %v776
        %809 = vst.msk [vmem:[%s257 + $0x58] sm:$0xff] %vm691, %v777
        %810 = vst.msk [vmem:[%s257 + $0x60] sm:$0xff] %vm691, %v778
        %811 = vst.msk [vmem:[%s257 + $0x68] sm:$0xff] %vm691, %v779
        %812 = vst.msk [vmem:[%s257 + $0x70] sm:$0xff] %vm691, %v780
        %813 = vst.msk [vmem:[%s257 + $0x78] sm:$0xff] %vm691, %v781
        %814 = vst.msk [vmem:[%s257 + $0x80] sm:$0xff] %vm691, %v782
        %815 = vst.msk [vmem:[%s257 + $0x88] sm:$0xff] %vm691, %v783
        %816 = vst.msk [vmem:[%s257 + $0x90] sm:$0xff] %vm691, %v784
        %817 = vst.msk [vmem:[%s257 + $0x98] sm:$0xff] %vm691, %v785
        %818 = vst.msk [vmem:[%s257 + $0xa0] sm:$0xff] %vm691, %v786
        %819 = vst.msk [vmem:[%s257 + $0xa8] sm:$0xff] %vm691, %v787
        %820 = vst.msk [vmem:[%s257 + $0xb0] sm:$0xff] %vm691, %v788
        %821 = vst.msk [vmem:[%s257 + $0xb8] sm:$0xff] %vm691, %v789
        %822 = vst.msk [vmem:[%s257 + $0xc0] sm:$0xff] %vm691, %v790
        %823 = vst.msk [vmem:[%s257 + $0xc8] sm:$0xff] %vm691, %v791
        %824 = vst.msk [vmem:[%s257 + $0xd0] sm:$0xff] %vm691, %v792
        %825 = vst.msk [vmem:[%s257 + $0xd8] sm:$0xff] %vm691, %v793
        %826 = vst.msk [vmem:[%s257 + $0xe0] sm:$0xff] %vm691, %v794
        %827 = vst.msk [vmem:[%s257 + $0xe8] sm:$0xff] %vm691, %v795
        %828 = vst.msk [vmem:[%s257 + $0xf0] sm:$0xff] %vm691, %v796
        %829 = vst.msk [vmem:[%s257 + $0xf8] sm:$0xff] %vm691, %v797
      $region40: #{setr_pup_forward.31} parent=31 // pred_fallthru
        _
      %s830 = smul.u32 32, %s19
      %p831 = scmp.lt.s32.totalorder %s830, 63
      %s832 = scalar_select %p831, %s830, 63
      %p833 = scmp.lt.s32.totalorder %s20, 0
      %s834 = scalar_select %p833, %s20, 0
      %s835 = sadd.s32 %s834, %s832
      %s836 = smul.addr %s835, 8
      %s837 = scalar_lea.vmem %s3, %s836
      // Predicated region
      $region41: #{setr_pup_forward.31} parent=31 // pred_check
        %p838 = pneg %p135
      $region42: #{setr_pup_forward.31} parent=31 // pred_check_branch
        %840 = sbr.rel (%p838) target = $region44
      $region43: #{setr_pup_forward.31} parent=31 // pred_region
        %s841 = smul.u32 32, %s19
      $region44: #{setr_pup_forward.31} parent=31 // pred_fallthru
        _
    $region32: #{setr_pup_forward.31} parent=5 // pred_fallthru
      _
    %p842 = scmp.le.s32.totalorder 2, %s9
    // Predicated region
    $region45: #{setr_pup_forward.31} parent=5 // pred_check
      %p843 = pneg %p842
    $region46: #{setr_pup_forward.31} parent=5 // pred_check_branch
      %845 = sbr.rel (%p843) target = $region48
    $region47: #{setr_pup_forward.31} parent=5 // pred_region
      %s846 = ssub.s32 %s9, 2
      // Predicated region
      $region49: #{setr_pup_forward.31} parent=47 // pred_check
        %p847 = pneg %p141
      $region50: #{setr_pup_forward.31} parent=47 // pred_check_branch
        %849 = sbr.rel (%p847) target = $region52
      $region51: #{setr_pup_forward.31} parent=47 // pred_region
        %s850 = smul.u32 32, %s22
        %p851 = scmp.lt.s32.totalorder %s850, 63
        %s852 = scalar_select %p851, %s850, 63
        %p853 = scmp.lt.s32.totalorder %s23, 0
        %s854 = scalar_select %p853, %s23, 0
        %s855 = sadd.s32 %s854, %s852
        %s856 = smul.addr %s855, 8
        %s857 = scalar_lea.vmem %s3, %s856
      $region52: #{setr_pup_forward.31} parent=47 // pred_fallthru
        _
    $region48: #{setr_pup_forward.31} parent=5 // pred_fallthru
      _
  $region6: #{setr_pup_forward.31} parent=0 // loop_footer
    %s13 = sadd.s32 1, %s9
  $region7: #{setr_pup_forward.31} parent=0 // loop_footer_branch
    %8 = sbr.rel target = $region3
  $region8: #{setr_pup_forward.31} parent=0 // loop_exit
    _

</llo_original>
